<compile_context>
chip_gen: v7x
topology: tpu7x:2x2x1
jax: 0.10.0
libtpu: 0.0.40
codegen_flags: <defaults>
</compile_context>

<pallas_src>
import functools

import jax
import jax.numpy as jnp
from jax.experimental import pallas as pl
from jax.experimental.pallas import tpu as pltpu

LANES = 128       # TPU lane width: last dims padded to multiples of this
COUT_PAD = 128    # all conv outputs carried at 128 lane-dense channels


# ----------------------------------------------------------------------------
# Helpers
# ----------------------------------------------------------------------------
def _round_up(x, m):
    return (x + m - 1) // m * m


def _choose_tm(m):
    """Pick an M-tile: large enough to feed the MXU, small enough that the
    grid has >= 2 steps when possible (megacore sharding on v7x), and never
    padding tiny late-layer GEMMs up to 128 rows."""
    if m >= 512:
        return 256
    if m >= 256:
        return 128
    if m >= 16:
        return _round_up((m + 1) // 2, 8)
    return _round_up(m, 8)


def _im2col(x, kh, kw, stride, padding, pad_value=0.0):
    n, h, w, c = x.shape
    hout = (h + 2 * padding - kh) // stride + 1
    wout = (w + 2 * padding - kw) // stride + 1
    xp = jnp.pad(x, ((0, 0), (padding, padding), (padding, padding), (0, 0)),
                 constant_values=pad_value)
    cols = []
    for i in range(kh):
        for j in range(kw):
            cols.append(xp[:, i:i + stride * hout:stride,
                           j:j + stride * wout:stride, :])
    return cols, hout, wout


# ----------------------------------------------------------------------------
# Pallas kernels
# ----------------------------------------------------------------------------
def _gemm_bias_kernel(p_ref, w_ref, b_ref, o_ref, *, apply_relu):
    # bf16 x bf16 MXU matmul with f32 accumulation, fused BN-shift (+ ReLU).
    acc = jnp.dot(p_ref[...], w_ref[...], preferred_element_type=jnp.float32)
    acc = acc + b_ref[...]
    if apply_relu:
        acc = jnp.maximum(acc, 0.0)
    o_ref[...] = acc.astype(o_ref.dtype)


def _gemm_bias_res_kernel(p_ref, w_ref, b_ref, r_ref, o_ref, *, apply_relu):
    # Same as above, plus fused residual add (before ReLU), as in BasicBlock.
    acc = jnp.dot(p_ref[...], w_ref[...], preferred_element_type=jnp.float32)
    acc = acc + b_ref[...] + r_ref[...].astype(jnp.float32)
    if apply_relu:
        acc = jnp.maximum(acc, 0.0)
    o_ref[...] = acc.astype(o_ref.dtype)


def _fused_conv_gemm(patches, wmat, bias, residual, apply_relu, *, tm):
    m_pad, k = patches.shape
    _, cout = wmat.shape
    grid = (m_pad // tm,)
    in_specs = [
        pl.BlockSpec((tm, k), lambda i: (i, 0)),        # im2col patches (bf16)
        pl.BlockSpec((k, cout), lambda i: (0, 0)),      # BN-folded weight (bf16)
        pl.BlockSpec((1, cout), lambda i: (0, 0)),      # BN shift / bias (f32)
    ]
    args = [patches, wmat, bias]
    if residual is not None:
        kernel = functools.partial(_gemm_bias_res_kernel, apply_relu=apply_relu)
        in_specs.append(pl.BlockSpec((tm, cout), lambda i: (i, 0)))
        args.append(residual)
    else:
        kernel = functools.partial(_gemm_bias_kernel, apply_relu=apply_relu)
    return pl.pallas_call(
        kernel,
        out_shape=jax.ShapeDtypeStruct((m_pad, cout), jnp.bfloat16),
        grid=grid,
        in_specs=in_specs,
        out_specs=pl.BlockSpec((tm, cout), lambda i: (i, 0)),
        compiler_params=pltpu.CompilerParams(dimension_semantics=("parallel",)),
    )(*args)


def _maxpool_kernel(p_ref, o_ref):
    # p_ref: (9, TM, C) window taps stacked on the leading axis.
    o_ref[...] = jnp.max(p_ref[...], axis=0)


# ----------------------------------------------------------------------------
# Network building blocks
# ----------------------------------------------------------------------------
def conv_bn(x, p, *, stride, padding, relu, residual=None, eps=1e-5):
    """x: NHWC bf16 with lane-padded channels (padded channels are exactly 0).
    p: conv weight (kh,kw,cin_true,cout_true) + eval-mode BN parameters."""
    w = p["w"]
    kh, kw, cin_t, cout_t = w.shape
    n, _, _, cin_eff = x.shape

    # Fold eval-mode BN into the conv weight + a per-channel bias.
    scale = p["gamma"] * jax.lax.rsqrt(p["var"] + eps)
    shift = p["beta"] - p["mean"] * scale
    w_f = w * scale  # broadcast over the last (cout) axis

    # Lane-pad weights: cin -> cin_eff (input already carries zero channels),
    # cout -> COUT_PAD (padded outputs get zero weights & bias -> stay 0).
    cout_pad = max(COUT_PAD, _round_up(cout_t, LANES))
    w_f = jnp.pad(w_f, ((0, 0), (0, 0),
                        (0, cin_eff - cin_t), (0, cout_pad - cout_t)))
    bias = jnp.pad(shift, (0, cout_pad - cout_t)).reshape(1, cout_pad)
    bias = bias.astype(jnp.float32)

    # im2col patches: K = kh*kw*cin_eff, zero-padded to a lane multiple.
    cols, hout, wout = _im2col(x, kh, kw, stride, padding, 0.0)
    k_raw = kh * kw * cin_eff
    k_pad = _round_up(k_raw, LANES)
    m = n * hout * wout
    tm = _choose_tm(m)
    m_pad = _round_up(m, tm)
    patches = jnp.concatenate(cols, axis=-1).reshape(m, k_raw)
    patches = jnp.pad(patches, ((0, m_pad - m), (0, k_pad - k_raw)))
    patches = patches.astype(jnp.bfloat16)
    wmat = jnp.pad(w_f.reshape(k_raw, cout_pad), ((0, k_pad - k_raw), (0, 0)))
    wmat = wmat.astype(jnp.bfloat16)

    res = None
    if residual is not None:
        res = jnp.pad(residual.reshape(m, cout_pad),
                      ((0, m_pad - m), (0, 0))).astype(jnp.bfloat16)

    out = _fused_conv_gemm(patches, wmat, bias, res, relu, tm=tm)
    return out[:m].reshape(n, hout, wout, cout_pad)


def maxpool3x3s2(x):
    """MaxPool2d(kernel=3, stride=2, padding=1), -inf padding semantics."""
    n, _, _, c = x.shape
    cols, hout, wout = _im2col(x, 3, 3, 2, 1, pad_value=-1e30)
    m = n * hout * wout
    tm = _choose_tm(m)
    m_pad = _round_up(m, tm)
    stacked = jnp.stack([col.reshape(m, c) for col in cols], axis=0)
    stacked = jnp.pad(stacked, ((0, 0), (0, m_pad - m), (0, 0)),
                      constant_values=-1e30)
    out = pl.pallas_call(
        _maxpool_kernel,
        out_shape=jax.ShapeDtypeStruct((m_pad, c), x.dtype),
        grid=(m_pad // tm,),
        in_specs=[pl.BlockSpec((9, tm, c), lambda i: (0, i, 0))],
        out_specs=pl.BlockSpec((tm, c), lambda i: (i, 0)),
        compiler_params=pltpu.CompilerParams(dimension_semantics=("parallel",)),
    )(stacked)
    return out[:m].reshape(n, hout, wout, c)


def basic_block(x, bp, stride):
    if "down" in bp:
        identity = conv_bn(x, bp["down"], stride=stride, padding=0, relu=False)
    else:
        identity = x
    out = conv_bn(x, bp["conv1"], stride=stride, padding=1, relu=True)
    # second conv: BN + residual add + ReLU all fused inside the Pallas kernel
    out = conv_bn(out, bp["conv2"], stride=1, padding=1, relu=True,
                  residual=identity)
    return out


def my_resnet_forward(x_nchw, params):
    """Equivalent of myResnet.forward: stem + layer1..layer4 feature maps."""
    x = jnp.transpose(x_nchw, (0, 2, 3, 1)).astype(jnp.bfloat16)  # NCHW -> NHWC
    x = conv_bn(x, params["conv1"], stride=2, padding=3, relu=True)  # conv1+bn1+relu
    x = maxpool3x3s2(x)                                              # maxpool
    for layer_idx, layer in enumerate(params["layers"]):             # layer1..4
        layer_stride = 1 if layer_idx == 0 else 2
        for b_idx, bp in enumerate(layer):
            x = basic_block(x, bp, layer_stride if b_idx == 0 else 1)
    c_final = params["layers"][-1][-1]["conv2"]["w"].shape[-1]
    x = x[..., :c_final]                        # drop lane padding
    return jnp.transpose(x, (0, 3, 1, 2)).astype(jnp.float32)  # back to NCHW


# ----------------------------------------------------------------------------
# Deterministic synthetic parameters (small ResNet-18-like topology)
# ----------------------------------------------------------------------------
def _conv_bn_params(key, cin, cout, k):
    kw_, kg, kb, km, kv = jax.random.split(key, 5)
    fan_in = k * k * cin
    return {
        "w": jax.random.normal(kw_, (k, k, cin, cout), jnp.float32)
             * (1.0 / fan_in ** 0.5),
        "gamma": 1.0 + 0.1 * jax.random.normal(kg, (cout,), jnp.float32),
        "beta": 0.1 * jax.random.normal(kb, (cout,), jnp.float32),
        "mean": 0.1 * jax.random.normal(km, (cout,), jnp.float32),
        "var": 1.0 + 0.1 * jnp.abs(jax.random.normal(kv, (cout,), jnp.float32)),
    }


def init_params(key, base=16, blocks=(2, 2, 2, 2)):
    keys = iter(jax.random.split(key, 64))
    params = {"conv1": _conv_bn_params(next(keys), 3, base, 7), "layers": []}
    cin = base
    for li, nb in enumerate(blocks):
        cout = base * (2 ** li)
        layer = []
        for bi in range(nb):
            stride = (1 if li == 0 else 2) if bi == 0 else 1
            block = {
                "conv1": _conv_bn_params(next(keys), cin, cout, 3),
                "conv2": _conv_bn_params(next(keys), cout, cout, 3),
            }
            if stride != 1 or cin != cout:
                block["down"] = _conv_bn_params(next(keys), cin, cout, 1)
            layer.append(block)
            cin = cout
        params["layers"].append(layer)
    return params


if __name__ == "__main__":
    key = jax.random.PRNGKey(0)
    kx, kp = jax.random.split(key)
    x = jax.random.normal(kx, (2, 3, 32, 32), jnp.float32)  # NCHW input
    params = init_params(kp, base=16)

    fwd = jax.jit(lambda inp: my_resnet_forward(inp, params))
    out = fwd(x)
    jax.block_until_ready(out)

    # 32 -> conv1/2 -> 16 -> maxpool -> 8 -> layer2..4 strides -> 1; channels 16*8
    assert out.shape == (2, 128, 1, 1), out.shape
    assert out.dtype == jnp.float32
    print("KERNEL_OK")
</pallas_src>

<mosaic_0001>
module attributes {stable_mosaic.version = 11 : i64} {
  func.func @_gemm_bias_kernel(%arg0: i32, %arg1: memref<256x256xbf16, #tpu.memory_space<vmem>>, %arg2: memref<256x128xbf16, #tpu.memory_space<vmem>>, %arg3: memref<1x128xf32, #tpu.memory_space<vmem>>, %arg4: memref<256x128xbf16, #tpu.memory_space<vmem>>) attributes {dimension_semantics = [#tpu.dimension_semantics<parallel>], iteration_bounds = array<i64: 2>, scalar_prefetch = 0 : i64, scratch_operands = 0 : i64, tpu.core_type = #tpu.core_type<tc>, window_params = [{transform_indices = @transform_0, window_bounds = array<i64: 256, 256>}, {pipeline_mode = #tpu.pipeline_mode<synchronous>, transform_indices = @transform_1, window_bounds = array<i64: 256, 128>}, {pipeline_mode = #tpu.pipeline_mode<synchronous>, transform_indices = @transform_2, window_bounds = array<i64: 1, 128>}, {transform_indices = @transform_3, window_bounds = array<i64: 256, 128>}]} {
    %c0 = arith.constant 0 : index
    %c0_0 = arith.constant 0 : index
    %0 = vector.load %arg1[%c0, %c0_0] : memref<256x256xbf16, #tpu.memory_space<vmem>>, vector<256x256xbf16>
    %c0_1 = arith.constant 0 : index
    %c0_2 = arith.constant 0 : index
    %1 = vector.load %arg2[%c0_1, %c0_2] : memref<256x128xbf16, #tpu.memory_space<vmem>>, vector<256x128xbf16>
    %cst = arith.constant dense<0.000000e+00> : vector<256x128xf32>
    %2 = tpu.matmul %0, %1, %cst {dimension_numbers = #tpu.dot_dimension_numbers<[1], [0], [0], [1], [0, 0, 1, 1], [], []>} : vector<256x256xbf16>, vector<256x128xbf16>, vector<256x128xf32> -> vector<256x128xf32>
    %c0_3 = arith.constant 0 : index
    %c0_4 = arith.constant 0 : index
    %3 = vector.load %arg3[%c0_3, %c0_4] : memref<1x128xf32, #tpu.memory_space<vmem>>, vector<1x128xf32>
    %4 = vector.broadcast %3 : vector<1x128xf32> to vector<256x128xf32>
    %5 = arith.addf %2, %4 : vector<256x128xf32>
    %cst_5 = arith.constant 0.000000e+00 : f32
    %6 = vector.broadcast %cst_5 : f32 to vector<256x128xf32>
    %7 = arith.maximumf %5, %6 : vector<256x128xf32>
    %8 = arith.truncf %7 : vector<256x128xf32> to vector<256x128xbf16>
    %c0_6 = arith.constant 0 : index
    %c0_7 = arith.constant 0 : index
    %9 = vector.load %arg4[%c0_6, %c0_7] : memref<256x128xbf16, #tpu.memory_space<vmem>>, vector<256x128xbf16>
    tpu.vector_store %arg4[%c0_6, %c0_7], %8 {strides = array<i32>} : memref<256x128xbf16, #tpu.memory_space<vmem>>, vector<256x128xbf16>,
    return
  }
  func.func @transform_0(%arg0: i32) -> (i32, i32) {
    %c0_i32 = arith.constant 0 : i32
    %c0_i32_0 = arith.constant 0 : i32
    return %arg0, %c0_i32 : i32, i32
  }
  func.func @transform_1(%arg0: i32) -> (i32, i32) {
    %c0_i32 = arith.constant 0 : i32
    %c0_i32_0 = arith.constant 0 : i32
    %c0_i32_1 = arith.constant 0 : i32
    return %c0_i32, %c0_i32_0 : i32, i32
  }
  func.func @transform_2(%arg0: i32) -> (i32, i32) {
    %c0_i32 = arith.constant 0 : i32
    %c0_i32_0 = arith.constant 0 : i32
    %c0_i32_1 = arith.constant 0 : i32
    return %c0_i32, %c0_i32_0 : i32, i32
  }
  func.func @transform_3(%arg0: i32) -> (i32, i32) {
    %c0_i32 = arith.constant 0 : i32
    %c0_i32_0 = arith.constant 0 : i32
    return %arg0, %c0_i32 : i32, i32
  }
}

module attributes {stable_mosaic.version = 11 : i64} {
  func.func @_maxpool_kernel(%arg0: i32, %arg1: memref<9x64x128xbf16, #tpu.memory_space<vmem>>, %arg2: memref<64x128xbf16, #tpu.memory_space<vmem>>) attributes {dimension_semantics = [#tpu.dimension_semantics<parallel>], iteration_bounds = array<i64: 2>, scalar_prefetch = 0 : i64, scratch_operands = 0 : i64, tpu.core_type = #tpu.core_type<tc>, window_params = [{transform_indices = @transform_0, window_bounds = array<i64: 9, 64, 128>}, {transform_indices = @transform_1, window_bounds = array<i64: 64, 128>}]} {
    %c0 = arith.constant 0 : index
    %c0_0 = arith.constant 0 : index
    %c0_1 = arith.constant 0 : index
    %0 = vector.load %arg1[%c0, %c0_0, %c0_1] : memref<9x64x128xbf16, #tpu.memory_space<vmem>>, vector<9x64x128xbf16>
    %cst = arith.constant dense<0xFF80> : vector<64x128xbf16>
    %1 = vector.multi_reduction <maximumf>, %0, %cst [0] : vector<9x64x128xbf16> to vector<64x128xbf16>
    %c0_2 = arith.constant 0 : index
    %c0_3 = arith.constant 0 : index
    %2 = vector.load %arg2[%c0_2, %c0_3] : memref<64x128xbf16, #tpu.memory_space<vmem>>, vector<64x128xbf16>
    tpu.vector_store %arg2[%c0_2, %c0_3], %1 {strides = array<i32>} : memref<64x128xbf16, #tpu.memory_space<vmem>>, vector<64x128xbf16>,
    return
  }
  func.func @transform_0(%arg0: i32) -> (i32, i32, i32) {
    %c0_i32 = arith.constant 0 : i32
    %c0_i32_0 = arith.constant 0 : i32
    %c0_i32_1 = arith.constant 0 : i32
    return %c0_i32, %arg0, %c0_i32_0 : i32, i32, i32
  }
  func.func @transform_1(%arg0: i32) -> (i32, i32) {
    %c0_i32 = arith.constant 0 : i32
    %c0_i32_0 = arith.constant 0 : i32
    return %arg0, %c0_i32 : i32, i32
  }
}

module attributes {stable_mosaic.version = 11 : i64} {
  func.func @_gemm_bias_kernel(%arg0: i32, %arg1: memref<64x1152xbf16, #tpu.memory_space<vmem>>, %arg2: memref<1152x128xbf16, #tpu.memory_space<vmem>>, %arg3: memref<1x128xf32, #tpu.memory_space<vmem>>, %arg4: memref<64x128xbf16, #tpu.memory_space<vmem>>) attributes {dimension_semantics = [#tpu.dimension_semantics<parallel>], iteration_bounds = array<i64: 2>, scalar_prefetch = 0 : i64, scratch_operands = 0 : i64, tpu.core_type = #tpu.core_type<tc>, window_params = [{transform_indices = @transform_0, window_bounds = array<i64: 64, 1152>}, {pipeline_mode = #tpu.pipeline_mode<synchronous>, transform_indices = @transform_1, window_bounds = array<i64: 1152, 128>}, {pipeline_mode = #tpu.pipeline_mode<synchronous>, transform_indices = @transform_2, window_bounds = array<i64: 1, 128>}, {transform_indices = @transform_3, window_bounds = array<i64: 64, 128>}]} {
    %c0 = arith.constant 0 : index
    %c0_0 = arith.constant 0 : index
    %0 = vector.load %arg1[%c0, %c0_0] : memref<64x1152xbf16, #tpu.memory_space<vmem>>, vector<64x1152xbf16>
    %c0_1 = arith.constant 0 : index
    %c0_2 = arith.constant 0 : index
    %1 = vector.load %arg2[%c0_1, %c0_2] : memref<1152x128xbf16, #tpu.memory_space<vmem>>, vector<1152x128xbf16>
    %cst = arith.constant dense<0.000000e+00> : vector<64x128xf32>
    %2 = tpu.matmul %0, %1, %cst {dimension_numbers = #tpu.dot_dimension_numbers<[1], [0], [0], [1], [0, 0, 1, 1], [], []>} : vector<64x1152xbf16>, vector<1152x128xbf16>, vector<64x128xf32> -> vector<64x128xf32>
    %c0_3 = arith.constant 0 : index
    %c0_4 = arith.constant 0 : index
    %3 = vector.load %arg3[%c0_3, %c0_4] : memref<1x128xf32, #tpu.memory_space<vmem>>, vector<1x128xf32>
    %4 = vector.broadcast %3 : vector<1x128xf32> to vector<64x128xf32>
    %5 = arith.addf %2, %4 : vector<64x128xf32>
    %cst_5 = arith.constant 0.000000e+00 : f32
    %6 = vector.broadcast %cst_5 : f32 to vector<64x128xf32>
    %7 = arith.maximumf %5, %6 : vector<64x128xf32>
    %8 = arith.truncf %7 : vector<64x128xf32> to vector<64x128xbf16>
    %c0_6 = arith.constant 0 : index
    %c0_7 = arith.constant 0 : index
    %9 = vector.load %arg4[%c0_6, %c0_7] : memref<64x128xbf16, #tpu.memory_space<vmem>>, vector<64x128xbf16>
    tpu.vector_store %arg4[%c0_6, %c0_7], %8 {strides = array<i32>} : memref<64x128xbf16, #tpu.memory_space<vmem>>, vector<64x128xbf16>,
    return
  }
  func.func @transform_0(%arg0: i32) -> (i32, i32) {
    %c0_i32 = arith.constant 0 : i32
    %c0_i32_0 = arith.constant 0 : i32
    return %arg0, %c0_i32 : i32, i32
  }
  func.func @transform_1(%arg0: i32) -> (i32, i32) {
    %c0_i32 = arith.constant 0 : i32
    %c0_i32_0 = arith.constant 0 : i32
    %c0_i32_1 = arith.constant 0 : i32
    return %c0_i32, %c0_i32_0 : i32, i32
  }
  func.func @transform_2(%arg0: i32) -> (i32, i32) {
    %c0_i32 = arith.constant 0 : i32
    %c0_i32_0 = arith.constant 0 : i32
    %c0_i32_1 = arith.constant 0 : i32
    return %c0_i32, %c0_i32_0 : i32, i32
  }
  func.func @transform_3(%arg0: i32) -> (i32, i32) {
    %c0_i32 = arith.constant 0 : i32
    %c0_i32_0 = arith.constant 0 : i32
    return %arg0, %c0_i32 : i32, i32
  }
}

module attributes {stable_mosaic.version = 11 : i64} {
  func.func @_gemm_bias_res_kernel(%arg0: i32, %arg1: memref<64x1152xbf16, #tpu.memory_space<vmem>>, %arg2: memref<1152x128xbf16, #tpu.memory_space<vmem>>, %arg3: memref<1x128xf32, #tpu.memory_space<vmem>>, %arg4: memref<64x128xbf16, #tpu.memory_space<vmem>>, %arg5: memref<64x128xbf16, #tpu.memory_space<vmem>>) attributes {dimension_semantics = [#tpu.dimension_semantics<parallel>], iteration_bounds = array<i64: 2>, scalar_prefetch = 0 : i64, scratch_operands = 0 : i64, tpu.core_type = #tpu.core_type<tc>, window_params = [{transform_indices = @transform_0, window_bounds = array<i64: 64, 1152>}, {pipeline_mode = #tpu.pipeline_mode<synchronous>, transform_indices = @transform_1, window_bounds = array<i64: 1152, 128>}, {pipeline_mode = #tpu.pipeline_mode<synchronous>, transform_indices = @transform_2, window_bounds = array<i64: 1, 128>}, {transform_indices = @transform_3, window_bounds = array<i64: 64, 128>}, {transform_indices = @transform_4, window_bounds = array<i64: 64, 128>}]} {
    %c0 = arith.constant 0 : index
    %c0_0 = arith.constant 0 : index
    %0 = vector.load %arg1[%c0, %c0_0] : memref<64x1152xbf16, #tpu.memory_space<vmem>>, vector<64x1152xbf16>
    %c0_1 = arith.constant 0 : index
    %c0_2 = arith.constant 0 : index
    %1 = vector.load %arg2[%c0_1, %c0_2] : memref<1152x128xbf16, #tpu.memory_space<vmem>>, vector<1152x128xbf16>
    %cst = arith.constant dense<0.000000e+00> : vector<64x128xf32>
    %2 = tpu.matmul %0, %1, %cst {dimension_numbers = #tpu.dot_dimension_numbers<[1], [0], [0], [1], [0, 0, 1, 1], [], []>} : vector<64x1152xbf16>, vector<1152x128xbf16>, vector<64x128xf32> -> vector<64x128xf32>
    %c0_3 = arith.constant 0 : index
    %c0_4 = arith.constant 0 : index
    %3 = vector.load %arg3[%c0_3, %c0_4] : memref<1x128xf32, #tpu.memory_space<vmem>>, vector<1x128xf32>
    %4 = vector.broadcast %3 : vector<1x128xf32> to vector<64x128xf32>
    %5 = arith.addf %2, %4 : vector<64x128xf32>
    %c0_5 = arith.constant 0 : index
    %c0_6 = arith.constant 0 : index
    %6 = vector.load %arg4[%c0_5, %c0_6] : memref<64x128xbf16, #tpu.memory_space<vmem>>, vector<64x128xbf16>
    %7 = arith.extf %6 : vector<64x128xbf16> to vector<64x128xf32>
    %8 = arith.addf %5, %7 : vector<64x128xf32>
    %cst_7 = arith.constant 0.000000e+00 : f32
    %9 = vector.broadcast %cst_7 : f32 to vector<64x128xf32>
    %10 = arith.maximumf %8, %9 : vector<64x128xf32>
    %11 = arith.truncf %10 : vector<64x128xf32> to vector<64x128xbf16>
    %c0_8 = arith.constant 0 : index
    %c0_9 = arith.constant 0 : index
    %12 = vector.load %arg5[%c0_8, %c0_9] : memref<64x128xbf16, #tpu.memory_space<vmem>>, vector<64x128xbf16>
    tpu.vector_store %arg5[%c0_8, %c0_9], %11 {strides = array<i32>} : memref<64x128xbf16, #tpu.memory_space<vmem>>, vector<64x128xbf16>,
    return
  }
  func.func @transform_0(%arg0: i32) -> (i32, i32) {
    %c0_i32 = arith.constant 0 : i32
    %c0_i32_0 = arith.constant 0 : i32
    return %arg0, %c0_i32 : i32, i32
  }
  func.func @transform_1(%arg0: i32) -> (i32, i32) {
    %c0_i32 = arith.constant 0 : i32
    %c0_i32_0 = arith.constant 0 : i32
    %c0_i32_1 = arith.constant 0 : i32
    return %c0_i32, %c0_i32_0 : i32, i32
  }
  func.func @transform_2(%arg0: i32) -> (i32, i32) {
    %c0_i32 = arith.constant 0 : i32
    %c0_i32_0 = arith.constant 0 : i32
    %c0_i32_1 = arith.constant 0 : i32
    return %c0_i32, %c0_i32_0 : i32, i32
  }
  func.func @transform_3(%arg0: i32) -> (i32, i32) {
    %c0_i32 = arith.constant 0 : i32
    %c0_i32_0 = arith.constant 0 : i32
    return %arg0, %c0_i32 : i32, i32
  }
  func.func @transform_4(%arg0: i32) -> (i32, i32) {
    %c0_i32 = arith.constant 0 : i32
    %c0_i32_0 = arith.constant 0 : i32
    return %arg0, %c0_i32 : i32, i32
  }
}

module attributes {stable_mosaic.version = 11 : i64} {
  func.func @_gemm_bias_kernel(%arg0: i32, %arg1: memref<16x1152xbf16, #tpu.memory_space<vmem>>, %arg2: memref<1152x128xbf16, #tpu.memory_space<vmem>>, %arg3: memref<1x128xf32, #tpu.memory_space<vmem>>, %arg4: memref<16x128xbf16, #tpu.memory_space<vmem>>) attributes {dimension_semantics = [#tpu.dimension_semantics<parallel>], iteration_bounds = array<i64: 2>, scalar_prefetch = 0 : i64, scratch_operands = 0 : i64, tpu.core_type = #tpu.core_type<tc>, window_params = [{transform_indices = @transform_0, window_bounds = array<i64: 16, 1152>}, {pipeline_mode = #tpu.pipeline_mode<synchronous>, transform_indices = @transform_1, window_bounds = array<i64: 1152, 128>}, {pipeline_mode = #tpu.pipeline_mode<synchronous>, transform_indices = @transform_2, window_bounds = array<i64: 1, 128>}, {transform_indices = @transform_3, window_bounds = array<i64: 16, 128>}]} {
    %c0 = arith.constant 0 : index
    %c0_0 = arith.constant 0 : index
    %0 = vector.load %arg1[%c0, %c0_0] : memref<16x1152xbf16, #tpu.memory_space<vmem>>, vector<16x1152xbf16>
    %c0_1 = arith.constant 0 : index
    %c0_2 = arith.constant 0 : index
    %1 = vector.load %arg2[%c0_1, %c0_2] : memref<1152x128xbf16, #tpu.memory_space<vmem>>, vector<1152x128xbf16>
    %cst = arith.constant dense<0.000000e+00> : vector<16x128xf32>
    %2 = tpu.matmul %0, %1, %cst {dimension_numbers = #tpu.dot_dimension_numbers<[1], [0], [0], [1], [0, 0, 1, 1], [], []>} : vector<16x1152xbf16>, vector<1152x128xbf16>, vector<16x128xf32> -> vector<16x128xf32>
    %c0_3 = arith.constant 0 : index
    %c0_4 = arith.constant 0 : index
    %3 = vector.load %arg3[%c0_3, %c0_4] : memref<1x128xf32, #tpu.memory_space<vmem>>, vector<1x128xf32>
    %4 = vector.broadcast %3 : vector<1x128xf32> to vector<16x128xf32>
    %5 = arith.addf %2, %4 : vector<16x128xf32>
    %cst_5 = arith.constant 0.000000e+00 : f32
    %6 = vector.broadcast %cst_5 : f32 to vector<16x128xf32>
    %7 = arith.maximumf %5, %6 : vector<16x128xf32>
    %8 = arith.truncf %7 : vector<16x128xf32> to vector<16x128xbf16>
    %c0_6 = arith.constant 0 : index
    %c0_7 = arith.constant 0 : index
    %9 = vector.load %arg4[%c0_6, %c0_7] : memref<16x128xbf16, #tpu.memory_space<vmem>>, vector<16x128xbf16>
    tpu.vector_store %arg4[%c0_6, %c0_7], %8 {strides = array<i32>} : memref<16x128xbf16, #tpu.memory_space<vmem>>, vector<16x128xbf16>,
    return
  }
  func.func @transform_0(%arg0: i32) -> (i32, i32) {
    %c0_i32 = arith.constant 0 : i32
    %c0_i32_0 = arith.constant 0 : i32
    return %arg0, %c0_i32 : i32, i32
  }
  func.func @transform_1(%arg0: i32) -> (i32, i32) {
    %c0_i32 = arith.constant 0 : i32
    %c0_i32_0 = arith.constant 0 : i32
    %c0_i32_1 = arith.constant 0 : i32
    return %c0_i32, %c0_i32_0 : i32, i32
  }
  func.func @transform_2(%arg0: i32) -> (i32, i32) {
    %c0_i32 = arith.constant 0 : i32
    %c0_i32_0 = arith.constant 0 : i32
    %c0_i32_1 = arith.constant 0 : i32
    return %c0_i32, %c0_i32_0 : i32, i32
  }
  func.func @transform_3(%arg0: i32) -> (i32, i32) {
    %c0_i32 = arith.constant 0 : i32
    %c0_i32_0 = arith.constant 0 : i32
    return %arg0, %c0_i32 : i32, i32
  }
}

module attributes {stable_mosaic.version = 11 : i64} {
  func.func @_gemm_bias_res_kernel(%arg0: i32, %arg1: memref<16x1152xbf16, #tpu.memory_space<vmem>>, %arg2: memref<1152x128xbf16, #tpu.memory_space<vmem>>, %arg3: memref<1x128xf32, #tpu.memory_space<vmem>>, %arg4: memref<16x128xbf16, #tpu.memory_space<vmem>>, %arg5: memref<16x128xbf16, #tpu.memory_space<vmem>>) attributes {dimension_semantics = [#tpu.dimension_semantics<parallel>], iteration_bounds = array<i64: 2>, scalar_prefetch = 0 : i64, scratch_operands = 0 : i64, tpu.core_type = #tpu.core_type<tc>, window_params = [{transform_indices = @transform_0, window_bounds = array<i64: 16, 1152>}, {pipeline_mode = #tpu.pipeline_mode<synchronous>, transform_indices = @transform_1, window_bounds = array<i64: 1152, 128>}, {pipeline_mode = #tpu.pipeline_mode<synchronous>, transform_indices = @transform_2, window_bounds = array<i64: 1, 128>}, {transform_indices = @transform_3, window_bounds = array<i64: 16, 128>}, {transform_indices = @transform_4, window_bounds = array<i64: 16, 128>}]} {
    %c0 = arith.constant 0 : index
    %c0_0 = arith.constant 0 : index
    %0 = vector.load %arg1[%c0, %c0_0] : memref<16x1152xbf16, #tpu.memory_space<vmem>>, vector<16x1152xbf16>
    %c0_1 = arith.constant 0 : index
    %c0_2 = arith.constant 0 : index
    %1 = vector.load %arg2[%c0_1, %c0_2] : memref<1152x128xbf16, #tpu.memory_space<vmem>>, vector<1152x128xbf16>
    %cst = arith.constant dense<0.000000e+00> : vector<16x128xf32>
    %2 = tpu.matmul %0, %1, %cst {dimension_numbers = #tpu.dot_dimension_numbers<[1], [0], [0], [1], [0, 0, 1, 1], [], []>} : vector<16x1152xbf16>, vector<1152x128xbf16>, vector<16x128xf32> -> vector<16x128xf32>
    %c0_3 = arith.constant 0 : index
    %c0_4 = arith.constant 0 : index
    %3 = vector.load %arg3[%c0_3, %c0_4] : memref<1x128xf32, #tpu.memory_space<vmem>>, vector<1x128xf32>
    %4 = vector.broadcast %3 : vector<1x128xf32> to vector<16x128xf32>
    %5 = arith.addf %2, %4 : vector<16x128xf32>
    %c0_5 = arith.constant 0 : index
    %c0_6 = arith.constant 0 : index
    %6 = vector.load %arg4[%c0_5, %c0_6] : memref<16x128xbf16, #tpu.memory_space<vmem>>, vector<16x128xbf16>
    %7 = arith.extf %6 : vector<16x128xbf16> to vector<16x128xf32>
    %8 = arith.addf %5, %7 : vector<16x128xf32>
    %cst_7 = arith.constant 0.000000e+00 : f32
    %9 = vector.broadcast %cst_7 : f32 to vector<16x128xf32>
    %10 = arith.maximumf %8, %9 : vector<16x128xf32>
    %11 = arith.truncf %10 : vector<16x128xf32> to vector<16x128xbf16>
    %c0_8 = arith.constant 0 : index
    %c0_9 = arith.constant 0 : index
    %12 = vector.load %arg5[%c0_8, %c0_9] : memref<16x128xbf16, #tpu.memory_space<vmem>>, vector<16x128xbf16>
    tpu.vector_store %arg5[%c0_8, %c0_9], %11 {strides = array<i32>} : memref<16x128xbf16, #tpu.memory_space<vmem>>, vector<16x128xbf16>,
    return
  }
  func.func @transform_0(%arg0: i32) -> (i32, i32) {
    %c0_i32 = arith.constant 0 : i32
    %c0_i32_0 = arith.constant 0 : i32
    return %arg0, %c0_i32 : i32, i32
  }
  func.func @transform_1(%arg0: i32) -> (i32, i32) {
    %c0_i32 = arith.constant 0 : i32
    %c0_i32_0 = arith.constant 0 : i32
    %c0_i32_1 = arith.constant 0 : i32
    return %c0_i32, %c0_i32_0 : i32, i32
  }
  func.func @transform_2(%arg0: i32) -> (i32, i32) {
    %c0_i32 = arith.constant 0 : i32
    %c0_i32_0 = arith.constant 0 : i32
    %c0_i32_1 = arith.constant 0 : i32
    return %c0_i32, %c0_i32_0 : i32, i32
  }
  func.func @transform_3(%arg0: i32) -> (i32, i32) {
    %c0_i32 = arith.constant 0 : i32
    %c0_i32_0 = arith.constant 0 : i32
    return %arg0, %c0_i32 : i32, i32
  }
  func.func @transform_4(%arg0: i32) -> (i32, i32) {
    %c0_i32 = arith.constant 0 : i32
    %c0_i32_0 = arith.constant 0 : i32
    return %arg0, %c0_i32 : i32, i32
  }
}

module attributes {stable_mosaic.version = 11 : i64} {
  func.func @_gemm_bias_kernel(%arg0: i32, %arg1: memref<16x128xbf16, #tpu.memory_space<vmem>>, %arg2: memref<128x128xbf16, #tpu.memory_space<vmem>>, %arg3: memref<1x128xf32, #tpu.memory_space<vmem>>, %arg4: memref<16x128xbf16, #tpu.memory_space<vmem>>) attributes {dimension_semantics = [#tpu.dimension_semantics<parallel>], iteration_bounds = array<i64: 2>, scalar_prefetch = 0 : i64, scratch_operands = 0 : i64, tpu.core_type = #tpu.core_type<tc>, window_params = [{transform_indices = @transform_0, window_bounds = array<i64: 16, 128>}, {pipeline_mode = #tpu.pipeline_mode<synchronous>, transform_indices = @transform_1, window_bounds = array<i64: 128, 128>}, {pipeline_mode = #tpu.pipeline_mode<synchronous>, transform_indices = @transform_2, window_bounds = array<i64: 1, 128>}, {transform_indices = @transform_3, window_bounds = array<i64: 16, 128>}]} {
    %c0 = arith.constant 0 : index
    %c0_0 = arith.constant 0 : index
    %0 = vector.load %arg1[%c0, %c0_0] : memref<16x128xbf16, #tpu.memory_space<vmem>>, vector<16x128xbf16>
    %c0_1 = arith.constant 0 : index
    %c0_2 = arith.constant 0 : index
    %1 = vector.load %arg2[%c0_1, %c0_2] : memref<128x128xbf16, #tpu.memory_space<vmem>>, vector<128x128xbf16>
    %cst = arith.constant dense<0.000000e+00> : vector<16x128xf32>
    %2 = tpu.matmul %0, %1, %cst {dimension_numbers = #tpu.dot_dimension_numbers<[1], [0], [0], [1], [0, 0, 1, 1], [], []>} : vector<16x128xbf16>, vector<128x128xbf16>, vector<16x128xf32> -> vector<16x128xf32>
    %c0_3 = arith.constant 0 : index
    %c0_4 = arith.constant 0 : index
    %3 = vector.load %arg3[%c0_3, %c0_4] : memref<1x128xf32, #tpu.memory_space<vmem>>, vector<1x128xf32>
    %4 = vector.broadcast %3 : vector<1x128xf32> to vector<16x128xf32>
    %5 = arith.addf %2, %4 : vector<16x128xf32>
    %6 = arith.truncf %5 : vector<16x128xf32> to vector<16x128xbf16>
    %c0_5 = arith.constant 0 : index
    %c0_6 = arith.constant 0 : index
    %7 = vector.load %arg4[%c0_5, %c0_6] : memref<16x128xbf16, #tpu.memory_space<vmem>>, vector<16x128xbf16>
    tpu.vector_store %arg4[%c0_5, %c0_6], %6 {strides = array<i32>} : memref<16x128xbf16, #tpu.memory_space<vmem>>, vector<16x128xbf16>,
    return
  }
  func.func @transform_0(%arg0: i32) -> (i32, i32) {
    %c0_i32 = arith.constant 0 : i32
    %c0_i32_0 = arith.constant 0 : i32
    return %arg0, %c0_i32 : i32, i32
  }
  func.func @transform_1(%arg0: i32) -> (i32, i32) {
    %c0_i32 = arith.constant 0 : i32
    %c0_i32_0 = arith.constant 0 : i32
    %c0_i32_1 = arith.constant 0 : i32
    return %c0_i32, %c0_i32_0 : i32, i32
  }
  func.func @transform_2(%arg0: i32) -> (i32, i32) {
    %c0_i32 = arith.constant 0 : i32
    %c0_i32_0 = arith.constant 0 : i32
    %c0_i32_1 = arith.constant 0 : i32
    return %c0_i32, %c0_i32_0 : i32, i32
  }
  func.func @transform_3(%arg0: i32) -> (i32, i32) {
    %c0_i32 = arith.constant 0 : i32
    %c0_i32_0 = arith.constant 0 : i32
    return %arg0, %c0_i32 : i32, i32
  }
}

module attributes {stable_mosaic.version = 11 : i64} {
  func.func @_gemm_bias_kernel(%arg0: i32, %arg1: memref<8x1152xbf16, #tpu.memory_space<vmem>>, %arg2: memref<1152x128xbf16, #tpu.memory_space<vmem>>, %arg3: memref<1x128xf32, #tpu.memory_space<vmem>>, %arg4: memref<8x128xbf16, #tpu.memory_space<vmem>>) attributes {dimension_semantics = [#tpu.dimension_semantics<parallel>], iteration_bounds = array<i64: 1>, scalar_prefetch = 0 : i64, scratch_operands = 0 : i64, tpu.core_type = #tpu.core_type<tc>, window_params = [{transform_indices = @transform_0, window_bounds = array<i64: 8, 1152>}, {pipeline_mode = #tpu.pipeline_mode<synchronous>, transform_indices = @transform_1, window_bounds = array<i64: 1152, 128>}, {pipeline_mode = #tpu.pipeline_mode<synchronous>, transform_indices = @transform_2, window_bounds = array<i64: 1, 128>}, {transform_indices = @transform_3, window_bounds = array<i64: 8, 128>}]} {
    %c0 = arith.constant 0 : index
    %c0_0 = arith.constant 0 : index
    %0 = vector.load %arg1[%c0, %c0_0] : memref<8x1152xbf16, #tpu.memory_space<vmem>>, vector<8x1152xbf16>
    %c0_1 = arith.constant 0 : index
    %c0_2 = arith.constant 0 : index
    %1 = vector.load %arg2[%c0_1, %c0_2] : memref<1152x128xbf16, #tpu.memory_space<vmem>>, vector<1152x128xbf16>
    %cst = arith.constant dense<0.000000e+00> : vector<8x128xf32>
    %2 = tpu.matmul %0, %1, %cst {dimension_numbers = #tpu.dot_dimension_numbers<[1], [0], [0], [1], [0, 0, 1, 1], [], []>} : vector<8x1152xbf16>, vector<1152x128xbf16>, vector<8x128xf32> -> vector<8x128xf32>
    %c0_3 = arith.constant 0 : index
    %c0_4 = arith.constant 0 : index
    %3 = vector.load %arg3[%c0_3, %c0_4] : memref<1x128xf32, #tpu.memory_space<vmem>>, vector<1x128xf32>
    %4 = vector.broadcast %3 : vector<1x128xf32> to vector<8x128xf32>
    %5 = arith.addf %2, %4 : vector<8x128xf32>
    %cst_5 = arith.constant 0.000000e+00 : f32
    %6 = vector.broadcast %cst_5 : f32 to vector<8x128xf32>
    %7 = arith.maximumf %5, %6 : vector<8x128xf32>
    %8 = arith.truncf %7 : vector<8x128xf32> to vector<8x128xbf16>
    %c0_6 = arith.constant 0 : index
    %c0_7 = arith.constant 0 : index
    %9 = vector.load %arg4[%c0_6, %c0_7] : memref<8x128xbf16, #tpu.memory_space<vmem>>, vector<8x128xbf16>
    tpu.vector_store %arg4[%c0_6, %c0_7], %8 {strides = array<i32>} : memref<8x128xbf16, #tpu.memory_space<vmem>>, vector<8x128xbf16>,
    return
  }
  func.func @transform_0(%arg0: i32) -> (i32, i32) {
    %c0_i32 = arith.constant 0 : i32
    %c0_i32_0 = arith.constant 0 : i32
    return %arg0, %c0_i32 : i32, i32
  }
  func.func @transform_1(%arg0: i32) -> (i32, i32) {
    %c0_i32 = arith.constant 0 : i32
    %c0_i32_0 = arith.constant 0 : i32
    %c0_i32_1 = arith.constant 0 : i32
    return %c0_i32, %c0_i32_0 : i32, i32
  }
  func.func @transform_2(%arg0: i32) -> (i32, i32) {
    %c0_i32 = arith.constant 0 : i32
    %c0_i32_0 = arith.constant 0 : i32
    %c0_i32_1 = arith.constant 0 : i32
    return %c0_i32, %c0_i32_0 : i32, i32
  }
  func.func @transform_3(%arg0: i32) -> (i32, i32) {
    %c0_i32 = arith.constant 0 : i32
    %c0_i32_0 = arith.constant 0 : i32
    return %arg0, %c0_i32 : i32, i32
  }
}

module attributes {stable_mosaic.version = 11 : i64} {
  func.func @_gemm_bias_res_kernel(%arg0: i32, %arg1: memref<8x1152xbf16, #tpu.memory_space<vmem>>, %arg2: memref<1152x128xbf16, #tpu.memory_space<vmem>>, %arg3: memref<1x128xf32, #tpu.memory_space<vmem>>, %arg4: memref<8x128xbf16, #tpu.memory_space<vmem>>, %arg5: memref<8x128xbf16, #tpu.memory_space<vmem>>) attributes {dimension_semantics = [#tpu.dimension_semantics<parallel>], iteration_bounds = array<i64: 1>, scalar_prefetch = 0 : i64, scratch_operands = 0 : i64, tpu.core_type = #tpu.core_type<tc>, window_params = [{transform_indices = @transform_0, window_bounds = array<i64: 8, 1152>}, {pipeline_mode = #tpu.pipeline_mode<synchronous>, transform_indices = @transform_1, window_bounds = array<i64: 1152, 128>}, {pipeline_mode = #tpu.pipeline_mode<synchronous>, transform_indices = @transform_2, window_bounds = array<i64: 1, 128>}, {transform_indices = @transform_3, window_bounds = array<i64: 8, 128>}, {transform_indices = @transform_4, window_bounds = array<i64: 8, 128>}]} {
    %c0 = arith.constant 0 : index
    %c0_0 = arith.constant 0 : index
    %0 = vector.load %arg1[%c0, %c0_0] : memref<8x1152xbf16, #tpu.memory_space<vmem>>, vector<8x1152xbf16>
    %c0_1 = arith.constant 0 : index
    %c0_2 = arith.constant 0 : index
    %1 = vector.load %arg2[%c0_1, %c0_2] : memref<1152x128xbf16, #tpu.memory_space<vmem>>, vector<1152x128xbf16>
    %cst = arith.constant dense<0.000000e+00> : vector<8x128xf32>
    %2 = tpu.matmul %0, %1, %cst {dimension_numbers = #tpu.dot_dimension_numbers<[1], [0], [0], [1], [0, 0, 1, 1], [], []>} : vector<8x1152xbf16>, vector<1152x128xbf16>, vector<8x128xf32> -> vector<8x128xf32>
    %c0_3 = arith.constant 0 : index
    %c0_4 = arith.constant 0 : index
    %3 = vector.load %arg3[%c0_3, %c0_4] : memref<1x128xf32, #tpu.memory_space<vmem>>, vector<1x128xf32>
    %4 = vector.broadcast %3 : vector<1x128xf32> to vector<8x128xf32>
    %5 = arith.addf %2, %4 : vector<8x128xf32>
    %c0_5 = arith.constant 0 : index
    %c0_6 = arith.constant 0 : index
    %6 = vector.load %arg4[%c0_5, %c0_6] : memref<8x128xbf16, #tpu.memory_space<vmem>>, vector<8x128xbf16>
    %7 = arith.extf %6 : vector<8x128xbf16> to vector<8x128xf32>
    %8 = arith.addf %5, %7 : vector<8x128xf32>
    %cst_7 = arith.constant 0.000000e+00 : f32
    %9 = vector.broadcast %cst_7 : f32 to vector<8x128xf32>
    %10 = arith.maximumf %8, %9 : vector<8x128xf32>
    %11 = arith.truncf %10 : vector<8x128xf32> to vector<8x128xbf16>
    %c0_8 = arith.constant 0 : index
    %c0_9 = arith.constant 0 : index
    %12 = vector.load %arg5[%c0_8, %c0_9] : memref<8x128xbf16, #tpu.memory_space<vmem>>, vector<8x128xbf16>
    tpu.vector_store %arg5[%c0_8, %c0_9], %11 {strides = array<i32>} : memref<8x128xbf16, #tpu.memory_space<vmem>>, vector<8x128xbf16>,
    return
  }
  func.func @transform_0(%arg0: i32) -> (i32, i32) {
    %c0_i32 = arith.constant 0 : i32
    %c0_i32_0 = arith.constant 0 : i32
    return %arg0, %c0_i32 : i32, i32
  }
  func.func @transform_1(%arg0: i32) -> (i32, i32) {
    %c0_i32 = arith.constant 0 : i32
    %c0_i32_0 = arith.constant 0 : i32
    %c0_i32_1 = arith.constant 0 : i32
    return %c0_i32, %c0_i32_0 : i32, i32
  }
  func.func @transform_2(%arg0: i32) -> (i32, i32) {
    %c0_i32 = arith.constant 0 : i32
    %c0_i32_0 = arith.constant 0 : i32
    %c0_i32_1 = arith.constant 0 : i32
    return %c0_i32, %c0_i32_0 : i32, i32
  }
  func.func @transform_3(%arg0: i32) -> (i32, i32) {
    %c0_i32 = arith.constant 0 : i32
    %c0_i32_0 = arith.constant 0 : i32
    return %arg0, %c0_i32 : i32, i32
  }
  func.func @transform_4(%arg0: i32) -> (i32, i32) {
    %c0_i32 = arith.constant 0 : i32
    %c0_i32_0 = arith.constant 0 : i32
    return %arg0, %c0_i32 : i32, i32
  }
}

module attributes {stable_mosaic.version = 11 : i64} {
  func.func @_gemm_bias_kernel(%arg0: i32, %arg1: memref<8x128xbf16, #tpu.memory_space<vmem>>, %arg2: memref<128x128xbf16, #tpu.memory_space<vmem>>, %arg3: memref<1x128xf32, #tpu.memory_space<vmem>>, %arg4: memref<8x128xbf16, #tpu.memory_space<vmem>>) attributes {dimension_semantics = [#tpu.dimension_semantics<parallel>], iteration_bounds = array<i64: 1>, scalar_prefetch = 0 : i64, scratch_operands = 0 : i64, tpu.core_type = #tpu.core_type<tc>, window_params = [{transform_indices = @transform_0, window_bounds = array<i64: 8, 128>}, {pipeline_mode = #tpu.pipeline_mode<synchronous>, transform_indices = @transform_1, window_bounds = array<i64: 128, 128>}, {pipeline_mode = #tpu.pipeline_mode<synchronous>, transform_indices = @transform_2, window_bounds = array<i64: 1, 128>}, {transform_indices = @transform_3, window_bounds = array<i64: 8, 128>}]} {
    %c0 = arith.constant 0 : index
    %c0_0 = arith.constant 0 : index
    %0 = vector.load %arg1[%c0, %c0_0] : memref<8x128xbf16, #tpu.memory_space<vmem>>, vector<8x128xbf16>
    %c0_1 = arith.constant 0 : index
    %c0_2 = arith.constant 0 : index
    %1 = vector.load %arg2[%c0_1, %c0_2] : memref<128x128xbf16, #tpu.memory_space<vmem>>, vector<128x128xbf16>
    %cst = arith.constant dense<0.000000e+00> : vector<8x128xf32>
    %2 = tpu.matmul %0, %1, %cst {dimension_numbers = #tpu.dot_dimension_numbers<[1], [0], [0], [1], [0, 0, 1, 1], [], []>} : vector<8x128xbf16>, vector<128x128xbf16>, vector<8x128xf32> -> vector<8x128xf32>
    %c0_3 = arith.constant 0 : index
    %c0_4 = arith.constant 0 : index
    %3 = vector.load %arg3[%c0_3, %c0_4] : memref<1x128xf32, #tpu.memory_space<vmem>>, vector<1x128xf32>
    %4 = vector.broadcast %3 : vector<1x128xf32> to vector<8x128xf32>
    %5 = arith.addf %2, %4 : vector<8x128xf32>
    %6 = arith.truncf %5 : vector<8x128xf32> to vector<8x128xbf16>
    %c0_5 = arith.constant 0 : index
    %c0_6 = arith.constant 0 : index
    %7 = vector.load %arg4[%c0_5, %c0_6] : memref<8x128xbf16, #tpu.memory_space<vmem>>, vector<8x128xbf16>
    tpu.vector_store %arg4[%c0_5, %c0_6], %6 {strides = array<i32>} : memref<8x128xbf16, #tpu.memory_space<vmem>>, vector<8x128xbf16>,
    return
  }
  func.func @transform_0(%arg0: i32) -> (i32, i32) {
    %c0_i32 = arith.constant 0 : i32
    %c0_i32_0 = arith.constant 0 : i32
    return %arg0, %c0_i32 : i32, i32
  }
  func.func @transform_1(%arg0: i32) -> (i32, i32) {
    %c0_i32 = arith.constant 0 : i32
    %c0_i32_0 = arith.constant 0 : i32
    %c0_i32_1 = arith.constant 0 : i32
    return %c0_i32, %c0_i32_0 : i32, i32
  }
  func.func @transform_2(%arg0: i32) -> (i32, i32) {
    %c0_i32 = arith.constant 0 : i32
    %c0_i32_0 = arith.constant 0 : i32
    %c0_i32_1 = arith.constant 0 : i32
    return %c0_i32, %c0_i32_0 : i32, i32
  }
  func.func @transform_3(%arg0: i32) -> (i32, i32) {
    %c0_i32 = arith.constant 0 : i32
    %c0_i32_0 = arith.constant 0 : i32
    return %arg0, %c0_i32 : i32, i32
  }
}

</mosaic_0001>

<llo_original>
// kernel: _lambda_.22
$region0: #{_lambda_.22}
  #allocation0 [shape = 'u32[]', space=smem, size = 0x4, offset = 0x4, fixed_abs, tag = 'smem constant byte address 0x4 - core index']
  #allocation1 [shape = 'u32[144,128]{1,0:T(1,128)}', space=vmem, size = 0x12000, scoped, tag = 'internal scratch']
  %s0 = inlined_call_operand.vmem [shape: bf16[9,128,128], index: 0, kind: input, shape index: {}]
  %s1 = inlined_call_operand.vmem [shape: bf16[128,128], index: 1, kind: output, shape index: {}]
  %s2 = sld [smem:[#allocation0]]
  $region78: #{_lambda_.22} parent=0
    _
  %s4 = ssub.s32 1, %s2
  %s5 = scalar_select 0, %s4, %s2
  $region1: #{_lambda_.22} parent=0
    #allocation2 [shape = 'u8[294912]{0}', space=vmem, size = 0x48000, scoped, tag = 'input window, operand 0']
    loop: start=0, step=1, limit=4
    $region2: #{_lambda_.22} parent=1 // loop_pre_header
      _
    $region3: #{_lambda_.22} parent=1 // loop_header
      %s7 = sphi 0, %s11
      %p8 = scmp.ge.s32.totalorder %s7, 4
      %s17 = sphi 0, %s19
      %s20 = sphi 0, %s17
      %s21 = sphi 0, %s20
      %s37 = sphi 0, %s21
      %s43 = sphi 0, %s45
      %s46 = sphi 0, %s43
      %s47 = sphi 0, %s46
      %s63 = sphi 0, %s47
    $region4: #{_lambda_.22} parent=1 // loop_header_branch
      %10 = sbr.rel (%p8) target = $region8
    $region5: #{_lambda_.22} parent=1 // loop_body
      %s12 = ssub.s32 %s7, 1
      %s13 = ssub.s32 %s7, 2
      %s14 = sadd.s32 %s7, 1
      %s15 = ssub.s32 %s7, %s14
      %p16 = scmp.eq.s32.totalorder %s15, 0
      %s18 = sadd.s32 %s17, 1
      %s19 = scalar_select %p16, %s17, %s18
      %p22 = pneg %p16
      %p23 = scmp.eq.s32.totalorder %s7, 1
      %p24 = por %p22, %p23
      %p25 = scmp.ne.s32.totalorder %s17, %s20
      %p26 = scmp.eq.s32.totalorder %s7, 0
      %p27 = por %p25, %p26
      %p28 = scmp.ne.s32.totalorder %s17, %s20
      %p29 = scmp.eq.s32.totalorder %s12, 1
      %p30 = por %p28, %p29
      %p31 = scmp.ne.s32.totalorder %s20, %s21
      %p32 = scmp.eq.s32.totalorder %s12, 0
      %p33 = por %p31, %p32
      %p34 = scmp.ne.s32.totalorder %s20, %s21
      %p35 = scmp.eq.s32.totalorder %s13, 1
      %p36 = por %p34, %p35
      %p38 = scmp.ne.s32.totalorder %s21, %s37
      %p39 = scmp.eq.s32.totalorder %s13, 0
      %p40 = por %p38, %p39
      %s41 = ssub.s32 %s7, %s14
      %p42 = scmp.eq.s32.totalorder %s41, 0
      %s44 = sadd.s32 %s43, 1
      %s45 = scalar_select %p42, %s43, %s44
      %p48 = pneg %p42
      %p49 = scmp.eq.s32.totalorder %s7, 1
      %p50 = por %p48, %p49
      %p51 = scmp.ne.s32.totalorder %s43, %s46
      %p52 = scmp.eq.s32.totalorder %s7, 0
      %p53 = por %p51, %p52
      %p54 = scmp.ne.s32.totalorder %s43, %s46
      %p55 = scmp.eq.s32.totalorder %s12, 1
      %p56 = por %p54, %p55
      %p57 = scmp.ne.s32.totalorder %s46, %s47
      %p58 = scmp.eq.s32.totalorder %s12, 0
      %p59 = por %p57, %p58
      %p60 = scmp.ne.s32.totalorder %s46, %s47
      %p61 = scmp.eq.s32.totalorder %s13, 1
      %p62 = por %p60, %p61
      %p64 = scmp.ne.s32.totalorder %s47, %s63
      %p65 = scmp.eq.s32.totalorder %s13, 0
      %p66 = por %p64, %p65
      %p67 = scmp.le.s32.totalorder 1, %s7
      %p68 = scmp.lt.s32.totalorder %s7, 3
      %p69 = pnand %p67, %p68
      %p70 = pneg %p69
      // Predicated region
      $region9: #{_lambda_.22} parent=5 // pred_check
        _
      $region10: #{_lambda_.22} parent=5 // pred_check_branch
        %72 = sbr.rel (%p69) target = $region12
      $region11: #{_lambda_.22} parent=5 // pred_region
        %s73 = ssub.s32 %s7, 1
      $region12: #{_lambda_.22} parent=5 // pred_fallthru
        _
      %p74 = scmp.lt.s32.totalorder %s7, 2
      // Predicated region
      $region13: #{_lambda_.22} parent=5 // pred_check
        %p75 = pneg %p74
      $region14: #{_lambda_.22} parent=5 // pred_check_branch
        %77 = sbr.rel (%p75) target = $region16
      $region15: #{_lambda_.22} parent=5 // pred_region
        // Predicated region
        $region17: #{_lambda_.22} parent=15 // pred_check
          %p78 = pneg %p27
        $region18: #{_lambda_.22} parent=15 // pred_check_branch
          %80 = sbr.rel (%p78) target = $region20
        $region19: #{_lambda_.22} parent=15 // pred_region
          %s81 = sand.u32 %s17, 1
          %s82 = sand.u32 %s17, 1
          %s83 = smul.addr %s82, 288
          %s84 = scalar_lea.vmem [#allocation2], %s83
          %s85 = smul.u32 8, %s7
          %s86 = smul.addr %s85, 4
          %s87 = scalar_lea.vmem %s0, %s86
          // Predicated region
          $region21: #{_lambda_.22} parent=19 // pred_check
            _
          $region22: #{_lambda_.22} parent=19 // pred_check_branch
            %89 = sbr.rel (0) target = $region24
          $region23: #{_lambda_.22} parent=19 // pred_region
            // Predicated region
            $region25: #{_lambda_.22} parent=23 // pred_check
              _
            $region26: #{_lambda_.22} parent=23 // pred_check_branch
              %91 = sbr.rel target = $region28
            $region27: #{_lambda_.22} parent=23 // pred_region
              // Predicated region
              $region40: #{_lambda_.22} parent=27 // pred_check
                _
              $region41: #{_lambda_.22} parent=27 // pred_check_branch
                %248 = sbr.rel (0) target = $region43
              $region42: #{_lambda_.22} parent=27 // pred_region
                loop: start=0, step=1, limit=1
                $region44: #{_lambda_.22} parent=42 // loop_pre_header
                  _
                $region45: #{_lambda_.22} parent=42 // loop_header
                  %s250 = sphi 0, %s254
                  %p251 = scmp.ge.s32.totalorder %s250, 1
                  %s255 = sphi %s87, %s87
                  %s256 = sphi %s84, %s84
                $region46: #{_lambda_.22} parent=42 // loop_header_branch
                  %253 = sbr.rel (%p251) target = $region50
                $region47: #{_lambda_.22} parent=42 // loop_body
                  _
                $region48: #{_lambda_.22} parent=42 // loop_footer
                  %s254 = sadd.s32 1, %s250
                $region49: #{_lambda_.22} parent=42 // loop_footer_branch
                  %249 = sbr.rel target = $region45
                $region50: #{_lambda_.22} parent=42 // loop_exit
                  _
                loop: start=0, step=1, limit=1
                $region51: #{_lambda_.22} parent=42 // loop_pre_header
                  _
                $region52: #{_lambda_.22} parent=42 // loop_header
                  %s259 = sphi 0, %s263
                  %p260 = scmp.ge.s32.totalorder %s259, 1
                  %s264 = sphi %s87, %s87
                  %s265 = sphi %s84, %s84
                $region53: #{_lambda_.22} parent=42 // loop_header_branch
                  %262 = sbr.rel (%p260) target = $region57
                $region54: #{_lambda_.22} parent=42 // loop_body
                  %v266 = vld [vmem:[%s264] sm:$0xf]
                  %267 = vst [vmem:[%s265] sm:$0xf] %v266
                  %v268 = vld [vmem:[%s264 + $0x4] sm:$0xf]
                  %269 = vst [vmem:[%s265 + $0x4] sm:$0xf] %v268
                  %v270 = vld [vmem:[%s264 + $0x8] sm:$0xf]
                  %271 = vst [vmem:[%s265 + $0x8] sm:$0xf] %v270
                  %v272 = vld [vmem:[%s264 + $0xc] sm:$0xf]
                  %273 = vst [vmem:[%s265 + $0xc] sm:$0xf] %v272
                  %v274 = vld [vmem:[%s264 + $0x10] sm:$0xf]
                  %275 = vst [vmem:[%s265 + $0x10] sm:$0xf] %v274
                  %v276 = vld [vmem:[%s264 + $0x14] sm:$0xf]
                  %277 = vst [vmem:[%s265 + $0x14] sm:$0xf] %v276
                  %v278 = vld [vmem:[%s264 + $0x18] sm:$0xf]
                  %279 = vst [vmem:[%s265 + $0x18] sm:$0xf] %v278
                  %v280 = vld [vmem:[%s264 + $0x1c] sm:$0xf]
                  %281 = vst [vmem:[%s265 + $0x1c] sm:$0xf] %v280
                  %v282 = vld [vmem:[%s264 + $0x40] sm:$0xf]
                  %283 = vst [vmem:[%s265 + $0x20] sm:$0xf] %v282
                  %v284 = vld [vmem:[%s264 + $0x44] sm:$0xf]
                  %285 = vst [vmem:[%s265 + $0x24] sm:$0xf] %v284
                  %v286 = vld [vmem:[%s264 + $0x48] sm:$0xf]
                  %287 = vst [vmem:[%s265 + $0x28] sm:$0xf] %v286
                  %v288 = vld [vmem:[%s264 + $0x4c] sm:$0xf]
                  %289 = vst [vmem:[%s265 + $0x2c] sm:$0xf] %v288
                  %v290 = vld [vmem:[%s264 + $0x50] sm:$0xf]
                  %291 = vst [vmem:[%s265 + $0x30] sm:$0xf] %v290
                  %v292 = vld [vmem:[%s264 + $0x54] sm:$0xf]
                  %293 = vst [vmem:[%s265 + $0x34] sm:$0xf] %v292
                  %v294 = vld [vmem:[%s264 + $0x58] sm:$0xf]
                  %295 = vst [vmem:[%s265 + $0x38] sm:$0xf] %v294
                  %v296 = vld [vmem:[%s264 + $0x5c] sm:$0xf]
                  %297 = vst [vmem:[%s265 + $0x3c] sm:$0xf] %v296
                  %v298 = vld [vmem:[%s264 + $0x80] sm:$0xf]
                  %299 = vst [vmem:[%s265 + $0x40] sm:$0xf] %v298
                  %v300 = vld [vmem:[%s264 + $0x84] sm:$0xf]
                  %301 = vst [vmem:[%s265 + $0x44] sm:$0xf] %v300
                  %v302 = vld [vmem:[%s264 + $0x88] sm:$0xf]
                  %303 = vst [vmem:[%s265 + $0x48] sm:$0xf] %v302
                  %v304 = vld [vmem:[%s264 + $0x8c] sm:$0xf]
                  %305 = vst [vmem:[%s265 + $0x4c] sm:$0xf] %v304
                  %v306 = vld [vmem:[%s264 + $0x90] sm:$0xf]
                  %307 = vst [vmem:[%s265 + $0x50] sm:$0xf] %v306
                  %v308 = vld [vmem:[%s264 + $0x94] sm:$0xf]
                  %309 = vst [vmem:[%s265 + $0x54] sm:$0xf] %v308
                  %v310 = vld [vmem:[%s264 + $0x98] sm:$0xf]
                  %311 = vst [vmem:[%s265 + $0x58] sm:$0xf] %v310
                  %v312 = vld [vmem:[%s264 + $0x9c] sm:$0xf]
                  %313 = vst [vmem:[%s265 + $0x5c] sm:$0xf] %v312
                  %v314 = vld [vmem:[%s264 + $0xc0] sm:$0xf]
                  %315 = vst [vmem:[%s265 + $0x60] sm:$0xf] %v314
                  %v316 = vld [vmem:[%s264 + $0xc4] sm:$0xf]
                  %317 = vst [vmem:[%s265 + $0x64] sm:$0xf] %v316
                  %v318 = vld [vmem:[%s264 + $0xc8] sm:$0xf]
                  %319 = vst [vmem:[%s265 + $0x68] sm:$0xf] %v318
                  %v320 = vld [vmem:[%s264 + $0xcc] sm:$0xf]
                  %321 = vst [vmem:[%s265 + $0x6c] sm:$0xf] %v320
                  %v322 = vld [vmem:[%s264 + $0xd0] sm:$0xf]
                  %323 = vst [vmem:[%s265 + $0x70] sm:$0xf] %v322
                  %v324 = vld [vmem:[%s264 + $0xd4] sm:$0xf]
                  %325 = vst [vmem:[%s265 + $0x74] sm:$0xf] %v324
                  %v326 = vld [vmem:[%s264 + $0xd8] sm:$0xf]
                  %327 = vst [vmem:[%s265 + $0x78] sm:$0xf] %v326
                  %v328 = vld [vmem:[%s264 + $0xdc] sm:$0xf]
                  %329 = vst [vmem:[%s265 + $0x7c] sm:$0xf] %v328
                  %v330 = vld [vmem:[%s264 + $0x100] sm:$0xf]
                  %331 = vst [vmem:[%s265 + $0x80] sm:$0xf] %v330
                  %v332 = vld [vmem:[%s264 + $0x104] sm:$0xf]
                  %333 = vst [vmem:[%s265 + $0x84] sm:$0xf] %v332
                  %v334 = vld [vmem:[%s264 + $0x108] sm:$0xf]
                  %335 = vst [vmem:[%s265 + $0x88] sm:$0xf] %v334
                  %v336 = vld [vmem:[%s264 + $0x10c] sm:$0xf]
                  %337 = vst [vmem:[%s265 + $0x8c] sm:$0xf] %v336
                  %v338 = vld [vmem:[%s264 + $0x110] sm:$0xf]
                  %339 = vst [vmem:[%s265 + $0x90] sm:$0xf] %v338
                  %v340 = vld [vmem:[%s264 + $0x114] sm:$0xf]
                  %341 = vst [vmem:[%s265 + $0x94] sm:$0xf] %v340
                  %v342 = vld [vmem:[%s264 + $0x118] sm:$0xf]
                  %343 = vst [vmem:[%s265 + $0x98] sm:$0xf] %v342
                  %v344 = vld [vmem:[%s264 + $0x11c] sm:$0xf]
                  %345 = vst [vmem:[%s265 + $0x9c] sm:$0xf] %v344
                  %v346 = vld [vmem:[%s264 + $0x140] sm:$0xf]
                  %347 = vst [vmem:[%s265 + $0xa0] sm:$0xf] %v346
                  %v348 = vld [vmem:[%s264 + $0x144] sm:$0xf]
                  %349 = vst [vmem:[%s265 + $0xa4] sm:$0xf] %v348
                  %v350 = vld [vmem:[%s264 + $0x148] sm:$0xf]
                  %351 = vst [vmem:[%s265 + $0xa8] sm:$0xf] %v350
                  %v352 = vld [vmem:[%s264 + $0x14c] sm:$0xf]
                  %353 = vst [vmem:[%s265 + $0xac] sm:$0xf] %v352
                  %v354 = vld [vmem:[%s264 + $0x150] sm:$0xf]
                  %355 = vst [vmem:[%s265 + $0xb0] sm:$0xf] %v354
                  %v356 = vld [vmem:[%s264 + $0x154] sm:$0xf]
                  %357 = vst [vmem:[%s265 + $0xb4] sm:$0xf] %v356
                  %v358 = vld [vmem:[%s264 + $0x158] sm:$0xf]
                  %359 = vst [vmem:[%s265 + $0xb8] sm:$0xf] %v358
                  %v360 = vld [vmem:[%s264 + $0x15c] sm:$0xf]
                  %361 = vst [vmem:[%s265 + $0xbc] sm:$0xf] %v360
                  %v362 = vld [vmem:[%s264 + $0x180] sm:$0xf]
                  %363 = vst [vmem:[%s265 + $0xc0] sm:$0xf] %v362
                  %v364 = vld [vmem:[%s264 + $0x184] sm:$0xf]
                  %365 = vst [vmem:[%s265 + $0xc4] sm:$0xf] %v364
                  %v366 = vld [vmem:[%s264 + $0x188] sm:$0xf]
                  %367 = vst [vmem:[%s265 + $0xc8] sm:$0xf] %v366
                  %v368 = vld [vmem:[%s264 + $0x18c] sm:$0xf]
                  %369 = vst [vmem:[%s265 + $0xcc] sm:$0xf] %v368
                  %v370 = vld [vmem:[%s264 + $0x190] sm:$0xf]
                  %371 = vst [vmem:[%s265 + $0xd0] sm:$0xf] %v370
                  %v372 = vld [vmem:[%s264 + $0x194] sm:$0xf]
                  %373 = vst [vmem:[%s265 + $0xd4] sm:$0xf] %v372
                  %v374 = vld [vmem:[%s264 + $0x198] sm:$0xf]
                  %375 = vst [vmem:[%s265 + $0xd8] sm:$0xf] %v374
                  %v376 = vld [vmem:[%s264 + $0x19c] sm:$0xf]
                  %377 = vst [vmem:[%s265 + $0xdc] sm:$0xf] %v376
                  %v378 = vld [vmem:[%s264 + $0x1c0] sm:$0xf]
                  %379 = vst [vmem:[%s265 + $0xe0] sm:$0xf] %v378
                  %v380 = vld [vmem:[%s264 + $0x1c4] sm:$0xf]
                  %381 = vst [vmem:[%s265 + $0xe4] sm:$0xf] %v380
                  %v382 = vld [vmem:[%s264 + $0x1c8] sm:$0xf]
                  %383 = vst [vmem:[%s265 + $0xe8] sm:$0xf] %v382
                  %v384 = vld [vmem:[%s264 + $0x1cc] sm:$0xf]
                  %385 = vst [vmem:[%s265 + $0xec] sm:$0xf] %v384
                  %v386 = vld [vmem:[%s264 + $0x1d0] sm:$0xf]
                  %387 = vst [vmem:[%s265 + $0xf0] sm:$0xf] %v386
                  %v388 = vld [vmem:[%s264 + $0x1d4] sm:$0xf]
                  %389 = vst [vmem:[%s265 + $0xf4] sm:$0xf] %v388
                  %v390 = vld [vmem:[%s264 + $0x1d8] sm:$0xf]
                  %391 = vst [vmem:[%s265 + $0xf8] sm:$0xf] %v390
                  %v392 = vld [vmem:[%s264 + $0x1dc] sm:$0xf]
                  %393 = vst [vmem:[%s265 + $0xfc] sm:$0xf] %v392
                  %v394 = vld [vmem:[%s264 + $0x200] sm:$0xf]
                  %395 = vst [vmem:[%s265 + $0x100] sm:$0xf] %v394
                  %v396 = vld [vmem:[%s264 + $0x204] sm:$0xf]
                  %397 = vst [vmem:[%s265 + $0x104] sm:$0xf] %v396
                  %v398 = vld [vmem:[%s264 + $0x208] sm:$0xf]
                  %399 = vst [vmem:[%s265 + $0x108] sm:$0xf] %v398
                  %v400 = vld [vmem:[%s264 + $0x20c] sm:$0xf]
                  %401 = vst [vmem:[%s265 + $0x10c] sm:$0xf] %v400
                  %v402 = vld [vmem:[%s264 + $0x210] sm:$0xf]
                  %403 = vst [vmem:[%s265 + $0x110] sm:$0xf] %v402
                  %v404 = vld [vmem:[%s264 + $0x214] sm:$0xf]
                  %405 = vst [vmem:[%s265 + $0x114] sm:$0xf] %v404
                  %v406 = vld [vmem:[%s264 + $0x218] sm:$0xf]
                  %407 = vst [vmem:[%s265 + $0x118] sm:$0xf] %v406
                  %v408 = vld [vmem:[%s264 + $0x21c] sm:$0xf]
                  %409 = vst [vmem:[%s265 + $0x11c] sm:$0xf] %v408
                $region55: #{_lambda_.22} parent=42 // loop_footer
                  %s263 = sadd.s32 1, %s259
                $region56: #{_lambda_.22} parent=42 // loop_footer_branch
                  %258 = sbr.rel target = $region52
                $region57: #{_lambda_.22} parent=42 // loop_exit
                  _
              $region43: #{_lambda_.22} parent=27 // pred_fallthru
                _
            $region28: #{_lambda_.22} parent=23 // pred_fallthru
              _
            // Predicated region
            $region29: #{_lambda_.22} parent=23 // pred_check
              _
            $region30: #{_lambda_.22} parent=23 // pred_check_branch
              %93 = sbr.rel (0) target = $region32
            $region31: #{_lambda_.22} parent=23 // pred_region
              loop: start=0, step=1, limit=1
              $region33: #{_lambda_.22} parent=31 // loop_pre_header
                _
              $region34: #{_lambda_.22} parent=31 // loop_header
                %s96 = sphi 0, %s100
                %p97 = scmp.ge.s32.totalorder %s96, 1
                %s101 = sphi %s87, %s87
                %s102 = sphi %s84, %s84
              $region35: #{_lambda_.22} parent=31 // loop_header_branch
                %99 = sbr.rel (%p97) target = $region39
              $region36: #{_lambda_.22} parent=31 // loop_body
                %v103 = vld [vmem:[%s101] sm:$0xf]
                %104 = vst [vmem:[%s102] sm:$0xf] %v103
                %v105 = vld [vmem:[%s101 + $0x4] sm:$0xf]
                %106 = vst [vmem:[%s102 + $0x4] sm:$0xf] %v105
                %v107 = vld [vmem:[%s101 + $0x8] sm:$0xf]
                %108 = vst [vmem:[%s102 + $0x8] sm:$0xf] %v107
                %v109 = vld [vmem:[%s101 + $0xc] sm:$0xf]
                %110 = vst [vmem:[%s102 + $0xc] sm:$0xf] %v109
                %v111 = vld [vmem:[%s101 + $0x10] sm:$0xf]
                %112 = vst [vmem:[%s102 + $0x10] sm:$0xf] %v111
                %v113 = vld [vmem:[%s101 + $0x14] sm:$0xf]
                %114 = vst [vmem:[%s102 + $0x14] sm:$0xf] %v113
                %v115 = vld [vmem:[%s101 + $0x18] sm:$0xf]
                %116 = vst [vmem:[%s102 + $0x18] sm:$0xf] %v115
                %v117 = vld [vmem:[%s101 + $0x1c] sm:$0xf]
                %118 = vst [vmem:[%s102 + $0x1c] sm:$0xf] %v117
                %v119 = vld [vmem:[%s101 + $0x40] sm:$0xf]
                %120 = vst [vmem:[%s102 + $0x20] sm:$0xf] %v119
                %v121 = vld [vmem:[%s101 + $0x44] sm:$0xf]
                %122 = vst [vmem:[%s102 + $0x24] sm:$0xf] %v121
                %v123 = vld [vmem:[%s101 + $0x48] sm:$0xf]
                %124 = vst [vmem:[%s102 + $0x28] sm:$0xf] %v123
                %v125 = vld [vmem:[%s101 + $0x4c] sm:$0xf]
                %126 = vst [vmem:[%s102 + $0x2c] sm:$0xf] %v125
                %v127 = vld [vmem:[%s101 + $0x50] sm:$0xf]
                %128 = vst [vmem:[%s102 + $0x30] sm:$0xf] %v127
                %v129 = vld [vmem:[%s101 + $0x54] sm:$0xf]
                %130 = vst [vmem:[%s102 + $0x34] sm:$0xf] %v129
                %v131 = vld [vmem:[%s101 + $0x58] sm:$0xf]
                %132 = vst [vmem:[%s102 + $0x38] sm:$0xf] %v131
                %v133 = vld [vmem:[%s101 + $0x5c] sm:$0xf]
                %134 = vst [vmem:[%s102 + $0x3c] sm:$0xf] %v133
                %v135 = vld [vmem:[%s101 + $0x80] sm:$0xf]
                %136 = vst [vmem:[%s102 + $0x40] sm:$0xf] %v135
                %v137 = vld [vmem:[%s101 + $0x84] sm:$0xf]
                %138 = vst [vmem:[%s102 + $0x44] sm:$0xf] %v137
                %v139 = vld [vmem:[%s101 + $0x88] sm:$0xf]
                %140 = vst [vmem:[%s102 + $0x48] sm:$0xf] %v139
                %v141 = vld [vmem:[%s101 + $0x8c] sm:$0xf]
                %142 = vst [vmem:[%s102 + $0x4c] sm:$0xf] %v141
                %v143 = vld [vmem:[%s101 + $0x90] sm:$0xf]
                %144 = vst [vmem:[%s102 + $0x50] sm:$0xf] %v143
                %v145 = vld [vmem:[%s101 + $0x94] sm:$0xf]
                %146 = vst [vmem:[%s102 + $0x54] sm:$0xf] %v145
                %v147 = vld [vmem:[%s101 + $0x98] sm:$0xf]
                %148 = vst [vmem:[%s102 + $0x58] sm:$0xf] %v147
                %v149 = vld [vmem:[%s101 + $0x9c] sm:$0xf]
                %150 = vst [vmem:[%s102 + $0x5c] sm:$0xf] %v149
                %v151 = vld [vmem:[%s101 + $0xc0] sm:$0xf]
                %152 = vst [vmem:[%s102 + $0x60] sm:$0xf] %v151
                %v153 = vld [vmem:[%s101 + $0xc4] sm:$0xf]
                %154 = vst [vmem:[%s102 + $0x64] sm:$0xf] %v153
                %v155 = vld [vmem:[%s101 + $0xc8] sm:$0xf]
                %156 = vst [vmem:[%s102 + $0x68] sm:$0xf] %v155
                %v157 = vld [vmem:[%s101 + $0xcc] sm:$0xf]
                %158 = vst [vmem:[%s102 + $0x6c] sm:$0xf] %v157
                %v159 = vld [vmem:[%s101 + $0xd0] sm:$0xf]
                %160 = vst [vmem:[%s102 + $0x70] sm:$0xf] %v159
                %v161 = vld [vmem:[%s101 + $0xd4] sm:$0xf]
                %162 = vst [vmem:[%s102 + $0x74] sm:$0xf] %v161
                %v163 = vld [vmem:[%s101 + $0xd8] sm:$0xf]
                %164 = vst [vmem:[%s102 + $0x78] sm:$0xf] %v163
                %v165 = vld [vmem:[%s101 + $0xdc] sm:$0xf]
                %166 = vst [vmem:[%s102 + $0x7c] sm:$0xf] %v165
                %v167 = vld [vmem:[%s101 + $0x100] sm:$0xf]
                %168 = vst [vmem:[%s102 + $0x80] sm:$0xf] %v167
                %v169 = vld [vmem:[%s101 + $0x104] sm:$0xf]
                %170 = vst [vmem:[%s102 + $0x84] sm:$0xf] %v169
                %v171 = vld [vmem:[%s101 + $0x108] sm:$0xf]
                %172 = vst [vmem:[%s102 + $0x88] sm:$0xf] %v171
                %v173 = vld [vmem:[%s101 + $0x10c] sm:$0xf]
                %174 = vst [vmem:[%s102 + $0x8c] sm:$0xf] %v173
                %v175 = vld [vmem:[%s101 + $0x110] sm:$0xf]
                %176 = vst [vmem:[%s102 + $0x90] sm:$0xf] %v175
                %v177 = vld [vmem:[%s101 + $0x114] sm:$0xf]
                %178 = vst [vmem:[%s102 + $0x94] sm:$0xf] %v177
                %v179 = vld [vmem:[%s101 + $0x118] sm:$0xf]
                %180 = vst [vmem:[%s102 + $0x98] sm:$0xf] %v179
                %v181 = vld [vmem:[%s101 + $0x11c] sm:$0xf]
                %182 = vst [vmem:[%s102 + $0x9c] sm:$0xf] %v181
                %v183 = vld [vmem:[%s101 + $0x140] sm:$0xf]
                %184 = vst [vmem:[%s102 + $0xa0] sm:$0xf] %v183
                %v185 = vld [vmem:[%s101 + $0x144] sm:$0xf]
                %186 = vst [vmem:[%s102 + $0xa4] sm:$0xf] %v185
                %v187 = vld [vmem:[%s101 + $0x148] sm:$0xf]
                %188 = vst [vmem:[%s102 + $0xa8] sm:$0xf] %v187
                %v189 = vld [vmem:[%s101 + $0x14c] sm:$0xf]
                %190 = vst [vmem:[%s102 + $0xac] sm:$0xf] %v189
                %v191 = vld [vmem:[%s101 + $0x150] sm:$0xf]
                %192 = vst [vmem:[%s102 + $0xb0] sm:$0xf] %v191
                %v193 = vld [vmem:[%s101 + $0x154] sm:$0xf]
                %194 = vst [vmem:[%s102 + $0xb4] sm:$0xf] %v193
                %v195 = vld [vmem:[%s101 + $0x158] sm:$0xf]
                %196 = vst [vmem:[%s102 + $0xb8] sm:$0xf] %v195
                %v197 = vld [vmem:[%s101 + $0x15c] sm:$0xf]
                %198 = vst [vmem:[%s102 + $0xbc] sm:$0xf] %v197
                %v199 = vld [vmem:[%s101 + $0x180] sm:$0xf]
                %200 = vst [vmem:[%s102 + $0xc0] sm:$0xf] %v199
                %v201 = vld [vmem:[%s101 + $0x184] sm:$0xf]
                %202 = vst [vmem:[%s102 + $0xc4] sm:$0xf] %v201
                %v203 = vld [vmem:[%s101 + $0x188] sm:$0xf]
                %204 = vst [vmem:[%s102 + $0xc8] sm:$0xf] %v203
                %v205 = vld [vmem:[%s101 + $0x18c] sm:$0xf]
                %206 = vst [vmem:[%s102 + $0xcc] sm:$0xf] %v205
                %v207 = vld [vmem:[%s101 + $0x190] sm:$0xf]
                %208 = vst [vmem:[%s102 + $0xd0] sm:$0xf] %v207
                %v209 = vld [vmem:[%s101 + $0x194] sm:$0xf]
                %210 = vst [vmem:[%s102 + $0xd4] sm:$0xf] %v209
                %v211 = vld [vmem:[%s101 + $0x198] sm:$0xf]
                %212 = vst [vmem:[%s102 + $0xd8] sm:$0xf] %v211
                %v213 = vld [vmem:[%s101 + $0x19c] sm:$0xf]
                %214 = vst [vmem:[%s102 + $0xdc] sm:$0xf] %v213
                %v215 = vld [vmem:[%s101 + $0x1c0] sm:$0xf]
                %216 = vst [vmem:[%s102 + $0xe0] sm:$0xf] %v215
                %v217 = vld [vmem:[%s101 + $0x1c4] sm:$0xf]
                %218 = vst [vmem:[%s102 + $0xe4] sm:$0xf] %v217
                %v219 = vld [vmem:[%s101 + $0x1c8] sm:$0xf]
                %220 = vst [vmem:[%s102 + $0xe8] sm:$0xf] %v219
                %v221 = vld [vmem:[%s101 + $0x1cc] sm:$0xf]
                %222 = vst [vmem:[%s102 + $0xec] sm:$0xf] %v221
                %v223 = vld [vmem:[%s101 + $0x1d0] sm:$0xf]
                %224 = vst [vmem:[%s102 + $0xf0] sm:$0xf] %v223
                %v225 = vld [vmem:[%s101 + $0x1d4] sm:$0xf]
                %226 = vst [vmem:[%s102 + $0xf4] sm:$0xf] %v225
                %v227 = vld [vmem:[%s101 + $0x1d8] sm:$0xf]
                %228 = vst [vmem:[%s102 + $0xf8] sm:$0xf] %v227
                %v229 = vld [vmem:[%s101 + $0x1dc] sm:$0xf]
                %230 = vst [vmem:[%s102 + $0xfc] sm:$0xf] %v229
                %v231 = vld [vmem:[%s101 + $0x200] sm:$0xf]
                %232 = vst [vmem:[%s102 + $0x100] sm:$0xf] %v231
                %v233 = vld [vmem:[%s101 + $0x204] sm:$0xf]
                %234 = vst [vmem:[%s102 + $0x104] sm:$0xf] %v233
                %v235 = vld [vmem:[%s101 + $0x208] sm:$0xf]
                %236 = vst [vmem:[%s102 + $0x108] sm:$0xf] %v235
                %v237 = vld [vmem:[%s101 + $0x20c] sm:$0xf]
                %238 = vst [vmem:[%s102 + $0x10c] sm:$0xf] %v237
                %v239 = vld [vmem:[%s101 + $0x210] sm:$0xf]
                %240 = vst [vmem:[%s102 + $0x110] sm:$0xf] %v239
                %v241 = vld [vmem:[%s101 + $0x214] sm:$0xf]
                %242 = vst [vmem:[%s102 + $0x114] sm:$0xf] %v241
                %v243 = vld [vmem:[%s101 + $0x218] sm:$0xf]
                %244 = vst [vmem:[%s102 + $0x118] sm:$0xf] %v243
                %v245 = vld [vmem:[%s101 + $0x21c] sm:$0xf]
                %246 = vst [vmem:[%s102 + $0x11c] sm:$0xf] %v245
              $region37: #{_lambda_.22} parent=31 // loop_footer
                %s100 = sadd.s32 1, %s96
              $region38: #{_lambda_.22} parent=31 // loop_footer_branch
                %95 = sbr.rel target = $region34
              $region39: #{_lambda_.22} parent=31 // loop_exit
                _
            $region32: #{_lambda_.22} parent=23 // pred_fallthru
              _
          $region24: #{_lambda_.22} parent=19 // pred_fallthru
            _
          %410 = vnop
        $region20: #{_lambda_.22} parent=15 // pred_fallthru
          _
      $region16: #{_lambda_.22} parent=5 // pred_fallthru
        _
      %p411 = scmp.le.s32.totalorder 1, %s7
      %p412 = scmp.lt.s32.totalorder %s7, 3
      %p413 = pnand %p411, %p412
      %p414 = pneg %p413
      // Predicated region
      $region58: #{_lambda_.22} parent=5 // pred_check
        _
      $region59: #{_lambda_.22} parent=5 // pred_check_branch
        %416 = sbr.rel (%p413) target = $region61
      $region60: #{_lambda_.22} parent=5 // pred_region
        %s417 = ssub.s32 %s7, 1
        %s418 = sand.u32 %s20, 1
        %s419 = sand.u32 %s20, 1
        %s420 = smul.addr %s419, 288
        %s421 = scalar_lea.vmem [#allocation2], %s420
        // Predicated region
        $region62: #{_lambda_.22} parent=60 // pred_check
          %p422 = pneg %p33
        $region63: #{_lambda_.22} parent=60 // pred_check_branch
          %424 = sbr.rel (%p422) target = $region65
        $region64: #{_lambda_.22} parent=60 // pred_region
          _
        $region65: #{_lambda_.22} parent=60 // pred_fallthru
          _
        %s425 = sand.u32 %s20, 1
        %s426 = sand.u32 %s20, 1
        %s427 = smul.addr %s426, 288
        %s428 = scalar_lea.vmem [#allocation2], %s427
        %p429 = pneg %p33
        %p430 = pneg %p30
        %p431 = pneg %p59
        %p432 = pneg %p56
        %s433 = smul.u32 8, %s12
        %p434 = scmp.lt.s32.totalorder %s433, 15
        %s435 = scalar_select %p434, %s433, 15
        %s436 = smul.addr %s435, 4
        %s437 = scalar_lea.vmem %s1, %s436
        %s438 = smul.u32 8, %s12
        %s439 = smul.u32 8, %s12
        %p440 = scmp.lt.s32.totalorder %s439, 15
        %s441 = scalar_select %p440, %s439, 15
        %s442 = smul.addr %s441, 4
        %s443 = scalar_lea.vmem %s1, %s442
        %s444 = smul.u32 8, %s12
        %v446 = vld [vmem:[%s421] sm:$0xf]
        %v447 = vld [vmem:[%s421 + $0x4] sm:$0xf]
        %v448 = vld [vmem:[%s421 + $0x8] sm:$0xf]
        %v449 = vld [vmem:[%s421 + $0xc] sm:$0xf]
        %v450 = vld [vmem:[%s421 + $0x10] sm:$0xf]
        %v451 = vld [vmem:[%s421 + $0x14] sm:$0xf]
        %v452 = vld [vmem:[%s421 + $0x18] sm:$0xf]
        %v453 = vld [vmem:[%s421 + $0x1c] sm:$0xf]
        %v454 = vld [vmem:[%s421 + $0x20] sm:$0xf]
        %v455 = vld [vmem:[%s421 + $0x24] sm:$0xf]
        %v456 = vld [vmem:[%s421 + $0x28] sm:$0xf]
        %v457 = vld [vmem:[%s421 + $0x2c] sm:$0xf]
        %v458 = vld [vmem:[%s421 + $0x30] sm:$0xf]
        %v459 = vld [vmem:[%s421 + $0x34] sm:$0xf]
        %v460 = vld [vmem:[%s421 + $0x38] sm:$0xf]
        %v461 = vld [vmem:[%s421 + $0x3c] sm:$0xf]
        %v462 = vld [vmem:[%s421 + $0x40] sm:$0xf]
        %v463 = vld [vmem:[%s421 + $0x44] sm:$0xf]
        %v464 = vld [vmem:[%s421 + $0x48] sm:$0xf]
        %v465 = vld [vmem:[%s421 + $0x4c] sm:$0xf]
        %v466 = vld [vmem:[%s421 + $0x50] sm:$0xf]
        %v467 = vld [vmem:[%s421 + $0x54] sm:$0xf]
        %v468 = vld [vmem:[%s421 + $0x58] sm:$0xf]
        %v469 = vld [vmem:[%s421 + $0x5c] sm:$0xf]
        %v470 = vld [vmem:[%s421 + $0x60] sm:$0xf]
        %v471 = vld [vmem:[%s421 + $0x64] sm:$0xf]
        %v472 = vld [vmem:[%s421 + $0x68] sm:$0xf]
        %v473 = vld [vmem:[%s421 + $0x6c] sm:$0xf]
        %v474 = vld [vmem:[%s421 + $0x70] sm:$0xf]
        %v475 = vld [vmem:[%s421 + $0x74] sm:$0xf]
        %v476 = vld [vmem:[%s421 + $0x78] sm:$0xf]
        %v477 = vld [vmem:[%s421 + $0x7c] sm:$0xf]
        %v478 = vld [vmem:[%s421 + $0x80] sm:$0xf]
        %v479 = vld [vmem:[%s421 + $0x84] sm:$0xf]
        %v480 = vld [vmem:[%s421 + $0x88] sm:$0xf]
        %v481 = vld [vmem:[%s421 + $0x8c] sm:$0xf]
        %v482 = vld [vmem:[%s421 + $0x90] sm:$0xf]
        %v483 = vld [vmem:[%s421 + $0x94] sm:$0xf]
        %v484 = vld [vmem:[%s421 + $0x98] sm:$0xf]
        %v485 = vld [vmem:[%s421 + $0x9c] sm:$0xf]
        %v486 = vld [vmem:[%s421 + $0xa0] sm:$0xf]
        %v487 = vld [vmem:[%s421 + $0xa4] sm:$0xf]
        %v488 = vld [vmem:[%s421 + $0xa8] sm:$0xf]
        %v489 = vld [vmem:[%s421 + $0xac] sm:$0xf]
        %v490 = vld [vmem:[%s421 + $0xb0] sm:$0xf]
        %v491 = vld [vmem:[%s421 + $0xb4] sm:$0xf]
        %v492 = vld [vmem:[%s421 + $0xb8] sm:$0xf]
        %v493 = vld [vmem:[%s421 + $0xbc] sm:$0xf]
        %v494 = vld [vmem:[%s421 + $0xc0] sm:$0xf]
        %v495 = vld [vmem:[%s421 + $0xc4] sm:$0xf]
        %v496 = vld [vmem:[%s421 + $0xc8] sm:$0xf]
        %v497 = vld [vmem:[%s421 + $0xcc] sm:$0xf]
        %v498 = vld [vmem:[%s421 + $0xd0] sm:$0xf]
        %v499 = vld [vmem:[%s421 + $0xd4] sm:$0xf]
        %v500 = vld [vmem:[%s421 + $0xd8] sm:$0xf]
        %v501 = vld [vmem:[%s421 + $0xdc] sm:$0xf]
        %v502 = vld [vmem:[%s421 + $0xe0] sm:$0xf]
        %v503 = vld [vmem:[%s421 + $0xe4] sm:$0xf]
        %v504 = vld [vmem:[%s421 + $0xe8] sm:$0xf]
        %v505 = vld [vmem:[%s421 + $0xec] sm:$0xf]
        %v506 = vld [vmem:[%s421 + $0xf0] sm:$0xf]
        %v507 = vld [vmem:[%s421 + $0xf4] sm:$0xf]
        %v508 = vld [vmem:[%s421 + $0xf8] sm:$0xf]
        %v509 = vld [vmem:[%s421 + $0xfc] sm:$0xf]
        %v510 = vld [vmem:[%s421 + $0x100] sm:$0xf]
        %v511 = vld [vmem:[%s421 + $0x104] sm:$0xf]
        %v512 = vld [vmem:[%s421 + $0x108] sm:$0xf]
        %v513 = vld [vmem:[%s421 + $0x10c] sm:$0xf]
        %v514 = vld [vmem:[%s421 + $0x110] sm:$0xf]
        %v515 = vld [vmem:[%s421 + $0x114] sm:$0xf]
        %v516 = vld [vmem:[%s421 + $0x118] sm:$0xf]
        %v517 = vld [vmem:[%s421 + $0x11c] sm:$0xf]
        %vm518 = vcmask 1043456
        %v521 = vsel %vm518, %v446, 4286644096
        %v524 = vsel %vm518, %v454, 4286644096
        %v526 = vmax.bf16 %v521, %v524
        %v528 = vsel %vm518, %v462, 4286644096
        %v530 = vmax.bf16 %v526, %v528
        %v532 = vsel %vm518, %v470, 4286644096
        %v534 = vmax.bf16 %v530, %v532
        %v536 = vsel %vm518, %v478, 4286644096
        %v538 = vmax.bf16 %v534, %v536
        %v540 = vsel %vm518, %v486, 4286644096
        %v542 = vmax.bf16 %v538, %v540
        %v544 = vsel %vm518, %v494, 4286644096
        %v546 = vmax.bf16 %v542, %v544
        %v548 = vsel %vm518, %v502, 4286644096
        %v550 = vmax.bf16 %v546, %v548
        %v552 = vsel %vm518, %v510, 4286644096
        %v554 = vmax.bf16 %v550, %v552
        %v556 = vsel %vm518, %v447, 4286644096
        %v559 = vsel %vm518, %v455, 4286644096
        %v561 = vmax.bf16 %v556, %v559
        %v563 = vsel %vm518, %v463, 4286644096
        %v565 = vmax.bf16 %v561, %v563
        %v567 = vsel %vm518, %v471, 4286644096
        %v569 = vmax.bf16 %v565, %v567
        %v571 = vsel %vm518, %v479, 4286644096
        %v573 = vmax.bf16 %v569, %v571
        %v575 = vsel %vm518, %v487, 4286644096
        %v577 = vmax.bf16 %v573, %v575
        %v579 = vsel %vm518, %v495, 4286644096
        %v581 = vmax.bf16 %v577, %v579
        %v583 = vsel %vm518, %v503, 4286644096
        %v585 = vmax.bf16 %v581, %v583
        %v587 = vsel %vm518, %v511, 4286644096
        %v589 = vmax.bf16 %v585, %v587
        %v591 = vsel %vm518, %v448, 4286644096
        %v594 = vsel %vm518, %v456, 4286644096
        %v596 = vmax.bf16 %v591, %v594
        %v598 = vsel %vm518, %v464, 4286644096
        %v600 = vmax.bf16 %v596, %v598
        %v602 = vsel %vm518, %v472, 4286644096
        %v604 = vmax.bf16 %v600, %v602
        %v606 = vsel %vm518, %v480, 4286644096
        %v608 = vmax.bf16 %v604, %v606
        %v610 = vsel %vm518, %v488, 4286644096
        %v612 = vmax.bf16 %v608, %v610
        %v614 = vsel %vm518, %v496, 4286644096
        %v616 = vmax.bf16 %v612, %v614
        %v618 = vsel %vm518, %v504, 4286644096
        %v620 = vmax.bf16 %v616, %v618
        %v622 = vsel %vm518, %v512, 4286644096
        %v624 = vmax.bf16 %v620, %v622
        %v626 = vsel %vm518, %v449, 4286644096
        %v629 = vsel %vm518, %v457, 4286644096
        %v631 = vmax.bf16 %v626, %v629
        %v633 = vsel %vm518, %v465, 4286644096
        %v635 = vmax.bf16 %v631, %v633
        %v637 = vsel %vm518, %v473, 4286644096
        %v639 = vmax.bf16 %v635, %v637
        %v641 = vsel %vm518, %v481, 4286644096
        %v643 = vmax.bf16 %v639, %v641
        %v645 = vsel %vm518, %v489, 4286644096
        %v647 = vmax.bf16 %v643, %v645
        %v649 = vsel %vm518, %v497, 4286644096
        %v651 = vmax.bf16 %v647, %v649
        %v653 = vsel %vm518, %v505, 4286644096
        %v655 = vmax.bf16 %v651, %v653
        %v657 = vsel %vm518, %v513, 4286644096
        %v659 = vmax.bf16 %v655, %v657
        %v661 = vsel %vm518, %v450, 4286644096
        %v664 = vsel %vm518, %v458, 4286644096
        %v666 = vmax.bf16 %v661, %v664
        %v668 = vsel %vm518, %v466, 4286644096
        %v670 = vmax.bf16 %v666, %v668
        %v672 = vsel %vm518, %v474, 4286644096
        %v674 = vmax.bf16 %v670, %v672
        %v676 = vsel %vm518, %v482, 4286644096
        %v678 = vmax.bf16 %v674, %v676
        %v680 = vsel %vm518, %v490, 4286644096
        %v682 = vmax.bf16 %v678, %v680
        %v684 = vsel %vm518, %v498, 4286644096
        %v686 = vmax.bf16 %v682, %v684
        %v688 = vsel %vm518, %v506, 4286644096
        %v690 = vmax.bf16 %v686, %v688
        %v692 = vsel %vm518, %v514, 4286644096
        %v694 = vmax.bf16 %v690, %v692
        %v696 = vsel %vm518, %v451, 4286644096
        %v699 = vsel %vm518, %v459, 4286644096
        %v701 = vmax.bf16 %v696, %v699
        %v703 = vsel %vm518, %v467, 4286644096
        %v705 = vmax.bf16 %v701, %v703
        %v707 = vsel %vm518, %v475, 4286644096
        %v709 = vmax.bf16 %v705, %v707
        %v711 = vsel %vm518, %v483, 4286644096
        %v713 = vmax.bf16 %v709, %v711
        %v715 = vsel %vm518, %v491, 4286644096
        %v717 = vmax.bf16 %v713, %v715
        %v719 = vsel %vm518, %v499, 4286644096
        %v721 = vmax.bf16 %v717, %v719
        %v723 = vsel %vm518, %v507, 4286644096
        %v725 = vmax.bf16 %v721, %v723
        %v727 = vsel %vm518, %v515, 4286644096
        %v729 = vmax.bf16 %v725, %v727
        %v731 = vsel %vm518, %v452, 4286644096
        %v734 = vsel %vm518, %v460, 4286644096
        %v736 = vmax.bf16 %v731, %v734
        %v738 = vsel %vm518, %v468, 4286644096
        %v740 = vmax.bf16 %v736, %v738
        %v742 = vsel %vm518, %v476, 4286644096
        %v744 = vmax.bf16 %v740, %v742
        %v746 = vsel %vm518, %v484, 4286644096
        %v748 = vmax.bf16 %v744, %v746
        %v750 = vsel %vm518, %v492, 4286644096
        %v752 = vmax.bf16 %v748, %v750
        %v754 = vsel %vm518, %v500, 4286644096
        %v756 = vmax.bf16 %v752, %v754
        %v758 = vsel %vm518, %v508, 4286644096
        %v760 = vmax.bf16 %v756, %v758
        %v762 = vsel %vm518, %v516, 4286644096
        %v764 = vmax.bf16 %v760, %v762
        %v766 = vsel %vm518, %v453, 4286644096
        %v769 = vsel %vm518, %v461, 4286644096
        %v771 = vmax.bf16 %v766, %v769
        %v773 = vsel %vm518, %v469, 4286644096
        %v775 = vmax.bf16 %v771, %v773
        %v777 = vsel %vm518, %v477, 4286644096
        %v779 = vmax.bf16 %v775, %v777
        %v781 = vsel %vm518, %v485, 4286644096
        %v783 = vmax.bf16 %v779, %v781
        %v785 = vsel %vm518, %v493, 4286644096
        %v787 = vmax.bf16 %v783, %v785
        %v789 = vsel %vm518, %v501, 4286644096
        %v791 = vmax.bf16 %v787, %v789
        %v793 = vsel %vm518, %v509, 4286644096
        %v795 = vmax.bf16 %v791, %v793
        %v797 = vsel %vm518, %v517, 4286644096
        %v799 = vmax.bf16 %v795, %v797
        %800 = vst [vmem:[%s443] sm:$0xf] %v554
        %801 = vst [vmem:[%s443 + $0x4] sm:$0xf] %v589
        %802 = vst [vmem:[%s443 + $0x8] sm:$0xf] %v624
        %803 = vst [vmem:[%s443 + $0xc] sm:$0xf] %v659
        %804 = vst [vmem:[%s443 + $0x10] sm:$0xf] %v694
        %805 = vst [vmem:[%s443 + $0x14] sm:$0xf] %v729
        %806 = vst [vmem:[%s443 + $0x18] sm:$0xf] %v764
        %807 = vst [vmem:[%s443 + $0x1c] sm:$0xf] %v799
        %s808 = smul.u32 8, %s12
        %p809 = scmp.lt.s32.totalorder %s808, 15
        %s810 = scalar_select %p809, %s808, 15
        %s811 = smul.addr %s810, 4
        %s812 = scalar_lea.vmem %s1, %s811
        // Predicated region
        $region66: #{_lambda_.22} parent=60 // pred_check
          %p813 = pneg %p56
        $region67: #{_lambda_.22} parent=60 // pred_check_branch
          %815 = sbr.rel (%p813) target = $region69
        $region68: #{_lambda_.22} parent=60 // pred_region
          %s816 = smul.u32 8, %s12
        $region69: #{_lambda_.22} parent=60 // pred_fallthru
          _
      $region61: #{_lambda_.22} parent=5 // pred_fallthru
        _
      %p817 = scmp.le.s32.totalorder 2, %s7
      // Predicated region
      $region70: #{_lambda_.22} parent=5 // pred_check
        %p818 = pneg %p817
      $region71: #{_lambda_.22} parent=5 // pred_check_branch
        %820 = sbr.rel (%p818) target = $region73
      $region72: #{_lambda_.22} parent=5 // pred_region
        %s821 = ssub.s32 %s7, 2
        // Predicated region
        $region74: #{_lambda_.22} parent=72 // pred_check
          %p822 = pneg %p62
        $region75: #{_lambda_.22} parent=72 // pred_check_branch
          %824 = sbr.rel (%p822) target = $region77
        $region76: #{_lambda_.22} parent=72 // pred_region
          %s825 = smul.u32 8, %s13
          %p826 = scmp.lt.s32.totalorder %s825, 15
          %s827 = scalar_select %p826, %s825, 15
          %s828 = smul.addr %s827, 4
          %s829 = scalar_lea.vmem %s1, %s828
        $region77: #{_lambda_.22} parent=72 // pred_fallthru
          _
      $region73: #{_lambda_.22} parent=5 // pred_fallthru
        _
    $region6: #{_lambda_.22} parent=1 // loop_footer
      %s11 = sadd.s32 1, %s7
    $region7: #{_lambda_.22} parent=1 // loop_footer_branch
      %6 = sbr.rel target = $region3
    $region8: #{_lambda_.22} parent=1 // loop_exit
      _

// kernel: _lambda_.21
$region0: #{_lambda_.21}
  #allocation0 [shape = 'u32[]', space=smem, size = 0x4, offset = 0x4, fixed_abs, tag = 'smem constant byte address 0x4 - core index']
  #allocation1 [shape = 'u32[144,128]{1,0:T(1,128)}', space=vmem, size = 0x12000, scoped, tag = 'internal scratch']
  %s0 = inlined_call_operand.vmem [shape: bf16[512,256], index: 0, kind: input, shape index: {}]
  %s1 = inlined_call_operand.vmem [shape: bf16[256,128], index: 1, kind: input, shape index: {}]
  %s2 = inlined_call_operand.vmem [shape: f32[1,128], index: 2, kind: input, shape index: {}]
  %s3 = inlined_call_operand.vmem [shape: bf16[512,128], index: 3, kind: output, shape index: {}]
  %s4 = sld [smem:[#allocation0]]
  $region45: #{_lambda_.21} parent=0
    _
  %s6 = ssub.s32 1, %s4
  %s7 = scalar_select 0, %s6, %s4
  loop: start=0, step=1, limit=4
  $region2: #{_lambda_.21} parent=0 // loop_pre_header
    _
  $region3: #{_lambda_.21} parent=0 // loop_header
    %s9 = sphi 0, %s13
    %p10 = scmp.ge.s32.totalorder %s9, 4
    %s19 = sphi 0, %s21
    %s22 = sphi 0, %s19
    %s23 = sphi 0, %s22
    %s39 = sphi 0, %s23
    %s43 = sphi 0, %s43
    %s45 = sphi 0, %s43
    %s46 = sphi 0, %s45
    %s60 = sphi 0, %s46
    %s64 = sphi 0, %s64
    %s66 = sphi 0, %s64
    %s67 = sphi 0, %s66
    %s81 = sphi 0, %s67
    %s87 = sphi 0, %s89
    %s90 = sphi 0, %s87
    %s91 = sphi 0, %s90
    %s107 = sphi 0, %s91
  $region4: #{_lambda_.21} parent=0 // loop_header_branch
    %12 = sbr.rel (%p10) target = $region8
  $region5: #{_lambda_.21} parent=0 // loop_body
    %s14 = ssub.s32 %s9, 1
    %s15 = ssub.s32 %s9, 2
    %s16 = sadd.s32 %s9, 1
    %s17 = ssub.s32 %s9, %s16
    %p18 = scmp.eq.s32.totalorder %s17, 0
    %s20 = sadd.s32 %s19, 1
    %s21 = scalar_select %p18, %s19, %s20
    %p24 = pneg %p18
    %p25 = scmp.eq.s32.totalorder %s9, 1
    %p26 = por %p24, %p25
    %p27 = scmp.ne.s32.totalorder %s19, %s22
    %p28 = scmp.eq.s32.totalorder %s9, 0
    %p29 = por %p27, %p28
    %p30 = scmp.ne.s32.totalorder %s19, %s22
    %p31 = scmp.eq.s32.totalorder %s14, 1
    %p32 = por %p30, %p31
    %p33 = scmp.ne.s32.totalorder %s22, %s23
    %p34 = scmp.eq.s32.totalorder %s14, 0
    %p35 = por %p33, %p34
    %p36 = scmp.ne.s32.totalorder %s22, %s23
    %p37 = scmp.eq.s32.totalorder %s15, 1
    %p38 = por %p36, %p37
    %p40 = scmp.ne.s32.totalorder %s23, %s39
    %p41 = scmp.eq.s32.totalorder %s15, 0
    %p42 = por %p40, %p41
    %s44 = sadd.s32 %s43, 1
    %p47 = scmp.eq.s32.totalorder %s9, 1
    %p48 = scmp.ne.s32.totalorder %s43, %s45
    %p49 = scmp.eq.s32.totalorder %s9, 0
    %p50 = por %p48, %p49
    %p51 = scmp.ne.s32.totalorder %s43, %s45
    %p52 = scmp.eq.s32.totalorder %s14, 1
    %p53 = por %p51, %p52
    %p54 = scmp.ne.s32.totalorder %s45, %s46
    %p55 = scmp.eq.s32.totalorder %s14, 0
    %p56 = por %p54, %p55
    %p57 = scmp.ne.s32.totalorder %s45, %s46
    %p58 = scmp.eq.s32.totalorder %s15, 1
    %p59 = por %p57, %p58
    %p61 = scmp.ne.s32.totalorder %s46, %s60
    %p62 = scmp.eq.s32.totalorder %s15, 0
    %p63 = por %p61, %p62
    %s65 = sadd.s32 %s64, 1
    %p68 = scmp.eq.s32.totalorder %s9, 1
    %p69 = scmp.ne.s32.totalorder %s64, %s66
    %p70 = scmp.eq.s32.totalorder %s9, 0
    %p71 = por %p69, %p70
    %p72 = scmp.ne.s32.totalorder %s64, %s66
    %p73 = scmp.eq.s32.totalorder %s14, 1
    %p74 = por %p72, %p73
    %p75 = scmp.ne.s32.totalorder %s66, %s67
    %p76 = scmp.eq.s32.totalorder %s14, 0
    %p77 = por %p75, %p76
    %p78 = scmp.ne.s32.totalorder %s66, %s67
    %p79 = scmp.eq.s32.totalorder %s15, 1
    %p80 = por %p78, %p79
    %p82 = scmp.ne.s32.totalorder %s67, %s81
    %p83 = scmp.eq.s32.totalorder %s15, 0
    %p84 = por %p82, %p83
    %s85 = ssub.s32 %s9, %s16
    %p86 = scmp.eq.s32.totalorder %s85, 0
    %s88 = sadd.s32 %s87, 1
    %s89 = scalar_select %p86, %s87, %s88
    %p92 = pneg %p86
    %p93 = scmp.eq.s32.totalorder %s9, 1
    %p94 = por %p92, %p93
    %p95 = scmp.ne.s32.totalorder %s87, %s90
    %p96 = scmp.eq.s32.totalorder %s9, 0
    %p97 = por %p95, %p96
    %p98 = scmp.ne.s32.totalorder %s87, %s90
    %p99 = scmp.eq.s32.totalorder %s14, 1
    %p100 = por %p98, %p99
    %p101 = scmp.ne.s32.totalorder %s90, %s91
    %p102 = scmp.eq.s32.totalorder %s14, 0
    %p103 = por %p101, %p102
    %p104 = scmp.ne.s32.totalorder %s90, %s91
    %p105 = scmp.eq.s32.totalorder %s15, 1
    %p106 = por %p104, %p105
    %p108 = scmp.ne.s32.totalorder %s91, %s107
    %p109 = scmp.eq.s32.totalorder %s15, 0
    %p110 = por %p108, %p109
    %p111 = scmp.le.s32.totalorder 1, %s9
    %p112 = scmp.lt.s32.totalorder %s9, 3
    %p113 = pnand %p111, %p112
    %p114 = pneg %p113
    // Predicated region
    $region9: #{_lambda_.21} parent=5 // pred_check
      _
    $region10: #{_lambda_.21} parent=5 // pred_check_branch
      %116 = sbr.rel (%p113) target = $region12
    $region11: #{_lambda_.21} parent=5 // pred_region
      %s117 = ssub.s32 %s9, 1
      // Predicated region
      $region13: #{_lambda_.21} parent=11 // pred_check
        %p118 = pneg %p56
      $region14: #{_lambda_.21} parent=11 // pred_check_branch
        %120 = sbr.rel (%p118) target = $region16
      $region15: #{_lambda_.21} parent=11 // pred_region
        _
      $region16: #{_lambda_.21} parent=11 // pred_fallthru
        _
      // Predicated region
      $region17: #{_lambda_.21} parent=11 // pred_check
        %p121 = pneg %p77
      $region18: #{_lambda_.21} parent=11 // pred_check_branch
        %123 = sbr.rel (%p121) target = $region20
      $region19: #{_lambda_.21} parent=11 // pred_region
        _
      $region20: #{_lambda_.21} parent=11 // pred_fallthru
        _
    $region12: #{_lambda_.21} parent=5 // pred_fallthru
      _
    %p124 = scmp.lt.s32.totalorder %s9, 2
    // Predicated region
    $region21: #{_lambda_.21} parent=5 // pred_check
      %p125 = pneg %p124
    $region22: #{_lambda_.21} parent=5 // pred_check_branch
      %127 = sbr.rel (%p125) target = $region24
    $region23: #{_lambda_.21} parent=5 // pred_region
      // Predicated region
      $region25: #{_lambda_.21} parent=23 // pred_check
        %p128 = pneg %p29
      $region26: #{_lambda_.21} parent=23 // pred_check_branch
        %130 = sbr.rel (%p128) target = $region28
      $region27: #{_lambda_.21} parent=23 // pred_region
        %s131 = smul.u32 32, %s9
        %p132 = scmp.lt.s32.totalorder %s131, 63
        %s133 = scalar_select %p132, %s131, 63
        %s134 = smul.addr %s133, 2
        %s135 = smul.addr %s134, 4
        %s136 = scalar_lea.vmem %s0, %s135
        %s137 = smul.u32 32, %s9
      $region28: #{_lambda_.21} parent=23 // pred_fallthru
        _
    $region24: #{_lambda_.21} parent=5 // pred_fallthru
      _
    %p138 = scmp.le.s32.totalorder 1, %s9
    %p139 = scmp.lt.s32.totalorder %s9, 3
    %p140 = pnand %p138, %p139
    %p141 = pneg %p140
    // Predicated region
    $region29: #{_lambda_.21} parent=5 // pred_check
      _
    $region30: #{_lambda_.21} parent=5 // pred_check_branch
      %143 = sbr.rel (%p140) target = $region32
    $region31: #{_lambda_.21} parent=5 // pred_region
      %s144 = ssub.s32 %s9, 1
      %s145 = smul.u32 32, %s14
      %p146 = scmp.lt.s32.totalorder %s145, 63
      %s147 = scalar_select %p146, %s145, 63
      %s148 = smul.addr %s147, 2
      %s149 = smul.addr %s148, 4
      %s150 = scalar_lea.vmem %s0, %s149
      %p151 = pneg %p35
      %p152 = pneg %p32
      %p153 = pneg %p56
      %p154 = pneg %p53
      %p155 = pneg %p77
      %p156 = pneg %p74
      %p157 = pneg %p103
      %p158 = pneg %p100
      %s159 = smul.u32 32, %s14
      %p160 = scmp.lt.s32.totalorder %s159, 63
      %s161 = scalar_select %p160, %s159, 63
      %s162 = smul.addr %s161, 4
      %s163 = scalar_lea.vmem %s3, %s162
      %s164 = smul.u32 32, %s14
      %p165 = scmp.lt.s32.totalorder %s164, 63
      %s166 = scalar_select %p165, %s164, 63
      %s167 = smul.addr %s166, 2
      %s168 = smul.addr %s167, 4
      %s169 = scalar_lea.vmem %s0, %s168
      %s170 = smul.u32 32, %s14
      %s171 = smul.u32 32, %s14
      %p172 = scmp.lt.s32.totalorder %s171, 63
      %s173 = scalar_select %p172, %s171, 63
      %s174 = smul.addr %s173, 4
      %s175 = scalar_lea.vmem %s3, %s174
      %s176 = smul.u32 32, %s14
      %v178 = vld [vmem:[%s169] sm:$0xff]
      %v179 = vld [vmem:[%s169 + $0x8] sm:$0xff]
      %v180 = vld [vmem:[%s169 + $0x10] sm:$0xff]
      %v181 = vld [vmem:[%s169 + $0x18] sm:$0xff]
      %v182 = vld [vmem:[%s169 + $0x20] sm:$0xff]
      %v183 = vld [vmem:[%s169 + $0x28] sm:$0xff]
      %v184 = vld [vmem:[%s169 + $0x30] sm:$0xff]
      %v185 = vld [vmem:[%s169 + $0x38] sm:$0xff]
      %v186 = vld [vmem:[%s169 + $0x40] sm:$0xff]
      %v187 = vld [vmem:[%s169 + $0x48] sm:$0xff]
      %v188 = vld [vmem:[%s169 + $0x50] sm:$0xff]
      %v189 = vld [vmem:[%s169 + $0x58] sm:$0xff]
      %v190 = vld [vmem:[%s169 + $0x60] sm:$0xff]
      %v191 = vld [vmem:[%s169 + $0x68] sm:$0xff]
      %v192 = vld [vmem:[%s169 + $0x70] sm:$0xff]
      %v193 = vld [vmem:[%s169 + $0x78] sm:$0xff]
      %v194 = vld [vmem:[%s169 + $0x80] sm:$0xff]
      %v195 = vld [vmem:[%s169 + $0x88] sm:$0xff]
      %v196 = vld [vmem:[%s169 + $0x90] sm:$0xff]
      %v197 = vld [vmem:[%s169 + $0x98] sm:$0xff]
      %v198 = vld [vmem:[%s169 + $0xa0] sm:$0xff]
      %v199 = vld [vmem:[%s169 + $0xa8] sm:$0xff]
      %v200 = vld [vmem:[%s169 + $0xb0] sm:$0xff]
      %v201 = vld [vmem:[%s169 + $0xb8] sm:$0xff]
      %v202 = vld [vmem:[%s169 + $0xc0] sm:$0xff]
      %v203 = vld [vmem:[%s169 + $0xc8] sm:$0xff]
      %v204 = vld [vmem:[%s169 + $0xd0] sm:$0xff]
      %v205 = vld [vmem:[%s169 + $0xd8] sm:$0xff]
      %v206 = vld [vmem:[%s169 + $0xe0] sm:$0xff]
      %v207 = vld [vmem:[%s169 + $0xe8] sm:$0xff]
      %v208 = vld [vmem:[%s169 + $0xf0] sm:$0xff]
      %v209 = vld [vmem:[%s169 + $0xf8] sm:$0xff]
      %v210 = vld [vmem:[%s1] sm:$0xf]
      %v211 = vld [vmem:[%s1 + $0x4] sm:$0xf]
      %v212 = vld [vmem:[%s1 + $0x8] sm:$0xf]
      %v213 = vld [vmem:[%s1 + $0xc] sm:$0xf]
      %v214 = vld [vmem:[%s1 + $0x10] sm:$0xf]
      %v215 = vld [vmem:[%s1 + $0x14] sm:$0xf]
      %v216 = vld [vmem:[%s1 + $0x18] sm:$0xf]
      %v217 = vld [vmem:[%s1 + $0x1c] sm:$0xf]
      %v218 = vld [vmem:[%s1 + $0x20] sm:$0xf]
      %v219 = vld [vmem:[%s1 + $0x24] sm:$0xf]
      %v220 = vld [vmem:[%s1 + $0x28] sm:$0xf]
      %v221 = vld [vmem:[%s1 + $0x2c] sm:$0xf]
      %v222 = vld [vmem:[%s1 + $0x30] sm:$0xf]
      %v223 = vld [vmem:[%s1 + $0x34] sm:$0xf]
      %v224 = vld [vmem:[%s1 + $0x38] sm:$0xf]
      %v225 = vld [vmem:[%s1 + $0x3c] sm:$0xf]
      %v226 = vld [vmem:[%s1 + $0x40] sm:$0xf]
      %v227 = vld [vmem:[%s1 + $0x44] sm:$0xf]
      %v228 = vld [vmem:[%s1 + $0x48] sm:$0xf]
      %v229 = vld [vmem:[%s1 + $0x4c] sm:$0xf]
      %v230 = vld [vmem:[%s1 + $0x50] sm:$0xf]
      %v231 = vld [vmem:[%s1 + $0x54] sm:$0xf]
      %v232 = vld [vmem:[%s1 + $0x58] sm:$0xf]
      %v233 = vld [vmem:[%s1 + $0x5c] sm:$0xf]
      %v234 = vld [vmem:[%s1 + $0x60] sm:$0xf]
      %v235 = vld [vmem:[%s1 + $0x64] sm:$0xf]
      %v236 = vld [vmem:[%s1 + $0x68] sm:$0xf]
      %v237 = vld [vmem:[%s1 + $0x6c] sm:$0xf]
      %v238 = vld [vmem:[%s1 + $0x70] sm:$0xf]
      %v239 = vld [vmem:[%s1 + $0x74] sm:$0xf]
      %v240 = vld [vmem:[%s1 + $0x78] sm:$0xf]
      %v241 = vld [vmem:[%s1 + $0x7c] sm:$0xf]
      %v242 = vld [vmem:[%s2] sm:$0x1]
      %v244 = vlaneseq
      %v245 = vshrl.u32 %v244, 7
      %v246 = vsub.s32 0, %v245
      %v247 = vrot.slane %v242, %v246
      %v281 = vunpack.c.l.b16 %v178
      %v282 = vunpack.c.h.b16 %v178
      %v283 = vunpack.c.l.b16 %v179
      %v284 = vunpack.c.h.b16 %v179
      %v285 = vunpack.c.l.b16 %v180
      %v286 = vunpack.c.h.b16 %v180
      %v287 = vunpack.c.l.b16 %v181
      %v288 = vunpack.c.h.b16 %v181
      %v289 = vunpack.c.l.b16 %v182
      %v290 = vunpack.c.h.b16 %v182
      %v291 = vunpack.c.l.b16 %v183
      %v292 = vunpack.c.h.b16 %v183
      %v293 = vunpack.c.l.b16 %v184
      %v294 = vunpack.c.h.b16 %v184
      %v295 = vunpack.c.l.b16 %v185
      %v296 = vunpack.c.h.b16 %v185
      %v297 = vunpack.c.l.b16 %v186
      %v298 = vunpack.c.h.b16 %v186
      %v299 = vunpack.c.l.b16 %v187
      %v300 = vunpack.c.h.b16 %v187
      %v301 = vunpack.c.l.b16 %v188
      %v302 = vunpack.c.h.b16 %v188
      %v303 = vunpack.c.l.b16 %v189
      %v304 = vunpack.c.h.b16 %v189
      %v305 = vunpack.c.l.b16 %v190
      %v306 = vunpack.c.h.b16 %v190
      %v307 = vunpack.c.l.b16 %v191
      %v308 = vunpack.c.h.b16 %v191
      %v309 = vunpack.c.l.b16 %v192
      %v310 = vunpack.c.h.b16 %v192
      %v311 = vunpack.c.l.b16 %v193
      %v312 = vunpack.c.h.b16 %v193
      %v313 = vunpack.c.l.b16 %v194
      %v314 = vunpack.c.h.b16 %v194
      %v315 = vunpack.c.l.b16 %v195
      %v316 = vunpack.c.h.b16 %v195
      %v317 = vunpack.c.l.b16 %v196
      %v318 = vunpack.c.h.b16 %v196
      %v319 = vunpack.c.l.b16 %v197
      %v320 = vunpack.c.h.b16 %v197
      %v321 = vunpack.c.l.b16 %v198
      %v322 = vunpack.c.h.b16 %v198
      %v323 = vunpack.c.l.b16 %v199
      %v324 = vunpack.c.h.b16 %v199
      %v325 = vunpack.c.l.b16 %v200
      %v326 = vunpack.c.h.b16 %v200
      %v327 = vunpack.c.l.b16 %v201
      %v328 = vunpack.c.h.b16 %v201
      %v329 = vunpack.c.l.b16 %v202
      %v330 = vunpack.c.h.b16 %v202
      %v331 = vunpack.c.l.b16 %v203
      %v332 = vunpack.c.h.b16 %v203
      %v333 = vunpack.c.l.b16 %v204
      %v334 = vunpack.c.h.b16 %v204
      %v335 = vunpack.c.l.b16 %v205
      %v336 = vunpack.c.h.b16 %v205
      %v337 = vunpack.c.l.b16 %v206
      %v338 = vunpack.c.h.b16 %v206
      %v339 = vunpack.c.l.b16 %v207
      %v340 = vunpack.c.h.b16 %v207
      %v341 = vunpack.c.l.b16 %v208
      %v342 = vunpack.c.h.b16 %v208
      %v343 = vunpack.c.l.b16 %v209
      %v344 = vunpack.c.h.b16 %v209
      %v345 = vpack.c.b16 %v283, %v281
      %v346 = vpack.c.b16 %v284, %v282
      %v347 = vpack.c.b16 %v287, %v285
      %v348 = vpack.c.b16 %v288, %v286
      %v349 = vpack.c.b16 %v291, %v289
      %v350 = vpack.c.b16 %v292, %v290
      %v351 = vpack.c.b16 %v295, %v293
      %v352 = vpack.c.b16 %v296, %v294
      %v353 = vpack.c.b16 %v299, %v297
      %v354 = vpack.c.b16 %v300, %v298
      %v355 = vpack.c.b16 %v303, %v301
      %v356 = vpack.c.b16 %v304, %v302
      %v357 = vpack.c.b16 %v307, %v305
      %v358 = vpack.c.b16 %v308, %v306
      %v359 = vpack.c.b16 %v311, %v309
      %v360 = vpack.c.b16 %v312, %v310
      %v361 = vpack.c.b16 %v315, %v313
      %v362 = vpack.c.b16 %v316, %v314
      %v363 = vpack.c.b16 %v319, %v317
      %v364 = vpack.c.b16 %v320, %v318
      %v365 = vpack.c.b16 %v323, %v321
      %v366 = vpack.c.b16 %v324, %v322
      %v367 = vpack.c.b16 %v327, %v325
      %v368 = vpack.c.b16 %v328, %v326
      %v369 = vpack.c.b16 %v331, %v329
      %v370 = vpack.c.b16 %v332, %v330
      %v371 = vpack.c.b16 %v335, %v333
      %v372 = vpack.c.b16 %v336, %v334
      %v373 = vpack.c.b16 %v339, %v337
      %v374 = vpack.c.b16 %v340, %v338
      %v375 = vpack.c.b16 %v343, %v341
      %v376 = vpack.c.b16 %v344, %v342
      %v441 = vunpack.c.l.b16 %v210
      %v442 = vunpack.c.l.b16 %v211
      %v443 = vunpack.c.l.b16 %v212
      %v444 = vunpack.c.l.b16 %v213
      %v445 = vunpack.c.l.b16 %v214
      %v446 = vunpack.c.l.b16 %v215
      %v447 = vunpack.c.l.b16 %v216
      %v448 = vunpack.c.l.b16 %v217
      %v449 = vunpack.c.l.b16 %v218
      %v450 = vunpack.c.l.b16 %v219
      %v451 = vunpack.c.l.b16 %v220
      %v452 = vunpack.c.l.b16 %v221
      %v453 = vunpack.c.l.b16 %v222
      %v454 = vunpack.c.l.b16 %v223
      %v455 = vunpack.c.l.b16 %v224
      %v456 = vunpack.c.l.b16 %v225
      %v457 = vunpack.c.l.b16 %v226
      %v458 = vunpack.c.l.b16 %v227
      %v459 = vunpack.c.l.b16 %v228
      %v460 = vunpack.c.l.b16 %v229
      %v461 = vunpack.c.l.b16 %v230
      %v462 = vunpack.c.l.b16 %v231
      %v463 = vunpack.c.l.b16 %v232
      %v464 = vunpack.c.l.b16 %v233
      %v465 = vunpack.c.l.b16 %v234
      %v466 = vunpack.c.l.b16 %v235
      %v467 = vunpack.c.l.b16 %v236
      %v468 = vunpack.c.l.b16 %v237
      %v469 = vunpack.c.l.b16 %v238
      %v470 = vunpack.c.l.b16 %v239
      %v471 = vunpack.c.l.b16 %v240
      %v472 = vunpack.c.l.b16 %v241
      %v473 = vpack.c.b16 %v442, %v441
      %v474 = vpack.c.b16 %v444, %v443
      %v475 = vpack.c.b16 %v446, %v445
      %v476 = vpack.c.b16 %v448, %v447
      %v477 = vpack.c.b16 %v450, %v449
      %v478 = vpack.c.b16 %v452, %v451
      %v479 = vpack.c.b16 %v454, %v453
      %v480 = vpack.c.b16 %v456, %v455
      %v481 = vpack.c.b16 %v458, %v457
      %v482 = vpack.c.b16 %v460, %v459
      %v483 = vpack.c.b16 %v462, %v461
      %v484 = vpack.c.b16 %v464, %v463
      %v485 = vpack.c.b16 %v466, %v465
      %v486 = vpack.c.b16 %v468, %v467
      %v487 = vpack.c.b16 %v470, %v469
      %v488 = vpack.c.b16 %v472, %v471
      %505 = vmatprep.subr.bf16.mxu0 0
      %506 = vmatpush1.bf16.msra.mxu0 %v473
      %507 = vmatprep.subr.bf16.mxu0 0
      %508 = vmatpush1.bf16.msra.mxu0 %v474
      %509 = vmatprep.subr.bf16.mxu0 0
      %510 = vmatpush1.bf16.msra.mxu0 %v475
      %511 = vmatprep.subr.bf16.mxu0 0
      %512 = vmatpush1.bf16.msra.mxu0 %v476
      %513 = vmatprep.subr.bf16.mxu0 0
      %514 = vmatpush1.bf16.msra.mxu0 %v477
      %515 = vmatprep.subr.bf16.mxu0 0
      %516 = vmatpush1.bf16.msra.mxu0 %v478
      %517 = vmatprep.subr.bf16.mxu0 0
      %518 = vmatpush1.bf16.msra.mxu0 %v479
      %519 = vmatprep.subr.bf16.mxu0 0
      %520 = vmatpush1.bf16.msra.mxu0 %v480
      %521 = vmatprep.subr.bf16.mxu0 0
      %522 = vmatpush1.bf16.msra.mxu0 %v481
      %523 = vmatprep.subr.bf16.mxu0 0
      %524 = vmatpush1.bf16.msra.mxu0 %v482
      %525 = vmatprep.subr.bf16.mxu0 0
      %526 = vmatpush1.bf16.msra.mxu0 %v483
      %527 = vmatprep.subr.bf16.mxu0 0
      %528 = vmatpush1.bf16.msra.mxu0 %v484
      %529 = vmatprep.subr.bf16.mxu0 0
      %530 = vmatpush1.bf16.msra.mxu0 %v485
      %531 = vmatprep.subr.bf16.mxu0 0
      %532 = vmatpush1.bf16.msra.mxu0 %v486
      %533 = vmatprep.subr.bf16.mxu0 0
      %534 = vmatpush1.bf16.msra.mxu0 %v487
      %535 = vmatprep.subr.bf16.mxu0 0
      %536 = vmatpush1.bf16.msra.mxu0 %v488
      %537 = vmatprep.mubr.bf16.mxu0 %v346
      %538 = vmatmul.mubr.bf16.gmra.mrb[0].mxu0 %v345
      %v539 = vpop.f32.mrb[0].mxu0
      %v540 = vadd.f32 %v247, %v539
      %v541 = vpop.f32.mrb[0].mxu0
      %v542 = vpop.f32.mrb[0].mxu0
      %v543 = vadd.f32 %v247, %v542
      %v544 = vpop.f32.mrb[0].mxu0
      %545 = vmatprep.mubr.bf16.mxu0 %v348
      %546 = vmatmul.mubr.bf16.gmra.mrb[0].mxu0 %v347
      %v547 = vpop.f32.mrb[0].mxu0
      %v548 = vadd.f32 %v247, %v547
      %v549 = vpop.f32.mrb[0].mxu0
      %v550 = vpop.f32.mrb[0].mxu0
      %v551 = vadd.f32 %v247, %v550
      %v552 = vpop.f32.mrb[0].mxu0
      %553 = vmatprep.mubr.bf16.mxu0 %v350
      %554 = vmatmul.mubr.bf16.gmra.mrb[0].mxu0 %v349
      %v555 = vpop.f32.mrb[0].mxu0
      %v556 = vadd.f32 %v247, %v555
      %v557 = vpop.f32.mrb[0].mxu0
      %v558 = vpop.f32.mrb[0].mxu0
      %v559 = vadd.f32 %v247, %v558
      %v560 = vpop.f32.mrb[0].mxu0
      %561 = vmatprep.mubr.bf16.mxu0 %v352
      %562 = vmatmul.mubr.bf16.gmra.mrb[0].mxu0 %v351
      %v563 = vpop.f32.mrb[0].mxu0
      %v564 = vadd.f32 %v247, %v563
      %v565 = vpop.f32.mrb[0].mxu0
      %v566 = vpop.f32.mrb[0].mxu0
      %v567 = vadd.f32 %v247, %v566
      %v568 = vpop.f32.mrb[0].mxu0
      %569 = vmatprep.mubr.bf16.mxu0 %v354
      %570 = vmatmul.mubr.bf16.gmra.mrb[0].mxu0 %v353
      %v571 = vpop.f32.mrb[0].mxu0
      %v572 = vadd.f32 %v247, %v571
      %v573 = vpop.f32.mrb[0].mxu0
      %v574 = vpop.f32.mrb[0].mxu0
      %v575 = vadd.f32 %v247, %v574
      %v576 = vpop.f32.mrb[0].mxu0
      %577 = vmatprep.mubr.bf16.mxu0 %v356
      %578 = vmatmul.mubr.bf16.gmra.mrb[0].mxu0 %v355
      %v579 = vpop.f32.mrb[0].mxu0
      %v580 = vadd.f32 %v247, %v579
      %v581 = vpop.f32.mrb[0].mxu0
      %v582 = vpop.f32.mrb[0].mxu0
      %v583 = vadd.f32 %v247, %v582
      %v584 = vpop.f32.mrb[0].mxu0
      %585 = vmatprep.mubr.bf16.mxu0 %v358
      %586 = vmatmul.mubr.bf16.gmra.mrb[0].mxu0 %v357
      %v587 = vpop.f32.mrb[0].mxu0
      %v588 = vadd.f32 %v247, %v587
      %v589 = vpop.f32.mrb[0].mxu0
      %v590 = vpop.f32.mrb[0].mxu0
      %v591 = vadd.f32 %v247, %v590
      %v592 = vpop.f32.mrb[0].mxu0
      %593 = vmatprep.mubr.bf16.mxu0 %v360
      %594 = vmatmul.mubr.bf16.gmra.mrb[0].mxu0 %v359
      %v595 = vpop.f32.mrb[0].mxu0
      %v596 = vadd.f32 %v247, %v595
      %v597 = vpop.f32.mrb[0].mxu0
      %v598 = vpop.f32.mrb[0].mxu0
      %v599 = vadd.f32 %v247, %v598
      %v600 = vpop.f32.mrb[0].mxu0
      %601 = vmatprep.mubr.bf16.mxu0 %v362
      %602 = vmatmul.mubr.bf16.gmra.mrb[0].mxu0 %v361
      %v603 = vpop.f32.mrb[0].mxu0
      %v604 = vadd.f32 %v247, %v603
      %v605 = vpop.f32.mrb[0].mxu0
      %v606 = vpop.f32.mrb[0].mxu0
      %v607 = vadd.f32 %v247, %v606
      %v608 = vpop.f32.mrb[0].mxu0
      %609 = vmatprep.mubr.bf16.mxu0 %v364
      %610 = vmatmul.mubr.bf16.gmra.mrb[0].mxu0 %v363
      %v611 = vpop.f32.mrb[0].mxu0
      %v612 = vadd.f32 %v247, %v611
      %v613 = vpop.f32.mrb[0].mxu0
      %v614 = vpop.f32.mrb[0].mxu0
      %v615 = vadd.f32 %v247, %v614
      %v616 = vpop.f32.mrb[0].mxu0
      %617 = vmatprep.mubr.bf16.mxu0 %v366
      %618 = vmatmul.mubr.bf16.gmra.mrb[0].mxu0 %v365
      %v619 = vpop.f32.mrb[0].mxu0
      %v620 = vadd.f32 %v247, %v619
      %v621 = vpop.f32.mrb[0].mxu0
      %v622 = vpop.f32.mrb[0].mxu0
      %v623 = vadd.f32 %v247, %v622
      %v624 = vpop.f32.mrb[0].mxu0
      %625 = vmatprep.mubr.bf16.mxu0 %v368
      %626 = vmatmul.mubr.bf16.gmra.mrb[0].mxu0 %v367
      %v627 = vpop.f32.mrb[0].mxu0
      %v628 = vadd.f32 %v247, %v627
      %v629 = vpop.f32.mrb[0].mxu0
      %v630 = vpop.f32.mrb[0].mxu0
      %v631 = vadd.f32 %v247, %v630
      %v632 = vpop.f32.mrb[0].mxu0
      %633 = vmatprep.mubr.bf16.mxu0 %v370
      %634 = vmatmul.mubr.bf16.gmra.mrb[0].mxu0 %v369
      %v635 = vpop.f32.mrb[0].mxu0
      %v636 = vadd.f32 %v247, %v635
      %v637 = vpop.f32.mrb[0].mxu0
      %v638 = vpop.f32.mrb[0].mxu0
      %v639 = vadd.f32 %v247, %v638
      %v640 = vpop.f32.mrb[0].mxu0
      %641 = vmatprep.mubr.bf16.mxu0 %v372
      %642 = vmatmul.mubr.bf16.gmra.mrb[0].mxu0 %v371
      %v643 = vpop.f32.mrb[0].mxu0
      %v644 = vadd.f32 %v247, %v643
      %v645 = vpop.f32.mrb[0].mxu0
      %v646 = vpop.f32.mrb[0].mxu0
      %v647 = vadd.f32 %v247, %v646
      %v648 = vpop.f32.mrb[0].mxu0
      %649 = vmatprep.mubr.bf16.mxu0 %v374
      %650 = vmatmul.mubr.bf16.gmra.mrb[0].mxu0 %v373
      %v651 = vpop.f32.mrb[0].mxu0
      %v652 = vadd.f32 %v247, %v651
      %v653 = vpop.f32.mrb[0].mxu0
      %v654 = vpop.f32.mrb[0].mxu0
      %v655 = vadd.f32 %v247, %v654
      %v656 = vpop.f32.mrb[0].mxu0
      %657 = vmatprep.mubr.bf16.mxu0 %v376
      %658 = vmatmul.mubr.bf16.gmra.mrb[0].mxu0 %v375
      %v659 = vpop.f32.mrb[0].mxu0
      %v660 = vadd.f32 %v247, %v659
      %v661 = vpop.f32.mrb[0].mxu0
      %v662 = vpop.f32.mrb[0].mxu0
      %v663 = vadd.f32 %v247, %v662
      %v664 = vpop.f32.mrb[0].mxu0
      %665 = vdwg.mxu0
      %v666 = vmax.f32 %v540, 0.0
      %v667 = vmax.f32 %v543, 0.0
      %v668 = vmax.f32 %v548, 0.0
      %v669 = vmax.f32 %v551, 0.0
      %v670 = vmax.f32 %v556, 0.0
      %v671 = vmax.f32 %v559, 0.0
      %v672 = vmax.f32 %v564, 0.0
      %v673 = vmax.f32 %v567, 0.0
      %v674 = vmax.f32 %v572, 0.0
      %v675 = vmax.f32 %v575, 0.0
      %v676 = vmax.f32 %v580, 0.0
      %v677 = vmax.f32 %v583, 0.0
      %v678 = vmax.f32 %v588, 0.0
      %v679 = vmax.f32 %v591, 0.0
      %v680 = vmax.f32 %v596, 0.0
      %v681 = vmax.f32 %v599, 0.0
      %v682 = vmax.f32 %v604, 0.0
      %v683 = vmax.f32 %v607, 0.0
      %v684 = vmax.f32 %v612, 0.0
      %v685 = vmax.f32 %v615, 0.0
      %v686 = vmax.f32 %v620, 0.0
      %v687 = vmax.f32 %v623, 0.0
      %v688 = vmax.f32 %v628, 0.0
      %v689 = vmax.f32 %v631, 0.0
      %v690 = vmax.f32 %v636, 0.0
      %v691 = vmax.f32 %v639, 0.0
      %v692 = vmax.f32 %v644, 0.0
      %v693 = vmax.f32 %v647, 0.0
      %v694 = vmax.f32 %v652, 0.0
      %v695 = vmax.f32 %v655, 0.0
      %v696 = vmax.f32 %v660, 0.0
      %v697 = vmax.f32 %v663, 0.0
      %v698 = vpack.c.bf16 %v667, %v666
      %v699 = vpack.c.bf16 %v669, %v668
      %v700 = vpack.c.bf16 %v671, %v670
      %v701 = vpack.c.bf16 %v673, %v672
      %v702 = vpack.c.bf16 %v675, %v674
      %v703 = vpack.c.bf16 %v677, %v676
      %v704 = vpack.c.bf16 %v679, %v678
      %v705 = vpack.c.bf16 %v681, %v680
      %v706 = vpack.c.bf16 %v683, %v682
      %v707 = vpack.c.bf16 %v685, %v684
      %v708 = vpack.c.bf16 %v687, %v686
      %v709 = vpack.c.bf16 %v689, %v688
      %v710 = vpack.c.bf16 %v691, %v690
      %v711 = vpack.c.bf16 %v693, %v692
      %v712 = vpack.c.bf16 %v695, %v694
      %v713 = vpack.c.bf16 %v697, %v696
      %v730 = vunpack.c.l.b16 %v698
      %v731 = vunpack.c.h.b16 %v698
      %v732 = vunpack.c.l.b16 %v699
      %v733 = vunpack.c.h.b16 %v699
      %v734 = vunpack.c.l.b16 %v700
      %v735 = vunpack.c.h.b16 %v700
      %v736 = vunpack.c.l.b16 %v701
      %v737 = vunpack.c.h.b16 %v701
      %v738 = vunpack.c.l.b16 %v702
      %v739 = vunpack.c.h.b16 %v702
      %v740 = vunpack.c.l.b16 %v703
      %v741 = vunpack.c.h.b16 %v703
      %v742 = vunpack.c.l.b16 %v704
      %v743 = vunpack.c.h.b16 %v704
      %v744 = vunpack.c.l.b16 %v705
      %v745 = vunpack.c.h.b16 %v705
      %v746 = vunpack.c.l.b16 %v706
      %v747 = vunpack.c.h.b16 %v706
      %v748 = vunpack.c.l.b16 %v707
      %v749 = vunpack.c.h.b16 %v707
      %v750 = vunpack.c.l.b16 %v708
      %v751 = vunpack.c.h.b16 %v708
      %v752 = vunpack.c.l.b16 %v709
      %v753 = vunpack.c.h.b16 %v709
      %v754 = vunpack.c.l.b16 %v710
      %v755 = vunpack.c.h.b16 %v710
      %v756 = vunpack.c.l.b16 %v711
      %v757 = vunpack.c.h.b16 %v711
      %v758 = vunpack.c.l.b16 %v712
      %v759 = vunpack.c.h.b16 %v712
      %v760 = vunpack.c.l.b16 %v713
      %v761 = vunpack.c.h.b16 %v713
      %v762 = vpack.c.b16 %v730, %v730
      %v763 = vpack.c.b16 %v731, %v731
      %v764 = vpack.c.b16 %v732, %v732
      %v765 = vpack.c.b16 %v733, %v733
      %v766 = vpack.c.b16 %v734, %v734
      %v767 = vpack.c.b16 %v735, %v735
      %v768 = vpack.c.b16 %v736, %v736
      %v769 = vpack.c.b16 %v737, %v737
      %v770 = vpack.c.b16 %v738, %v738
      %v771 = vpack.c.b16 %v739, %v739
      %v772 = vpack.c.b16 %v740, %v740
      %v773 = vpack.c.b16 %v741, %v741
      %v774 = vpack.c.b16 %v742, %v742
      %v775 = vpack.c.b16 %v743, %v743
      %v776 = vpack.c.b16 %v744, %v744
      %v777 = vpack.c.b16 %v745, %v745
      %v778 = vpack.c.b16 %v746, %v746
      %v779 = vpack.c.b16 %v747, %v747
      %v780 = vpack.c.b16 %v748, %v748
      %v781 = vpack.c.b16 %v749, %v749
      %v782 = vpack.c.b16 %v750, %v750
      %v783 = vpack.c.b16 %v751, %v751
      %v784 = vpack.c.b16 %v752, %v752
      %v785 = vpack.c.b16 %v753, %v753
      %v786 = vpack.c.b16 %v754, %v754
      %v787 = vpack.c.b16 %v755, %v755
      %v788 = vpack.c.b16 %v756, %v756
      %v789 = vpack.c.b16 %v757, %v757
      %v790 = vpack.c.b16 %v758, %v758
      %v791 = vpack.c.b16 %v759, %v759
      %v792 = vpack.c.b16 %v760, %v760
      %v793 = vpack.c.b16 %v761, %v761
      %826 = vst [vmem:[%s175] sm:$0xf] %v762
      %827 = vst [vmem:[%s175 + $0x4] sm:$0xf] %v763
      %828 = vst [vmem:[%s175 + $0x8] sm:$0xf] %v764
      %829 = vst [vmem:[%s175 + $0xc] sm:$0xf] %v765
      %830 = vst [vmem:[%s175 + $0x10] sm:$0xf] %v766
      %831 = vst [vmem:[%s175 + $0x14] sm:$0xf] %v767
      %832 = vst [vmem:[%s175 + $0x18] sm:$0xf] %v768
      %833 = vst [vmem:[%s175 + $0x1c] sm:$0xf] %v769
      %834 = vst [vmem:[%s175 + $0x20] sm:$0xf] %v770
      %835 = vst [vmem:[%s175 + $0x24] sm:$0xf] %v771
      %836 = vst [vmem:[%s175 + $0x28] sm:$0xf] %v772
      %837 = vst [vmem:[%s175 + $0x2c] sm:$0xf] %v773
      %838 = vst [vmem:[%s175 + $0x30] sm:$0xf] %v774
      %839 = vst [vmem:[%s175 + $0x34] sm:$0xf] %v775
      %840 = vst [vmem:[%s175 + $0x38] sm:$0xf] %v776
      %841 = vst [vmem:[%s175 + $0x3c] sm:$0xf] %v777
      %842 = vst [vmem:[%s175 + $0x40] sm:$0xf] %v778
      %843 = vst [vmem:[%s175 + $0x44] sm:$0xf] %v779
      %844 = vst [vmem:[%s175 + $0x48] sm:$0xf] %v780
      %845 = vst [vmem:[%s175 + $0x4c] sm:$0xf] %v781
      %846 = vst [vmem:[%s175 + $0x50] sm:$0xf] %v782
      %847 = vst [vmem:[%s175 + $0x54] sm:$0xf] %v783
      %848 = vst [vmem:[%s175 + $0x58] sm:$0xf] %v784
      %849 = vst [vmem:[%s175 + $0x5c] sm:$0xf] %v785
      %850 = vst [vmem:[%s175 + $0x60] sm:$0xf] %v786
      %851 = vst [vmem:[%s175 + $0x64] sm:$0xf] %v787
      %852 = vst [vmem:[%s175 + $0x68] sm:$0xf] %v788
      %853 = vst [vmem:[%s175 + $0x6c] sm:$0xf] %v789
      %854 = vst [vmem:[%s175 + $0x70] sm:$0xf] %v790
      %855 = vst [vmem:[%s175 + $0x74] sm:$0xf] %v791
      %856 = vst [vmem:[%s175 + $0x78] sm:$0xf] %v792
      %857 = vst [vmem:[%s175 + $0x7c] sm:$0xf] %v793
      %s858 = smul.u32 32, %s14
      %p859 = scmp.lt.s32.totalorder %s858, 63
      %s860 = scalar_select %p859, %s858, 63
      %s861 = smul.addr %s860, 4
      %s862 = scalar_lea.vmem %s3, %s861
      // Predicated region
      $region33: #{_lambda_.21} parent=31 // pred_check
        %p863 = pneg %p100
      $region34: #{_lambda_.21} parent=31 // pred_check_branch
        %865 = sbr.rel (%p863) target = $region36
      $region35: #{_lambda_.21} parent=31 // pred_region
        %s866 = smul.u32 32, %s14
      $region36: #{_lambda_.21} parent=31 // pred_fallthru
        _
    $region32: #{_lambda_.21} parent=5 // pred_fallthru
      _
    %p867 = scmp.le.s32.totalorder 2, %s9
    // Predicated region
    $region37: #{_lambda_.21} parent=5 // pred_check
      %p868 = pneg %p867
    $region38: #{_lambda_.21} parent=5 // pred_check_branch
      %870 = sbr.rel (%p868) target = $region40
    $region39: #{_lambda_.21} parent=5 // pred_region
      %s871 = ssub.s32 %s9, 2
      // Predicated region
      $region41: #{_lambda_.21} parent=39 // pred_check
        %p872 = pneg %p106
      $region42: #{_lambda_.21} parent=39 // pred_check_branch
        %874 = sbr.rel (%p872) target = $region44
      $region43: #{_lambda_.21} parent=39 // pred_region
        %s875 = smul.u32 32, %s15
        %p876 = scmp.lt.s32.totalorder %s875, 63
        %s877 = scalar_select %p876, %s875, 63
        %s878 = smul.addr %s877, 4
        %s879 = scalar_lea.vmem %s3, %s878
      $region44: #{_lambda_.21} parent=39 // pred_fallthru
        _
    $region40: #{_lambda_.21} parent=5 // pred_fallthru
      _
  $region6: #{_lambda_.21} parent=0 // loop_footer
    %s13 = sadd.s32 1, %s9
  $region7: #{_lambda_.21} parent=0 // loop_footer_branch
    %8 = sbr.rel target = $region3
  $region8: #{_lambda_.21} parent=0 // loop_exit
    _

// kernel: _lambda_.23
$region0: #{_lambda_.23}
  #allocation0 [shape = 'u32[]', space=smem, size = 0x4, offset = 0x4, fixed_abs, tag = 'smem constant byte address 0x4 - core index']
  #allocation1 [shape = 'u32[144,128]{1,0:T(1,128)}', space=vmem, size = 0x12000, scoped, tag = 'internal scratch']
  %s0 = inlined_call_operand.vmem [shape: bf16[128,1152], index: 0, kind: input, shape index: {}]
  %s1 = inlined_call_operand.vmem [shape: bf16[1152,128], index: 1, kind: input, shape index: {}]
  %s2 = inlined_call_operand.vmem [shape: f32[1,128], index: 2, kind: input, shape index: {}]
  %s3 = inlined_call_operand.vmem [shape: bf16[128,128], index: 3, kind: output, shape index: {}]
  %s4 = sld [smem:[#allocation0]]
  $region45: #{_lambda_.23} parent=0
    _
  %s6 = ssub.s32 1, %s4
  %s7 = scalar_select 0, %s6, %s4
  loop: start=0, step=1, limit=4
  $region2: #{_lambda_.23} parent=0 // loop_pre_header
    _
  $region3: #{_lambda_.23} parent=0 // loop_header
    %s9 = sphi 0, %s13
    %p10 = scmp.ge.s32.totalorder %s9, 4
    %s19 = sphi 0, %s21
    %s22 = sphi 0, %s19
    %s23 = sphi 0, %s22
    %s39 = sphi 0, %s23
    %s43 = sphi 0, %s43
    %s45 = sphi 0, %s43
    %s46 = sphi 0, %s45
    %s60 = sphi 0, %s46
    %s64 = sphi 0, %s64
    %s66 = sphi 0, %s64
    %s67 = sphi 0, %s66
    %s81 = sphi 0, %s67
    %s87 = sphi 0, %s89
    %s90 = sphi 0, %s87
    %s91 = sphi 0, %s90
    %s107 = sphi 0, %s91
  $region4: #{_lambda_.23} parent=0 // loop_header_branch
    %12 = sbr.rel (%p10) target = $region8
  $region5: #{_lambda_.23} parent=0 // loop_body
    %s14 = ssub.s32 %s9, 1
    %s15 = ssub.s32 %s9, 2
    %s16 = sadd.s32 %s9, 1
    %s17 = ssub.s32 %s9, %s16
    %p18 = scmp.eq.s32.totalorder %s17, 0
    %s20 = sadd.s32 %s19, 1
    %s21 = scalar_select %p18, %s19, %s20
    %p24 = pneg %p18
    %p25 = scmp.eq.s32.totalorder %s9, 1
    %p26 = por %p24, %p25
    %p27 = scmp.ne.s32.totalorder %s19, %s22
    %p28 = scmp.eq.s32.totalorder %s9, 0
    %p29 = por %p27, %p28
    %p30 = scmp.ne.s32.totalorder %s19, %s22
    %p31 = scmp.eq.s32.totalorder %s14, 1
    %p32 = por %p30, %p31
    %p33 = scmp.ne.s32.totalorder %s22, %s23
    %p34 = scmp.eq.s32.totalorder %s14, 0
    %p35 = por %p33, %p34
    %p36 = scmp.ne.s32.totalorder %s22, %s23
    %p37 = scmp.eq.s32.totalorder %s15, 1
    %p38 = por %p36, %p37
    %p40 = scmp.ne.s32.totalorder %s23, %s39
    %p41 = scmp.eq.s32.totalorder %s15, 0
    %p42 = por %p40, %p41
    %s44 = sadd.s32 %s43, 1
    %p47 = scmp.eq.s32.totalorder %s9, 1
    %p48 = scmp.ne.s32.totalorder %s43, %s45
    %p49 = scmp.eq.s32.totalorder %s9, 0
    %p50 = por %p48, %p49
    %p51 = scmp.ne.s32.totalorder %s43, %s45
    %p52 = scmp.eq.s32.totalorder %s14, 1
    %p53 = por %p51, %p52
    %p54 = scmp.ne.s32.totalorder %s45, %s46
    %p55 = scmp.eq.s32.totalorder %s14, 0
    %p56 = por %p54, %p55
    %p57 = scmp.ne.s32.totalorder %s45, %s46
    %p58 = scmp.eq.s32.totalorder %s15, 1
    %p59 = por %p57, %p58
    %p61 = scmp.ne.s32.totalorder %s46, %s60
    %p62 = scmp.eq.s32.totalorder %s15, 0
    %p63 = por %p61, %p62
    %s65 = sadd.s32 %s64, 1
    %p68 = scmp.eq.s32.totalorder %s9, 1
    %p69 = scmp.ne.s32.totalorder %s64, %s66
    %p70 = scmp.eq.s32.totalorder %s9, 0
    %p71 = por %p69, %p70
    %p72 = scmp.ne.s32.totalorder %s64, %s66
    %p73 = scmp.eq.s32.totalorder %s14, 1
    %p74 = por %p72, %p73
    %p75 = scmp.ne.s32.totalorder %s66, %s67
    %p76 = scmp.eq.s32.totalorder %s14, 0
    %p77 = por %p75, %p76
    %p78 = scmp.ne.s32.totalorder %s66, %s67
    %p79 = scmp.eq.s32.totalorder %s15, 1
    %p80 = por %p78, %p79
    %p82 = scmp.ne.s32.totalorder %s67, %s81
    %p83 = scmp.eq.s32.totalorder %s15, 0
    %p84 = por %p82, %p83
    %s85 = ssub.s32 %s9, %s16
    %p86 = scmp.eq.s32.totalorder %s85, 0
    %s88 = sadd.s32 %s87, 1
    %s89 = scalar_select %p86, %s87, %s88
    %p92 = pneg %p86
    %p93 = scmp.eq.s32.totalorder %s9, 1
    %p94 = por %p92, %p93
    %p95 = scmp.ne.s32.totalorder %s87, %s90
    %p96 = scmp.eq.s32.totalorder %s9, 0
    %p97 = por %p95, %p96
    %p98 = scmp.ne.s32.totalorder %s87, %s90
    %p99 = scmp.eq.s32.totalorder %s14, 1
    %p100 = por %p98, %p99
    %p101 = scmp.ne.s32.totalorder %s90, %s91
    %p102 = scmp.eq.s32.totalorder %s14, 0
    %p103 = por %p101, %p102
    %p104 = scmp.ne.s32.totalorder %s90, %s91
    %p105 = scmp.eq.s32.totalorder %s15, 1
    %p106 = por %p104, %p105
    %p108 = scmp.ne.s32.totalorder %s91, %s107
    %p109 = scmp.eq.s32.totalorder %s15, 0
    %p110 = por %p108, %p109
    %p111 = scmp.le.s32.totalorder 1, %s9
    %p112 = scmp.lt.s32.totalorder %s9, 3
    %p113 = pnand %p111, %p112
    %p114 = pneg %p113
    // Predicated region
    $region9: #{_lambda_.23} parent=5 // pred_check
      _
    $region10: #{_lambda_.23} parent=5 // pred_check_branch
      %116 = sbr.rel (%p113) target = $region12
    $region11: #{_lambda_.23} parent=5 // pred_region
      %s117 = ssub.s32 %s9, 1
      // Predicated region
      $region13: #{_lambda_.23} parent=11 // pred_check
        %p118 = pneg %p56
      $region14: #{_lambda_.23} parent=11 // pred_check_branch
        %120 = sbr.rel (%p118) target = $region16
      $region15: #{_lambda_.23} parent=11 // pred_region
        _
      $region16: #{_lambda_.23} parent=11 // pred_fallthru
        _
      // Predicated region
      $region17: #{_lambda_.23} parent=11 // pred_check
        %p121 = pneg %p77
      $region18: #{_lambda_.23} parent=11 // pred_check_branch
        %123 = sbr.rel (%p121) target = $region20
      $region19: #{_lambda_.23} parent=11 // pred_region
        _
      $region20: #{_lambda_.23} parent=11 // pred_fallthru
        _
    $region12: #{_lambda_.23} parent=5 // pred_fallthru
      _
    %p124 = scmp.lt.s32.totalorder %s9, 2
    // Predicated region
    $region21: #{_lambda_.23} parent=5 // pred_check
      %p125 = pneg %p124
    $region22: #{_lambda_.23} parent=5 // pred_check_branch
      %127 = sbr.rel (%p125) target = $region24
    $region23: #{_lambda_.23} parent=5 // pred_region
      // Predicated region
      $region25: #{_lambda_.23} parent=23 // pred_check
        %p128 = pneg %p29
      $region26: #{_lambda_.23} parent=23 // pred_check_branch
        %130 = sbr.rel (%p128) target = $region28
      $region27: #{_lambda_.23} parent=23 // pred_region
        %s131 = smul.u32 8, %s9
        %p132 = scmp.lt.s32.totalorder %s131, 15
        %s133 = scalar_select %p132, %s131, 15
        %s134 = smul.addr %s133, 9
        %s135 = smul.addr %s134, 4
        %s136 = scalar_lea.vmem %s0, %s135
        %s137 = smul.u32 8, %s9
      $region28: #{_lambda_.23} parent=23 // pred_fallthru
        _
    $region24: #{_lambda_.23} parent=5 // pred_fallthru
      _
    %p138 = scmp.le.s32.totalorder 1, %s9
    %p139 = scmp.lt.s32.totalorder %s9, 3
    %p140 = pnand %p138, %p139
    %p141 = pneg %p140
    // Predicated region
    $region29: #{_lambda_.23} parent=5 // pred_check
      _
    $region30: #{_lambda_.23} parent=5 // pred_check_branch
      %143 = sbr.rel (%p140) target = $region32
    $region31: #{_lambda_.23} parent=5 // pred_region
      %s144 = ssub.s32 %s9, 1
      %s145 = smul.u32 8, %s14
      %p146 = scmp.lt.s32.totalorder %s145, 15
      %s147 = scalar_select %p146, %s145, 15
      %s148 = smul.addr %s147, 9
      %s149 = smul.addr %s148, 4
      %s150 = scalar_lea.vmem %s0, %s149
      %p151 = pneg %p35
      %p152 = pneg %p32
      %p153 = pneg %p56
      %p154 = pneg %p53
      %p155 = pneg %p77
      %p156 = pneg %p74
      %p157 = pneg %p103
      %p158 = pneg %p100
      %s159 = smul.u32 8, %s14
      %p160 = scmp.lt.s32.totalorder %s159, 15
      %s161 = scalar_select %p160, %s159, 15
      %s162 = smul.addr %s161, 4
      %s163 = scalar_lea.vmem %s3, %s162
      %s164 = smul.u32 8, %s14
      %p165 = scmp.lt.s32.totalorder %s164, 15
      %s166 = scalar_select %p165, %s164, 15
      %s167 = smul.addr %s166, 9
      %s168 = smul.addr %s167, 4
      %s169 = scalar_lea.vmem %s0, %s168
      %s170 = smul.u32 8, %s14
      %s171 = smul.u32 8, %s14
      %p172 = scmp.lt.s32.totalorder %s171, 15
      %s173 = scalar_select %p172, %s171, 15
      %s174 = smul.addr %s173, 4
      %s175 = scalar_lea.vmem %s3, %s174
      %s176 = smul.u32 8, %s14
      %v178 = vld [vmem:[%s169] sm:$0xff]
      %v179 = vld [vmem:[%s169 + $0x8] sm:$0xff]
      %v180 = vld [vmem:[%s169 + $0x10] sm:$0xff]
      %v181 = vld [vmem:[%s169 + $0x18] sm:$0xff]
      %v182 = vld [vmem:[%s169 + $0x20] sm:$0xf]
      %v183 = vld [vmem:[%s169 + $0x24] sm:$0xff]
      %v184 = vld [vmem:[%s169 + $0x2c] sm:$0xff]
      %v185 = vld [vmem:[%s169 + $0x34] sm:$0xff]
      %v186 = vld [vmem:[%s169 + $0x3c] sm:$0xff]
      %v187 = vld [vmem:[%s169 + $0x44] sm:$0xf]
      %v188 = vld [vmem:[%s169 + $0x48] sm:$0xff]
      %v189 = vld [vmem:[%s169 + $0x50] sm:$0xff]
      %v190 = vld [vmem:[%s169 + $0x58] sm:$0xff]
      %v191 = vld [vmem:[%s169 + $0x60] sm:$0xff]
      %v192 = vld [vmem:[%s169 + $0x68] sm:$0xf]
      %v193 = vld [vmem:[%s169 + $0x6c] sm:$0xff]
      %v194 = vld [vmem:[%s169 + $0x74] sm:$0xff]
      %v195 = vld [vmem:[%s169 + $0x7c] sm:$0xff]
      %v196 = vld [vmem:[%s169 + $0x84] sm:$0xff]
      %v197 = vld [vmem:[%s169 + $0x8c] sm:$0xf]
      %v198 = vld [vmem:[%s169 + $0x90] sm:$0xff]
      %v199 = vld [vmem:[%s169 + $0x98] sm:$0xff]
      %v200 = vld [vmem:[%s169 + $0xa0] sm:$0xff]
      %v201 = vld [vmem:[%s169 + $0xa8] sm:$0xff]
      %v202 = vld [vmem:[%s169 + $0xb0] sm:$0xf]
      %v203 = vld [vmem:[%s169 + $0xb4] sm:$0xff]
      %v204 = vld [vmem:[%s169 + $0xbc] sm:$0xff]
      %v205 = vld [vmem:[%s169 + $0xc4] sm:$0xff]
      %v206 = vld [vmem:[%s169 + $0xcc] sm:$0xff]
      %v207 = vld [vmem:[%s169 + $0xd4] sm:$0xf]
      %v208 = vld [vmem:[%s169 + $0xd8] sm:$0xff]
      %v209 = vld [vmem:[%s169 + $0xe0] sm:$0xff]
      %v210 = vld [vmem:[%s169 + $0xe8] sm:$0xff]
      %v211 = vld [vmem:[%s169 + $0xf0] sm:$0xff]
      %v212 = vld [vmem:[%s169 + $0xf8] sm:$0xf]
      %v213 = vld [vmem:[%s169 + $0xfc] sm:$0xff]
      %v214 = vld [vmem:[%s169 + $0x104] sm:$0xff]
      %v215 = vld [vmem:[%s169 + $0x10c] sm:$0xff]
      %v216 = vld [vmem:[%s169 + $0x114] sm:$0xff]
      %v217 = vld [vmem:[%s169 + $0x11c] sm:$0xf]
      %v218 = vld [vmem:[%s1] sm:$0xf]
      %v219 = vld [vmem:[%s1 + $0x4] sm:$0xf]
      %v220 = vld [vmem:[%s1 + $0x8] sm:$0xf]
      %v221 = vld [vmem:[%s1 + $0xc] sm:$0xf]
      %v222 = vld [vmem:[%s1 + $0x10] sm:$0xf]
      %v223 = vld [vmem:[%s1 + $0x14] sm:$0xf]
      %v224 = vld [vmem:[%s1 + $0x18] sm:$0xf]
      %v225 = vld [vmem:[%s1 + $0x1c] sm:$0xf]
      %v226 = vld [vmem:[%s1 + $0x20] sm:$0xf]
      %v227 = vld [vmem:[%s1 + $0x24] sm:$0xf]
      %v228 = vld [vmem:[%s1 + $0x28] sm:$0xf]
      %v229 = vld [vmem:[%s1 + $0x2c] sm:$0xf]
      %v230 = vld [vmem:[%s1 + $0x30] sm:$0xf]
      %v231 = vld [vmem:[%s1 + $0x34] sm:$0xf]
      %v232 = vld [vmem:[%s1 + $0x38] sm:$0xf]
      %v233 = vld [vmem:[%s1 + $0x3c] sm:$0xf]
      %v234 = vld [vmem:[%s1 + $0x40] sm:$0xf]
      %v235 = vld [vmem:[%s1 + $0x44] sm:$0xf]
      %v236 = vld [vmem:[%s1 + $0x48] sm:$0xf]
      %v237 = vld [vmem:[%s1 + $0x4c] sm:$0xf]
      %v238 = vld [vmem:[%s1 + $0x50] sm:$0xf]
      %v239 = vld [vmem:[%s1 + $0x54] sm:$0xf]
      %v240 = vld [vmem:[%s1 + $0x58] sm:$0xf]
      %v241 = vld [vmem:[%s1 + $0x5c] sm:$0xf]
      %v242 = vld [vmem:[%s1 + $0x60] sm:$0xf]
      %v243 = vld [vmem:[%s1 + $0x64] sm:$0xf]
      %v244 = vld [vmem:[%s1 + $0x68] sm:$0xf]
      %v245 = vld [vmem:[%s1 + $0x6c] sm:$0xf]
      %v246 = vld [vmem:[%s1 + $0x70] sm:$0xf]
      %v247 = vld [vmem:[%s1 + $0x74] sm:$0xf]
      %v248 = vld [vmem:[%s1 + $0x78] sm:$0xf]
      %v249 = vld [vmem:[%s1 + $0x7c] sm:$0xf]
      %v250 = vld [vmem:[%s1 + $0x80] sm:$0xf]
      %v251 = vld [vmem:[%s1 + $0x84] sm:$0xf]
      %v252 = vld [vmem:[%s1 + $0x88] sm:$0xf]
      %v253 = vld [vmem:[%s1 + $0x8c] sm:$0xf]
      %v254 = vld [vmem:[%s1 + $0x90] sm:$0xf]
      %v255 = vld [vmem:[%s1 + $0x94] sm:$0xf]
      %v256 = vld [vmem:[%s1 + $0x98] sm:$0xf]
      %v257 = vld [vmem:[%s1 + $0x9c] sm:$0xf]
      %v258 = vld [vmem:[%s1 + $0xa0] sm:$0xf]
      %v259 = vld [vmem:[%s1 + $0xa4] sm:$0xf]
      %v260 = vld [vmem:[%s1 + $0xa8] sm:$0xf]
      %v261 = vld [vmem:[%s1 + $0xac] sm:$0xf]
      %v262 = vld [vmem:[%s1 + $0xb0] sm:$0xf]
      %v263 = vld [vmem:[%s1 + $0xb4] sm:$0xf]
      %v264 = vld [vmem:[%s1 + $0xb8] sm:$0xf]
      %v265 = vld [vmem:[%s1 + $0xbc] sm:$0xf]
      %v266 = vld [vmem:[%s1 + $0xc0] sm:$0xf]
      %v267 = vld [vmem:[%s1 + $0xc4] sm:$0xf]
      %v268 = vld [vmem:[%s1 + $0xc8] sm:$0xf]
      %v269 = vld [vmem:[%s1 + $0xcc] sm:$0xf]
      %v270 = vld [vmem:[%s1 + $0xd0] sm:$0xf]
      %v271 = vld [vmem:[%s1 + $0xd4] sm:$0xf]
      %v272 = vld [vmem:[%s1 + $0xd8] sm:$0xf]
      %v273 = vld [vmem:[%s1 + $0xdc] sm:$0xf]
      %v274 = vld [vmem:[%s1 + $0xe0] sm:$0xf]
      %v275 = vld [vmem:[%s1 + $0xe4] sm:$0xf]
      %v276 = vld [vmem:[%s1 + $0xe8] sm:$0xf]
      %v277 = vld [vmem:[%s1 + $0xec] sm:$0xf]
      %v278 = vld [vmem:[%s1 + $0xf0] sm:$0xf]
      %v279 = vld [vmem:[%s1 + $0xf4] sm:$0xf]
      %v280 = vld [vmem:[%s1 + $0xf8] sm:$0xf]
      %v281 = vld [vmem:[%s1 + $0xfc] sm:$0xf]
      %v282 = vld [vmem:[%s1 + $0x100] sm:$0xf]
      %v283 = vld [vmem:[%s1 + $0x104] sm:$0xf]
      %v284 = vld [vmem:[%s1 + $0x108] sm:$0xf]
      %v285 = vld [vmem:[%s1 + $0x10c] sm:$0xf]
      %v286 = vld [vmem:[%s1 + $0x110] sm:$0xf]
      %v287 = vld [vmem:[%s1 + $0x114] sm:$0xf]
      %v288 = vld [vmem:[%s1 + $0x118] sm:$0xf]
      %v289 = vld [vmem:[%s1 + $0x11c] sm:$0xf]
      %v290 = vld [vmem:[%s1 + $0x120] sm:$0xf]
      %v291 = vld [vmem:[%s1 + $0x124] sm:$0xf]
      %v292 = vld [vmem:[%s1 + $0x128] sm:$0xf]
      %v293 = vld [vmem:[%s1 + $0x12c] sm:$0xf]
      %v294 = vld [vmem:[%s1 + $0x130] sm:$0xf]
      %v295 = vld [vmem:[%s1 + $0x134] sm:$0xf]
      %v296 = vld [vmem:[%s1 + $0x138] sm:$0xf]
      %v297 = vld [vmem:[%s1 + $0x13c] sm:$0xf]
      %v298 = vld [vmem:[%s1 + $0x140] sm:$0xf]
      %v299 = vld [vmem:[%s1 + $0x144] sm:$0xf]
      %v300 = vld [vmem:[%s1 + $0x148] sm:$0xf]
      %v301 = vld [vmem:[%s1 + $0x14c] sm:$0xf]
      %v302 = vld [vmem:[%s1 + $0x150] sm:$0xf]
      %v303 = vld [vmem:[%s1 + $0x154] sm:$0xf]
      %v304 = vld [vmem:[%s1 + $0x158] sm:$0xf]
      %v305 = vld [vmem:[%s1 + $0x15c] sm:$0xf]
      %v306 = vld [vmem:[%s1 + $0x160] sm:$0xf]
      %v307 = vld [vmem:[%s1 + $0x164] sm:$0xf]
      %v308 = vld [vmem:[%s1 + $0x168] sm:$0xf]
      %v309 = vld [vmem:[%s1 + $0x16c] sm:$0xf]
      %v310 = vld [vmem:[%s1 + $0x170] sm:$0xf]
      %v311 = vld [vmem:[%s1 + $0x174] sm:$0xf]
      %v312 = vld [vmem:[%s1 + $0x178] sm:$0xf]
      %v313 = vld [vmem:[%s1 + $0x17c] sm:$0xf]
      %v314 = vld [vmem:[%s1 + $0x180] sm:$0xf]
      %v315 = vld [vmem:[%s1 + $0x184] sm:$0xf]
      %v316 = vld [vmem:[%s1 + $0x188] sm:$0xf]
      %v317 = vld [vmem:[%s1 + $0x18c] sm:$0xf]
      %v318 = vld [vmem:[%s1 + $0x190] sm:$0xf]
      %v319 = vld [vmem:[%s1 + $0x194] sm:$0xf]
      %v320 = vld [vmem:[%s1 + $0x198] sm:$0xf]
      %v321 = vld [vmem:[%s1 + $0x19c] sm:$0xf]
      %v322 = vld [vmem:[%s1 + $0x1a0] sm:$0xf]
      %v323 = vld [vmem:[%s1 + $0x1a4] sm:$0xf]
      %v324 = vld [vmem:[%s1 + $0x1a8] sm:$0xf]
      %v325 = vld [vmem:[%s1 + $0x1ac] sm:$0xf]
      %v326 = vld [vmem:[%s1 + $0x1b0] sm:$0xf]
      %v327 = vld [vmem:[%s1 + $0x1b4] sm:$0xf]
      %v328 = vld [vmem:[%s1 + $0x1b8] sm:$0xf]
      %v329 = vld [vmem:[%s1 + $0x1bc] sm:$0xf]
      %v330 = vld [vmem:[%s1 + $0x1c0] sm:$0xf]
      %v331 = vld [vmem:[%s1 + $0x1c4] sm:$0xf]
      %v332 = vld [vmem:[%s1 + $0x1c8] sm:$0xf]
      %v333 = vld [vmem:[%s1 + $0x1cc] sm:$0xf]
      %v334 = vld [vmem:[%s1 + $0x1d0] sm:$0xf]
      %v335 = vld [vmem:[%s1 + $0x1d4] sm:$0xf]
      %v336 = vld [vmem:[%s1 + $0x1d8] sm:$0xf]
      %v337 = vld [vmem:[%s1 + $0x1dc] sm:$0xf]
      %v338 = vld [vmem:[%s1 + $0x1e0] sm:$0xf]
      %v339 = vld [vmem:[%s1 + $0x1e4] sm:$0xf]
      %v340 = vld [vmem:[%s1 + $0x1e8] sm:$0xf]
      %v341 = vld [vmem:[%s1 + $0x1ec] sm:$0xf]
      %v342 = vld [vmem:[%s1 + $0x1f0] sm:$0xf]
      %v343 = vld [vmem:[%s1 + $0x1f4] sm:$0xf]
      %v344 = vld [vmem:[%s1 + $0x1f8] sm:$0xf]
      %v345 = vld [vmem:[%s1 + $0x1fc] sm:$0xf]
      %v346 = vld [vmem:[%s1 + $0x200] sm:$0xf]
      %v347 = vld [vmem:[%s1 + $0x204] sm:$0xf]
      %v348 = vld [vmem:[%s1 + $0x208] sm:$0xf]
      %v349 = vld [vmem:[%s1 + $0x20c] sm:$0xf]
      %v350 = vld [vmem:[%s1 + $0x210] sm:$0xf]
      %v351 = vld [vmem:[%s1 + $0x214] sm:$0xf]
      %v352 = vld [vmem:[%s1 + $0x218] sm:$0xf]
      %v353 = vld [vmem:[%s1 + $0x21c] sm:$0xf]
      %v354 = vld [vmem:[%s1 + $0x220] sm:$0xf]
      %v355 = vld [vmem:[%s1 + $0x224] sm:$0xf]
      %v356 = vld [vmem:[%s1 + $0x228] sm:$0xf]
      %v357 = vld [vmem:[%s1 + $0x22c] sm:$0xf]
      %v358 = vld [vmem:[%s1 + $0x230] sm:$0xf]
      %v359 = vld [vmem:[%s1 + $0x234] sm:$0xf]
      %v360 = vld [vmem:[%s1 + $0x238] sm:$0xf]
      %v361 = vld [vmem:[%s1 + $0x23c] sm:$0xf]
      %v362 = vld [vmem:[%s2] sm:$0x1]
      %v364 = vlaneseq
      %v365 = vshrl.u32 %v364, 7
      %v366 = vsub.s32 0, %v365
      %v367 = vrot.slane %v362, %v366
      %v409 = vunpack.c.l.b16 %v178
      %v410 = vunpack.c.h.b16 %v178
      %v411 = vunpack.c.l.b16 %v179
      %v412 = vunpack.c.h.b16 %v179
      %v413 = vunpack.c.l.b16 %v180
      %v414 = vunpack.c.h.b16 %v180
      %v415 = vunpack.c.l.b16 %v181
      %v416 = vunpack.c.h.b16 %v181
      %v417 = vunpack.c.l.b16 %v182
      %v418 = vunpack.c.l.b16 %v183
      %v419 = vunpack.c.h.b16 %v183
      %v420 = vunpack.c.l.b16 %v184
      %v421 = vunpack.c.h.b16 %v184
      %v422 = vunpack.c.l.b16 %v185
      %v423 = vunpack.c.h.b16 %v185
      %v424 = vunpack.c.l.b16 %v186
      %v425 = vunpack.c.h.b16 %v186
      %v426 = vunpack.c.l.b16 %v187
      %v427 = vunpack.c.l.b16 %v188
      %v428 = vunpack.c.h.b16 %v188
      %v429 = vunpack.c.l.b16 %v189
      %v430 = vunpack.c.h.b16 %v189
      %v431 = vunpack.c.l.b16 %v190
      %v432 = vunpack.c.h.b16 %v190
      %v433 = vunpack.c.l.b16 %v191
      %v434 = vunpack.c.h.b16 %v191
      %v435 = vunpack.c.l.b16 %v192
      %v436 = vunpack.c.l.b16 %v193
      %v437 = vunpack.c.h.b16 %v193
      %v438 = vunpack.c.l.b16 %v194
      %v439 = vunpack.c.h.b16 %v194
      %v440 = vunpack.c.l.b16 %v195
      %v441 = vunpack.c.h.b16 %v195
      %v442 = vunpack.c.l.b16 %v196
      %v443 = vunpack.c.h.b16 %v196
      %v444 = vunpack.c.l.b16 %v197
      %v445 = vunpack.c.l.b16 %v198
      %v446 = vunpack.c.h.b16 %v198
      %v447 = vunpack.c.l.b16 %v199
      %v448 = vunpack.c.h.b16 %v199
      %v449 = vunpack.c.l.b16 %v200
      %v450 = vunpack.c.h.b16 %v200
      %v451 = vunpack.c.l.b16 %v201
      %v452 = vunpack.c.h.b16 %v201
      %v453 = vunpack.c.l.b16 %v202
      %v454 = vunpack.c.l.b16 %v203
      %v455 = vunpack.c.h.b16 %v203
      %v456 = vunpack.c.l.b16 %v204
      %v457 = vunpack.c.h.b16 %v204
      %v458 = vunpack.c.l.b16 %v205
      %v459 = vunpack.c.h.b16 %v205
      %v460 = vunpack.c.l.b16 %v206
      %v461 = vunpack.c.h.b16 %v206
      %v462 = vunpack.c.l.b16 %v207
      %v463 = vunpack.c.l.b16 %v208
      %v464 = vunpack.c.h.b16 %v208
      %v465 = vunpack.c.l.b16 %v209
      %v466 = vunpack.c.h.b16 %v209
      %v467 = vunpack.c.l.b16 %v210
      %v468 = vunpack.c.h.b16 %v210
      %v469 = vunpack.c.l.b16 %v211
      %v470 = vunpack.c.h.b16 %v211
      %v471 = vunpack.c.l.b16 %v212
      %v472 = vunpack.c.l.b16 %v213
      %v473 = vunpack.c.h.b16 %v213
      %v474 = vunpack.c.l.b16 %v214
      %v475 = vunpack.c.h.b16 %v214
      %v476 = vunpack.c.l.b16 %v215
      %v477 = vunpack.c.h.b16 %v215
      %v478 = vunpack.c.l.b16 %v216
      %v479 = vunpack.c.h.b16 %v216
      %v480 = vunpack.c.l.b16 %v217
      %v481 = vpack.c.b16 %v418, %v409
      %v482 = vpack.c.b16 %v419, %v410
      %v483 = vpack.c.b16 %v420, %v411
      %v484 = vpack.c.b16 %v421, %v412
      %v485 = vpack.c.b16 %v422, %v413
      %v486 = vpack.c.b16 %v423, %v414
      %v487 = vpack.c.b16 %v424, %v415
      %v488 = vpack.c.b16 %v425, %v416
      %v489 = vpack.c.b16 %v426, %v417
      %v490 = vpack.c.b16 %v436, %v427
      %v491 = vpack.c.b16 %v437, %v428
      %v492 = vpack.c.b16 %v438, %v429
      %v493 = vpack.c.b16 %v439, %v430
      %v494 = vpack.c.b16 %v440, %v431
      %v495 = vpack.c.b16 %v441, %v432
      %v496 = vpack.c.b16 %v442, %v433
      %v497 = vpack.c.b16 %v443, %v434
      %v498 = vpack.c.b16 %v444, %v435
      %v499 = vpack.c.b16 %v454, %v445
      %v500 = vpack.c.b16 %v455, %v446
      %v501 = vpack.c.b16 %v456, %v447
      %v502 = vpack.c.b16 %v457, %v448
      %v503 = vpack.c.b16 %v458, %v449
      %v504 = vpack.c.b16 %v459, %v450
      %v505 = vpack.c.b16 %v460, %v451
      %v506 = vpack.c.b16 %v461, %v452
      %v507 = vpack.c.b16 %v462, %v453
      %v508 = vpack.c.b16 %v472, %v463
      %v509 = vpack.c.b16 %v473, %v464
      %v510 = vpack.c.b16 %v474, %v465
      %v511 = vpack.c.b16 %v475, %v466
      %v512 = vpack.c.b16 %v476, %v467
      %v513 = vpack.c.b16 %v477, %v468
      %v514 = vpack.c.b16 %v478, %v469
      %v515 = vpack.c.b16 %v479, %v470
      %v516 = vpack.c.b16 %v480, %v471
      %v697 = vunpack.c.l.b16 %v218
      %v698 = vunpack.c.l.b16 %v219
      %v699 = vunpack.c.l.b16 %v220
      %v700 = vunpack.c.l.b16 %v221
      %v701 = vunpack.c.l.b16 %v222
      %v702 = vunpack.c.l.b16 %v223
      %v703 = vunpack.c.l.b16 %v224
      %v704 = vunpack.c.l.b16 %v225
      %v705 = vunpack.c.l.b16 %v226
      %v706 = vunpack.c.l.b16 %v227
      %v707 = vunpack.c.l.b16 %v228
      %v708 = vunpack.c.l.b16 %v229
      %v709 = vunpack.c.l.b16 %v230
      %v710 = vunpack.c.l.b16 %v231
      %v711 = vunpack.c.l.b16 %v232
      %v712 = vunpack.c.l.b16 %v233
      %v713 = vunpack.c.l.b16 %v234
      %v714 = vunpack.c.l.b16 %v235
      %v715 = vunpack.c.l.b16 %v236
      %v716 = vunpack.c.l.b16 %v237
      %v717 = vunpack.c.l.b16 %v238
      %v718 = vunpack.c.l.b16 %v239
      %v719 = vunpack.c.l.b16 %v240
      %v720 = vunpack.c.l.b16 %v241
      %v721 = vunpack.c.l.b16 %v242
      %v722 = vunpack.c.l.b16 %v243
      %v723 = vunpack.c.l.b16 %v244
      %v724 = vunpack.c.l.b16 %v245
      %v725 = vunpack.c.l.b16 %v246
      %v726 = vunpack.c.l.b16 %v247
      %v727 = vunpack.c.l.b16 %v248
      %v728 = vunpack.c.l.b16 %v249
      %v729 = vunpack.c.l.b16 %v250
      %v730 = vunpack.c.l.b16 %v251
      %v731 = vunpack.c.l.b16 %v252
      %v732 = vunpack.c.l.b16 %v253
      %v733 = vunpack.c.l.b16 %v254
      %v734 = vunpack.c.l.b16 %v255
      %v735 = vunpack.c.l.b16 %v256
      %v736 = vunpack.c.l.b16 %v257
      %v737 = vunpack.c.l.b16 %v258
      %v738 = vunpack.c.l.b16 %v259
      %v739 = vunpack.c.l.b16 %v260
      %v740 = vunpack.c.l.b16 %v261
      %v741 = vunpack.c.l.b16 %v262
      %v742 = vunpack.c.l.b16 %v263
      %v743 = vunpack.c.l.b16 %v264
      %v744 = vunpack.c.l.b16 %v265
      %v745 = vunpack.c.l.b16 %v266
      %v746 = vunpack.c.l.b16 %v267
      %v747 = vunpack.c.l.b16 %v268
      %v748 = vunpack.c.l.b16 %v269
      %v749 = vunpack.c.l.b16 %v270
      %v750 = vunpack.c.l.b16 %v271
      %v751 = vunpack.c.l.b16 %v272
      %v752 = vunpack.c.l.b16 %v273
      %v753 = vunpack.c.l.b16 %v274
      %v754 = vunpack.c.l.b16 %v275
      %v755 = vunpack.c.l.b16 %v276
      %v756 = vunpack.c.l.b16 %v277
      %v757 = vunpack.c.l.b16 %v278
      %v758 = vunpack.c.l.b16 %v279
      %v759 = vunpack.c.l.b16 %v280
      %v760 = vunpack.c.l.b16 %v281
      %v761 = vunpack.c.l.b16 %v282
      %v762 = vunpack.c.l.b16 %v283
      %v763 = vunpack.c.l.b16 %v284
      %v764 = vunpack.c.l.b16 %v285
      %v765 = vunpack.c.l.b16 %v286
      %v766 = vunpack.c.l.b16 %v287
      %v767 = vunpack.c.l.b16 %v288
      %v768 = vunpack.c.l.b16 %v289
      %v769 = vunpack.c.l.b16 %v290
      %v770 = vunpack.c.l.b16 %v291
      %v771 = vunpack.c.l.b16 %v292
      %v772 = vunpack.c.l.b16 %v293
      %v773 = vunpack.c.l.b16 %v294
      %v774 = vunpack.c.l.b16 %v295
      %v775 = vunpack.c.l.b16 %v296
      %v776 = vunpack.c.l.b16 %v297
      %v777 = vunpack.c.l.b16 %v298
      %v778 = vunpack.c.l.b16 %v299
      %v779 = vunpack.c.l.b16 %v300
      %v780 = vunpack.c.l.b16 %v301
      %v781 = vunpack.c.l.b16 %v302
      %v782 = vunpack.c.l.b16 %v303
      %v783 = vunpack.c.l.b16 %v304
      %v784 = vunpack.c.l.b16 %v305
      %v785 = vunpack.c.l.b16 %v306
      %v786 = vunpack.c.l.b16 %v307
      %v787 = vunpack.c.l.b16 %v308
      %v788 = vunpack.c.l.b16 %v309
      %v789 = vunpack.c.l.b16 %v310
      %v790 = vunpack.c.l.b16 %v311
      %v791 = vunpack.c.l.b16 %v312
      %v792 = vunpack.c.l.b16 %v313
      %v793 = vunpack.c.l.b16 %v314
      %v794 = vunpack.c.l.b16 %v315
      %v795 = vunpack.c.l.b16 %v316
      %v796 = vunpack.c.l.b16 %v317
      %v797 = vunpack.c.l.b16 %v318
      %v798 = vunpack.c.l.b16 %v319
      %v799 = vunpack.c.l.b16 %v320
      %v800 = vunpack.c.l.b16 %v321
      %v801 = vunpack.c.l.b16 %v322
      %v802 = vunpack.c.l.b16 %v323
      %v803 = vunpack.c.l.b16 %v324
      %v804 = vunpack.c.l.b16 %v325
      %v805 = vunpack.c.l.b16 %v326
      %v806 = vunpack.c.l.b16 %v327
      %v807 = vunpack.c.l.b16 %v328
      %v808 = vunpack.c.l.b16 %v329
      %v809 = vunpack.c.l.b16 %v330
      %v810 = vunpack.c.l.b16 %v331
      %v811 = vunpack.c.l.b16 %v332
      %v812 = vunpack.c.l.b16 %v333
      %v813 = vunpack.c.l.b16 %v334
      %v814 = vunpack.c.l.b16 %v335
      %v815 = vunpack.c.l.b16 %v336
      %v816 = vunpack.c.l.b16 %v337
      %v817 = vunpack.c.l.b16 %v338
      %v818 = vunpack.c.l.b16 %v339
      %v819 = vunpack.c.l.b16 %v340
      %v820 = vunpack.c.l.b16 %v341
      %v821 = vunpack.c.l.b16 %v342
      %v822 = vunpack.c.l.b16 %v343
      %v823 = vunpack.c.l.b16 %v344
      %v824 = vunpack.c.l.b16 %v345
      %v825 = vunpack.c.l.b16 %v346
      %v826 = vunpack.c.l.b16 %v347
      %v827 = vunpack.c.l.b16 %v348
      %v828 = vunpack.c.l.b16 %v349
      %v829 = vunpack.c.l.b16 %v350
      %v830 = vunpack.c.l.b16 %v351
      %v831 = vunpack.c.l.b16 %v352
      %v832 = vunpack.c.l.b16 %v353
      %v833 = vunpack.c.l.b16 %v354
      %v834 = vunpack.c.l.b16 %v355
      %v835 = vunpack.c.l.b16 %v356
      %v836 = vunpack.c.l.b16 %v357
      %v837 = vunpack.c.l.b16 %v358
      %v838 = vunpack.c.l.b16 %v359
      %v839 = vunpack.c.l.b16 %v360
      %v840 = vunpack.c.l.b16 %v361
      %v841 = vpack.c.b16 %v698, %v697
      %v842 = vpack.c.b16 %v700, %v699
      %v843 = vpack.c.b16 %v702, %v701
      %v844 = vpack.c.b16 %v704, %v703
      %v845 = vpack.c.b16 %v706, %v705
      %v846 = vpack.c.b16 %v708, %v707
      %v847 = vpack.c.b16 %v710, %v709
      %v848 = vpack.c.b16 %v712, %v711
      %v849 = vpack.c.b16 %v714, %v713
      %v850 = vpack.c.b16 %v716, %v715
      %v851 = vpack.c.b16 %v718, %v717
      %v852 = vpack.c.b16 %v720, %v719
      %v853 = vpack.c.b16 %v722, %v721
      %v854 = vpack.c.b16 %v724, %v723
      %v855 = vpack.c.b16 %v726, %v725
      %v856 = vpack.c.b16 %v728, %v727
      %v857 = vpack.c.b16 %v730, %v729
      %v858 = vpack.c.b16 %v732, %v731
      %v859 = vpack.c.b16 %v734, %v733
      %v860 = vpack.c.b16 %v736, %v735
      %v861 = vpack.c.b16 %v738, %v737
      %v862 = vpack.c.b16 %v740, %v739
      %v863 = vpack.c.b16 %v742, %v741
      %v864 = vpack.c.b16 %v744, %v743
      %v865 = vpack.c.b16 %v746, %v745
      %v866 = vpack.c.b16 %v748, %v747
      %v867 = vpack.c.b16 %v750, %v749
      %v868 = vpack.c.b16 %v752, %v751
      %v869 = vpack.c.b16 %v754, %v753
      %v870 = vpack.c.b16 %v756, %v755
      %v871 = vpack.c.b16 %v758, %v757
      %v872 = vpack.c.b16 %v760, %v759
      %v873 = vpack.c.b16 %v762, %v761
      %v874 = vpack.c.b16 %v764, %v763
      %v875 = vpack.c.b16 %v766, %v765
      %v876 = vpack.c.b16 %v768, %v767
      %v877 = vpack.c.b16 %v770, %v769
      %v878 = vpack.c.b16 %v772, %v771
      %v879 = vpack.c.b16 %v774, %v773
      %v880 = vpack.c.b16 %v776, %v775
      %v881 = vpack.c.b16 %v778, %v777
      %v882 = vpack.c.b16 %v780, %v779
      %v883 = vpack.c.b16 %v782, %v781
      %v884 = vpack.c.b16 %v784, %v783
      %v885 = vpack.c.b16 %v786, %v785
      %v886 = vpack.c.b16 %v788, %v787
      %v887 = vpack.c.b16 %v790, %v789
      %v888 = vpack.c.b16 %v792, %v791
      %v889 = vpack.c.b16 %v794, %v793
      %v890 = vpack.c.b16 %v796, %v795
      %v891 = vpack.c.b16 %v798, %v797
      %v892 = vpack.c.b16 %v800, %v799
      %v893 = vpack.c.b16 %v802, %v801
      %v894 = vpack.c.b16 %v804, %v803
      %v895 = vpack.c.b16 %v806, %v805
      %v896 = vpack.c.b16 %v808, %v807
      %v897 = vpack.c.b16 %v810, %v809
      %v898 = vpack.c.b16 %v812, %v811
      %v899 = vpack.c.b16 %v814, %v813
      %v900 = vpack.c.b16 %v816, %v815
      %v901 = vpack.c.b16 %v818, %v817
      %v902 = vpack.c.b16 %v820, %v819
      %v903 = vpack.c.b16 %v822, %v821
      %v904 = vpack.c.b16 %v824, %v823
      %v905 = vpack.c.b16 %v826, %v825
      %v906 = vpack.c.b16 %v828, %v827
      %v907 = vpack.c.b16 %v830, %v829
      %v908 = vpack.c.b16 %v832, %v831
      %v909 = vpack.c.b16 %v834, %v833
      %v910 = vpack.c.b16 %v836, %v835
      %v911 = vpack.c.b16 %v838, %v837
      %v912 = vpack.c.b16 %v840, %v839
      %985 = vmatprep.subr.bf16.mxu0 0
      %986 = vmatpush1.bf16.msra.mxu0 %v841
      %987 = vmatprep.subr.bf16.mxu0 0
      %988 = vmatpush1.bf16.msra.mxu0 %v842
      %989 = vmatprep.subr.bf16.mxu0 0
      %990 = vmatpush1.bf16.msra.mxu0 %v843
      %991 = vmatprep.subr.bf16.mxu0 0
      %992 = vmatpush1.bf16.msra.mxu0 %v844
      %993 = vmatprep.subr.bf16.mxu0 0
      %994 = vmatpush1.bf16.msra.mxu0 %v845
      %995 = vmatprep.subr.bf16.mxu0 0
      %996 = vmatpush1.bf16.msra.mxu0 %v846
      %997 = vmatprep.subr.bf16.mxu0 0
      %998 = vmatpush1.bf16.msra.mxu0 %v847
      %999 = vmatprep.subr.bf16.mxu0 0
      %1000 = vmatpush1.bf16.msra.mxu0 %v848
      %1001 = vmatprep.subr.bf16.mxu0 0
      %1002 = vmatpush1.bf16.msra.mxu0 %v849
      %1003 = vmatprep.subr.bf16.mxu0 0
      %1004 = vmatpush1.bf16.msra.mxu0 %v850
      %1005 = vmatprep.subr.bf16.mxu0 0
      %1006 = vmatpush1.bf16.msra.mxu0 %v851
      %1007 = vmatprep.subr.bf16.mxu0 0
      %1008 = vmatpush1.bf16.msra.mxu0 %v852
      %1009 = vmatprep.subr.bf16.mxu0 0
      %1010 = vmatpush1.bf16.msra.mxu0 %v853
      %1011 = vmatprep.subr.bf16.mxu0 0
      %1012 = vmatpush1.bf16.msra.mxu0 %v854
      %1013 = vmatprep.subr.bf16.mxu0 0
      %1014 = vmatpush1.bf16.msra.mxu0 %v855
      %1015 = vmatprep.subr.bf16.mxu0 0
      %1016 = vmatpush1.bf16.msra.mxu0 %v856
      %1017 = vmatprep.mubr.bf16.mxu0 %v482
      %1018 = vmatmul.mubr.bf16.gmra.mrb[0].mxu0 %v481
      %v1019 = vpop.f32.mrb[0].mxu0
      %v1020 = vadd.f32 %v367, %v1019
      %v1021 = vpop.f32.mrb[0].mxu0
      %v1022 = vpop.f32.mrb[0].mxu0
      %v1023 = vadd.f32 %v367, %v1022
      %v1024 = vpop.f32.mrb[0].mxu0
      %1025 = vmatprep.mubr.bf16.mxu0 %v491
      %1026 = vmatmul.mubr.bf16.gmra.mrb[0].mxu0 %v490
      %v1027 = vpop.f32.mrb[0].mxu0
      %v1028 = vadd.f32 %v367, %v1027
      %v1029 = vpop.f32.mrb[0].mxu0
      %v1030 = vpop.f32.mrb[0].mxu0
      %v1031 = vadd.f32 %v367, %v1030
      %v1032 = vpop.f32.mrb[0].mxu0
      %1033 = vmatprep.mubr.bf16.mxu0 %v500
      %1034 = vmatmul.mubr.bf16.gmra.mrb[0].mxu0 %v499
      %v1035 = vpop.f32.mrb[0].mxu0
      %v1036 = vadd.f32 %v367, %v1035
      %v1037 = vpop.f32.mrb[0].mxu0
      %v1038 = vpop.f32.mrb[0].mxu0
      %v1039 = vadd.f32 %v367, %v1038
      %v1040 = vpop.f32.mrb[0].mxu0
      %1041 = vmatprep.mubr.bf16.mxu0 %v509
      %1042 = vmatmul.mubr.bf16.gmra.mrb[0].mxu0 %v508
      %v1043 = vpop.f32.mrb[0].mxu0
      %v1044 = vadd.f32 %v367, %v1043
      %v1045 = vpop.f32.mrb[0].mxu0
      %v1046 = vpop.f32.mrb[0].mxu0
      %v1047 = vadd.f32 %v367, %v1046
      %v1048 = vpop.f32.mrb[0].mxu0
      %1049 = vdwg.mxu0
      %1050 = vmatprep.subr.bf16.mxu0 0
      %1051 = vmatpush1.bf16.msra.mxu0 %v857
      %1052 = vmatprep.subr.bf16.mxu0 0
      %1053 = vmatpush1.bf16.msra.mxu0 %v858
      %1054 = vmatprep.subr.bf16.mxu0 0
      %1055 = vmatpush1.bf16.msra.mxu0 %v859
      %1056 = vmatprep.subr.bf16.mxu0 0
      %1057 = vmatpush1.bf16.msra.mxu0 %v860
      %1058 = vmatprep.subr.bf16.mxu0 0
      %1059 = vmatpush1.bf16.msra.mxu0 %v861
      %1060 = vmatprep.subr.bf16.mxu0 0
      %1061 = vmatpush1.bf16.msra.mxu0 %v862
      %1062 = vmatprep.subr.bf16.mxu0 0
      %1063 = vmatpush1.bf16.msra.mxu0 %v863
      %1064 = vmatprep.subr.bf16.mxu0 0
      %1065 = vmatpush1.bf16.msra.mxu0 %v864
      %1066 = vmatprep.subr.bf16.mxu0 0
      %1067 = vmatpush1.bf16.msra.mxu0 %v865
      %1068 = vmatprep.subr.bf16.mxu0 0
      %1069 = vmatpush1.bf16.msra.mxu0 %v866
      %1070 = vmatprep.subr.bf16.mxu0 0
      %1071 = vmatpush1.bf16.msra.mxu0 %v867
      %1072 = vmatprep.subr.bf16.mxu0 0
      %1073 = vmatpush1.bf16.msra.mxu0 %v868
      %1074 = vmatprep.subr.bf16.mxu0 0
      %1075 = vmatpush1.bf16.msra.mxu0 %v869
      %1076 = vmatprep.subr.bf16.mxu0 0
      %1077 = vmatpush1.bf16.msra.mxu0 %v870
      %1078 = vmatprep.subr.bf16.mxu0 0
      %1079 = vmatpush1.bf16.msra.mxu0 %v871
      %1080 = vmatprep.subr.bf16.mxu0 0
      %1081 = vmatpush1.bf16.msra.mxu0 %v872
      %1082 = vmatprep.mubr.bf16.mxu0 %v484
      %1083 = vmatmul.mubr.bf16.gmra.mrb[0].mxu0 %v483
      %v1084 = vpop.f32.mrb[0].mxu0
      %v1085 = vadd.f32 %v1020, %v1084
      %v1086 = vpop.f32.mrb[0].mxu0
      %v1087 = vpop.f32.mrb[0].mxu0
      %v1088 = vadd.f32 %v1023, %v1087
      %v1089 = vpop.f32.mrb[0].mxu0
      %1090 = vmatprep.mubr.bf16.mxu0 %v493
      %1091 = vmatmul.mubr.bf16.gmra.mrb[0].mxu0 %v492
      %v1092 = vpop.f32.mrb[0].mxu0
      %v1093 = vadd.f32 %v1028, %v1092
      %v1094 = vpop.f32.mrb[0].mxu0
      %v1095 = vpop.f32.mrb[0].mxu0
      %v1096 = vadd.f32 %v1031, %v1095
      %v1097 = vpop.f32.mrb[0].mxu0
      %1098 = vmatprep.mubr.bf16.mxu0 %v502
      %1099 = vmatmul.mubr.bf16.gmra.mrb[0].mxu0 %v501
      %v1100 = vpop.f32.mrb[0].mxu0
      %v1101 = vadd.f32 %v1036, %v1100
      %v1102 = vpop.f32.mrb[0].mxu0
      %v1103 = vpop.f32.mrb[0].mxu0
      %v1104 = vadd.f32 %v1039, %v1103
      %v1105 = vpop.f32.mrb[0].mxu0
      %1106 = vmatprep.mubr.bf16.mxu0 %v511
      %1107 = vmatmul.mubr.bf16.gmra.mrb[0].mxu0 %v510
      %v1108 = vpop.f32.mrb[0].mxu0
      %v1109 = vadd.f32 %v1044, %v1108
      %v1110 = vpop.f32.mrb[0].mxu0
      %v1111 = vpop.f32.mrb[0].mxu0
      %v1112 = vadd.f32 %v1047, %v1111
      %v1113 = vpop.f32.mrb[0].mxu0
      %1114 = vdwg.mxu0
      %1115 = vmatprep.subr.bf16.mxu0 0
      %1116 = vmatpush1.bf16.msra.mxu0 %v873
      %1117 = vmatprep.subr.bf16.mxu0 0
      %1118 = vmatpush1.bf16.msra.mxu0 %v874
      %1119 = vmatprep.subr.bf16.mxu0 0
      %1120 = vmatpush1.bf16.msra.mxu0 %v875
      %1121 = vmatprep.subr.bf16.mxu0 0
      %1122 = vmatpush1.bf16.msra.mxu0 %v876
      %1123 = vmatprep.subr.bf16.mxu0 0
      %1124 = vmatpush1.bf16.msra.mxu0 %v877
      %1125 = vmatprep.subr.bf16.mxu0 0
      %1126 = vmatpush1.bf16.msra.mxu0 %v878
      %1127 = vmatprep.subr.bf16.mxu0 0
      %1128 = vmatpush1.bf16.msra.mxu0 %v879
      %1129 = vmatprep.subr.bf16.mxu0 0
      %1130 = vmatpush1.bf16.msra.mxu0 %v880
      %1131 = vmatprep.subr.bf16.mxu0 0
      %1132 = vmatpush1.bf16.msra.mxu0 %v881
      %1133 = vmatprep.subr.bf16.mxu0 0
      %1134 = vmatpush1.bf16.msra.mxu0 %v882
      %1135 = vmatprep.subr.bf16.mxu0 0
      %1136 = vmatpush1.bf16.msra.mxu0 %v883
      %1137 = vmatprep.subr.bf16.mxu0 0
      %1138 = vmatpush1.bf16.msra.mxu0 %v884
      %1139 = vmatprep.subr.bf16.mxu0 0
      %1140 = vmatpush1.bf16.msra.mxu0 %v885
      %1141 = vmatprep.subr.bf16.mxu0 0
      %1142 = vmatpush1.bf16.msra.mxu0 %v886
      %1143 = vmatprep.subr.bf16.mxu0 0
      %1144 = vmatpush1.bf16.msra.mxu0 %v887
      %1145 = vmatprep.subr.bf16.mxu0 0
      %1146 = vmatpush1.bf16.msra.mxu0 %v888
      %1147 = vmatprep.mubr.bf16.mxu0 %v486
      %1148 = vmatmul.mubr.bf16.gmra.mrb[0].mxu0 %v485
      %v1149 = vpop.f32.mrb[0].mxu0
      %v1150 = vadd.f32 %v1085, %v1149
      %v1151 = vpop.f32.mrb[0].mxu0
      %v1152 = vpop.f32.mrb[0].mxu0
      %v1153 = vadd.f32 %v1088, %v1152
      %v1154 = vpop.f32.mrb[0].mxu0
      %1155 = vmatprep.mubr.bf16.mxu0 %v495
      %1156 = vmatmul.mubr.bf16.gmra.mrb[0].mxu0 %v494
      %v1157 = vpop.f32.mrb[0].mxu0
      %v1158 = vadd.f32 %v1093, %v1157
      %v1159 = vpop.f32.mrb[0].mxu0
      %v1160 = vpop.f32.mrb[0].mxu0
      %v1161 = vadd.f32 %v1096, %v1160
      %v1162 = vpop.f32.mrb[0].mxu0
      %1163 = vmatprep.mubr.bf16.mxu0 %v504
      %1164 = vmatmul.mubr.bf16.gmra.mrb[0].mxu0 %v503
      %v1165 = vpop.f32.mrb[0].mxu0
      %v1166 = vadd.f32 %v1101, %v1165
      %v1167 = vpop.f32.mrb[0].mxu0
      %v1168 = vpop.f32.mrb[0].mxu0
      %v1169 = vadd.f32 %v1104, %v1168
      %v1170 = vpop.f32.mrb[0].mxu0
      %1171 = vmatprep.mubr.bf16.mxu0 %v513
      %1172 = vmatmul.mubr.bf16.gmra.mrb[0].mxu0 %v512
      %v1173 = vpop.f32.mrb[0].mxu0
      %v1174 = vadd.f32 %v1109, %v1173
      %v1175 = vpop.f32.mrb[0].mxu0
      %v1176 = vpop.f32.mrb[0].mxu0
      %v1177 = vadd.f32 %v1112, %v1176
      %v1178 = vpop.f32.mrb[0].mxu0
      %1179 = vdwg.mxu0
      %1180 = vmatprep.subr.bf16.mxu0 0
      %1181 = vmatpush1.bf16.msra.mxu0 %v889
      %1182 = vmatprep.subr.bf16.mxu0 0
      %1183 = vmatpush1.bf16.msra.mxu0 %v890
      %1184 = vmatprep.subr.bf16.mxu0 0
      %1185 = vmatpush1.bf16.msra.mxu0 %v891
      %1186 = vmatprep.subr.bf16.mxu0 0
      %1187 = vmatpush1.bf16.msra.mxu0 %v892
      %1188 = vmatprep.subr.bf16.mxu0 0
      %1189 = vmatpush1.bf16.msra.mxu0 %v893
      %1190 = vmatprep.subr.bf16.mxu0 0
      %1191 = vmatpush1.bf16.msra.mxu0 %v894
      %1192 = vmatprep.subr.bf16.mxu0 0
      %1193 = vmatpush1.bf16.msra.mxu0 %v895
      %1194 = vmatprep.subr.bf16.mxu0 0
      %1195 = vmatpush1.bf16.msra.mxu0 %v896
      %1196 = vmatprep.subr.bf16.mxu0 0
      %1197 = vmatpush1.bf16.msra.mxu0 %v897
      %1198 = vmatprep.subr.bf16.mxu0 0
      %1199 = vmatpush1.bf16.msra.mxu0 %v898
      %1200 = vmatprep.subr.bf16.mxu0 0
      %1201 = vmatpush1.bf16.msra.mxu0 %v899
      %1202 = vmatprep.subr.bf16.mxu0 0
      %1203 = vmatpush1.bf16.msra.mxu0 %v900
      %1204 = vmatprep.subr.bf16.mxu0 0
      %1205 = vmatpush1.bf16.msra.mxu0 %v901
      %1206 = vmatprep.subr.bf16.mxu0 0
      %1207 = vmatpush1.bf16.msra.mxu0 %v902
      %1208 = vmatprep.subr.bf16.mxu0 0
      %1209 = vmatpush1.bf16.msra.mxu0 %v903
      %1210 = vmatprep.subr.bf16.mxu0 0
      %1211 = vmatpush1.bf16.msra.mxu0 %v904
      %1212 = vmatprep.mubr.bf16.mxu0 %v488
      %1213 = vmatmul.mubr.bf16.gmra.mrb[0].mxu0 %v487
      %v1214 = vpop.f32.mrb[0].mxu0
      %v1215 = vadd.f32 %v1150, %v1214
      %v1216 = vpop.f32.mrb[0].mxu0
      %v1217 = vpop.f32.mrb[0].mxu0
      %v1218 = vadd.f32 %v1153, %v1217
      %v1219 = vpop.f32.mrb[0].mxu0
      %1220 = vmatprep.mubr.bf16.mxu0 %v497
      %1221 = vmatmul.mubr.bf16.gmra.mrb[0].mxu0 %v496
      %v1222 = vpop.f32.mrb[0].mxu0
      %v1223 = vadd.f32 %v1158, %v1222
      %v1224 = vpop.f32.mrb[0].mxu0
      %v1225 = vpop.f32.mrb[0].mxu0
      %v1226 = vadd.f32 %v1161, %v1225
      %v1227 = vpop.f32.mrb[0].mxu0
      %1228 = vmatprep.mubr.bf16.mxu0 %v506
      %1229 = vmatmul.mubr.bf16.gmra.mrb[0].mxu0 %v505
      %v1230 = vpop.f32.mrb[0].mxu0
      %v1231 = vadd.f32 %v1166, %v1230
      %v1232 = vpop.f32.mrb[0].mxu0
      %v1233 = vpop.f32.mrb[0].mxu0
      %v1234 = vadd.f32 %v1169, %v1233
      %v1235 = vpop.f32.mrb[0].mxu0
      %1236 = vmatprep.mubr.bf16.mxu0 %v515
      %1237 = vmatmul.mubr.bf16.gmra.mrb[0].mxu0 %v514
      %v1238 = vpop.f32.mrb[0].mxu0
      %v1239 = vadd.f32 %v1174, %v1238
      %v1240 = vpop.f32.mrb[0].mxu0
      %v1241 = vpop.f32.mrb[0].mxu0
      %v1242 = vadd.f32 %v1177, %v1241
      %v1243 = vpop.f32.mrb[0].mxu0
      %1244 = vdwg.mxu0
      %1245 = vmatprep.subr.bf16.mxu0 0
      %1246 = vmatpush1.bf16.msra.mxu0 %v905
      %1247 = vmatprep.subr.bf16.mxu0 0
      %1248 = vmatpush1.bf16.msra.mxu0 %v906
      %1249 = vmatprep.subr.bf16.mxu0 0
      %1250 = vmatpush1.bf16.msra.mxu0 %v907
      %1251 = vmatprep.subr.bf16.mxu0 0
      %1252 = vmatpush1.bf16.msra.mxu0 %v908
      %1253 = vmatprep.subr.bf16.mxu0 0
      %1254 = vmatpush1.bf16.msra.mxu0 %v909
      %1255 = vmatprep.subr.bf16.mxu0 0
      %1256 = vmatpush1.bf16.msra.mxu0 %v910
      %1257 = vmatprep.subr.bf16.mxu0 0
      %1258 = vmatpush1.bf16.msra.mxu0 %v911
      %1259 = vmatprep.subr.bf16.mxu0 0
      %1260 = vmatpush1.bf16.msra.mxu0 %v912
      %1261 = vmatprep.subr.bf16.mxu0 0
      %1262 = vmatpush1.bf16.msra.mxu0 0
      %1263 = vmatprep.subr.bf16.mxu0 0
      %1264 = vmatpush1.bf16.msra.mxu0 0
      %1265 = vmatprep.subr.bf16.mxu0 0
      %1266 = vmatpush1.bf16.msra.mxu0 0
      %1267 = vmatprep.subr.bf16.mxu0 0
      %1268 = vmatpush1.bf16.msra.mxu0 0
      %1269 = vmatprep.subr.bf16.mxu0 0
      %1270 = vmatpush1.bf16.msra.mxu0 0
      %1271 = vmatprep.subr.bf16.mxu0 0
      %1272 = vmatpush1.bf16.msra.mxu0 0
      %1273 = vmatprep.subr.bf16.mxu0 0
      %1274 = vmatpush1.bf16.msra.mxu0 0
      %1275 = vmatprep.subr.bf16.mxu0 0
      %1276 = vmatpush1.bf16.msra.mxu0 0
      %1277 = vmatprep.mubr.bf16.mxu0 0
      %1278 = vmatmul.mubr.bf16.gmra.mrb[0].mxu0 %v489
      %v1279 = vpop.f32.mrb[0].mxu0
      %v1280 = vadd.f32 %v1215, %v1279
      %v1281 = vpop.f32.mrb[0].mxu0
      %v1282 = vpop.f32.mrb[0].mxu0
      %v1283 = vadd.f32 %v1218, %v1282
      %v1284 = vpop.f32.mrb[0].mxu0
      %1285 = vmatprep.mubr.bf16.mxu0 0
      %1286 = vmatmul.mubr.bf16.gmra.mrb[0].mxu0 %v498
      %v1287 = vpop.f32.mrb[0].mxu0
      %v1288 = vadd.f32 %v1223, %v1287
      %v1289 = vpop.f32.mrb[0].mxu0
      %v1290 = vpop.f32.mrb[0].mxu0
      %v1291 = vadd.f32 %v1226, %v1290
      %v1292 = vpop.f32.mrb[0].mxu0
      %1293 = vmatprep.mubr.bf16.mxu0 0
      %1294 = vmatmul.mubr.bf16.gmra.mrb[0].mxu0 %v507
      %v1295 = vpop.f32.mrb[0].mxu0
      %v1296 = vadd.f32 %v1231, %v1295
      %v1297 = vpop.f32.mrb[0].mxu0
      %v1298 = vpop.f32.mrb[0].mxu0
      %v1299 = vadd.f32 %v1234, %v1298
      %v1300 = vpop.f32.mrb[0].mxu0
      %1301 = vmatprep.mubr.bf16.mxu0 0
      %1302 = vmatmul.mubr.bf16.gmra.mrb[0].mxu0 %v516
      %v1303 = vpop.f32.mrb[0].mxu0
      %v1304 = vadd.f32 %v1239, %v1303
      %v1305 = vpop.f32.mrb[0].mxu0
      %v1306 = vpop.f32.mrb[0].mxu0
      %v1307 = vadd.f32 %v1242, %v1306
      %v1308 = vpop.f32.mrb[0].mxu0
      %1309 = vdwg.mxu0
      %v1310 = vmax.f32 %v1280, 0.0
      %v1311 = vmax.f32 %v1283, 0.0
      %v1312 = vmax.f32 %v1288, 0.0
      %v1313 = vmax.f32 %v1291, 0.0
      %v1314 = vmax.f32 %v1296, 0.0
      %v1315 = vmax.f32 %v1299, 0.0
      %v1316 = vmax.f32 %v1304, 0.0
      %v1317 = vmax.f32 %v1307, 0.0
      %v1318 = vpack.c.bf16 %v1311, %v1310
      %v1319 = vpack.c.bf16 %v1313, %v1312
      %v1320 = vpack.c.bf16 %v1315, %v1314
      %v1321 = vpack.c.bf16 %v1317, %v1316
      %v1326 = vunpack.c.l.b16 %v1318
      %v1327 = vunpack.c.h.b16 %v1318
      %v1328 = vunpack.c.l.b16 %v1319
      %v1329 = vunpack.c.h.b16 %v1319
      %v1330 = vunpack.c.l.b16 %v1320
      %v1331 = vunpack.c.h.b16 %v1320
      %v1332 = vunpack.c.l.b16 %v1321
      %v1333 = vunpack.c.h.b16 %v1321
      %v1334 = vpack.c.b16 %v1326, %v1326
      %v1335 = vpack.c.b16 %v1327, %v1327
      %v1336 = vpack.c.b16 %v1328, %v1328
      %v1337 = vpack.c.b16 %v1329, %v1329
      %v1338 = vpack.c.b16 %v1330, %v1330
      %v1339 = vpack.c.b16 %v1331, %v1331
      %v1340 = vpack.c.b16 %v1332, %v1332
      %v1341 = vpack.c.b16 %v1333, %v1333
      %1350 = vst [vmem:[%s175] sm:$0xf] %v1334
      %1351 = vst [vmem:[%s175 + $0x4] sm:$0xf] %v1335
      %1352 = vst [vmem:[%s175 + $0x8] sm:$0xf] %v1336
      %1353 = vst [vmem:[%s175 + $0xc] sm:$0xf] %v1337
      %1354 = vst [vmem:[%s175 + $0x10] sm:$0xf] %v1338
      %1355 = vst [vmem:[%s175 + $0x14] sm:$0xf] %v1339
      %1356 = vst [vmem:[%s175 + $0x18] sm:$0xf] %v1340
      %1357 = vst [vmem:[%s175 + $0x1c] sm:$0xf] %v1341
      %s1358 = smul.u32 8, %s14
      %p1359 = scmp.lt.s32.totalorder %s1358, 15
      %s1360 = scalar_select %p1359, %s1358, 15
      %s1361 = smul.addr %s1360, 4
      %s1362 = scalar_lea.vmem %s3, %s1361
      // Predicated region
      $region33: #{_lambda_.23} parent=31 // pred_check
        %p1363 = pneg %p100
      $region34: #{_lambda_.23} parent=31 // pred_check_branch
        %1365 = sbr.rel (%p1363) target = $region36
      $region35: #{_lambda_.23} parent=31 // pred_region
        %s1366 = smul.u32 8, %s14
      $region36: #{_lambda_.23} parent=31 // pred_fallthru
        _
    $region32: #{_lambda_.23} parent=5 // pred_fallthru
      _
    %p1367 = scmp.le.s32.totalorder 2, %s9
    // Predicated region
    $region37: #{_lambda_.23} parent=5 // pred_check
      %p1368 = pneg %p1367
    $region38: #{_lambda_.23} parent=5 // pred_check_branch
      %1370 = sbr.rel (%p1368) target = $region40
    $region39: #{_lambda_.23} parent=5 // pred_region
      %s1371 = ssub.s32 %s9, 2
      // Predicated region
      $region41: #{_lambda_.23} parent=39 // pred_check
        %p1372 = pneg %p106
      $region42: #{_lambda_.23} parent=39 // pred_check_branch
        %1374 = sbr.rel (%p1372) target = $region44
      $region43: #{_lambda_.23} parent=39 // pred_region
        %s1375 = smul.u32 8, %s15
        %p1376 = scmp.lt.s32.totalorder %s1375, 15
        %s1377 = scalar_select %p1376, %s1375, 15
        %s1378 = smul.addr %s1377, 4
        %s1379 = scalar_lea.vmem %s3, %s1378
      $region44: #{_lambda_.23} parent=39 // pred_fallthru
        _
    $region40: #{_lambda_.23} parent=5 // pred_fallthru
      _
  $region6: #{_lambda_.23} parent=0 // loop_footer
    %s13 = sadd.s32 1, %s9
  $region7: #{_lambda_.23} parent=0 // loop_footer_branch
    %8 = sbr.rel target = $region3
  $region8: #{_lambda_.23} parent=0 // loop_exit
    _

// kernel: _lambda_.24
$region0: #{_lambda_.24}
  #allocation0 [shape = 'u32[]', space=smem, size = 0x4, offset = 0x4, fixed_abs, tag = 'smem constant byte address 0x4 - core index']
  #allocation1 [shape = 'u32[144,128]{1,0:T(1,128)}', space=vmem, size = 0x12000, scoped, tag = 'internal scratch']
  %s0 = inlined_call_operand.vmem [shape: bf16[128,1152], index: 0, kind: input, shape index: {}]
  %s1 = inlined_call_operand.vmem [shape: bf16[1152,128], index: 1, kind: input, shape index: {}]
  %s2 = inlined_call_operand.vmem [shape: f32[1,128], index: 2, kind: input, shape index: {}]
  %s3 = inlined_call_operand.vmem [shape: bf16[128,128], index: 3, kind: input, shape index: {}]
  %s4 = inlined_call_operand.vmem [shape: bf16[128,128], index: 4, kind: output, shape index: {}]
  %s5 = sld [smem:[#allocation0]]
  $region49: #{_lambda_.24} parent=0
    _
  %s7 = ssub.s32 1, %s5
  %s8 = scalar_select 0, %s7, %s5
  loop: start=0, step=1, limit=4
  $region2: #{_lambda_.24} parent=0 // loop_pre_header
    _
  $region3: #{_lambda_.24} parent=0 // loop_header
    %s10 = sphi 0, %s14
    %p11 = scmp.ge.s32.totalorder %s10, 4
    %s20 = sphi 0, %s22
    %s23 = sphi 0, %s20
    %s24 = sphi 0, %s23
    %s40 = sphi 0, %s24
    %s44 = sphi 0, %s44
    %s46 = sphi 0, %s44
    %s47 = sphi 0, %s46
    %s61 = sphi 0, %s47
    %s65 = sphi 0, %s65
    %s67 = sphi 0, %s65
    %s68 = sphi 0, %s67
    %s82 = sphi 0, %s68
    %s88 = sphi 0, %s90
    %s91 = sphi 0, %s88
    %s92 = sphi 0, %s91
    %s108 = sphi 0, %s92
    %s114 = sphi 0, %s116
    %s117 = sphi 0, %s114
    %s118 = sphi 0, %s117
    %s134 = sphi 0, %s118
  $region4: #{_lambda_.24} parent=0 // loop_header_branch
    %13 = sbr.rel (%p11) target = $region8
  $region5: #{_lambda_.24} parent=0 // loop_body
    %s15 = ssub.s32 %s10, 1
    %s16 = ssub.s32 %s10, 2
    %s17 = sadd.s32 %s10, 1
    %s18 = ssub.s32 %s10, %s17
    %p19 = scmp.eq.s32.totalorder %s18, 0
    %s21 = sadd.s32 %s20, 1
    %s22 = scalar_select %p19, %s20, %s21
    %p25 = pneg %p19
    %p26 = scmp.eq.s32.totalorder %s10, 1
    %p27 = por %p25, %p26
    %p28 = scmp.ne.s32.totalorder %s20, %s23
    %p29 = scmp.eq.s32.totalorder %s10, 0
    %p30 = por %p28, %p29
    %p31 = scmp.ne.s32.totalorder %s20, %s23
    %p32 = scmp.eq.s32.totalorder %s15, 1
    %p33 = por %p31, %p32
    %p34 = scmp.ne.s32.totalorder %s23, %s24
    %p35 = scmp.eq.s32.totalorder %s15, 0
    %p36 = por %p34, %p35
    %p37 = scmp.ne.s32.totalorder %s23, %s24
    %p38 = scmp.eq.s32.totalorder %s16, 1
    %p39 = por %p37, %p38
    %p41 = scmp.ne.s32.totalorder %s24, %s40
    %p42 = scmp.eq.s32.totalorder %s16, 0
    %p43 = por %p41, %p42
    %s45 = sadd.s32 %s44, 1
    %p48 = scmp.eq.s32.totalorder %s10, 1
    %p49 = scmp.ne.s32.totalorder %s44, %s46
    %p50 = scmp.eq.s32.totalorder %s10, 0
    %p51 = por %p49, %p50
    %p52 = scmp.ne.s32.totalorder %s44, %s46
    %p53 = scmp.eq.s32.totalorder %s15, 1
    %p54 = por %p52, %p53
    %p55 = scmp.ne.s32.totalorder %s46, %s47
    %p56 = scmp.eq.s32.totalorder %s15, 0
    %p57 = por %p55, %p56
    %p58 = scmp.ne.s32.totalorder %s46, %s47
    %p59 = scmp.eq.s32.totalorder %s16, 1
    %p60 = por %p58, %p59
    %p62 = scmp.ne.s32.totalorder %s47, %s61
    %p63 = scmp.eq.s32.totalorder %s16, 0
    %p64 = por %p62, %p63
    %s66 = sadd.s32 %s65, 1
    %p69 = scmp.eq.s32.totalorder %s10, 1
    %p70 = scmp.ne.s32.totalorder %s65, %s67
    %p71 = scmp.eq.s32.totalorder %s10, 0
    %p72 = por %p70, %p71
    %p73 = scmp.ne.s32.totalorder %s65, %s67
    %p74 = scmp.eq.s32.totalorder %s15, 1
    %p75 = por %p73, %p74
    %p76 = scmp.ne.s32.totalorder %s67, %s68
    %p77 = scmp.eq.s32.totalorder %s15, 0
    %p78 = por %p76, %p77
    %p79 = scmp.ne.s32.totalorder %s67, %s68
    %p80 = scmp.eq.s32.totalorder %s16, 1
    %p81 = por %p79, %p80
    %p83 = scmp.ne.s32.totalorder %s68, %s82
    %p84 = scmp.eq.s32.totalorder %s16, 0
    %p85 = por %p83, %p84
    %s86 = ssub.s32 %s10, %s17
    %p87 = scmp.eq.s32.totalorder %s86, 0
    %s89 = sadd.s32 %s88, 1
    %s90 = scalar_select %p87, %s88, %s89
    %p93 = pneg %p87
    %p94 = scmp.eq.s32.totalorder %s10, 1
    %p95 = por %p93, %p94
    %p96 = scmp.ne.s32.totalorder %s88, %s91
    %p97 = scmp.eq.s32.totalorder %s10, 0
    %p98 = por %p96, %p97
    %p99 = scmp.ne.s32.totalorder %s88, %s91
    %p100 = scmp.eq.s32.totalorder %s15, 1
    %p101 = por %p99, %p100
    %p102 = scmp.ne.s32.totalorder %s91, %s92
    %p103 = scmp.eq.s32.totalorder %s15, 0
    %p104 = por %p102, %p103
    %p105 = scmp.ne.s32.totalorder %s91, %s92
    %p106 = scmp.eq.s32.totalorder %s16, 1
    %p107 = por %p105, %p106
    %p109 = scmp.ne.s32.totalorder %s92, %s108
    %p110 = scmp.eq.s32.totalorder %s16, 0
    %p111 = por %p109, %p110
    %s112 = ssub.s32 %s10, %s17
    %p113 = scmp.eq.s32.totalorder %s112, 0
    %s115 = sadd.s32 %s114, 1
    %s116 = scalar_select %p113, %s114, %s115
    %p119 = pneg %p113
    %p120 = scmp.eq.s32.totalorder %s10, 1
    %p121 = por %p119, %p120
    %p122 = scmp.ne.s32.totalorder %s114, %s117
    %p123 = scmp.eq.s32.totalorder %s10, 0
    %p124 = por %p122, %p123
    %p125 = scmp.ne.s32.totalorder %s114, %s117
    %p126 = scmp.eq.s32.totalorder %s15, 1
    %p127 = por %p125, %p126
    %p128 = scmp.ne.s32.totalorder %s117, %s118
    %p129 = scmp.eq.s32.totalorder %s15, 0
    %p130 = por %p128, %p129
    %p131 = scmp.ne.s32.totalorder %s117, %s118
    %p132 = scmp.eq.s32.totalorder %s16, 1
    %p133 = por %p131, %p132
    %p135 = scmp.ne.s32.totalorder %s118, %s134
    %p136 = scmp.eq.s32.totalorder %s16, 0
    %p137 = por %p135, %p136
    %p138 = scmp.le.s32.totalorder 1, %s10
    %p139 = scmp.lt.s32.totalorder %s10, 3
    %p140 = pnand %p138, %p139
    %p141 = pneg %p140
    // Predicated region
    $region9: #{_lambda_.24} parent=5 // pred_check
      _
    $region10: #{_lambda_.24} parent=5 // pred_check_branch
      %143 = sbr.rel (%p140) target = $region12
    $region11: #{_lambda_.24} parent=5 // pred_region
      %s144 = ssub.s32 %s10, 1
      // Predicated region
      $region13: #{_lambda_.24} parent=11 // pred_check
        %p145 = pneg %p57
      $region14: #{_lambda_.24} parent=11 // pred_check_branch
        %147 = sbr.rel (%p145) target = $region16
      $region15: #{_lambda_.24} parent=11 // pred_region
        _
      $region16: #{_lambda_.24} parent=11 // pred_fallthru
        _
      // Predicated region
      $region17: #{_lambda_.24} parent=11 // pred_check
        %p148 = pneg %p78
      $region18: #{_lambda_.24} parent=11 // pred_check_branch
        %150 = sbr.rel (%p148) target = $region20
      $region19: #{_lambda_.24} parent=11 // pred_region
        _
      $region20: #{_lambda_.24} parent=11 // pred_fallthru
        _
    $region12: #{_lambda_.24} parent=5 // pred_fallthru
      _
    %p151 = scmp.lt.s32.totalorder %s10, 2
    // Predicated region
    $region21: #{_lambda_.24} parent=5 // pred_check
      %p152 = pneg %p151
    $region22: #{_lambda_.24} parent=5 // pred_check_branch
      %154 = sbr.rel (%p152) target = $region24
    $region23: #{_lambda_.24} parent=5 // pred_region
      // Predicated region
      $region25: #{_lambda_.24} parent=23 // pred_check
        %p155 = pneg %p30
      $region26: #{_lambda_.24} parent=23 // pred_check_branch
        %157 = sbr.rel (%p155) target = $region28
      $region27: #{_lambda_.24} parent=23 // pred_region
        %s158 = smul.u32 8, %s10
        %p159 = scmp.lt.s32.totalorder %s158, 15
        %s160 = scalar_select %p159, %s158, 15
        %s161 = smul.addr %s160, 9
        %s162 = smul.addr %s161, 4
        %s163 = scalar_lea.vmem %s0, %s162
        %s164 = smul.u32 8, %s10
      $region28: #{_lambda_.24} parent=23 // pred_fallthru
        _
      // Predicated region
      $region29: #{_lambda_.24} parent=23 // pred_check
        %p165 = pneg %p98
      $region30: #{_lambda_.24} parent=23 // pred_check_branch
        %167 = sbr.rel (%p165) target = $region32
      $region31: #{_lambda_.24} parent=23 // pred_region
        %s168 = smul.u32 8, %s10
        %p169 = scmp.lt.s32.totalorder %s168, 15
        %s170 = scalar_select %p169, %s168, 15
        %s171 = smul.addr %s170, 4
        %s172 = scalar_lea.vmem %s3, %s171
        %s173 = smul.u32 8, %s10
      $region32: #{_lambda_.24} parent=23 // pred_fallthru
        _
    $region24: #{_lambda_.24} parent=5 // pred_fallthru
      _
    %p174 = scmp.le.s32.totalorder 1, %s10
    %p175 = scmp.lt.s32.totalorder %s10, 3
    %p176 = pnand %p174, %p175
    %p177 = pneg %p176
    // Predicated region
    $region33: #{_lambda_.24} parent=5 // pred_check
      _
    $region34: #{_lambda_.24} parent=5 // pred_check_branch
      %179 = sbr.rel (%p176) target = $region36
    $region35: #{_lambda_.24} parent=5 // pred_region
      %s180 = ssub.s32 %s10, 1
      %s181 = smul.u32 8, %s15
      %p182 = scmp.lt.s32.totalorder %s181, 15
      %s183 = scalar_select %p182, %s181, 15
      %s184 = smul.addr %s183, 9
      %s185 = smul.addr %s184, 4
      %s186 = scalar_lea.vmem %s0, %s185
      %p187 = pneg %p36
      %p188 = pneg %p33
      %p189 = pneg %p57
      %p190 = pneg %p54
      %p191 = pneg %p78
      %p192 = pneg %p75
      %s193 = smul.u32 8, %s15
      %p194 = scmp.lt.s32.totalorder %s193, 15
      %s195 = scalar_select %p194, %s193, 15
      %s196 = smul.addr %s195, 4
      %s197 = scalar_lea.vmem %s3, %s196
      %p198 = pneg %p104
      %p199 = pneg %p101
      %p200 = pneg %p130
      %p201 = pneg %p127
      %s202 = smul.u32 8, %s15
      %p203 = scmp.lt.s32.totalorder %s202, 15
      %s204 = scalar_select %p203, %s202, 15
      %s205 = smul.addr %s204, 4
      %s206 = scalar_lea.vmem %s4, %s205
      %s207 = smul.u32 8, %s15
      %p208 = scmp.lt.s32.totalorder %s207, 15
      %s209 = scalar_select %p208, %s207, 15
      %s210 = smul.addr %s209, 9
      %s211 = smul.addr %s210, 4
      %s212 = scalar_lea.vmem %s0, %s211
      %s213 = smul.u32 8, %s15
      %s214 = smul.u32 8, %s15
      %p215 = scmp.lt.s32.totalorder %s214, 15
      %s216 = scalar_select %p215, %s214, 15
      %s217 = smul.addr %s216, 4
      %s218 = scalar_lea.vmem %s3, %s217
      %s219 = smul.u32 8, %s15
      %s220 = smul.u32 8, %s15
      %p221 = scmp.lt.s32.totalorder %s220, 15
      %s222 = scalar_select %p221, %s220, 15
      %s223 = smul.addr %s222, 4
      %s224 = scalar_lea.vmem %s4, %s223
      %s225 = smul.u32 8, %s15
      %v227 = vld [vmem:[%s212] sm:$0xff]
      %v228 = vld [vmem:[%s212 + $0x8] sm:$0xff]
      %v229 = vld [vmem:[%s212 + $0x10] sm:$0xff]
      %v230 = vld [vmem:[%s212 + $0x18] sm:$0xff]
      %v231 = vld [vmem:[%s212 + $0x20] sm:$0xf]
      %v232 = vld [vmem:[%s212 + $0x24] sm:$0xff]
      %v233 = vld [vmem:[%s212 + $0x2c] sm:$0xff]
      %v234 = vld [vmem:[%s212 + $0x34] sm:$0xff]
      %v235 = vld [vmem:[%s212 + $0x3c] sm:$0xff]
      %v236 = vld [vmem:[%s212 + $0x44] sm:$0xf]
      %v237 = vld [vmem:[%s212 + $0x48] sm:$0xff]
      %v238 = vld [vmem:[%s212 + $0x50] sm:$0xff]
      %v239 = vld [vmem:[%s212 + $0x58] sm:$0xff]
      %v240 = vld [vmem:[%s212 + $0x60] sm:$0xff]
      %v241 = vld [vmem:[%s212 + $0x68] sm:$0xf]
      %v242 = vld [vmem:[%s212 + $0x6c] sm:$0xff]
      %v243 = vld [vmem:[%s212 + $0x74] sm:$0xff]
      %v244 = vld [vmem:[%s212 + $0x7c] sm:$0xff]
      %v245 = vld [vmem:[%s212 + $0x84] sm:$0xff]
      %v246 = vld [vmem:[%s212 + $0x8c] sm:$0xf]
      %v247 = vld [vmem:[%s212 + $0x90] sm:$0xff]
      %v248 = vld [vmem:[%s212 + $0x98] sm:$0xff]
      %v249 = vld [vmem:[%s212 + $0xa0] sm:$0xff]
      %v250 = vld [vmem:[%s212 + $0xa8] sm:$0xff]
      %v251 = vld [vmem:[%s212 + $0xb0] sm:$0xf]
      %v252 = vld [vmem:[%s212 + $0xb4] sm:$0xff]
      %v253 = vld [vmem:[%s212 + $0xbc] sm:$0xff]
      %v254 = vld [vmem:[%s212 + $0xc4] sm:$0xff]
      %v255 = vld [vmem:[%s212 + $0xcc] sm:$0xff]
      %v256 = vld [vmem:[%s212 + $0xd4] sm:$0xf]
      %v257 = vld [vmem:[%s212 + $0xd8] sm:$0xff]
      %v258 = vld [vmem:[%s212 + $0xe0] sm:$0xff]
      %v259 = vld [vmem:[%s212 + $0xe8] sm:$0xff]
      %v260 = vld [vmem:[%s212 + $0xf0] sm:$0xff]
      %v261 = vld [vmem:[%s212 + $0xf8] sm:$0xf]
      %v262 = vld [vmem:[%s212 + $0xfc] sm:$0xff]
      %v263 = vld [vmem:[%s212 + $0x104] sm:$0xff]
      %v264 = vld [vmem:[%s212 + $0x10c] sm:$0xff]
      %v265 = vld [vmem:[%s212 + $0x114] sm:$0xff]
      %v266 = vld [vmem:[%s212 + $0x11c] sm:$0xf]
      %v267 = vld [vmem:[%s1] sm:$0xf]
      %v268 = vld [vmem:[%s1 + $0x4] sm:$0xf]
      %v269 = vld [vmem:[%s1 + $0x8] sm:$0xf]
      %v270 = vld [vmem:[%s1 + $0xc] sm:$0xf]
      %v271 = vld [vmem:[%s1 + $0x10] sm:$0xf]
      %v272 = vld [vmem:[%s1 + $0x14] sm:$0xf]
      %v273 = vld [vmem:[%s1 + $0x18] sm:$0xf]
      %v274 = vld [vmem:[%s1 + $0x1c] sm:$0xf]
      %v275 = vld [vmem:[%s1 + $0x20] sm:$0xf]
      %v276 = vld [vmem:[%s1 + $0x24] sm:$0xf]
      %v277 = vld [vmem:[%s1 + $0x28] sm:$0xf]
      %v278 = vld [vmem:[%s1 + $0x2c] sm:$0xf]
      %v279 = vld [vmem:[%s1 + $0x30] sm:$0xf]
      %v280 = vld [vmem:[%s1 + $0x34] sm:$0xf]
      %v281 = vld [vmem:[%s1 + $0x38] sm:$0xf]
      %v282 = vld [vmem:[%s1 + $0x3c] sm:$0xf]
      %v283 = vld [vmem:[%s1 + $0x40] sm:$0xf]
      %v284 = vld [vmem:[%s1 + $0x44] sm:$0xf]
      %v285 = vld [vmem:[%s1 + $0x48] sm:$0xf]
      %v286 = vld [vmem:[%s1 + $0x4c] sm:$0xf]
      %v287 = vld [vmem:[%s1 + $0x50] sm:$0xf]
      %v288 = vld [vmem:[%s1 + $0x54] sm:$0xf]
      %v289 = vld [vmem:[%s1 + $0x58] sm:$0xf]
      %v290 = vld [vmem:[%s1 + $0x5c] sm:$0xf]
      %v291 = vld [vmem:[%s1 + $0x60] sm:$0xf]
      %v292 = vld [vmem:[%s1 + $0x64] sm:$0xf]
      %v293 = vld [vmem:[%s1 + $0x68] sm:$0xf]
      %v294 = vld [vmem:[%s1 + $0x6c] sm:$0xf]
      %v295 = vld [vmem:[%s1 + $0x70] sm:$0xf]
      %v296 = vld [vmem:[%s1 + $0x74] sm:$0xf]
      %v297 = vld [vmem:[%s1 + $0x78] sm:$0xf]
      %v298 = vld [vmem:[%s1 + $0x7c] sm:$0xf]
      %v299 = vld [vmem:[%s1 + $0x80] sm:$0xf]
      %v300 = vld [vmem:[%s1 + $0x84] sm:$0xf]
      %v301 = vld [vmem:[%s1 + $0x88] sm:$0xf]
      %v302 = vld [vmem:[%s1 + $0x8c] sm:$0xf]
      %v303 = vld [vmem:[%s1 + $0x90] sm:$0xf]
      %v304 = vld [vmem:[%s1 + $0x94] sm:$0xf]
      %v305 = vld [vmem:[%s1 + $0x98] sm:$0xf]
      %v306 = vld [vmem:[%s1 + $0x9c] sm:$0xf]
      %v307 = vld [vmem:[%s1 + $0xa0] sm:$0xf]
      %v308 = vld [vmem:[%s1 + $0xa4] sm:$0xf]
      %v309 = vld [vmem:[%s1 + $0xa8] sm:$0xf]
      %v310 = vld [vmem:[%s1 + $0xac] sm:$0xf]
      %v311 = vld [vmem:[%s1 + $0xb0] sm:$0xf]
      %v312 = vld [vmem:[%s1 + $0xb4] sm:$0xf]
      %v313 = vld [vmem:[%s1 + $0xb8] sm:$0xf]
      %v314 = vld [vmem:[%s1 + $0xbc] sm:$0xf]
      %v315 = vld [vmem:[%s1 + $0xc0] sm:$0xf]
      %v316 = vld [vmem:[%s1 + $0xc4] sm:$0xf]
      %v317 = vld [vmem:[%s1 + $0xc8] sm:$0xf]
      %v318 = vld [vmem:[%s1 + $0xcc] sm:$0xf]
      %v319 = vld [vmem:[%s1 + $0xd0] sm:$0xf]
      %v320 = vld [vmem:[%s1 + $0xd4] sm:$0xf]
      %v321 = vld [vmem:[%s1 + $0xd8] sm:$0xf]
      %v322 = vld [vmem:[%s1 + $0xdc] sm:$0xf]
      %v323 = vld [vmem:[%s1 + $0xe0] sm:$0xf]
      %v324 = vld [vmem:[%s1 + $0xe4] sm:$0xf]
      %v325 = vld [vmem:[%s1 + $0xe8] sm:$0xf]
      %v326 = vld [vmem:[%s1 + $0xec] sm:$0xf]
      %v327 = vld [vmem:[%s1 + $0xf0] sm:$0xf]
      %v328 = vld [vmem:[%s1 + $0xf4] sm:$0xf]
      %v329 = vld [vmem:[%s1 + $0xf8] sm:$0xf]
      %v330 = vld [vmem:[%s1 + $0xfc] sm:$0xf]
      %v331 = vld [vmem:[%s1 + $0x100] sm:$0xf]
      %v332 = vld [vmem:[%s1 + $0x104] sm:$0xf]
      %v333 = vld [vmem:[%s1 + $0x108] sm:$0xf]
      %v334 = vld [vmem:[%s1 + $0x10c] sm:$0xf]
      %v335 = vld [vmem:[%s1 + $0x110] sm:$0xf]
      %v336 = vld [vmem:[%s1 + $0x114] sm:$0xf]
      %v337 = vld [vmem:[%s1 + $0x118] sm:$0xf]
      %v338 = vld [vmem:[%s1 + $0x11c] sm:$0xf]
      %v339 = vld [vmem:[%s1 + $0x120] sm:$0xf]
      %v340 = vld [vmem:[%s1 + $0x124] sm:$0xf]
      %v341 = vld [vmem:[%s1 + $0x128] sm:$0xf]
      %v342 = vld [vmem:[%s1 + $0x12c] sm:$0xf]
      %v343 = vld [vmem:[%s1 + $0x130] sm:$0xf]
      %v344 = vld [vmem:[%s1 + $0x134] sm:$0xf]
      %v345 = vld [vmem:[%s1 + $0x138] sm:$0xf]
      %v346 = vld [vmem:[%s1 + $0x13c] sm:$0xf]
      %v347 = vld [vmem:[%s1 + $0x140] sm:$0xf]
      %v348 = vld [vmem:[%s1 + $0x144] sm:$0xf]
      %v349 = vld [vmem:[%s1 + $0x148] sm:$0xf]
      %v350 = vld [vmem:[%s1 + $0x14c] sm:$0xf]
      %v351 = vld [vmem:[%s1 + $0x150] sm:$0xf]
      %v352 = vld [vmem:[%s1 + $0x154] sm:$0xf]
      %v353 = vld [vmem:[%s1 + $0x158] sm:$0xf]
      %v354 = vld [vmem:[%s1 + $0x15c] sm:$0xf]
      %v355 = vld [vmem:[%s1 + $0x160] sm:$0xf]
      %v356 = vld [vmem:[%s1 + $0x164] sm:$0xf]
      %v357 = vld [vmem:[%s1 + $0x168] sm:$0xf]
      %v358 = vld [vmem:[%s1 + $0x16c] sm:$0xf]
      %v359 = vld [vmem:[%s1 + $0x170] sm:$0xf]
      %v360 = vld [vmem:[%s1 + $0x174] sm:$0xf]
      %v361 = vld [vmem:[%s1 + $0x178] sm:$0xf]
      %v362 = vld [vmem:[%s1 + $0x17c] sm:$0xf]
      %v363 = vld [vmem:[%s1 + $0x180] sm:$0xf]
      %v364 = vld [vmem:[%s1 + $0x184] sm:$0xf]
      %v365 = vld [vmem:[%s1 + $0x188] sm:$0xf]
      %v366 = vld [vmem:[%s1 + $0x18c] sm:$0xf]
      %v367 = vld [vmem:[%s1 + $0x190] sm:$0xf]
      %v368 = vld [vmem:[%s1 + $0x194] sm:$0xf]
      %v369 = vld [vmem:[%s1 + $0x198] sm:$0xf]
      %v370 = vld [vmem:[%s1 + $0x19c] sm:$0xf]
      %v371 = vld [vmem:[%s1 + $0x1a0] sm:$0xf]
      %v372 = vld [vmem:[%s1 + $0x1a4] sm:$0xf]
      %v373 = vld [vmem:[%s1 + $0x1a8] sm:$0xf]
      %v374 = vld [vmem:[%s1 + $0x1ac] sm:$0xf]
      %v375 = vld [vmem:[%s1 + $0x1b0] sm:$0xf]
      %v376 = vld [vmem:[%s1 + $0x1b4] sm:$0xf]
      %v377 = vld [vmem:[%s1 + $0x1b8] sm:$0xf]
      %v378 = vld [vmem:[%s1 + $0x1bc] sm:$0xf]
      %v379 = vld [vmem:[%s1 + $0x1c0] sm:$0xf]
      %v380 = vld [vmem:[%s1 + $0x1c4] sm:$0xf]
      %v381 = vld [vmem:[%s1 + $0x1c8] sm:$0xf]
      %v382 = vld [vmem:[%s1 + $0x1cc] sm:$0xf]
      %v383 = vld [vmem:[%s1 + $0x1d0] sm:$0xf]
      %v384 = vld [vmem:[%s1 + $0x1d4] sm:$0xf]
      %v385 = vld [vmem:[%s1 + $0x1d8] sm:$0xf]
      %v386 = vld [vmem:[%s1 + $0x1dc] sm:$0xf]
      %v387 = vld [vmem:[%s1 + $0x1e0] sm:$0xf]
      %v388 = vld [vmem:[%s1 + $0x1e4] sm:$0xf]
      %v389 = vld [vmem:[%s1 + $0x1e8] sm:$0xf]
      %v390 = vld [vmem:[%s1 + $0x1ec] sm:$0xf]
      %v391 = vld [vmem:[%s1 + $0x1f0] sm:$0xf]
      %v392 = vld [vmem:[%s1 + $0x1f4] sm:$0xf]
      %v393 = vld [vmem:[%s1 + $0x1f8] sm:$0xf]
      %v394 = vld [vmem:[%s1 + $0x1fc] sm:$0xf]
      %v395 = vld [vmem:[%s1 + $0x200] sm:$0xf]
      %v396 = vld [vmem:[%s1 + $0x204] sm:$0xf]
      %v397 = vld [vmem:[%s1 + $0x208] sm:$0xf]
      %v398 = vld [vmem:[%s1 + $0x20c] sm:$0xf]
      %v399 = vld [vmem:[%s1 + $0x210] sm:$0xf]
      %v400 = vld [vmem:[%s1 + $0x214] sm:$0xf]
      %v401 = vld [vmem:[%s1 + $0x218] sm:$0xf]
      %v402 = vld [vmem:[%s1 + $0x21c] sm:$0xf]
      %v403 = vld [vmem:[%s1 + $0x220] sm:$0xf]
      %v404 = vld [vmem:[%s1 + $0x224] sm:$0xf]
      %v405 = vld [vmem:[%s1 + $0x228] sm:$0xf]
      %v406 = vld [vmem:[%s1 + $0x22c] sm:$0xf]
      %v407 = vld [vmem:[%s1 + $0x230] sm:$0xf]
      %v408 = vld [vmem:[%s1 + $0x234] sm:$0xf]
      %v409 = vld [vmem:[%s1 + $0x238] sm:$0xf]
      %v410 = vld [vmem:[%s1 + $0x23c] sm:$0xf]
      %v411 = vld [vmem:[%s2] sm:$0x1]
      %v413 = vlaneseq
      %v414 = vshrl.u32 %v413, 7
      %v415 = vsub.s32 0, %v414
      %v416 = vrot.slane %v411, %v415
      %v458 = vunpack.c.l.b16 %v227
      %v459 = vunpack.c.h.b16 %v227
      %v460 = vunpack.c.l.b16 %v228
      %v461 = vunpack.c.h.b16 %v228
      %v462 = vunpack.c.l.b16 %v229
      %v463 = vunpack.c.h.b16 %v229
      %v464 = vunpack.c.l.b16 %v230
      %v465 = vunpack.c.h.b16 %v230
      %v466 = vunpack.c.l.b16 %v231
      %v467 = vunpack.c.l.b16 %v232
      %v468 = vunpack.c.h.b16 %v232
      %v469 = vunpack.c.l.b16 %v233
      %v470 = vunpack.c.h.b16 %v233
      %v471 = vunpack.c.l.b16 %v234
      %v472 = vunpack.c.h.b16 %v234
      %v473 = vunpack.c.l.b16 %v235
      %v474 = vunpack.c.h.b16 %v235
      %v475 = vunpack.c.l.b16 %v236
      %v476 = vunpack.c.l.b16 %v237
      %v477 = vunpack.c.h.b16 %v237
      %v478 = vunpack.c.l.b16 %v238
      %v479 = vunpack.c.h.b16 %v238
      %v480 = vunpack.c.l.b16 %v239
      %v481 = vunpack.c.h.b16 %v239
      %v482 = vunpack.c.l.b16 %v240
      %v483 = vunpack.c.h.b16 %v240
      %v484 = vunpack.c.l.b16 %v241
      %v485 = vunpack.c.l.b16 %v242
      %v486 = vunpack.c.h.b16 %v242
      %v487 = vunpack.c.l.b16 %v243
      %v488 = vunpack.c.h.b16 %v243
      %v489 = vunpack.c.l.b16 %v244
      %v490 = vunpack.c.h.b16 %v244
      %v491 = vunpack.c.l.b16 %v245
      %v492 = vunpack.c.h.b16 %v245
      %v493 = vunpack.c.l.b16 %v246
      %v494 = vunpack.c.l.b16 %v247
      %v495 = vunpack.c.h.b16 %v247
      %v496 = vunpack.c.l.b16 %v248
      %v497 = vunpack.c.h.b16 %v248
      %v498 = vunpack.c.l.b16 %v249
      %v499 = vunpack.c.h.b16 %v249
      %v500 = vunpack.c.l.b16 %v250
      %v501 = vunpack.c.h.b16 %v250
      %v502 = vunpack.c.l.b16 %v251
      %v503 = vunpack.c.l.b16 %v252
      %v504 = vunpack.c.h.b16 %v252
      %v505 = vunpack.c.l.b16 %v253
      %v506 = vunpack.c.h.b16 %v253
      %v507 = vunpack.c.l.b16 %v254
      %v508 = vunpack.c.h.b16 %v254
      %v509 = vunpack.c.l.b16 %v255
      %v510 = vunpack.c.h.b16 %v255
      %v511 = vunpack.c.l.b16 %v256
      %v512 = vunpack.c.l.b16 %v257
      %v513 = vunpack.c.h.b16 %v257
      %v514 = vunpack.c.l.b16 %v258
      %v515 = vunpack.c.h.b16 %v258
      %v516 = vunpack.c.l.b16 %v259
      %v517 = vunpack.c.h.b16 %v259
      %v518 = vunpack.c.l.b16 %v260
      %v519 = vunpack.c.h.b16 %v260
      %v520 = vunpack.c.l.b16 %v261
      %v521 = vunpack.c.l.b16 %v262
      %v522 = vunpack.c.h.b16 %v262
      %v523 = vunpack.c.l.b16 %v263
      %v524 = vunpack.c.h.b16 %v263
      %v525 = vunpack.c.l.b16 %v264
      %v526 = vunpack.c.h.b16 %v264
      %v527 = vunpack.c.l.b16 %v265
      %v528 = vunpack.c.h.b16 %v265
      %v529 = vunpack.c.l.b16 %v266
      %v530 = vpack.c.b16 %v467, %v458
      %v531 = vpack.c.b16 %v468, %v459
      %v532 = vpack.c.b16 %v469, %v460
      %v533 = vpack.c.b16 %v470, %v461
      %v534 = vpack.c.b16 %v471, %v462
      %v535 = vpack.c.b16 %v472, %v463
      %v536 = vpack.c.b16 %v473, %v464
      %v537 = vpack.c.b16 %v474, %v465
      %v538 = vpack.c.b16 %v475, %v466
      %v539 = vpack.c.b16 %v485, %v476
      %v540 = vpack.c.b16 %v486, %v477
      %v541 = vpack.c.b16 %v487, %v478
      %v542 = vpack.c.b16 %v488, %v479
      %v543 = vpack.c.b16 %v489, %v480
      %v544 = vpack.c.b16 %v490, %v481
      %v545 = vpack.c.b16 %v491, %v482
      %v546 = vpack.c.b16 %v492, %v483
      %v547 = vpack.c.b16 %v493, %v484
      %v548 = vpack.c.b16 %v503, %v494
      %v549 = vpack.c.b16 %v504, %v495
      %v550 = vpack.c.b16 %v505, %v496
      %v551 = vpack.c.b16 %v506, %v497
      %v552 = vpack.c.b16 %v507, %v498
      %v553 = vpack.c.b16 %v508, %v499
      %v554 = vpack.c.b16 %v509, %v500
      %v555 = vpack.c.b16 %v510, %v501
      %v556 = vpack.c.b16 %v511, %v502
      %v557 = vpack.c.b16 %v521, %v512
      %v558 = vpack.c.b16 %v522, %v513
      %v559 = vpack.c.b16 %v523, %v514
      %v560 = vpack.c.b16 %v524, %v515
      %v561 = vpack.c.b16 %v525, %v516
      %v562 = vpack.c.b16 %v526, %v517
      %v563 = vpack.c.b16 %v527, %v518
      %v564 = vpack.c.b16 %v528, %v519
      %v565 = vpack.c.b16 %v529, %v520
      %v746 = vunpack.c.l.b16 %v267
      %v747 = vunpack.c.l.b16 %v268
      %v748 = vunpack.c.l.b16 %v269
      %v749 = vunpack.c.l.b16 %v270
      %v750 = vunpack.c.l.b16 %v271
      %v751 = vunpack.c.l.b16 %v272
      %v752 = vunpack.c.l.b16 %v273
      %v753 = vunpack.c.l.b16 %v274
      %v754 = vunpack.c.l.b16 %v275
      %v755 = vunpack.c.l.b16 %v276
      %v756 = vunpack.c.l.b16 %v277
      %v757 = vunpack.c.l.b16 %v278
      %v758 = vunpack.c.l.b16 %v279
      %v759 = vunpack.c.l.b16 %v280
      %v760 = vunpack.c.l.b16 %v281
      %v761 = vunpack.c.l.b16 %v282
      %v762 = vunpack.c.l.b16 %v283
      %v763 = vunpack.c.l.b16 %v284
      %v764 = vunpack.c.l.b16 %v285
      %v765 = vunpack.c.l.b16 %v286
      %v766 = vunpack.c.l.b16 %v287
      %v767 = vunpack.c.l.b16 %v288
      %v768 = vunpack.c.l.b16 %v289
      %v769 = vunpack.c.l.b16 %v290
      %v770 = vunpack.c.l.b16 %v291
      %v771 = vunpack.c.l.b16 %v292
      %v772 = vunpack.c.l.b16 %v293
      %v773 = vunpack.c.l.b16 %v294
      %v774 = vunpack.c.l.b16 %v295
      %v775 = vunpack.c.l.b16 %v296
      %v776 = vunpack.c.l.b16 %v297
      %v777 = vunpack.c.l.b16 %v298
      %v778 = vunpack.c.l.b16 %v299
      %v779 = vunpack.c.l.b16 %v300
      %v780 = vunpack.c.l.b16 %v301
      %v781 = vunpack.c.l.b16 %v302
      %v782 = vunpack.c.l.b16 %v303
      %v783 = vunpack.c.l.b16 %v304
      %v784 = vunpack.c.l.b16 %v305
      %v785 = vunpack.c.l.b16 %v306
      %v786 = vunpack.c.l.b16 %v307
      %v787 = vunpack.c.l.b16 %v308
      %v788 = vunpack.c.l.b16 %v309
      %v789 = vunpack.c.l.b16 %v310
      %v790 = vunpack.c.l.b16 %v311
      %v791 = vunpack.c.l.b16 %v312
      %v792 = vunpack.c.l.b16 %v313
      %v793 = vunpack.c.l.b16 %v314
      %v794 = vunpack.c.l.b16 %v315
      %v795 = vunpack.c.l.b16 %v316
      %v796 = vunpack.c.l.b16 %v317
      %v797 = vunpack.c.l.b16 %v318
      %v798 = vunpack.c.l.b16 %v319
      %v799 = vunpack.c.l.b16 %v320
      %v800 = vunpack.c.l.b16 %v321
      %v801 = vunpack.c.l.b16 %v322
      %v802 = vunpack.c.l.b16 %v323
      %v803 = vunpack.c.l.b16 %v324
      %v804 = vunpack.c.l.b16 %v325
      %v805 = vunpack.c.l.b16 %v326
      %v806 = vunpack.c.l.b16 %v327
      %v807 = vunpack.c.l.b16 %v328
      %v808 = vunpack.c.l.b16 %v329
      %v809 = vunpack.c.l.b16 %v330
      %v810 = vunpack.c.l.b16 %v331
      %v811 = vunpack.c.l.b16 %v332
      %v812 = vunpack.c.l.b16 %v333
      %v813 = vunpack.c.l.b16 %v334
      %v814 = vunpack.c.l.b16 %v335
      %v815 = vunpack.c.l.b16 %v336
      %v816 = vunpack.c.l.b16 %v337
      %v817 = vunpack.c.l.b16 %v338
      %v818 = vunpack.c.l.b16 %v339
      %v819 = vunpack.c.l.b16 %v340
      %v820 = vunpack.c.l.b16 %v341
      %v821 = vunpack.c.l.b16 %v342
      %v822 = vunpack.c.l.b16 %v343
      %v823 = vunpack.c.l.b16 %v344
      %v824 = vunpack.c.l.b16 %v345
      %v825 = vunpack.c.l.b16 %v346
      %v826 = vunpack.c.l.b16 %v347
      %v827 = vunpack.c.l.b16 %v348
      %v828 = vunpack.c.l.b16 %v349
      %v829 = vunpack.c.l.b16 %v350
      %v830 = vunpack.c.l.b16 %v351
      %v831 = vunpack.c.l.b16 %v352
      %v832 = vunpack.c.l.b16 %v353
      %v833 = vunpack.c.l.b16 %v354
      %v834 = vunpack.c.l.b16 %v355
      %v835 = vunpack.c.l.b16 %v356
      %v836 = vunpack.c.l.b16 %v357
      %v837 = vunpack.c.l.b16 %v358
      %v838 = vunpack.c.l.b16 %v359
      %v839 = vunpack.c.l.b16 %v360
      %v840 = vunpack.c.l.b16 %v361
      %v841 = vunpack.c.l.b16 %v362
      %v842 = vunpack.c.l.b16 %v363
      %v843 = vunpack.c.l.b16 %v364
      %v844 = vunpack.c.l.b16 %v365
      %v845 = vunpack.c.l.b16 %v366
      %v846 = vunpack.c.l.b16 %v367
      %v847 = vunpack.c.l.b16 %v368
      %v848 = vunpack.c.l.b16 %v369
      %v849 = vunpack.c.l.b16 %v370
      %v850 = vunpack.c.l.b16 %v371
      %v851 = vunpack.c.l.b16 %v372
      %v852 = vunpack.c.l.b16 %v373
      %v853 = vunpack.c.l.b16 %v374
      %v854 = vunpack.c.l.b16 %v375
      %v855 = vunpack.c.l.b16 %v376
      %v856 = vunpack.c.l.b16 %v377
      %v857 = vunpack.c.l.b16 %v378
      %v858 = vunpack.c.l.b16 %v379
      %v859 = vunpack.c.l.b16 %v380
      %v860 = vunpack.c.l.b16 %v381
      %v861 = vunpack.c.l.b16 %v382
      %v862 = vunpack.c.l.b16 %v383
      %v863 = vunpack.c.l.b16 %v384
      %v864 = vunpack.c.l.b16 %v385
      %v865 = vunpack.c.l.b16 %v386
      %v866 = vunpack.c.l.b16 %v387
      %v867 = vunpack.c.l.b16 %v388
      %v868 = vunpack.c.l.b16 %v389
      %v869 = vunpack.c.l.b16 %v390
      %v870 = vunpack.c.l.b16 %v391
      %v871 = vunpack.c.l.b16 %v392
      %v872 = vunpack.c.l.b16 %v393
      %v873 = vunpack.c.l.b16 %v394
      %v874 = vunpack.c.l.b16 %v395
      %v875 = vunpack.c.l.b16 %v396
      %v876 = vunpack.c.l.b16 %v397
      %v877 = vunpack.c.l.b16 %v398
      %v878 = vunpack.c.l.b16 %v399
      %v879 = vunpack.c.l.b16 %v400
      %v880 = vunpack.c.l.b16 %v401
      %v881 = vunpack.c.l.b16 %v402
      %v882 = vunpack.c.l.b16 %v403
      %v883 = vunpack.c.l.b16 %v404
      %v884 = vunpack.c.l.b16 %v405
      %v885 = vunpack.c.l.b16 %v406
      %v886 = vunpack.c.l.b16 %v407
      %v887 = vunpack.c.l.b16 %v408
      %v888 = vunpack.c.l.b16 %v409
      %v889 = vunpack.c.l.b16 %v410
      %v890 = vpack.c.b16 %v747, %v746
      %v891 = vpack.c.b16 %v749, %v748
      %v892 = vpack.c.b16 %v751, %v750
      %v893 = vpack.c.b16 %v753, %v752
      %v894 = vpack.c.b16 %v755, %v754
      %v895 = vpack.c.b16 %v757, %v756
      %v896 = vpack.c.b16 %v759, %v758
      %v897 = vpack.c.b16 %v761, %v760
      %v898 = vpack.c.b16 %v763, %v762
      %v899 = vpack.c.b16 %v765, %v764
      %v900 = vpack.c.b16 %v767, %v766
      %v901 = vpack.c.b16 %v769, %v768
      %v902 = vpack.c.b16 %v771, %v770
      %v903 = vpack.c.b16 %v773, %v772
      %v904 = vpack.c.b16 %v775, %v774
      %v905 = vpack.c.b16 %v777, %v776
      %v906 = vpack.c.b16 %v779, %v778
      %v907 = vpack.c.b16 %v781, %v780
      %v908 = vpack.c.b16 %v783, %v782
      %v909 = vpack.c.b16 %v785, %v784
      %v910 = vpack.c.b16 %v787, %v786
      %v911 = vpack.c.b16 %v789, %v788
      %v912 = vpack.c.b16 %v791, %v790
      %v913 = vpack.c.b16 %v793, %v792
      %v914 = vpack.c.b16 %v795, %v794
      %v915 = vpack.c.b16 %v797, %v796
      %v916 = vpack.c.b16 %v799, %v798
      %v917 = vpack.c.b16 %v801, %v800
      %v918 = vpack.c.b16 %v803, %v802
      %v919 = vpack.c.b16 %v805, %v804
      %v920 = vpack.c.b16 %v807, %v806
      %v921 = vpack.c.b16 %v809, %v808
      %v922 = vpack.c.b16 %v811, %v810
      %v923 = vpack.c.b16 %v813, %v812
      %v924 = vpack.c.b16 %v815, %v814
      %v925 = vpack.c.b16 %v817, %v816
      %v926 = vpack.c.b16 %v819, %v818
      %v927 = vpack.c.b16 %v821, %v820
      %v928 = vpack.c.b16 %v823, %v822
      %v929 = vpack.c.b16 %v825, %v824
      %v930 = vpack.c.b16 %v827, %v826
      %v931 = vpack.c.b16 %v829, %v828
      %v932 = vpack.c.b16 %v831, %v830
      %v933 = vpack.c.b16 %v833, %v832
      %v934 = vpack.c.b16 %v835, %v834
      %v935 = vpack.c.b16 %v837, %v836
      %v936 = vpack.c.b16 %v839, %v838
      %v937 = vpack.c.b16 %v841, %v840
      %v938 = vpack.c.b16 %v843, %v842
      %v939 = vpack.c.b16 %v845, %v844
      %v940 = vpack.c.b16 %v847, %v846
      %v941 = vpack.c.b16 %v849, %v848
      %v942 = vpack.c.b16 %v851, %v850
      %v943 = vpack.c.b16 %v853, %v852
      %v944 = vpack.c.b16 %v855, %v854
      %v945 = vpack.c.b16 %v857, %v856
      %v946 = vpack.c.b16 %v859, %v858
      %v947 = vpack.c.b16 %v861, %v860
      %v948 = vpack.c.b16 %v863, %v862
      %v949 = vpack.c.b16 %v865, %v864
      %v950 = vpack.c.b16 %v867, %v866
      %v951 = vpack.c.b16 %v869, %v868
      %v952 = vpack.c.b16 %v871, %v870
      %v953 = vpack.c.b16 %v873, %v872
      %v954 = vpack.c.b16 %v875, %v874
      %v955 = vpack.c.b16 %v877, %v876
      %v956 = vpack.c.b16 %v879, %v878
      %v957 = vpack.c.b16 %v881, %v880
      %v958 = vpack.c.b16 %v883, %v882
      %v959 = vpack.c.b16 %v885, %v884
      %v960 = vpack.c.b16 %v887, %v886
      %v961 = vpack.c.b16 %v889, %v888
      %1034 = vmatprep.subr.bf16.mxu0 0
      %1035 = vmatpush1.bf16.msra.mxu0 %v890
      %1036 = vmatprep.subr.bf16.mxu0 0
      %1037 = vmatpush1.bf16.msra.mxu0 %v891
      %1038 = vmatprep.subr.bf16.mxu0 0
      %1039 = vmatpush1.bf16.msra.mxu0 %v892
      %1040 = vmatprep.subr.bf16.mxu0 0
      %1041 = vmatpush1.bf16.msra.mxu0 %v893
      %1042 = vmatprep.subr.bf16.mxu0 0
      %1043 = vmatpush1.bf16.msra.mxu0 %v894
      %1044 = vmatprep.subr.bf16.mxu0 0
      %1045 = vmatpush1.bf16.msra.mxu0 %v895
      %1046 = vmatprep.subr.bf16.mxu0 0
      %1047 = vmatpush1.bf16.msra.mxu0 %v896
      %1048 = vmatprep.subr.bf16.mxu0 0
      %1049 = vmatpush1.bf16.msra.mxu0 %v897
      %1050 = vmatprep.subr.bf16.mxu0 0
      %1051 = vmatpush1.bf16.msra.mxu0 %v898
      %1052 = vmatprep.subr.bf16.mxu0 0
      %1053 = vmatpush1.bf16.msra.mxu0 %v899
      %1054 = vmatprep.subr.bf16.mxu0 0
      %1055 = vmatpush1.bf16.msra.mxu0 %v900
      %1056 = vmatprep.subr.bf16.mxu0 0
      %1057 = vmatpush1.bf16.msra.mxu0 %v901
      %1058 = vmatprep.subr.bf16.mxu0 0
      %1059 = vmatpush1.bf16.msra.mxu0 %v902
      %1060 = vmatprep.subr.bf16.mxu0 0
      %1061 = vmatpush1.bf16.msra.mxu0 %v903
      %1062 = vmatprep.subr.bf16.mxu0 0
      %1063 = vmatpush1.bf16.msra.mxu0 %v904
      %1064 = vmatprep.subr.bf16.mxu0 0
      %1065 = vmatpush1.bf16.msra.mxu0 %v905
      %1066 = vmatprep.mubr.bf16.mxu0 %v531
      %1067 = vmatmul.mubr.bf16.gmra.mrb[0].mxu0 %v530
      %v1068 = vpop.f32.mrb[0].mxu0
      %v1069 = vadd.f32 %v416, %v1068
      %v1070 = vpop.f32.mrb[0].mxu0
      %v1071 = vpop.f32.mrb[0].mxu0
      %v1072 = vadd.f32 %v416, %v1071
      %v1073 = vpop.f32.mrb[0].mxu0
      %1074 = vmatprep.mubr.bf16.mxu0 %v540
      %1075 = vmatmul.mubr.bf16.gmra.mrb[0].mxu0 %v539
      %v1076 = vpop.f32.mrb[0].mxu0
      %v1077 = vadd.f32 %v416, %v1076
      %v1078 = vpop.f32.mrb[0].mxu0
      %v1079 = vpop.f32.mrb[0].mxu0
      %v1080 = vadd.f32 %v416, %v1079
      %v1081 = vpop.f32.mrb[0].mxu0
      %1082 = vmatprep.mubr.bf16.mxu0 %v549
      %1083 = vmatmul.mubr.bf16.gmra.mrb[0].mxu0 %v548
      %v1084 = vpop.f32.mrb[0].mxu0
      %v1085 = vadd.f32 %v416, %v1084
      %v1086 = vpop.f32.mrb[0].mxu0
      %v1087 = vpop.f32.mrb[0].mxu0
      %v1088 = vadd.f32 %v416, %v1087
      %v1089 = vpop.f32.mrb[0].mxu0
      %1090 = vmatprep.mubr.bf16.mxu0 %v558
      %1091 = vmatmul.mubr.bf16.gmra.mrb[0].mxu0 %v557
      %v1092 = vpop.f32.mrb[0].mxu0
      %v1093 = vadd.f32 %v416, %v1092
      %v1094 = vpop.f32.mrb[0].mxu0
      %v1095 = vpop.f32.mrb[0].mxu0
      %v1096 = vadd.f32 %v416, %v1095
      %v1097 = vpop.f32.mrb[0].mxu0
      %1098 = vdwg.mxu0
      %1099 = vmatprep.subr.bf16.mxu0 0
      %1100 = vmatpush1.bf16.msra.mxu0 %v906
      %1101 = vmatprep.subr.bf16.mxu0 0
      %1102 = vmatpush1.bf16.msra.mxu0 %v907
      %1103 = vmatprep.subr.bf16.mxu0 0
      %1104 = vmatpush1.bf16.msra.mxu0 %v908
      %1105 = vmatprep.subr.bf16.mxu0 0
      %1106 = vmatpush1.bf16.msra.mxu0 %v909
      %1107 = vmatprep.subr.bf16.mxu0 0
      %1108 = vmatpush1.bf16.msra.mxu0 %v910
      %1109 = vmatprep.subr.bf16.mxu0 0
      %1110 = vmatpush1.bf16.msra.mxu0 %v911
      %1111 = vmatprep.subr.bf16.mxu0 0
      %1112 = vmatpush1.bf16.msra.mxu0 %v912
      %1113 = vmatprep.subr.bf16.mxu0 0
      %1114 = vmatpush1.bf16.msra.mxu0 %v913
      %1115 = vmatprep.subr.bf16.mxu0 0
      %1116 = vmatpush1.bf16.msra.mxu0 %v914
      %1117 = vmatprep.subr.bf16.mxu0 0
      %1118 = vmatpush1.bf16.msra.mxu0 %v915
      %1119 = vmatprep.subr.bf16.mxu0 0
      %1120 = vmatpush1.bf16.msra.mxu0 %v916
      %1121 = vmatprep.subr.bf16.mxu0 0
      %1122 = vmatpush1.bf16.msra.mxu0 %v917
      %1123 = vmatprep.subr.bf16.mxu0 0
      %1124 = vmatpush1.bf16.msra.mxu0 %v918
      %1125 = vmatprep.subr.bf16.mxu0 0
      %1126 = vmatpush1.bf16.msra.mxu0 %v919
      %1127 = vmatprep.subr.bf16.mxu0 0
      %1128 = vmatpush1.bf16.msra.mxu0 %v920
      %1129 = vmatprep.subr.bf16.mxu0 0
      %1130 = vmatpush1.bf16.msra.mxu0 %v921
      %1131 = vmatprep.mubr.bf16.mxu0 %v533
      %1132 = vmatmul.mubr.bf16.gmra.mrb[0].mxu0 %v532
      %v1133 = vpop.f32.mrb[0].mxu0
      %v1134 = vadd.f32 %v1069, %v1133
      %v1135 = vpop.f32.mrb[0].mxu0
      %v1136 = vpop.f32.mrb[0].mxu0
      %v1137 = vadd.f32 %v1072, %v1136
      %v1138 = vpop.f32.mrb[0].mxu0
      %1139 = vmatprep.mubr.bf16.mxu0 %v542
      %1140 = vmatmul.mubr.bf16.gmra.mrb[0].mxu0 %v541
      %v1141 = vpop.f32.mrb[0].mxu0
      %v1142 = vadd.f32 %v1077, %v1141
      %v1143 = vpop.f32.mrb[0].mxu0
      %v1144 = vpop.f32.mrb[0].mxu0
      %v1145 = vadd.f32 %v1080, %v1144
      %v1146 = vpop.f32.mrb[0].mxu0
      %1147 = vmatprep.mubr.bf16.mxu0 %v551
      %1148 = vmatmul.mubr.bf16.gmra.mrb[0].mxu0 %v550
      %v1149 = vpop.f32.mrb[0].mxu0
      %v1150 = vadd.f32 %v1085, %v1149
      %v1151 = vpop.f32.mrb[0].mxu0
      %v1152 = vpop.f32.mrb[0].mxu0
      %v1153 = vadd.f32 %v1088, %v1152
      %v1154 = vpop.f32.mrb[0].mxu0
      %1155 = vmatprep.mubr.bf16.mxu0 %v560
      %1156 = vmatmul.mubr.bf16.gmra.mrb[0].mxu0 %v559
      %v1157 = vpop.f32.mrb[0].mxu0
      %v1158 = vadd.f32 %v1093, %v1157
      %v1159 = vpop.f32.mrb[0].mxu0
      %v1160 = vpop.f32.mrb[0].mxu0
      %v1161 = vadd.f32 %v1096, %v1160
      %v1162 = vpop.f32.mrb[0].mxu0
      %1163 = vdwg.mxu0
      %1164 = vmatprep.subr.bf16.mxu0 0
      %1165 = vmatpush1.bf16.msra.mxu0 %v922
      %1166 = vmatprep.subr.bf16.mxu0 0
      %1167 = vmatpush1.bf16.msra.mxu0 %v923
      %1168 = vmatprep.subr.bf16.mxu0 0
      %1169 = vmatpush1.bf16.msra.mxu0 %v924
      %1170 = vmatprep.subr.bf16.mxu0 0
      %1171 = vmatpush1.bf16.msra.mxu0 %v925
      %1172 = vmatprep.subr.bf16.mxu0 0
      %1173 = vmatpush1.bf16.msra.mxu0 %v926
      %1174 = vmatprep.subr.bf16.mxu0 0
      %1175 = vmatpush1.bf16.msra.mxu0 %v927
      %1176 = vmatprep.subr.bf16.mxu0 0
      %1177 = vmatpush1.bf16.msra.mxu0 %v928
      %1178 = vmatprep.subr.bf16.mxu0 0
      %1179 = vmatpush1.bf16.msra.mxu0 %v929
      %1180 = vmatprep.subr.bf16.mxu0 0
      %1181 = vmatpush1.bf16.msra.mxu0 %v930
      %1182 = vmatprep.subr.bf16.mxu0 0
      %1183 = vmatpush1.bf16.msra.mxu0 %v931
      %1184 = vmatprep.subr.bf16.mxu0 0
      %1185 = vmatpush1.bf16.msra.mxu0 %v932
      %1186 = vmatprep.subr.bf16.mxu0 0
      %1187 = vmatpush1.bf16.msra.mxu0 %v933
      %1188 = vmatprep.subr.bf16.mxu0 0
      %1189 = vmatpush1.bf16.msra.mxu0 %v934
      %1190 = vmatprep.subr.bf16.mxu0 0
      %1191 = vmatpush1.bf16.msra.mxu0 %v935
      %1192 = vmatprep.subr.bf16.mxu0 0
      %1193 = vmatpush1.bf16.msra.mxu0 %v936
      %1194 = vmatprep.subr.bf16.mxu0 0
      %1195 = vmatpush1.bf16.msra.mxu0 %v937
      %1196 = vmatprep.mubr.bf16.mxu0 %v535
      %1197 = vmatmul.mubr.bf16.gmra.mrb[0].mxu0 %v534
      %v1198 = vpop.f32.mrb[0].mxu0
      %v1199 = vadd.f32 %v1134, %v1198
      %v1200 = vpop.f32.mrb[0].mxu0
      %v1201 = vpop.f32.mrb[0].mxu0
      %v1202 = vadd.f32 %v1137, %v1201
      %v1203 = vpop.f32.mrb[0].mxu0
      %1204 = vmatprep.mubr.bf16.mxu0 %v544
      %1205 = vmatmul.mubr.bf16.gmra.mrb[0].mxu0 %v543
      %v1206 = vpop.f32.mrb[0].mxu0
      %v1207 = vadd.f32 %v1142, %v1206
      %v1208 = vpop.f32.mrb[0].mxu0
      %v1209 = vpop.f32.mrb[0].mxu0
      %v1210 = vadd.f32 %v1145, %v1209
      %v1211 = vpop.f32.mrb[0].mxu0
      %1212 = vmatprep.mubr.bf16.mxu0 %v553
      %1213 = vmatmul.mubr.bf16.gmra.mrb[0].mxu0 %v552
      %v1214 = vpop.f32.mrb[0].mxu0
      %v1215 = vadd.f32 %v1150, %v1214
      %v1216 = vpop.f32.mrb[0].mxu0
      %v1217 = vpop.f32.mrb[0].mxu0
      %v1218 = vadd.f32 %v1153, %v1217
      %v1219 = vpop.f32.mrb[0].mxu0
      %1220 = vmatprep.mubr.bf16.mxu0 %v562
      %1221 = vmatmul.mubr.bf16.gmra.mrb[0].mxu0 %v561
      %v1222 = vpop.f32.mrb[0].mxu0
      %v1223 = vadd.f32 %v1158, %v1222
      %v1224 = vpop.f32.mrb[0].mxu0
      %v1225 = vpop.f32.mrb[0].mxu0
      %v1226 = vadd.f32 %v1161, %v1225
      %v1227 = vpop.f32.mrb[0].mxu0
      %1228 = vdwg.mxu0
      %1229 = vmatprep.subr.bf16.mxu0 0
      %1230 = vmatpush1.bf16.msra.mxu0 %v938
      %1231 = vmatprep.subr.bf16.mxu0 0
      %1232 = vmatpush1.bf16.msra.mxu0 %v939
      %1233 = vmatprep.subr.bf16.mxu0 0
      %1234 = vmatpush1.bf16.msra.mxu0 %v940
      %1235 = vmatprep.subr.bf16.mxu0 0
      %1236 = vmatpush1.bf16.msra.mxu0 %v941
      %1237 = vmatprep.subr.bf16.mxu0 0
      %1238 = vmatpush1.bf16.msra.mxu0 %v942
      %1239 = vmatprep.subr.bf16.mxu0 0
      %1240 = vmatpush1.bf16.msra.mxu0 %v943
      %1241 = vmatprep.subr.bf16.mxu0 0
      %1242 = vmatpush1.bf16.msra.mxu0 %v944
      %1243 = vmatprep.subr.bf16.mxu0 0
      %1244 = vmatpush1.bf16.msra.mxu0 %v945
      %1245 = vmatprep.subr.bf16.mxu0 0
      %1246 = vmatpush1.bf16.msra.mxu0 %v946
      %1247 = vmatprep.subr.bf16.mxu0 0
      %1248 = vmatpush1.bf16.msra.mxu0 %v947
      %1249 = vmatprep.subr.bf16.mxu0 0
      %1250 = vmatpush1.bf16.msra.mxu0 %v948
      %1251 = vmatprep.subr.bf16.mxu0 0
      %1252 = vmatpush1.bf16.msra.mxu0 %v949
      %1253 = vmatprep.subr.bf16.mxu0 0
      %1254 = vmatpush1.bf16.msra.mxu0 %v950
      %1255 = vmatprep.subr.bf16.mxu0 0
      %1256 = vmatpush1.bf16.msra.mxu0 %v951
      %1257 = vmatprep.subr.bf16.mxu0 0
      %1258 = vmatpush1.bf16.msra.mxu0 %v952
      %1259 = vmatprep.subr.bf16.mxu0 0
      %1260 = vmatpush1.bf16.msra.mxu0 %v953
      %1261 = vmatprep.mubr.bf16.mxu0 %v537
      %1262 = vmatmul.mubr.bf16.gmra.mrb[0].mxu0 %v536
      %v1263 = vpop.f32.mrb[0].mxu0
      %v1264 = vadd.f32 %v1199, %v1263
      %v1265 = vpop.f32.mrb[0].mxu0
      %v1266 = vpop.f32.mrb[0].mxu0
      %v1267 = vadd.f32 %v1202, %v1266
      %v1268 = vpop.f32.mrb[0].mxu0
      %1269 = vmatprep.mubr.bf16.mxu0 %v546
      %1270 = vmatmul.mubr.bf16.gmra.mrb[0].mxu0 %v545
      %v1271 = vpop.f32.mrb[0].mxu0
      %v1272 = vadd.f32 %v1207, %v1271
      %v1273 = vpop.f32.mrb[0].mxu0
      %v1274 = vpop.f32.mrb[0].mxu0
      %v1275 = vadd.f32 %v1210, %v1274
      %v1276 = vpop.f32.mrb[0].mxu0
      %1277 = vmatprep.mubr.bf16.mxu0 %v555
      %1278 = vmatmul.mubr.bf16.gmra.mrb[0].mxu0 %v554
      %v1279 = vpop.f32.mrb[0].mxu0
      %v1280 = vadd.f32 %v1215, %v1279
      %v1281 = vpop.f32.mrb[0].mxu0
      %v1282 = vpop.f32.mrb[0].mxu0
      %v1283 = vadd.f32 %v1218, %v1282
      %v1284 = vpop.f32.mrb[0].mxu0
      %1285 = vmatprep.mubr.bf16.mxu0 %v564
      %1286 = vmatmul.mubr.bf16.gmra.mrb[0].mxu0 %v563
      %v1287 = vpop.f32.mrb[0].mxu0
      %v1288 = vadd.f32 %v1223, %v1287
      %v1289 = vpop.f32.mrb[0].mxu0
      %v1290 = vpop.f32.mrb[0].mxu0
      %v1291 = vadd.f32 %v1226, %v1290
      %v1292 = vpop.f32.mrb[0].mxu0
      %1293 = vdwg.mxu0
      %1294 = vmatprep.subr.bf16.mxu0 0
      %1295 = vmatpush1.bf16.msra.mxu0 %v954
      %1296 = vmatprep.subr.bf16.mxu0 0
      %1297 = vmatpush1.bf16.msra.mxu0 %v955
      %1298 = vmatprep.subr.bf16.mxu0 0
      %1299 = vmatpush1.bf16.msra.mxu0 %v956
      %1300 = vmatprep.subr.bf16.mxu0 0
      %1301 = vmatpush1.bf16.msra.mxu0 %v957
      %1302 = vmatprep.subr.bf16.mxu0 0
      %1303 = vmatpush1.bf16.msra.mxu0 %v958
      %1304 = vmatprep.subr.bf16.mxu0 0
      %1305 = vmatpush1.bf16.msra.mxu0 %v959
      %1306 = vmatprep.subr.bf16.mxu0 0
      %1307 = vmatpush1.bf16.msra.mxu0 %v960
      %1308 = vmatprep.subr.bf16.mxu0 0
      %1309 = vmatpush1.bf16.msra.mxu0 %v961
      %1310 = vmatprep.subr.bf16.mxu0 0
      %1311 = vmatpush1.bf16.msra.mxu0 0
      %1312 = vmatprep.subr.bf16.mxu0 0
      %1313 = vmatpush1.bf16.msra.mxu0 0
      %1314 = vmatprep.subr.bf16.mxu0 0
      %1315 = vmatpush1.bf16.msra.mxu0 0
      %1316 = vmatprep.subr.bf16.mxu0 0
      %1317 = vmatpush1.bf16.msra.mxu0 0
      %1318 = vmatprep.subr.bf16.mxu0 0
      %1319 = vmatpush1.bf16.msra.mxu0 0
      %1320 = vmatprep.subr.bf16.mxu0 0
      %1321 = vmatpush1.bf16.msra.mxu0 0
      %1322 = vmatprep.subr.bf16.mxu0 0
      %1323 = vmatpush1.bf16.msra.mxu0 0
      %1324 = vmatprep.subr.bf16.mxu0 0
      %1325 = vmatpush1.bf16.msra.mxu0 0
      %1326 = vmatprep.mubr.bf16.mxu0 0
      %1327 = vmatmul.mubr.bf16.gmra.mrb[0].mxu0 %v538
      %v1328 = vpop.f32.mrb[0].mxu0
      %v1329 = vadd.f32 %v1264, %v1328
      %v1330 = vpop.f32.mrb[0].mxu0
      %v1331 = vpop.f32.mrb[0].mxu0
      %v1332 = vadd.f32 %v1267, %v1331
      %v1333 = vpop.f32.mrb[0].mxu0
      %1334 = vmatprep.mubr.bf16.mxu0 0
      %1335 = vmatmul.mubr.bf16.gmra.mrb[0].mxu0 %v547
      %v1336 = vpop.f32.mrb[0].mxu0
      %v1337 = vadd.f32 %v1272, %v1336
      %v1338 = vpop.f32.mrb[0].mxu0
      %v1339 = vpop.f32.mrb[0].mxu0
      %v1340 = vadd.f32 %v1275, %v1339
      %v1341 = vpop.f32.mrb[0].mxu0
      %1342 = vmatprep.mubr.bf16.mxu0 0
      %1343 = vmatmul.mubr.bf16.gmra.mrb[0].mxu0 %v556
      %v1344 = vpop.f32.mrb[0].mxu0
      %v1345 = vadd.f32 %v1280, %v1344
      %v1346 = vpop.f32.mrb[0].mxu0
      %v1347 = vpop.f32.mrb[0].mxu0
      %v1348 = vadd.f32 %v1283, %v1347
      %v1349 = vpop.f32.mrb[0].mxu0
      %1350 = vmatprep.mubr.bf16.mxu0 0
      %1351 = vmatmul.mubr.bf16.gmra.mrb[0].mxu0 %v565
      %v1352 = vpop.f32.mrb[0].mxu0
      %v1353 = vadd.f32 %v1288, %v1352
      %v1354 = vpop.f32.mrb[0].mxu0
      %v1355 = vpop.f32.mrb[0].mxu0
      %v1356 = vadd.f32 %v1291, %v1355
      %v1357 = vpop.f32.mrb[0].mxu0
      %1358 = vdwg.mxu0
      %v1359 = vld [vmem:[%s218] sm:$0xf]
      %v1360 = vld [vmem:[%s218 + $0x4] sm:$0xf]
      %v1361 = vld [vmem:[%s218 + $0x8] sm:$0xf]
      %v1362 = vld [vmem:[%s218 + $0xc] sm:$0xf]
      %v1363 = vld [vmem:[%s218 + $0x10] sm:$0xf]
      %v1364 = vld [vmem:[%s218 + $0x14] sm:$0xf]
      %v1365 = vld [vmem:[%s218 + $0x18] sm:$0xf]
      %v1366 = vld [vmem:[%s218 + $0x1c] sm:$0xf]
      %v1367 = vunpack.c.l.bf16 %v1359
      %v1368 = vunpack.c.l.bf16 %v1360
      %v1369 = vunpack.c.l.bf16 %v1361
      %v1370 = vunpack.c.l.bf16 %v1362
      %v1371 = vunpack.c.l.bf16 %v1363
      %v1372 = vunpack.c.l.bf16 %v1364
      %v1373 = vunpack.c.l.bf16 %v1365
      %v1374 = vunpack.c.l.bf16 %v1366
      %v1375 = vadd.f32 %v1329, %v1367
      %v1376 = vadd.f32 %v1332, %v1368
      %v1377 = vadd.f32 %v1337, %v1369
      %v1378 = vadd.f32 %v1340, %v1370
      %v1379 = vadd.f32 %v1345, %v1371
      %v1380 = vadd.f32 %v1348, %v1372
      %v1381 = vadd.f32 %v1353, %v1373
      %v1382 = vadd.f32 %v1356, %v1374
      %v1383 = vmax.f32 %v1375, 0.0
      %v1384 = vmax.f32 %v1376, 0.0
      %v1385 = vmax.f32 %v1377, 0.0
      %v1386 = vmax.f32 %v1378, 0.0
      %v1387 = vmax.f32 %v1379, 0.0
      %v1388 = vmax.f32 %v1380, 0.0
      %v1389 = vmax.f32 %v1381, 0.0
      %v1390 = vmax.f32 %v1382, 0.0
      %v1391 = vpack.c.bf16 %v1384, %v1383
      %v1392 = vpack.c.bf16 %v1386, %v1385
      %v1393 = vpack.c.bf16 %v1388, %v1387
      %v1394 = vpack.c.bf16 %v1390, %v1389
      %v1399 = vunpack.c.l.b16 %v1391
      %v1400 = vunpack.c.h.b16 %v1391
      %v1401 = vunpack.c.l.b16 %v1392
      %v1402 = vunpack.c.h.b16 %v1392
      %v1403 = vunpack.c.l.b16 %v1393
      %v1404 = vunpack.c.h.b16 %v1393
      %v1405 = vunpack.c.l.b16 %v1394
      %v1406 = vunpack.c.h.b16 %v1394
      %v1407 = vpack.c.b16 %v1399, %v1399
      %v1408 = vpack.c.b16 %v1400, %v1400
      %v1409 = vpack.c.b16 %v1401, %v1401
      %v1410 = vpack.c.b16 %v1402, %v1402
      %v1411 = vpack.c.b16 %v1403, %v1403
      %v1412 = vpack.c.b16 %v1404, %v1404
      %v1413 = vpack.c.b16 %v1405, %v1405
      %v1414 = vpack.c.b16 %v1406, %v1406
      %1423 = vst [vmem:[%s224] sm:$0xf] %v1407
      %1424 = vst [vmem:[%s224 + $0x4] sm:$0xf] %v1408
      %1425 = vst [vmem:[%s224 + $0x8] sm:$0xf] %v1409
      %1426 = vst [vmem:[%s224 + $0xc] sm:$0xf] %v1410
      %1427 = vst [vmem:[%s224 + $0x10] sm:$0xf] %v1411
      %1428 = vst [vmem:[%s224 + $0x14] sm:$0xf] %v1412
      %1429 = vst [vmem:[%s224 + $0x18] sm:$0xf] %v1413
      %1430 = vst [vmem:[%s224 + $0x1c] sm:$0xf] %v1414
      %s1431 = smul.u32 8, %s15
      %p1432 = scmp.lt.s32.totalorder %s1431, 15
      %s1433 = scalar_select %p1432, %s1431, 15
      %s1434 = smul.addr %s1433, 4
      %s1435 = scalar_lea.vmem %s4, %s1434
      // Predicated region
      $region37: #{_lambda_.24} parent=35 // pred_check
        %p1436 = pneg %p127
      $region38: #{_lambda_.24} parent=35 // pred_check_branch
        %1438 = sbr.rel (%p1436) target = $region40
      $region39: #{_lambda_.24} parent=35 // pred_region
        %s1439 = smul.u32 8, %s15
      $region40: #{_lambda_.24} parent=35 // pred_fallthru
        _
    $region36: #{_lambda_.24} parent=5 // pred_fallthru
      _
    %p1440 = scmp.le.s32.totalorder 2, %s10
    // Predicated region
    $region41: #{_lambda_.24} parent=5 // pred_check
      %p1441 = pneg %p1440
    $region42: #{_lambda_.24} parent=5 // pred_check_branch
      %1443 = sbr.rel (%p1441) target = $region44
    $region43: #{_lambda_.24} parent=5 // pred_region
      %s1444 = ssub.s32 %s10, 2
      // Predicated region
      $region45: #{_lambda_.24} parent=43 // pred_check
        %p1445 = pneg %p133
      $region46: #{_lambda_.24} parent=43 // pred_check_branch
        %1447 = sbr.rel (%p1445) target = $region48
      $region47: #{_lambda_.24} parent=43 // pred_region
        %s1448 = smul.u32 8, %s16
        %p1449 = scmp.lt.s32.totalorder %s1448, 15
        %s1450 = scalar_select %p1449, %s1448, 15
        %s1451 = smul.addr %s1450, 4
        %s1452 = scalar_lea.vmem %s4, %s1451
      $region48: #{_lambda_.24} parent=43 // pred_fallthru
        _
    $region44: #{_lambda_.24} parent=5 // pred_fallthru
      _
  $region6: #{_lambda_.24} parent=0 // loop_footer
    %s14 = sadd.s32 1, %s10
  $region7: #{_lambda_.24} parent=0 // loop_footer_branch
    %9 = sbr.rel target = $region3
  $region8: #{_lambda_.24} parent=0 // loop_exit
    _

// kernel: _lambda_.28
$region0: #{_lambda_.28}
  #allocation0 [shape = 'u32[]', space=smem, size = 0x4, offset = 0x4, fixed_abs, tag = 'smem constant byte address 0x4 - core index']
  #allocation1 [shape = 'u32[144,128]{1,0:T(1,128)}', space=vmem, size = 0x12000, scoped, tag = 'internal scratch']
  %s0 = inlined_call_operand.vmem [shape: bf16[32,1152], index: 0, kind: input, shape index: {}]
  %s1 = inlined_call_operand.vmem [shape: bf16[1152,128], index: 1, kind: input, shape index: {}]
  %s2 = inlined_call_operand.vmem [shape: f32[1,128], index: 2, kind: input, shape index: {}]
  %s3 = inlined_call_operand.vmem [shape: bf16[32,128], index: 3, kind: output, shape index: {}]
  %s4 = sld [smem:[#allocation0]]
  $region45: #{_lambda_.28} parent=0
    _
  %s6 = ssub.s32 1, %s4
  %s7 = scalar_select 0, %s6, %s4
  loop: start=0, step=1, limit=4
  $region2: #{_lambda_.28} parent=0 // loop_pre_header
    _
  $region3: #{_lambda_.28} parent=0 // loop_header
    %s9 = sphi 0, %s13
    %p10 = scmp.ge.s32.totalorder %s9, 4
    %s19 = sphi 0, %s21
    %s22 = sphi 0, %s19
    %s23 = sphi 0, %s22
    %s39 = sphi 0, %s23
    %s43 = sphi 0, %s43
    %s45 = sphi 0, %s43
    %s46 = sphi 0, %s45
    %s60 = sphi 0, %s46
    %s64 = sphi 0, %s64
    %s66 = sphi 0, %s64
    %s67 = sphi 0, %s66
    %s81 = sphi 0, %s67
    %s87 = sphi 0, %s89
    %s90 = sphi 0, %s87
    %s91 = sphi 0, %s90
    %s107 = sphi 0, %s91
  $region4: #{_lambda_.28} parent=0 // loop_header_branch
    %12 = sbr.rel (%p10) target = $region8
  $region5: #{_lambda_.28} parent=0 // loop_body
    %s14 = ssub.s32 %s9, 1
    %s15 = ssub.s32 %s9, 2
    %s16 = sadd.s32 %s9, 1
    %s17 = ssub.s32 %s9, %s16
    %p18 = scmp.eq.s32.totalorder %s17, 0
    %s20 = sadd.s32 %s19, 1
    %s21 = scalar_select %p18, %s19, %s20
    %p24 = pneg %p18
    %p25 = scmp.eq.s32.totalorder %s9, 1
    %p26 = por %p24, %p25
    %p27 = scmp.ne.s32.totalorder %s19, %s22
    %p28 = scmp.eq.s32.totalorder %s9, 0
    %p29 = por %p27, %p28
    %p30 = scmp.ne.s32.totalorder %s19, %s22
    %p31 = scmp.eq.s32.totalorder %s14, 1
    %p32 = por %p30, %p31
    %p33 = scmp.ne.s32.totalorder %s22, %s23
    %p34 = scmp.eq.s32.totalorder %s14, 0
    %p35 = por %p33, %p34
    %p36 = scmp.ne.s32.totalorder %s22, %s23
    %p37 = scmp.eq.s32.totalorder %s15, 1
    %p38 = por %p36, %p37
    %p40 = scmp.ne.s32.totalorder %s23, %s39
    %p41 = scmp.eq.s32.totalorder %s15, 0
    %p42 = por %p40, %p41
    %s44 = sadd.s32 %s43, 1
    %p47 = scmp.eq.s32.totalorder %s9, 1
    %p48 = scmp.ne.s32.totalorder %s43, %s45
    %p49 = scmp.eq.s32.totalorder %s9, 0
    %p50 = por %p48, %p49
    %p51 = scmp.ne.s32.totalorder %s43, %s45
    %p52 = scmp.eq.s32.totalorder %s14, 1
    %p53 = por %p51, %p52
    %p54 = scmp.ne.s32.totalorder %s45, %s46
    %p55 = scmp.eq.s32.totalorder %s14, 0
    %p56 = por %p54, %p55
    %p57 = scmp.ne.s32.totalorder %s45, %s46
    %p58 = scmp.eq.s32.totalorder %s15, 1
    %p59 = por %p57, %p58
    %p61 = scmp.ne.s32.totalorder %s46, %s60
    %p62 = scmp.eq.s32.totalorder %s15, 0
    %p63 = por %p61, %p62
    %s65 = sadd.s32 %s64, 1
    %p68 = scmp.eq.s32.totalorder %s9, 1
    %p69 = scmp.ne.s32.totalorder %s64, %s66
    %p70 = scmp.eq.s32.totalorder %s9, 0
    %p71 = por %p69, %p70
    %p72 = scmp.ne.s32.totalorder %s64, %s66
    %p73 = scmp.eq.s32.totalorder %s14, 1
    %p74 = por %p72, %p73
    %p75 = scmp.ne.s32.totalorder %s66, %s67
    %p76 = scmp.eq.s32.totalorder %s14, 0
    %p77 = por %p75, %p76
    %p78 = scmp.ne.s32.totalorder %s66, %s67
    %p79 = scmp.eq.s32.totalorder %s15, 1
    %p80 = por %p78, %p79
    %p82 = scmp.ne.s32.totalorder %s67, %s81
    %p83 = scmp.eq.s32.totalorder %s15, 0
    %p84 = por %p82, %p83
    %s85 = ssub.s32 %s9, %s16
    %p86 = scmp.eq.s32.totalorder %s85, 0
    %s88 = sadd.s32 %s87, 1
    %s89 = scalar_select %p86, %s87, %s88
    %p92 = pneg %p86
    %p93 = scmp.eq.s32.totalorder %s9, 1
    %p94 = por %p92, %p93
    %p95 = scmp.ne.s32.totalorder %s87, %s90
    %p96 = scmp.eq.s32.totalorder %s9, 0
    %p97 = por %p95, %p96
    %p98 = scmp.ne.s32.totalorder %s87, %s90
    %p99 = scmp.eq.s32.totalorder %s14, 1
    %p100 = por %p98, %p99
    %p101 = scmp.ne.s32.totalorder %s90, %s91
    %p102 = scmp.eq.s32.totalorder %s14, 0
    %p103 = por %p101, %p102
    %p104 = scmp.ne.s32.totalorder %s90, %s91
    %p105 = scmp.eq.s32.totalorder %s15, 1
    %p106 = por %p104, %p105
    %p108 = scmp.ne.s32.totalorder %s91, %s107
    %p109 = scmp.eq.s32.totalorder %s15, 0
    %p110 = por %p108, %p109
    %p111 = scmp.le.s32.totalorder 1, %s9
    %p112 = scmp.lt.s32.totalorder %s9, 3
    %p113 = pnand %p111, %p112
    %p114 = pneg %p113
    // Predicated region
    $region9: #{_lambda_.28} parent=5 // pred_check
      _
    $region10: #{_lambda_.28} parent=5 // pred_check_branch
      %116 = sbr.rel (%p113) target = $region12
    $region11: #{_lambda_.28} parent=5 // pred_region
      %s117 = ssub.s32 %s9, 1
      // Predicated region
      $region13: #{_lambda_.28} parent=11 // pred_check
        %p118 = pneg %p56
      $region14: #{_lambda_.28} parent=11 // pred_check_branch
        %120 = sbr.rel (%p118) target = $region16
      $region15: #{_lambda_.28} parent=11 // pred_region
        _
      $region16: #{_lambda_.28} parent=11 // pred_fallthru
        _
      // Predicated region
      $region17: #{_lambda_.28} parent=11 // pred_check
        %p121 = pneg %p77
      $region18: #{_lambda_.28} parent=11 // pred_check_branch
        %123 = sbr.rel (%p121) target = $region20
      $region19: #{_lambda_.28} parent=11 // pred_region
        _
      $region20: #{_lambda_.28} parent=11 // pred_fallthru
        _
    $region12: #{_lambda_.28} parent=5 // pred_fallthru
      _
    %p124 = scmp.lt.s32.totalorder %s9, 2
    // Predicated region
    $region21: #{_lambda_.28} parent=5 // pred_check
      %p125 = pneg %p124
    $region22: #{_lambda_.28} parent=5 // pred_check_branch
      %127 = sbr.rel (%p125) target = $region24
    $region23: #{_lambda_.28} parent=5 // pred_region
      // Predicated region
      $region25: #{_lambda_.28} parent=23 // pred_check
        %p128 = pneg %p29
      $region26: #{_lambda_.28} parent=23 // pred_check_branch
        %130 = sbr.rel (%p128) target = $region28
      $region27: #{_lambda_.28} parent=23 // pred_region
        %s131 = smul.u32 2, %s9
        %p132 = scmp.lt.s32.totalorder %s131, 3
        %s133 = scalar_select %p132, %s131, 3
        %s134 = smul.addr %s133, 9
        %s135 = smul.addr %s134, 4
        %s136 = scalar_lea.vmem %s0, %s135
        %s137 = smul.u32 2, %s9
      $region28: #{_lambda_.28} parent=23 // pred_fallthru
        _
    $region24: #{_lambda_.28} parent=5 // pred_fallthru
      _
    %p138 = scmp.le.s32.totalorder 1, %s9
    %p139 = scmp.lt.s32.totalorder %s9, 3
    %p140 = pnand %p138, %p139
    %p141 = pneg %p140
    // Predicated region
    $region29: #{_lambda_.28} parent=5 // pred_check
      _
    $region30: #{_lambda_.28} parent=5 // pred_check_branch
      %143 = sbr.rel (%p140) target = $region32
    $region31: #{_lambda_.28} parent=5 // pred_region
      %s144 = ssub.s32 %s9, 1
      %s145 = smul.u32 2, %s14
      %p146 = scmp.lt.s32.totalorder %s145, 3
      %s147 = scalar_select %p146, %s145, 3
      %s148 = smul.addr %s147, 9
      %s149 = smul.addr %s148, 4
      %s150 = scalar_lea.vmem %s0, %s149
      %p151 = pneg %p35
      %p152 = pneg %p32
      %p153 = pneg %p56
      %p154 = pneg %p53
      %p155 = pneg %p77
      %p156 = pneg %p74
      %p157 = pneg %p103
      %p158 = pneg %p100
      %s159 = smul.u32 2, %s14
      %p160 = scmp.lt.s32.totalorder %s159, 3
      %s161 = scalar_select %p160, %s159, 3
      %s162 = smul.addr %s161, 4
      %s163 = scalar_lea.vmem %s3, %s162
      %s164 = smul.u32 2, %s14
      %p165 = scmp.lt.s32.totalorder %s164, 3
      %s166 = scalar_select %p165, %s164, 3
      %s167 = smul.addr %s166, 9
      %s168 = smul.addr %s167, 4
      %s169 = scalar_lea.vmem %s0, %s168
      %s170 = smul.u32 2, %s14
      %s171 = smul.u32 2, %s14
      %p172 = scmp.lt.s32.totalorder %s171, 3
      %s173 = scalar_select %p172, %s171, 3
      %s174 = smul.addr %s173, 4
      %s175 = scalar_lea.vmem %s3, %s174
      %s176 = smul.u32 2, %s14
      %v178 = vld [vmem:[%s169] sm:$0xff]
      %v179 = vld [vmem:[%s169 + $0x8] sm:$0xff]
      %v180 = vld [vmem:[%s169 + $0x10] sm:$0xff]
      %v181 = vld [vmem:[%s169 + $0x18] sm:$0xff]
      %v182 = vld [vmem:[%s169 + $0x20] sm:$0xf]
      %v183 = vld [vmem:[%s169 + $0x24] sm:$0xff]
      %v184 = vld [vmem:[%s169 + $0x2c] sm:$0xff]
      %v185 = vld [vmem:[%s169 + $0x34] sm:$0xff]
      %v186 = vld [vmem:[%s169 + $0x3c] sm:$0xff]
      %v187 = vld [vmem:[%s169 + $0x44] sm:$0xf]
      %v188 = vld [vmem:[%s1] sm:$0xf]
      %v189 = vld [vmem:[%s1 + $0x4] sm:$0xf]
      %v190 = vld [vmem:[%s1 + $0x8] sm:$0xf]
      %v191 = vld [vmem:[%s1 + $0xc] sm:$0xf]
      %v192 = vld [vmem:[%s1 + $0x10] sm:$0xf]
      %v193 = vld [vmem:[%s1 + $0x14] sm:$0xf]
      %v194 = vld [vmem:[%s1 + $0x18] sm:$0xf]
      %v195 = vld [vmem:[%s1 + $0x1c] sm:$0xf]
      %v196 = vld [vmem:[%s1 + $0x20] sm:$0xf]
      %v197 = vld [vmem:[%s1 + $0x24] sm:$0xf]
      %v198 = vld [vmem:[%s1 + $0x28] sm:$0xf]
      %v199 = vld [vmem:[%s1 + $0x2c] sm:$0xf]
      %v200 = vld [vmem:[%s1 + $0x30] sm:$0xf]
      %v201 = vld [vmem:[%s1 + $0x34] sm:$0xf]
      %v202 = vld [vmem:[%s1 + $0x38] sm:$0xf]
      %v203 = vld [vmem:[%s1 + $0x3c] sm:$0xf]
      %v204 = vld [vmem:[%s1 + $0x40] sm:$0xf]
      %v205 = vld [vmem:[%s1 + $0x44] sm:$0xf]
      %v206 = vld [vmem:[%s1 + $0x48] sm:$0xf]
      %v207 = vld [vmem:[%s1 + $0x4c] sm:$0xf]
      %v208 = vld [vmem:[%s1 + $0x50] sm:$0xf]
      %v209 = vld [vmem:[%s1 + $0x54] sm:$0xf]
      %v210 = vld [vmem:[%s1 + $0x58] sm:$0xf]
      %v211 = vld [vmem:[%s1 + $0x5c] sm:$0xf]
      %v212 = vld [vmem:[%s1 + $0x60] sm:$0xf]
      %v213 = vld [vmem:[%s1 + $0x64] sm:$0xf]
      %v214 = vld [vmem:[%s1 + $0x68] sm:$0xf]
      %v215 = vld [vmem:[%s1 + $0x6c] sm:$0xf]
      %v216 = vld [vmem:[%s1 + $0x70] sm:$0xf]
      %v217 = vld [vmem:[%s1 + $0x74] sm:$0xf]
      %v218 = vld [vmem:[%s1 + $0x78] sm:$0xf]
      %v219 = vld [vmem:[%s1 + $0x7c] sm:$0xf]
      %v220 = vld [vmem:[%s1 + $0x80] sm:$0xf]
      %v221 = vld [vmem:[%s1 + $0x84] sm:$0xf]
      %v222 = vld [vmem:[%s1 + $0x88] sm:$0xf]
      %v223 = vld [vmem:[%s1 + $0x8c] sm:$0xf]
      %v224 = vld [vmem:[%s1 + $0x90] sm:$0xf]
      %v225 = vld [vmem:[%s1 + $0x94] sm:$0xf]
      %v226 = vld [vmem:[%s1 + $0x98] sm:$0xf]
      %v227 = vld [vmem:[%s1 + $0x9c] sm:$0xf]
      %v228 = vld [vmem:[%s1 + $0xa0] sm:$0xf]
      %v229 = vld [vmem:[%s1 + $0xa4] sm:$0xf]
      %v230 = vld [vmem:[%s1 + $0xa8] sm:$0xf]
      %v231 = vld [vmem:[%s1 + $0xac] sm:$0xf]
      %v232 = vld [vmem:[%s1 + $0xb0] sm:$0xf]
      %v233 = vld [vmem:[%s1 + $0xb4] sm:$0xf]
      %v234 = vld [vmem:[%s1 + $0xb8] sm:$0xf]
      %v235 = vld [vmem:[%s1 + $0xbc] sm:$0xf]
      %v236 = vld [vmem:[%s1 + $0xc0] sm:$0xf]
      %v237 = vld [vmem:[%s1 + $0xc4] sm:$0xf]
      %v238 = vld [vmem:[%s1 + $0xc8] sm:$0xf]
      %v239 = vld [vmem:[%s1 + $0xcc] sm:$0xf]
      %v240 = vld [vmem:[%s1 + $0xd0] sm:$0xf]
      %v241 = vld [vmem:[%s1 + $0xd4] sm:$0xf]
      %v242 = vld [vmem:[%s1 + $0xd8] sm:$0xf]
      %v243 = vld [vmem:[%s1 + $0xdc] sm:$0xf]
      %v244 = vld [vmem:[%s1 + $0xe0] sm:$0xf]
      %v245 = vld [vmem:[%s1 + $0xe4] sm:$0xf]
      %v246 = vld [vmem:[%s1 + $0xe8] sm:$0xf]
      %v247 = vld [vmem:[%s1 + $0xec] sm:$0xf]
      %v248 = vld [vmem:[%s1 + $0xf0] sm:$0xf]
      %v249 = vld [vmem:[%s1 + $0xf4] sm:$0xf]
      %v250 = vld [vmem:[%s1 + $0xf8] sm:$0xf]
      %v251 = vld [vmem:[%s1 + $0xfc] sm:$0xf]
      %v252 = vld [vmem:[%s1 + $0x100] sm:$0xf]
      %v253 = vld [vmem:[%s1 + $0x104] sm:$0xf]
      %v254 = vld [vmem:[%s1 + $0x108] sm:$0xf]
      %v255 = vld [vmem:[%s1 + $0x10c] sm:$0xf]
      %v256 = vld [vmem:[%s1 + $0x110] sm:$0xf]
      %v257 = vld [vmem:[%s1 + $0x114] sm:$0xf]
      %v258 = vld [vmem:[%s1 + $0x118] sm:$0xf]
      %v259 = vld [vmem:[%s1 + $0x11c] sm:$0xf]
      %v260 = vld [vmem:[%s1 + $0x120] sm:$0xf]
      %v261 = vld [vmem:[%s1 + $0x124] sm:$0xf]
      %v262 = vld [vmem:[%s1 + $0x128] sm:$0xf]
      %v263 = vld [vmem:[%s1 + $0x12c] sm:$0xf]
      %v264 = vld [vmem:[%s1 + $0x130] sm:$0xf]
      %v265 = vld [vmem:[%s1 + $0x134] sm:$0xf]
      %v266 = vld [vmem:[%s1 + $0x138] sm:$0xf]
      %v267 = vld [vmem:[%s1 + $0x13c] sm:$0xf]
      %v268 = vld [vmem:[%s1 + $0x140] sm:$0xf]
      %v269 = vld [vmem:[%s1 + $0x144] sm:$0xf]
      %v270 = vld [vmem:[%s1 + $0x148] sm:$0xf]
      %v271 = vld [vmem:[%s1 + $0x14c] sm:$0xf]
      %v272 = vld [vmem:[%s1 + $0x150] sm:$0xf]
      %v273 = vld [vmem:[%s1 + $0x154] sm:$0xf]
      %v274 = vld [vmem:[%s1 + $0x158] sm:$0xf]
      %v275 = vld [vmem:[%s1 + $0x15c] sm:$0xf]
      %v276 = vld [vmem:[%s1 + $0x160] sm:$0xf]
      %v277 = vld [vmem:[%s1 + $0x164] sm:$0xf]
      %v278 = vld [vmem:[%s1 + $0x168] sm:$0xf]
      %v279 = vld [vmem:[%s1 + $0x16c] sm:$0xf]
      %v280 = vld [vmem:[%s1 + $0x170] sm:$0xf]
      %v281 = vld [vmem:[%s1 + $0x174] sm:$0xf]
      %v282 = vld [vmem:[%s1 + $0x178] sm:$0xf]
      %v283 = vld [vmem:[%s1 + $0x17c] sm:$0xf]
      %v284 = vld [vmem:[%s1 + $0x180] sm:$0xf]
      %v285 = vld [vmem:[%s1 + $0x184] sm:$0xf]
      %v286 = vld [vmem:[%s1 + $0x188] sm:$0xf]
      %v287 = vld [vmem:[%s1 + $0x18c] sm:$0xf]
      %v288 = vld [vmem:[%s1 + $0x190] sm:$0xf]
      %v289 = vld [vmem:[%s1 + $0x194] sm:$0xf]
      %v290 = vld [vmem:[%s1 + $0x198] sm:$0xf]
      %v291 = vld [vmem:[%s1 + $0x19c] sm:$0xf]
      %v292 = vld [vmem:[%s1 + $0x1a0] sm:$0xf]
      %v293 = vld [vmem:[%s1 + $0x1a4] sm:$0xf]
      %v294 = vld [vmem:[%s1 + $0x1a8] sm:$0xf]
      %v295 = vld [vmem:[%s1 + $0x1ac] sm:$0xf]
      %v296 = vld [vmem:[%s1 + $0x1b0] sm:$0xf]
      %v297 = vld [vmem:[%s1 + $0x1b4] sm:$0xf]
      %v298 = vld [vmem:[%s1 + $0x1b8] sm:$0xf]
      %v299 = vld [vmem:[%s1 + $0x1bc] sm:$0xf]
      %v300 = vld [vmem:[%s1 + $0x1c0] sm:$0xf]
      %v301 = vld [vmem:[%s1 + $0x1c4] sm:$0xf]
      %v302 = vld [vmem:[%s1 + $0x1c8] sm:$0xf]
      %v303 = vld [vmem:[%s1 + $0x1cc] sm:$0xf]
      %v304 = vld [vmem:[%s1 + $0x1d0] sm:$0xf]
      %v305 = vld [vmem:[%s1 + $0x1d4] sm:$0xf]
      %v306 = vld [vmem:[%s1 + $0x1d8] sm:$0xf]
      %v307 = vld [vmem:[%s1 + $0x1dc] sm:$0xf]
      %v308 = vld [vmem:[%s1 + $0x1e0] sm:$0xf]
      %v309 = vld [vmem:[%s1 + $0x1e4] sm:$0xf]
      %v310 = vld [vmem:[%s1 + $0x1e8] sm:$0xf]
      %v311 = vld [vmem:[%s1 + $0x1ec] sm:$0xf]
      %v312 = vld [vmem:[%s1 + $0x1f0] sm:$0xf]
      %v313 = vld [vmem:[%s1 + $0x1f4] sm:$0xf]
      %v314 = vld [vmem:[%s1 + $0x1f8] sm:$0xf]
      %v315 = vld [vmem:[%s1 + $0x1fc] sm:$0xf]
      %v316 = vld [vmem:[%s1 + $0x200] sm:$0xf]
      %v317 = vld [vmem:[%s1 + $0x204] sm:$0xf]
      %v318 = vld [vmem:[%s1 + $0x208] sm:$0xf]
      %v319 = vld [vmem:[%s1 + $0x20c] sm:$0xf]
      %v320 = vld [vmem:[%s1 + $0x210] sm:$0xf]
      %v321 = vld [vmem:[%s1 + $0x214] sm:$0xf]
      %v322 = vld [vmem:[%s1 + $0x218] sm:$0xf]
      %v323 = vld [vmem:[%s1 + $0x21c] sm:$0xf]
      %v324 = vld [vmem:[%s1 + $0x220] sm:$0xf]
      %v325 = vld [vmem:[%s1 + $0x224] sm:$0xf]
      %v326 = vld [vmem:[%s1 + $0x228] sm:$0xf]
      %v327 = vld [vmem:[%s1 + $0x22c] sm:$0xf]
      %v328 = vld [vmem:[%s1 + $0x230] sm:$0xf]
      %v329 = vld [vmem:[%s1 + $0x234] sm:$0xf]
      %v330 = vld [vmem:[%s1 + $0x238] sm:$0xf]
      %v331 = vld [vmem:[%s1 + $0x23c] sm:$0xf]
      %v332 = vld [vmem:[%s2] sm:$0x1]
      %v334 = vlaneseq
      %v335 = vshrl.u32 %v334, 7
      %v336 = vsub.s32 0, %v335
      %v337 = vrot.slane %v332, %v336
      %v349 = vunpack.c.l.b16 %v178
      %v350 = vunpack.c.h.b16 %v178
      %v351 = vunpack.c.l.b16 %v179
      %v352 = vunpack.c.h.b16 %v179
      %v353 = vunpack.c.l.b16 %v180
      %v354 = vunpack.c.h.b16 %v180
      %v355 = vunpack.c.l.b16 %v181
      %v356 = vunpack.c.h.b16 %v181
      %v357 = vunpack.c.l.b16 %v182
      %v358 = vunpack.c.l.b16 %v183
      %v359 = vunpack.c.h.b16 %v183
      %v360 = vunpack.c.l.b16 %v184
      %v361 = vunpack.c.h.b16 %v184
      %v362 = vunpack.c.l.b16 %v185
      %v363 = vunpack.c.h.b16 %v185
      %v364 = vunpack.c.l.b16 %v186
      %v365 = vunpack.c.h.b16 %v186
      %v366 = vunpack.c.l.b16 %v187
      %v367 = vpack.c.b16 %v358, %v349
      %v368 = vpack.c.b16 %v359, %v350
      %v369 = vpack.c.b16 %v360, %v351
      %v370 = vpack.c.b16 %v361, %v352
      %v371 = vpack.c.b16 %v362, %v353
      %v372 = vpack.c.b16 %v363, %v354
      %v373 = vpack.c.b16 %v364, %v355
      %v374 = vpack.c.b16 %v365, %v356
      %v375 = vpack.c.b16 %v366, %v357
      %v529 = vunpack.c.l.b16 %v188
      %v530 = vunpack.c.l.b16 %v189
      %v531 = vunpack.c.l.b16 %v190
      %v532 = vunpack.c.l.b16 %v191
      %v533 = vunpack.c.l.b16 %v192
      %v534 = vunpack.c.l.b16 %v193
      %v535 = vunpack.c.l.b16 %v194
      %v536 = vunpack.c.l.b16 %v195
      %v537 = vunpack.c.l.b16 %v196
      %v538 = vunpack.c.l.b16 %v197
      %v539 = vunpack.c.l.b16 %v198
      %v540 = vunpack.c.l.b16 %v199
      %v541 = vunpack.c.l.b16 %v200
      %v542 = vunpack.c.l.b16 %v201
      %v543 = vunpack.c.l.b16 %v202
      %v544 = vunpack.c.l.b16 %v203
      %v545 = vunpack.c.l.b16 %v204
      %v546 = vunpack.c.l.b16 %v205
      %v547 = vunpack.c.l.b16 %v206
      %v548 = vunpack.c.l.b16 %v207
      %v549 = vunpack.c.l.b16 %v208
      %v550 = vunpack.c.l.b16 %v209
      %v551 = vunpack.c.l.b16 %v210
      %v552 = vunpack.c.l.b16 %v211
      %v553 = vunpack.c.l.b16 %v212
      %v554 = vunpack.c.l.b16 %v213
      %v555 = vunpack.c.l.b16 %v214
      %v556 = vunpack.c.l.b16 %v215
      %v557 = vunpack.c.l.b16 %v216
      %v558 = vunpack.c.l.b16 %v217
      %v559 = vunpack.c.l.b16 %v218
      %v560 = vunpack.c.l.b16 %v219
      %v561 = vunpack.c.l.b16 %v220
      %v562 = vunpack.c.l.b16 %v221
      %v563 = vunpack.c.l.b16 %v222
      %v564 = vunpack.c.l.b16 %v223
      %v565 = vunpack.c.l.b16 %v224
      %v566 = vunpack.c.l.b16 %v225
      %v567 = vunpack.c.l.b16 %v226
      %v568 = vunpack.c.l.b16 %v227
      %v569 = vunpack.c.l.b16 %v228
      %v570 = vunpack.c.l.b16 %v229
      %v571 = vunpack.c.l.b16 %v230
      %v572 = vunpack.c.l.b16 %v231
      %v573 = vunpack.c.l.b16 %v232
      %v574 = vunpack.c.l.b16 %v233
      %v575 = vunpack.c.l.b16 %v234
      %v576 = vunpack.c.l.b16 %v235
      %v577 = vunpack.c.l.b16 %v236
      %v578 = vunpack.c.l.b16 %v237
      %v579 = vunpack.c.l.b16 %v238
      %v580 = vunpack.c.l.b16 %v239
      %v581 = vunpack.c.l.b16 %v240
      %v582 = vunpack.c.l.b16 %v241
      %v583 = vunpack.c.l.b16 %v242
      %v584 = vunpack.c.l.b16 %v243
      %v585 = vunpack.c.l.b16 %v244
      %v586 = vunpack.c.l.b16 %v245
      %v587 = vunpack.c.l.b16 %v246
      %v588 = vunpack.c.l.b16 %v247
      %v589 = vunpack.c.l.b16 %v248
      %v590 = vunpack.c.l.b16 %v249
      %v591 = vunpack.c.l.b16 %v250
      %v592 = vunpack.c.l.b16 %v251
      %v593 = vunpack.c.l.b16 %v252
      %v594 = vunpack.c.l.b16 %v253
      %v595 = vunpack.c.l.b16 %v254
      %v596 = vunpack.c.l.b16 %v255
      %v597 = vunpack.c.l.b16 %v256
      %v598 = vunpack.c.l.b16 %v257
      %v599 = vunpack.c.l.b16 %v258
      %v600 = vunpack.c.l.b16 %v259
      %v601 = vunpack.c.l.b16 %v260
      %v602 = vunpack.c.l.b16 %v261
      %v603 = vunpack.c.l.b16 %v262
      %v604 = vunpack.c.l.b16 %v263
      %v605 = vunpack.c.l.b16 %v264
      %v606 = vunpack.c.l.b16 %v265
      %v607 = vunpack.c.l.b16 %v266
      %v608 = vunpack.c.l.b16 %v267
      %v609 = vunpack.c.l.b16 %v268
      %v610 = vunpack.c.l.b16 %v269
      %v611 = vunpack.c.l.b16 %v270
      %v612 = vunpack.c.l.b16 %v271
      %v613 = vunpack.c.l.b16 %v272
      %v614 = vunpack.c.l.b16 %v273
      %v615 = vunpack.c.l.b16 %v274
      %v616 = vunpack.c.l.b16 %v275
      %v617 = vunpack.c.l.b16 %v276
      %v618 = vunpack.c.l.b16 %v277
      %v619 = vunpack.c.l.b16 %v278
      %v620 = vunpack.c.l.b16 %v279
      %v621 = vunpack.c.l.b16 %v280
      %v622 = vunpack.c.l.b16 %v281
      %v623 = vunpack.c.l.b16 %v282
      %v624 = vunpack.c.l.b16 %v283
      %v625 = vunpack.c.l.b16 %v284
      %v626 = vunpack.c.l.b16 %v285
      %v627 = vunpack.c.l.b16 %v286
      %v628 = vunpack.c.l.b16 %v287
      %v629 = vunpack.c.l.b16 %v288
      %v630 = vunpack.c.l.b16 %v289
      %v631 = vunpack.c.l.b16 %v290
      %v632 = vunpack.c.l.b16 %v291
      %v633 = vunpack.c.l.b16 %v292
      %v634 = vunpack.c.l.b16 %v293
      %v635 = vunpack.c.l.b16 %v294
      %v636 = vunpack.c.l.b16 %v295
      %v637 = vunpack.c.l.b16 %v296
      %v638 = vunpack.c.l.b16 %v297
      %v639 = vunpack.c.l.b16 %v298
      %v640 = vunpack.c.l.b16 %v299
      %v641 = vunpack.c.l.b16 %v300
      %v642 = vunpack.c.l.b16 %v301
      %v643 = vunpack.c.l.b16 %v302
      %v644 = vunpack.c.l.b16 %v303
      %v645 = vunpack.c.l.b16 %v304
      %v646 = vunpack.c.l.b16 %v305
      %v647 = vunpack.c.l.b16 %v306
      %v648 = vunpack.c.l.b16 %v307
      %v649 = vunpack.c.l.b16 %v308
      %v650 = vunpack.c.l.b16 %v309
      %v651 = vunpack.c.l.b16 %v310
      %v652 = vunpack.c.l.b16 %v311
      %v653 = vunpack.c.l.b16 %v312
      %v654 = vunpack.c.l.b16 %v313
      %v655 = vunpack.c.l.b16 %v314
      %v656 = vunpack.c.l.b16 %v315
      %v657 = vunpack.c.l.b16 %v316
      %v658 = vunpack.c.l.b16 %v317
      %v659 = vunpack.c.l.b16 %v318
      %v660 = vunpack.c.l.b16 %v319
      %v661 = vunpack.c.l.b16 %v320
      %v662 = vunpack.c.l.b16 %v321
      %v663 = vunpack.c.l.b16 %v322
      %v664 = vunpack.c.l.b16 %v323
      %v665 = vunpack.c.l.b16 %v324
      %v666 = vunpack.c.l.b16 %v325
      %v667 = vunpack.c.l.b16 %v326
      %v668 = vunpack.c.l.b16 %v327
      %v669 = vunpack.c.l.b16 %v328
      %v670 = vunpack.c.l.b16 %v329
      %v671 = vunpack.c.l.b16 %v330
      %v672 = vunpack.c.l.b16 %v331
      %v673 = vpack.c.b16 %v530, %v529
      %v674 = vpack.c.b16 %v532, %v531
      %v675 = vpack.c.b16 %v534, %v533
      %v676 = vpack.c.b16 %v536, %v535
      %v677 = vpack.c.b16 %v538, %v537
      %v678 = vpack.c.b16 %v540, %v539
      %v679 = vpack.c.b16 %v542, %v541
      %v680 = vpack.c.b16 %v544, %v543
      %v681 = vpack.c.b16 %v546, %v545
      %v682 = vpack.c.b16 %v548, %v547
      %v683 = vpack.c.b16 %v550, %v549
      %v684 = vpack.c.b16 %v552, %v551
      %v685 = vpack.c.b16 %v554, %v553
      %v686 = vpack.c.b16 %v556, %v555
      %v687 = vpack.c.b16 %v558, %v557
      %v688 = vpack.c.b16 %v560, %v559
      %v689 = vpack.c.b16 %v562, %v561
      %v690 = vpack.c.b16 %v564, %v563
      %v691 = vpack.c.b16 %v566, %v565
      %v692 = vpack.c.b16 %v568, %v567
      %v693 = vpack.c.b16 %v570, %v569
      %v694 = vpack.c.b16 %v572, %v571
      %v695 = vpack.c.b16 %v574, %v573
      %v696 = vpack.c.b16 %v576, %v575
      %v697 = vpack.c.b16 %v578, %v577
      %v698 = vpack.c.b16 %v580, %v579
      %v699 = vpack.c.b16 %v582, %v581
      %v700 = vpack.c.b16 %v584, %v583
      %v701 = vpack.c.b16 %v586, %v585
      %v702 = vpack.c.b16 %v588, %v587
      %v703 = vpack.c.b16 %v590, %v589
      %v704 = vpack.c.b16 %v592, %v591
      %v705 = vpack.c.b16 %v594, %v593
      %v706 = vpack.c.b16 %v596, %v595
      %v707 = vpack.c.b16 %v598, %v597
      %v708 = vpack.c.b16 %v600, %v599
      %v709 = vpack.c.b16 %v602, %v601
      %v710 = vpack.c.b16 %v604, %v603
      %v711 = vpack.c.b16 %v606, %v605
      %v712 = vpack.c.b16 %v608, %v607
      %v713 = vpack.c.b16 %v610, %v609
      %v714 = vpack.c.b16 %v612, %v611
      %v715 = vpack.c.b16 %v614, %v613
      %v716 = vpack.c.b16 %v616, %v615
      %v717 = vpack.c.b16 %v618, %v617
      %v718 = vpack.c.b16 %v620, %v619
      %v719 = vpack.c.b16 %v622, %v621
      %v720 = vpack.c.b16 %v624, %v623
      %v721 = vpack.c.b16 %v626, %v625
      %v722 = vpack.c.b16 %v628, %v627
      %v723 = vpack.c.b16 %v630, %v629
      %v724 = vpack.c.b16 %v632, %v631
      %v725 = vpack.c.b16 %v634, %v633
      %v726 = vpack.c.b16 %v636, %v635
      %v727 = vpack.c.b16 %v638, %v637
      %v728 = vpack.c.b16 %v640, %v639
      %v729 = vpack.c.b16 %v642, %v641
      %v730 = vpack.c.b16 %v644, %v643
      %v731 = vpack.c.b16 %v646, %v645
      %v732 = vpack.c.b16 %v648, %v647
      %v733 = vpack.c.b16 %v650, %v649
      %v734 = vpack.c.b16 %v652, %v651
      %v735 = vpack.c.b16 %v654, %v653
      %v736 = vpack.c.b16 %v656, %v655
      %v737 = vpack.c.b16 %v658, %v657
      %v738 = vpack.c.b16 %v660, %v659
      %v739 = vpack.c.b16 %v662, %v661
      %v740 = vpack.c.b16 %v664, %v663
      %v741 = vpack.c.b16 %v666, %v665
      %v742 = vpack.c.b16 %v668, %v667
      %v743 = vpack.c.b16 %v670, %v669
      %v744 = vpack.c.b16 %v672, %v671
      %817 = vmatprep.subr.bf16.mxu0 0
      %818 = vmatpush1.bf16.msra.mxu0 %v673
      %819 = vmatprep.subr.bf16.mxu0 0
      %820 = vmatpush1.bf16.msra.mxu0 %v674
      %821 = vmatprep.subr.bf16.mxu0 0
      %822 = vmatpush1.bf16.msra.mxu0 %v675
      %823 = vmatprep.subr.bf16.mxu0 0
      %824 = vmatpush1.bf16.msra.mxu0 %v676
      %825 = vmatprep.subr.bf16.mxu0 0
      %826 = vmatpush1.bf16.msra.mxu0 %v677
      %827 = vmatprep.subr.bf16.mxu0 0
      %828 = vmatpush1.bf16.msra.mxu0 %v678
      %829 = vmatprep.subr.bf16.mxu0 0
      %830 = vmatpush1.bf16.msra.mxu0 %v679
      %831 = vmatprep.subr.bf16.mxu0 0
      %832 = vmatpush1.bf16.msra.mxu0 %v680
      %833 = vmatprep.subr.bf16.mxu0 0
      %834 = vmatpush1.bf16.msra.mxu0 %v681
      %835 = vmatprep.subr.bf16.mxu0 0
      %836 = vmatpush1.bf16.msra.mxu0 %v682
      %837 = vmatprep.subr.bf16.mxu0 0
      %838 = vmatpush1.bf16.msra.mxu0 %v683
      %839 = vmatprep.subr.bf16.mxu0 0
      %840 = vmatpush1.bf16.msra.mxu0 %v684
      %841 = vmatprep.subr.bf16.mxu0 0
      %842 = vmatpush1.bf16.msra.mxu0 %v685
      %843 = vmatprep.subr.bf16.mxu0 0
      %844 = vmatpush1.bf16.msra.mxu0 %v686
      %845 = vmatprep.subr.bf16.mxu0 0
      %846 = vmatpush1.bf16.msra.mxu0 %v687
      %847 = vmatprep.subr.bf16.mxu0 0
      %848 = vmatpush1.bf16.msra.mxu0 %v688
      %849 = vmatprep.mubr.bf16.mxu0 %v368
      %850 = vmatmul.mubr.bf16.gmra.mrb[0].mxu0 %v367
      %v851 = vpop.f32.mrb[0].mxu0
      %v852 = vadd.f32 %v337, %v851
      %v853 = vpop.f32.mrb[0].mxu0
      %v854 = vpop.f32.mrb[0].mxu0
      %v855 = vadd.f32 %v337, %v854
      %v856 = vpop.f32.mrb[0].mxu0
      %857 = vdwg.mxu0
      %858 = vmatprep.subr.bf16.mxu0 0
      %859 = vmatpush1.bf16.msra.mxu0 %v689
      %860 = vmatprep.subr.bf16.mxu0 0
      %861 = vmatpush1.bf16.msra.mxu0 %v690
      %862 = vmatprep.subr.bf16.mxu0 0
      %863 = vmatpush1.bf16.msra.mxu0 %v691
      %864 = vmatprep.subr.bf16.mxu0 0
      %865 = vmatpush1.bf16.msra.mxu0 %v692
      %866 = vmatprep.subr.bf16.mxu0 0
      %867 = vmatpush1.bf16.msra.mxu0 %v693
      %868 = vmatprep.subr.bf16.mxu0 0
      %869 = vmatpush1.bf16.msra.mxu0 %v694
      %870 = vmatprep.subr.bf16.mxu0 0
      %871 = vmatpush1.bf16.msra.mxu0 %v695
      %872 = vmatprep.subr.bf16.mxu0 0
      %873 = vmatpush1.bf16.msra.mxu0 %v696
      %874 = vmatprep.subr.bf16.mxu0 0
      %875 = vmatpush1.bf16.msra.mxu0 %v697
      %876 = vmatprep.subr.bf16.mxu0 0
      %877 = vmatpush1.bf16.msra.mxu0 %v698
      %878 = vmatprep.subr.bf16.mxu0 0
      %879 = vmatpush1.bf16.msra.mxu0 %v699
      %880 = vmatprep.subr.bf16.mxu0 0
      %881 = vmatpush1.bf16.msra.mxu0 %v700
      %882 = vmatprep.subr.bf16.mxu0 0
      %883 = vmatpush1.bf16.msra.mxu0 %v701
      %884 = vmatprep.subr.bf16.mxu0 0
      %885 = vmatpush1.bf16.msra.mxu0 %v702
      %886 = vmatprep.subr.bf16.mxu0 0
      %887 = vmatpush1.bf16.msra.mxu0 %v703
      %888 = vmatprep.subr.bf16.mxu0 0
      %889 = vmatpush1.bf16.msra.mxu0 %v704
      %890 = vmatprep.mubr.bf16.mxu0 %v370
      %891 = vmatmul.mubr.bf16.gmra.mrb[0].mxu0 %v369
      %v892 = vpop.f32.mrb[0].mxu0
      %v893 = vadd.f32 %v852, %v892
      %v894 = vpop.f32.mrb[0].mxu0
      %v895 = vpop.f32.mrb[0].mxu0
      %v896 = vadd.f32 %v855, %v895
      %v897 = vpop.f32.mrb[0].mxu0
      %898 = vdwg.mxu0
      %899 = vmatprep.subr.bf16.mxu0 0
      %900 = vmatpush1.bf16.msra.mxu0 %v705
      %901 = vmatprep.subr.bf16.mxu0 0
      %902 = vmatpush1.bf16.msra.mxu0 %v706
      %903 = vmatprep.subr.bf16.mxu0 0
      %904 = vmatpush1.bf16.msra.mxu0 %v707
      %905 = vmatprep.subr.bf16.mxu0 0
      %906 = vmatpush1.bf16.msra.mxu0 %v708
      %907 = vmatprep.subr.bf16.mxu0 0
      %908 = vmatpush1.bf16.msra.mxu0 %v709
      %909 = vmatprep.subr.bf16.mxu0 0
      %910 = vmatpush1.bf16.msra.mxu0 %v710
      %911 = vmatprep.subr.bf16.mxu0 0
      %912 = vmatpush1.bf16.msra.mxu0 %v711
      %913 = vmatprep.subr.bf16.mxu0 0
      %914 = vmatpush1.bf16.msra.mxu0 %v712
      %915 = vmatprep.subr.bf16.mxu0 0
      %916 = vmatpush1.bf16.msra.mxu0 %v713
      %917 = vmatprep.subr.bf16.mxu0 0
      %918 = vmatpush1.bf16.msra.mxu0 %v714
      %919 = vmatprep.subr.bf16.mxu0 0
      %920 = vmatpush1.bf16.msra.mxu0 %v715
      %921 = vmatprep.subr.bf16.mxu0 0
      %922 = vmatpush1.bf16.msra.mxu0 %v716
      %923 = vmatprep.subr.bf16.mxu0 0
      %924 = vmatpush1.bf16.msra.mxu0 %v717
      %925 = vmatprep.subr.bf16.mxu0 0
      %926 = vmatpush1.bf16.msra.mxu0 %v718
      %927 = vmatprep.subr.bf16.mxu0 0
      %928 = vmatpush1.bf16.msra.mxu0 %v719
      %929 = vmatprep.subr.bf16.mxu0 0
      %930 = vmatpush1.bf16.msra.mxu0 %v720
      %931 = vmatprep.mubr.bf16.mxu0 %v372
      %932 = vmatmul.mubr.bf16.gmra.mrb[0].mxu0 %v371
      %v933 = vpop.f32.mrb[0].mxu0
      %v934 = vadd.f32 %v893, %v933
      %v935 = vpop.f32.mrb[0].mxu0
      %v936 = vpop.f32.mrb[0].mxu0
      %v937 = vadd.f32 %v896, %v936
      %v938 = vpop.f32.mrb[0].mxu0
      %939 = vdwg.mxu0
      %940 = vmatprep.subr.bf16.mxu0 0
      %941 = vmatpush1.bf16.msra.mxu0 %v721
      %942 = vmatprep.subr.bf16.mxu0 0
      %943 = vmatpush1.bf16.msra.mxu0 %v722
      %944 = vmatprep.subr.bf16.mxu0 0
      %945 = vmatpush1.bf16.msra.mxu0 %v723
      %946 = vmatprep.subr.bf16.mxu0 0
      %947 = vmatpush1.bf16.msra.mxu0 %v724
      %948 = vmatprep.subr.bf16.mxu0 0
      %949 = vmatpush1.bf16.msra.mxu0 %v725
      %950 = vmatprep.subr.bf16.mxu0 0
      %951 = vmatpush1.bf16.msra.mxu0 %v726
      %952 = vmatprep.subr.bf16.mxu0 0
      %953 = vmatpush1.bf16.msra.mxu0 %v727
      %954 = vmatprep.subr.bf16.mxu0 0
      %955 = vmatpush1.bf16.msra.mxu0 %v728
      %956 = vmatprep.subr.bf16.mxu0 0
      %957 = vmatpush1.bf16.msra.mxu0 %v729
      %958 = vmatprep.subr.bf16.mxu0 0
      %959 = vmatpush1.bf16.msra.mxu0 %v730
      %960 = vmatprep.subr.bf16.mxu0 0
      %961 = vmatpush1.bf16.msra.mxu0 %v731
      %962 = vmatprep.subr.bf16.mxu0 0
      %963 = vmatpush1.bf16.msra.mxu0 %v732
      %964 = vmatprep.subr.bf16.mxu0 0
      %965 = vmatpush1.bf16.msra.mxu0 %v733
      %966 = vmatprep.subr.bf16.mxu0 0
      %967 = vmatpush1.bf16.msra.mxu0 %v734
      %968 = vmatprep.subr.bf16.mxu0 0
      %969 = vmatpush1.bf16.msra.mxu0 %v735
      %970 = vmatprep.subr.bf16.mxu0 0
      %971 = vmatpush1.bf16.msra.mxu0 %v736
      %972 = vmatprep.mubr.bf16.mxu0 %v374
      %973 = vmatmul.mubr.bf16.gmra.mrb[0].mxu0 %v373
      %v974 = vpop.f32.mrb[0].mxu0
      %v975 = vadd.f32 %v934, %v974
      %v976 = vpop.f32.mrb[0].mxu0
      %v977 = vpop.f32.mrb[0].mxu0
      %v978 = vadd.f32 %v937, %v977
      %v979 = vpop.f32.mrb[0].mxu0
      %980 = vdwg.mxu0
      %981 = vmatprep.subr.bf16.mxu0 0
      %982 = vmatpush1.bf16.msra.mxu0 %v737
      %983 = vmatprep.subr.bf16.mxu0 0
      %984 = vmatpush1.bf16.msra.mxu0 %v738
      %985 = vmatprep.subr.bf16.mxu0 0
      %986 = vmatpush1.bf16.msra.mxu0 %v739
      %987 = vmatprep.subr.bf16.mxu0 0
      %988 = vmatpush1.bf16.msra.mxu0 %v740
      %989 = vmatprep.subr.bf16.mxu0 0
      %990 = vmatpush1.bf16.msra.mxu0 %v741
      %991 = vmatprep.subr.bf16.mxu0 0
      %992 = vmatpush1.bf16.msra.mxu0 %v742
      %993 = vmatprep.subr.bf16.mxu0 0
      %994 = vmatpush1.bf16.msra.mxu0 %v743
      %995 = vmatprep.subr.bf16.mxu0 0
      %996 = vmatpush1.bf16.msra.mxu0 %v744
      %997 = vmatprep.subr.bf16.mxu0 0
      %998 = vmatpush1.bf16.msra.mxu0 0
      %999 = vmatprep.subr.bf16.mxu0 0
      %1000 = vmatpush1.bf16.msra.mxu0 0
      %1001 = vmatprep.subr.bf16.mxu0 0
      %1002 = vmatpush1.bf16.msra.mxu0 0
      %1003 = vmatprep.subr.bf16.mxu0 0
      %1004 = vmatpush1.bf16.msra.mxu0 0
      %1005 = vmatprep.subr.bf16.mxu0 0
      %1006 = vmatpush1.bf16.msra.mxu0 0
      %1007 = vmatprep.subr.bf16.mxu0 0
      %1008 = vmatpush1.bf16.msra.mxu0 0
      %1009 = vmatprep.subr.bf16.mxu0 0
      %1010 = vmatpush1.bf16.msra.mxu0 0
      %1011 = vmatprep.subr.bf16.mxu0 0
      %1012 = vmatpush1.bf16.msra.mxu0 0
      %1013 = vmatprep.mubr.bf16.mxu0 0
      %1014 = vmatmul.mubr.bf16.gmra.mrb[0].mxu0 %v375
      %v1015 = vpop.f32.mrb[0].mxu0
      %v1016 = vadd.f32 %v975, %v1015
      %v1017 = vpop.f32.mrb[0].mxu0
      %v1018 = vpop.f32.mrb[0].mxu0
      %v1019 = vadd.f32 %v978, %v1018
      %v1020 = vpop.f32.mrb[0].mxu0
      %1021 = vdwg.mxu0
      %v1022 = vmax.f32 %v1016, 0.0
      %v1023 = vmax.f32 %v1019, 0.0
      %v1024 = vpack.c.bf16 %v1023, %v1022
      %v1026 = vunpack.c.l.b16 %v1024
      %v1027 = vunpack.c.h.b16 %v1024
      %v1028 = vpack.c.b16 %v1026, %v1026
      %v1029 = vpack.c.b16 %v1027, %v1027
      %1032 = vst [vmem:[%s175] sm:$0xf] %v1028
      %1033 = vst [vmem:[%s175 + $0x4] sm:$0xf] %v1029
      %s1034 = smul.u32 2, %s14
      %p1035 = scmp.lt.s32.totalorder %s1034, 3
      %s1036 = scalar_select %p1035, %s1034, 3
      %s1037 = smul.addr %s1036, 4
      %s1038 = scalar_lea.vmem %s3, %s1037
      // Predicated region
      $region33: #{_lambda_.28} parent=31 // pred_check
        %p1039 = pneg %p100
      $region34: #{_lambda_.28} parent=31 // pred_check_branch
        %1041 = sbr.rel (%p1039) target = $region36
      $region35: #{_lambda_.28} parent=31 // pred_region
        %s1042 = smul.u32 2, %s14
      $region36: #{_lambda_.28} parent=31 // pred_fallthru
        _
    $region32: #{_lambda_.28} parent=5 // pred_fallthru
      _
    %p1043 = scmp.le.s32.totalorder 2, %s9
    // Predicated region
    $region37: #{_lambda_.28} parent=5 // pred_check
      %p1044 = pneg %p1043
    $region38: #{_lambda_.28} parent=5 // pred_check_branch
      %1046 = sbr.rel (%p1044) target = $region40
    $region39: #{_lambda_.28} parent=5 // pred_region
      %s1047 = ssub.s32 %s9, 2
      // Predicated region
      $region41: #{_lambda_.28} parent=39 // pred_check
        %p1048 = pneg %p106
      $region42: #{_lambda_.28} parent=39 // pred_check_branch
        %1050 = sbr.rel (%p1048) target = $region44
      $region43: #{_lambda_.28} parent=39 // pred_region
        %s1051 = smul.u32 2, %s15
        %p1052 = scmp.lt.s32.totalorder %s1051, 3
        %s1053 = scalar_select %p1052, %s1051, 3
        %s1054 = smul.addr %s1053, 4
        %s1055 = scalar_lea.vmem %s3, %s1054
      $region44: #{_lambda_.28} parent=39 // pred_fallthru
        _
    $region40: #{_lambda_.28} parent=5 // pred_fallthru
      _
  $region6: #{_lambda_.28} parent=0 // loop_footer
    %s13 = sadd.s32 1, %s9
  $region7: #{_lambda_.28} parent=0 // loop_footer_branch
    %8 = sbr.rel target = $region3
  $region8: #{_lambda_.28} parent=0 // loop_exit
    _

// kernel: _lambda_.27
$region0: #{_lambda_.27}
  #allocation0 [shape = 'u32[]', space=smem, size = 0x4, offset = 0x4, fixed_abs, tag = 'smem constant byte address 0x4 - core index']
  #allocation1 [shape = 'u32[144,128]{1,0:T(1,128)}', space=vmem, size = 0x12000, scoped, tag = 'internal scratch']
  %s0 = inlined_call_operand.vmem [shape: bf16[32,128], index: 0, kind: input, shape index: {}]
  %s1 = inlined_call_operand.vmem [shape: bf16[128,128], index: 1, kind: input, shape index: {}]
  %s2 = inlined_call_operand.vmem [shape: f32[1,128], index: 2, kind: input, shape index: {}]
  %s3 = inlined_call_operand.vmem [shape: bf16[32,128], index: 3, kind: output, shape index: {}]
  %s4 = sld [smem:[#allocation0]]
  $region45: #{_lambda_.27} parent=0
    _
  %s6 = ssub.s32 1, %s4
  %s7 = scalar_select 0, %s6, %s4
  loop: start=0, step=1, limit=4
  $region2: #{_lambda_.27} parent=0 // loop_pre_header
    _
  $region3: #{_lambda_.27} parent=0 // loop_header
    %s9 = sphi 0, %s13
    %p10 = scmp.ge.s32.totalorder %s9, 4
    %s19 = sphi 0, %s21
    %s22 = sphi 0, %s19
    %s23 = sphi 0, %s22
    %s39 = sphi 0, %s23
    %s43 = sphi 0, %s43
    %s45 = sphi 0, %s43
    %s46 = sphi 0, %s45
    %s60 = sphi 0, %s46
    %s64 = sphi 0, %s64
    %s66 = sphi 0, %s64
    %s67 = sphi 0, %s66
    %s81 = sphi 0, %s67
    %s87 = sphi 0, %s89
    %s90 = sphi 0, %s87
    %s91 = sphi 0, %s90
    %s107 = sphi 0, %s91
  $region4: #{_lambda_.27} parent=0 // loop_header_branch
    %12 = sbr.rel (%p10) target = $region8
  $region5: #{_lambda_.27} parent=0 // loop_body
    %s14 = ssub.s32 %s9, 1
    %s15 = ssub.s32 %s9, 2
    %s16 = sadd.s32 %s9, 1
    %s17 = ssub.s32 %s9, %s16
    %p18 = scmp.eq.s32.totalorder %s17, 0
    %s20 = sadd.s32 %s19, 1
    %s21 = scalar_select %p18, %s19, %s20
    %p24 = pneg %p18
    %p25 = scmp.eq.s32.totalorder %s9, 1
    %p26 = por %p24, %p25
    %p27 = scmp.ne.s32.totalorder %s19, %s22
    %p28 = scmp.eq.s32.totalorder %s9, 0
    %p29 = por %p27, %p28
    %p30 = scmp.ne.s32.totalorder %s19, %s22
    %p31 = scmp.eq.s32.totalorder %s14, 1
    %p32 = por %p30, %p31
    %p33 = scmp.ne.s32.totalorder %s22, %s23
    %p34 = scmp.eq.s32.totalorder %s14, 0
    %p35 = por %p33, %p34
    %p36 = scmp.ne.s32.totalorder %s22, %s23
    %p37 = scmp.eq.s32.totalorder %s15, 1
    %p38 = por %p36, %p37
    %p40 = scmp.ne.s32.totalorder %s23, %s39
    %p41 = scmp.eq.s32.totalorder %s15, 0
    %p42 = por %p40, %p41
    %s44 = sadd.s32 %s43, 1
    %p47 = scmp.eq.s32.totalorder %s9, 1
    %p48 = scmp.ne.s32.totalorder %s43, %s45
    %p49 = scmp.eq.s32.totalorder %s9, 0
    %p50 = por %p48, %p49
    %p51 = scmp.ne.s32.totalorder %s43, %s45
    %p52 = scmp.eq.s32.totalorder %s14, 1
    %p53 = por %p51, %p52
    %p54 = scmp.ne.s32.totalorder %s45, %s46
    %p55 = scmp.eq.s32.totalorder %s14, 0
    %p56 = por %p54, %p55
    %p57 = scmp.ne.s32.totalorder %s45, %s46
    %p58 = scmp.eq.s32.totalorder %s15, 1
    %p59 = por %p57, %p58
    %p61 = scmp.ne.s32.totalorder %s46, %s60
    %p62 = scmp.eq.s32.totalorder %s15, 0
    %p63 = por %p61, %p62
    %s65 = sadd.s32 %s64, 1
    %p68 = scmp.eq.s32.totalorder %s9, 1
    %p69 = scmp.ne.s32.totalorder %s64, %s66
    %p70 = scmp.eq.s32.totalorder %s9, 0
    %p71 = por %p69, %p70
    %p72 = scmp.ne.s32.totalorder %s64, %s66
    %p73 = scmp.eq.s32.totalorder %s14, 1
    %p74 = por %p72, %p73
    %p75 = scmp.ne.s32.totalorder %s66, %s67
    %p76 = scmp.eq.s32.totalorder %s14, 0
    %p77 = por %p75, %p76
    %p78 = scmp.ne.s32.totalorder %s66, %s67
    %p79 = scmp.eq.s32.totalorder %s15, 1
    %p80 = por %p78, %p79
    %p82 = scmp.ne.s32.totalorder %s67, %s81
    %p83 = scmp.eq.s32.totalorder %s15, 0
    %p84 = por %p82, %p83
    %s85 = ssub.s32 %s9, %s16
    %p86 = scmp.eq.s32.totalorder %s85, 0
    %s88 = sadd.s32 %s87, 1
    %s89 = scalar_select %p86, %s87, %s88
    %p92 = pneg %p86
    %p93 = scmp.eq.s32.totalorder %s9, 1
    %p94 = por %p92, %p93
    %p95 = scmp.ne.s32.totalorder %s87, %s90
    %p96 = scmp.eq.s32.totalorder %s9, 0
    %p97 = por %p95, %p96
    %p98 = scmp.ne.s32.totalorder %s87, %s90
    %p99 = scmp.eq.s32.totalorder %s14, 1
    %p100 = por %p98, %p99
    %p101 = scmp.ne.s32.totalorder %s90, %s91
    %p102 = scmp.eq.s32.totalorder %s14, 0
    %p103 = por %p101, %p102
    %p104 = scmp.ne.s32.totalorder %s90, %s91
    %p105 = scmp.eq.s32.totalorder %s15, 1
    %p106 = por %p104, %p105
    %p108 = scmp.ne.s32.totalorder %s91, %s107
    %p109 = scmp.eq.s32.totalorder %s15, 0
    %p110 = por %p108, %p109
    %p111 = scmp.le.s32.totalorder 1, %s9
    %p112 = scmp.lt.s32.totalorder %s9, 3
    %p113 = pnand %p111, %p112
    %p114 = pneg %p113
    // Predicated region
    $region9: #{_lambda_.27} parent=5 // pred_check
      _
    $region10: #{_lambda_.27} parent=5 // pred_check_branch
      %116 = sbr.rel (%p113) target = $region12
    $region11: #{_lambda_.27} parent=5 // pred_region
      %s117 = ssub.s32 %s9, 1
      // Predicated region
      $region13: #{_lambda_.27} parent=11 // pred_check
        %p118 = pneg %p56
      $region14: #{_lambda_.27} parent=11 // pred_check_branch
        %120 = sbr.rel (%p118) target = $region16
      $region15: #{_lambda_.27} parent=11 // pred_region
        _
      $region16: #{_lambda_.27} parent=11 // pred_fallthru
        _
      // Predicated region
      $region17: #{_lambda_.27} parent=11 // pred_check
        %p121 = pneg %p77
      $region18: #{_lambda_.27} parent=11 // pred_check_branch
        %123 = sbr.rel (%p121) target = $region20
      $region19: #{_lambda_.27} parent=11 // pred_region
        _
      $region20: #{_lambda_.27} parent=11 // pred_fallthru
        _
    $region12: #{_lambda_.27} parent=5 // pred_fallthru
      _
    %p124 = scmp.lt.s32.totalorder %s9, 2
    // Predicated region
    $region21: #{_lambda_.27} parent=5 // pred_check
      %p125 = pneg %p124
    $region22: #{_lambda_.27} parent=5 // pred_check_branch
      %127 = sbr.rel (%p125) target = $region24
    $region23: #{_lambda_.27} parent=5 // pred_region
      // Predicated region
      $region25: #{_lambda_.27} parent=23 // pred_check
        %p128 = pneg %p29
      $region26: #{_lambda_.27} parent=23 // pred_check_branch
        %130 = sbr.rel (%p128) target = $region28
      $region27: #{_lambda_.27} parent=23 // pred_region
        %s131 = smul.u32 2, %s9
        %p132 = scmp.lt.s32.totalorder %s131, 3
        %s133 = scalar_select %p132, %s131, 3
        %s134 = smul.addr %s133, 4
        %s135 = scalar_lea.vmem %s0, %s134
        %s136 = smul.u32 2, %s9
      $region28: #{_lambda_.27} parent=23 // pred_fallthru
        _
    $region24: #{_lambda_.27} parent=5 // pred_fallthru
      _
    %p137 = scmp.le.s32.totalorder 1, %s9
    %p138 = scmp.lt.s32.totalorder %s9, 3
    %p139 = pnand %p137, %p138
    %p140 = pneg %p139
    // Predicated region
    $region29: #{_lambda_.27} parent=5 // pred_check
      _
    $region30: #{_lambda_.27} parent=5 // pred_check_branch
      %142 = sbr.rel (%p139) target = $region32
    $region31: #{_lambda_.27} parent=5 // pred_region
      %s143 = ssub.s32 %s9, 1
      %s144 = smul.u32 2, %s14
      %p145 = scmp.lt.s32.totalorder %s144, 3
      %s146 = scalar_select %p145, %s144, 3
      %s147 = smul.addr %s146, 4
      %s148 = scalar_lea.vmem %s0, %s147
      %p149 = pneg %p35
      %p150 = pneg %p32
      %p151 = pneg %p56
      %p152 = pneg %p53
      %p153 = pneg %p77
      %p154 = pneg %p74
      %p155 = pneg %p103
      %p156 = pneg %p100
      %s157 = smul.u32 2, %s14
      %p158 = scmp.lt.s32.totalorder %s157, 3
      %s159 = scalar_select %p158, %s157, 3
      %s160 = smul.addr %s159, 4
      %s161 = scalar_lea.vmem %s3, %s160
      %s162 = smul.u32 2, %s14
      %p163 = scmp.lt.s32.totalorder %s162, 3
      %s164 = scalar_select %p163, %s162, 3
      %s165 = smul.addr %s164, 4
      %s166 = scalar_lea.vmem %s0, %s165
      %s167 = smul.u32 2, %s14
      %s168 = smul.u32 2, %s14
      %p169 = scmp.lt.s32.totalorder %s168, 3
      %s170 = scalar_select %p169, %s168, 3
      %s171 = smul.addr %s170, 4
      %s172 = scalar_lea.vmem %s3, %s171
      %s173 = smul.u32 2, %s14
      %v175 = vld [vmem:[%s166] sm:$0xf]
      %v176 = vld [vmem:[%s166 + $0x4] sm:$0xf]
      %v177 = vld [vmem:[%s1] sm:$0xf]
      %v178 = vld [vmem:[%s1 + $0x4] sm:$0xf]
      %v179 = vld [vmem:[%s1 + $0x8] sm:$0xf]
      %v180 = vld [vmem:[%s1 + $0xc] sm:$0xf]
      %v181 = vld [vmem:[%s1 + $0x10] sm:$0xf]
      %v182 = vld [vmem:[%s1 + $0x14] sm:$0xf]
      %v183 = vld [vmem:[%s1 + $0x18] sm:$0xf]
      %v184 = vld [vmem:[%s1 + $0x1c] sm:$0xf]
      %v185 = vld [vmem:[%s1 + $0x20] sm:$0xf]
      %v186 = vld [vmem:[%s1 + $0x24] sm:$0xf]
      %v187 = vld [vmem:[%s1 + $0x28] sm:$0xf]
      %v188 = vld [vmem:[%s1 + $0x2c] sm:$0xf]
      %v189 = vld [vmem:[%s1 + $0x30] sm:$0xf]
      %v190 = vld [vmem:[%s1 + $0x34] sm:$0xf]
      %v191 = vld [vmem:[%s1 + $0x38] sm:$0xf]
      %v192 = vld [vmem:[%s1 + $0x3c] sm:$0xf]
      %v193 = vld [vmem:[%s2] sm:$0x1]
      %v195 = vlaneseq
      %v196 = vshrl.u32 %v195, 7
      %v197 = vsub.s32 0, %v196
      %v198 = vrot.slane %v193, %v197
      %v202 = vunpack.c.l.b16 %v175
      %v203 = vunpack.c.l.b16 %v176
      %v204 = vpack.c.b16 %v203, %v202
      %v222 = vunpack.c.l.b16 %v177
      %v223 = vunpack.c.l.b16 %v178
      %v224 = vunpack.c.l.b16 %v179
      %v225 = vunpack.c.l.b16 %v180
      %v226 = vunpack.c.l.b16 %v181
      %v227 = vunpack.c.l.b16 %v182
      %v228 = vunpack.c.l.b16 %v183
      %v229 = vunpack.c.l.b16 %v184
      %v230 = vunpack.c.l.b16 %v185
      %v231 = vunpack.c.l.b16 %v186
      %v232 = vunpack.c.l.b16 %v187
      %v233 = vunpack.c.l.b16 %v188
      %v234 = vunpack.c.l.b16 %v189
      %v235 = vunpack.c.l.b16 %v190
      %v236 = vunpack.c.l.b16 %v191
      %v237 = vunpack.c.l.b16 %v192
      %v238 = vpack.c.b16 %v223, %v222
      %v239 = vpack.c.b16 %v225, %v224
      %v240 = vpack.c.b16 %v227, %v226
      %v241 = vpack.c.b16 %v229, %v228
      %v242 = vpack.c.b16 %v231, %v230
      %v243 = vpack.c.b16 %v233, %v232
      %v244 = vpack.c.b16 %v235, %v234
      %v245 = vpack.c.b16 %v237, %v236
      %254 = vmatprep.subr.bf16.mxu0 0
      %255 = vmatpush1.bf16.msra.mxu0 %v238
      %256 = vmatprep.subr.bf16.mxu0 0
      %257 = vmatpush1.bf16.msra.mxu0 %v239
      %258 = vmatprep.subr.bf16.mxu0 0
      %259 = vmatpush1.bf16.msra.mxu0 %v240
      %260 = vmatprep.subr.bf16.mxu0 0
      %261 = vmatpush1.bf16.msra.mxu0 %v241
      %262 = vmatprep.subr.bf16.mxu0 0
      %263 = vmatpush1.bf16.msra.mxu0 %v242
      %264 = vmatprep.subr.bf16.mxu0 0
      %265 = vmatpush1.bf16.msra.mxu0 %v243
      %266 = vmatprep.subr.bf16.mxu0 0
      %267 = vmatpush1.bf16.msra.mxu0 %v244
      %268 = vmatprep.subr.bf16.mxu0 0
      %269 = vmatpush1.bf16.msra.mxu0 %v245
      %270 = vmatprep.subr.bf16.mxu0 0
      %271 = vmatpush1.bf16.msra.mxu0 0
      %272 = vmatprep.subr.bf16.mxu0 0
      %273 = vmatpush1.bf16.msra.mxu0 0
      %274 = vmatprep.subr.bf16.mxu0 0
      %275 = vmatpush1.bf16.msra.mxu0 0
      %276 = vmatprep.subr.bf16.mxu0 0
      %277 = vmatpush1.bf16.msra.mxu0 0
      %278 = vmatprep.subr.bf16.mxu0 0
      %279 = vmatpush1.bf16.msra.mxu0 0
      %280 = vmatprep.subr.bf16.mxu0 0
      %281 = vmatpush1.bf16.msra.mxu0 0
      %282 = vmatprep.subr.bf16.mxu0 0
      %283 = vmatpush1.bf16.msra.mxu0 0
      %284 = vmatprep.subr.bf16.mxu0 0
      %285 = vmatpush1.bf16.msra.mxu0 0
      %286 = vmatprep.mubr.bf16.mxu0 0
      %287 = vmatmul.mubr.bf16.gmra.mrb[0].mxu0 %v204
      %v288 = vpop.f32.mrb[0].mxu0
      %v289 = vadd.f32 %v198, %v288
      %v290 = vpop.f32.mrb[0].mxu0
      %v291 = vpop.f32.mrb[0].mxu0
      %v292 = vadd.f32 %v198, %v291
      %v293 = vpop.f32.mrb[0].mxu0
      %294 = vdwg.mxu0
      %v295 = vpack.c.bf16 %v292, %v289
      %v297 = vunpack.c.l.b16 %v295
      %v298 = vunpack.c.h.b16 %v295
      %v299 = vpack.c.b16 %v297, %v297
      %v300 = vpack.c.b16 %v298, %v298
      %303 = vst [vmem:[%s172] sm:$0xf] %v299
      %304 = vst [vmem:[%s172 + $0x4] sm:$0xf] %v300
      %s305 = smul.u32 2, %s14
      %p306 = scmp.lt.s32.totalorder %s305, 3
      %s307 = scalar_select %p306, %s305, 3
      %s308 = smul.addr %s307, 4
      %s309 = scalar_lea.vmem %s3, %s308
      // Predicated region
      $region33: #{_lambda_.27} parent=31 // pred_check
        %p310 = pneg %p100
      $region34: #{_lambda_.27} parent=31 // pred_check_branch
        %312 = sbr.rel (%p310) target = $region36
      $region35: #{_lambda_.27} parent=31 // pred_region
        %s313 = smul.u32 2, %s14
      $region36: #{_lambda_.27} parent=31 // pred_fallthru
        _
    $region32: #{_lambda_.27} parent=5 // pred_fallthru
      _
    %p314 = scmp.le.s32.totalorder 2, %s9
    // Predicated region
    $region37: #{_lambda_.27} parent=5 // pred_check
      %p315 = pneg %p314
    $region38: #{_lambda_.27} parent=5 // pred_check_branch
      %317 = sbr.rel (%p315) target = $region40
    $region39: #{_lambda_.27} parent=5 // pred_region
      %s318 = ssub.s32 %s9, 2
      // Predicated region
      $region41: #{_lambda_.27} parent=39 // pred_check
        %p319 = pneg %p106
      $region42: #{_lambda_.27} parent=39 // pred_check_branch
        %321 = sbr.rel (%p319) target = $region44
      $region43: #{_lambda_.27} parent=39 // pred_region
        %s322 = smul.u32 2, %s15
        %p323 = scmp.lt.s32.totalorder %s322, 3
        %s324 = scalar_select %p323, %s322, 3
        %s325 = smul.addr %s324, 4
        %s326 = scalar_lea.vmem %s3, %s325
      $region44: #{_lambda_.27} parent=39 // pred_fallthru
        _
    $region40: #{_lambda_.27} parent=5 // pred_fallthru
      _
  $region6: #{_lambda_.27} parent=0 // loop_footer
    %s13 = sadd.s32 1, %s9
  $region7: #{_lambda_.27} parent=0 // loop_footer_branch
    %8 = sbr.rel target = $region3
  $region8: #{_lambda_.27} parent=0 // loop_exit
    _

// kernel: _lambda_.29
$region0: #{_lambda_.29}
  #allocation0 [shape = 'u32[]', space=smem, size = 0x4, offset = 0x4, fixed_abs, tag = 'smem constant byte address 0x4 - core index']
  #allocation1 [shape = 'u32[144,128]{1,0:T(1,128)}', space=vmem, size = 0x12000, scoped, tag = 'internal scratch']
  %s0 = inlined_call_operand.vmem [shape: bf16[32,1152], index: 0, kind: input, shape index: {}]
  %s1 = inlined_call_operand.vmem [shape: bf16[1152,128], index: 1, kind: input, shape index: {}]
  %s2 = inlined_call_operand.vmem [shape: f32[1,128], index: 2, kind: input, shape index: {}]
  %s3 = inlined_call_operand.vmem [shape: bf16[32,128], index: 3, kind: input, shape index: {}]
  %s4 = inlined_call_operand.vmem [shape: bf16[32,128], index: 4, kind: output, shape index: {}]
  %s5 = sld [smem:[#allocation0]]
  $region49: #{_lambda_.29} parent=0
    _
  %s7 = ssub.s32 1, %s5
  %s8 = scalar_select 0, %s7, %s5
  loop: start=0, step=1, limit=4
  $region2: #{_lambda_.29} parent=0 // loop_pre_header
    _
  $region3: #{_lambda_.29} parent=0 // loop_header
    %s10 = sphi 0, %s14
    %p11 = scmp.ge.s32.totalorder %s10, 4
    %s20 = sphi 0, %s22
    %s23 = sphi 0, %s20
    %s24 = sphi 0, %s23
    %s40 = sphi 0, %s24
    %s44 = sphi 0, %s44
    %s46 = sphi 0, %s44
    %s47 = sphi 0, %s46
    %s61 = sphi 0, %s47
    %s65 = sphi 0, %s65
    %s67 = sphi 0, %s65
    %s68 = sphi 0, %s67
    %s82 = sphi 0, %s68
    %s88 = sphi 0, %s90
    %s91 = sphi 0, %s88
    %s92 = sphi 0, %s91
    %s108 = sphi 0, %s92
    %s114 = sphi 0, %s116
    %s117 = sphi 0, %s114
    %s118 = sphi 0, %s117
    %s134 = sphi 0, %s118
  $region4: #{_lambda_.29} parent=0 // loop_header_branch
    %13 = sbr.rel (%p11) target = $region8
  $region5: #{_lambda_.29} parent=0 // loop_body
    %s15 = ssub.s32 %s10, 1
    %s16 = ssub.s32 %s10, 2
    %s17 = sadd.s32 %s10, 1
    %s18 = ssub.s32 %s10, %s17
    %p19 = scmp.eq.s32.totalorder %s18, 0
    %s21 = sadd.s32 %s20, 1
    %s22 = scalar_select %p19, %s20, %s21
    %p25 = pneg %p19
    %p26 = scmp.eq.s32.totalorder %s10, 1
    %p27 = por %p25, %p26
    %p28 = scmp.ne.s32.totalorder %s20, %s23
    %p29 = scmp.eq.s32.totalorder %s10, 0
    %p30 = por %p28, %p29
    %p31 = scmp.ne.s32.totalorder %s20, %s23
    %p32 = scmp.eq.s32.totalorder %s15, 1
    %p33 = por %p31, %p32
    %p34 = scmp.ne.s32.totalorder %s23, %s24
    %p35 = scmp.eq.s32.totalorder %s15, 0
    %p36 = por %p34, %p35
    %p37 = scmp.ne.s32.totalorder %s23, %s24
    %p38 = scmp.eq.s32.totalorder %s16, 1
    %p39 = por %p37, %p38
    %p41 = scmp.ne.s32.totalorder %s24, %s40
    %p42 = scmp.eq.s32.totalorder %s16, 0
    %p43 = por %p41, %p42
    %s45 = sadd.s32 %s44, 1
    %p48 = scmp.eq.s32.totalorder %s10, 1
    %p49 = scmp.ne.s32.totalorder %s44, %s46
    %p50 = scmp.eq.s32.totalorder %s10, 0
    %p51 = por %p49, %p50
    %p52 = scmp.ne.s32.totalorder %s44, %s46
    %p53 = scmp.eq.s32.totalorder %s15, 1
    %p54 = por %p52, %p53
    %p55 = scmp.ne.s32.totalorder %s46, %s47
    %p56 = scmp.eq.s32.totalorder %s15, 0
    %p57 = por %p55, %p56
    %p58 = scmp.ne.s32.totalorder %s46, %s47
    %p59 = scmp.eq.s32.totalorder %s16, 1
    %p60 = por %p58, %p59
    %p62 = scmp.ne.s32.totalorder %s47, %s61
    %p63 = scmp.eq.s32.totalorder %s16, 0
    %p64 = por %p62, %p63
    %s66 = sadd.s32 %s65, 1
    %p69 = scmp.eq.s32.totalorder %s10, 1
    %p70 = scmp.ne.s32.totalorder %s65, %s67
    %p71 = scmp.eq.s32.totalorder %s10, 0
    %p72 = por %p70, %p71
    %p73 = scmp.ne.s32.totalorder %s65, %s67
    %p74 = scmp.eq.s32.totalorder %s15, 1
    %p75 = por %p73, %p74
    %p76 = scmp.ne.s32.totalorder %s67, %s68
    %p77 = scmp.eq.s32.totalorder %s15, 0
    %p78 = por %p76, %p77
    %p79 = scmp.ne.s32.totalorder %s67, %s68
    %p80 = scmp.eq.s32.totalorder %s16, 1
    %p81 = por %p79, %p80
    %p83 = scmp.ne.s32.totalorder %s68, %s82
    %p84 = scmp.eq.s32.totalorder %s16, 0
    %p85 = por %p83, %p84
    %s86 = ssub.s32 %s10, %s17
    %p87 = scmp.eq.s32.totalorder %s86, 0
    %s89 = sadd.s32 %s88, 1
    %s90 = scalar_select %p87, %s88, %s89
    %p93 = pneg %p87
    %p94 = scmp.eq.s32.totalorder %s10, 1
    %p95 = por %p93, %p94
    %p96 = scmp.ne.s32.totalorder %s88, %s91
    %p97 = scmp.eq.s32.totalorder %s10, 0
    %p98 = por %p96, %p97
    %p99 = scmp.ne.s32.totalorder %s88, %s91
    %p100 = scmp.eq.s32.totalorder %s15, 1
    %p101 = por %p99, %p100
    %p102 = scmp.ne.s32.totalorder %s91, %s92
    %p103 = scmp.eq.s32.totalorder %s15, 0
    %p104 = por %p102, %p103
    %p105 = scmp.ne.s32.totalorder %s91, %s92
    %p106 = scmp.eq.s32.totalorder %s16, 1
    %p107 = por %p105, %p106
    %p109 = scmp.ne.s32.totalorder %s92, %s108
    %p110 = scmp.eq.s32.totalorder %s16, 0
    %p111 = por %p109, %p110
    %s112 = ssub.s32 %s10, %s17
    %p113 = scmp.eq.s32.totalorder %s112, 0
    %s115 = sadd.s32 %s114, 1
    %s116 = scalar_select %p113, %s114, %s115
    %p119 = pneg %p113
    %p120 = scmp.eq.s32.totalorder %s10, 1
    %p121 = por %p119, %p120
    %p122 = scmp.ne.s32.totalorder %s114, %s117
    %p123 = scmp.eq.s32.totalorder %s10, 0
    %p124 = por %p122, %p123
    %p125 = scmp.ne.s32.totalorder %s114, %s117
    %p126 = scmp.eq.s32.totalorder %s15, 1
    %p127 = por %p125, %p126
    %p128 = scmp.ne.s32.totalorder %s117, %s118
    %p129 = scmp.eq.s32.totalorder %s15, 0
    %p130 = por %p128, %p129
    %p131 = scmp.ne.s32.totalorder %s117, %s118
    %p132 = scmp.eq.s32.totalorder %s16, 1
    %p133 = por %p131, %p132
    %p135 = scmp.ne.s32.totalorder %s118, %s134
    %p136 = scmp.eq.s32.totalorder %s16, 0
    %p137 = por %p135, %p136
    %p138 = scmp.le.s32.totalorder 1, %s10
    %p139 = scmp.lt.s32.totalorder %s10, 3
    %p140 = pnand %p138, %p139
    %p141 = pneg %p140
    // Predicated region
    $region9: #{_lambda_.29} parent=5 // pred_check
      _
    $region10: #{_lambda_.29} parent=5 // pred_check_branch
      %143 = sbr.rel (%p140) target = $region12
    $region11: #{_lambda_.29} parent=5 // pred_region
      %s144 = ssub.s32 %s10, 1
      // Predicated region
      $region13: #{_lambda_.29} parent=11 // pred_check
        %p145 = pneg %p57
      $region14: #{_lambda_.29} parent=11 // pred_check_branch
        %147 = sbr.rel (%p145) target = $region16
      $region15: #{_lambda_.29} parent=11 // pred_region
        _
      $region16: #{_lambda_.29} parent=11 // pred_fallthru
        _
      // Predicated region
      $region17: #{_lambda_.29} parent=11 // pred_check
        %p148 = pneg %p78
      $region18: #{_lambda_.29} parent=11 // pred_check_branch
        %150 = sbr.rel (%p148) target = $region20
      $region19: #{_lambda_.29} parent=11 // pred_region
        _
      $region20: #{_lambda_.29} parent=11 // pred_fallthru
        _
    $region12: #{_lambda_.29} parent=5 // pred_fallthru
      _
    %p151 = scmp.lt.s32.totalorder %s10, 2
    // Predicated region
    $region21: #{_lambda_.29} parent=5 // pred_check
      %p152 = pneg %p151
    $region22: #{_lambda_.29} parent=5 // pred_check_branch
      %154 = sbr.rel (%p152) target = $region24
    $region23: #{_lambda_.29} parent=5 // pred_region
      // Predicated region
      $region25: #{_lambda_.29} parent=23 // pred_check
        %p155 = pneg %p30
      $region26: #{_lambda_.29} parent=23 // pred_check_branch
        %157 = sbr.rel (%p155) target = $region28
      $region27: #{_lambda_.29} parent=23 // pred_region
        %s158 = smul.u32 2, %s10
        %p159 = scmp.lt.s32.totalorder %s158, 3
        %s160 = scalar_select %p159, %s158, 3
        %s161 = smul.addr %s160, 9
        %s162 = smul.addr %s161, 4
        %s163 = scalar_lea.vmem %s0, %s162
        %s164 = smul.u32 2, %s10
      $region28: #{_lambda_.29} parent=23 // pred_fallthru
        _
      // Predicated region
      $region29: #{_lambda_.29} parent=23 // pred_check
        %p165 = pneg %p98
      $region30: #{_lambda_.29} parent=23 // pred_check_branch
        %167 = sbr.rel (%p165) target = $region32
      $region31: #{_lambda_.29} parent=23 // pred_region
        %s168 = smul.u32 2, %s10
        %p169 = scmp.lt.s32.totalorder %s168, 3
        %s170 = scalar_select %p169, %s168, 3
        %s171 = smul.addr %s170, 4
        %s172 = scalar_lea.vmem %s3, %s171
        %s173 = smul.u32 2, %s10
      $region32: #{_lambda_.29} parent=23 // pred_fallthru
        _
    $region24: #{_lambda_.29} parent=5 // pred_fallthru
      _
    %p174 = scmp.le.s32.totalorder 1, %s10
    %p175 = scmp.lt.s32.totalorder %s10, 3
    %p176 = pnand %p174, %p175
    %p177 = pneg %p176
    // Predicated region
    $region33: #{_lambda_.29} parent=5 // pred_check
      _
    $region34: #{_lambda_.29} parent=5 // pred_check_branch
      %179 = sbr.rel (%p176) target = $region36
    $region35: #{_lambda_.29} parent=5 // pred_region
      %s180 = ssub.s32 %s10, 1
      %s181 = smul.u32 2, %s15
      %p182 = scmp.lt.s32.totalorder %s181, 3
      %s183 = scalar_select %p182, %s181, 3
      %s184 = smul.addr %s183, 9
      %s185 = smul.addr %s184, 4
      %s186 = scalar_lea.vmem %s0, %s185
      %p187 = pneg %p36
      %p188 = pneg %p33
      %p189 = pneg %p57
      %p190 = pneg %p54
      %p191 = pneg %p78
      %p192 = pneg %p75
      %s193 = smul.u32 2, %s15
      %p194 = scmp.lt.s32.totalorder %s193, 3
      %s195 = scalar_select %p194, %s193, 3
      %s196 = smul.addr %s195, 4
      %s197 = scalar_lea.vmem %s3, %s196
      %p198 = pneg %p104
      %p199 = pneg %p101
      %p200 = pneg %p130
      %p201 = pneg %p127
      %s202 = smul.u32 2, %s15
      %p203 = scmp.lt.s32.totalorder %s202, 3
      %s204 = scalar_select %p203, %s202, 3
      %s205 = smul.addr %s204, 4
      %s206 = scalar_lea.vmem %s4, %s205
      %s207 = smul.u32 2, %s15
      %p208 = scmp.lt.s32.totalorder %s207, 3
      %s209 = scalar_select %p208, %s207, 3
      %s210 = smul.addr %s209, 9
      %s211 = smul.addr %s210, 4
      %s212 = scalar_lea.vmem %s0, %s211
      %s213 = smul.u32 2, %s15
      %s214 = smul.u32 2, %s15
      %p215 = scmp.lt.s32.totalorder %s214, 3
      %s216 = scalar_select %p215, %s214, 3
      %s217 = smul.addr %s216, 4
      %s218 = scalar_lea.vmem %s3, %s217
      %s219 = smul.u32 2, %s15
      %s220 = smul.u32 2, %s15
      %p221 = scmp.lt.s32.totalorder %s220, 3
      %s222 = scalar_select %p221, %s220, 3
      %s223 = smul.addr %s222, 4
      %s224 = scalar_lea.vmem %s4, %s223
      %s225 = smul.u32 2, %s15
      %v227 = vld [vmem:[%s212] sm:$0xff]
      %v228 = vld [vmem:[%s212 + $0x8] sm:$0xff]
      %v229 = vld [vmem:[%s212 + $0x10] sm:$0xff]
      %v230 = vld [vmem:[%s212 + $0x18] sm:$0xff]
      %v231 = vld [vmem:[%s212 + $0x20] sm:$0xf]
      %v232 = vld [vmem:[%s212 + $0x24] sm:$0xff]
      %v233 = vld [vmem:[%s212 + $0x2c] sm:$0xff]
      %v234 = vld [vmem:[%s212 + $0x34] sm:$0xff]
      %v235 = vld [vmem:[%s212 + $0x3c] sm:$0xff]
      %v236 = vld [vmem:[%s212 + $0x44] sm:$0xf]
      %v237 = vld [vmem:[%s1] sm:$0xf]
      %v238 = vld [vmem:[%s1 + $0x4] sm:$0xf]
      %v239 = vld [vmem:[%s1 + $0x8] sm:$0xf]
      %v240 = vld [vmem:[%s1 + $0xc] sm:$0xf]
      %v241 = vld [vmem:[%s1 + $0x10] sm:$0xf]
      %v242 = vld [vmem:[%s1 + $0x14] sm:$0xf]
      %v243 = vld [vmem:[%s1 + $0x18] sm:$0xf]
      %v244 = vld [vmem:[%s1 + $0x1c] sm:$0xf]
      %v245 = vld [vmem:[%s1 + $0x20] sm:$0xf]
      %v246 = vld [vmem:[%s1 + $0x24] sm:$0xf]
      %v247 = vld [vmem:[%s1 + $0x28] sm:$0xf]
      %v248 = vld [vmem:[%s1 + $0x2c] sm:$0xf]
      %v249 = vld [vmem:[%s1 + $0x30] sm:$0xf]
      %v250 = vld [vmem:[%s1 + $0x34] sm:$0xf]
      %v251 = vld [vmem:[%s1 + $0x38] sm:$0xf]
      %v252 = vld [vmem:[%s1 + $0x3c] sm:$0xf]
      %v253 = vld [vmem:[%s1 + $0x40] sm:$0xf]
      %v254 = vld [vmem:[%s1 + $0x44] sm:$0xf]
      %v255 = vld [vmem:[%s1 + $0x48] sm:$0xf]
      %v256 = vld [vmem:[%s1 + $0x4c] sm:$0xf]
      %v257 = vld [vmem:[%s1 + $0x50] sm:$0xf]
      %v258 = vld [vmem:[%s1 + $0x54] sm:$0xf]
      %v259 = vld [vmem:[%s1 + $0x58] sm:$0xf]
      %v260 = vld [vmem:[%s1 + $0x5c] sm:$0xf]
      %v261 = vld [vmem:[%s1 + $0x60] sm:$0xf]
      %v262 = vld [vmem:[%s1 + $0x64] sm:$0xf]
      %v263 = vld [vmem:[%s1 + $0x68] sm:$0xf]
      %v264 = vld [vmem:[%s1 + $0x6c] sm:$0xf]
      %v265 = vld [vmem:[%s1 + $0x70] sm:$0xf]
      %v266 = vld [vmem:[%s1 + $0x74] sm:$0xf]
      %v267 = vld [vmem:[%s1 + $0x78] sm:$0xf]
      %v268 = vld [vmem:[%s1 + $0x7c] sm:$0xf]
      %v269 = vld [vmem:[%s1 + $0x80] sm:$0xf]
      %v270 = vld [vmem:[%s1 + $0x84] sm:$0xf]
      %v271 = vld [vmem:[%s1 + $0x88] sm:$0xf]
      %v272 = vld [vmem:[%s1 + $0x8c] sm:$0xf]
      %v273 = vld [vmem:[%s1 + $0x90] sm:$0xf]
      %v274 = vld [vmem:[%s1 + $0x94] sm:$0xf]
      %v275 = vld [vmem:[%s1 + $0x98] sm:$0xf]
      %v276 = vld [vmem:[%s1 + $0x9c] sm:$0xf]
      %v277 = vld [vmem:[%s1 + $0xa0] sm:$0xf]
      %v278 = vld [vmem:[%s1 + $0xa4] sm:$0xf]
      %v279 = vld [vmem:[%s1 + $0xa8] sm:$0xf]
      %v280 = vld [vmem:[%s1 + $0xac] sm:$0xf]
      %v281 = vld [vmem:[%s1 + $0xb0] sm:$0xf]
      %v282 = vld [vmem:[%s1 + $0xb4] sm:$0xf]
      %v283 = vld [vmem:[%s1 + $0xb8] sm:$0xf]
      %v284 = vld [vmem:[%s1 + $0xbc] sm:$0xf]
      %v285 = vld [vmem:[%s1 + $0xc0] sm:$0xf]
      %v286 = vld [vmem:[%s1 + $0xc4] sm:$0xf]
      %v287 = vld [vmem:[%s1 + $0xc8] sm:$0xf]
      %v288 = vld [vmem:[%s1 + $0xcc] sm:$0xf]
      %v289 = vld [vmem:[%s1 + $0xd0] sm:$0xf]
      %v290 = vld [vmem:[%s1 + $0xd4] sm:$0xf]
      %v291 = vld [vmem:[%s1 + $0xd8] sm:$0xf]
      %v292 = vld [vmem:[%s1 + $0xdc] sm:$0xf]
      %v293 = vld [vmem:[%s1 + $0xe0] sm:$0xf]
      %v294 = vld [vmem:[%s1 + $0xe4] sm:$0xf]
      %v295 = vld [vmem:[%s1 + $0xe8] sm:$0xf]
      %v296 = vld [vmem:[%s1 + $0xec] sm:$0xf]
      %v297 = vld [vmem:[%s1 + $0xf0] sm:$0xf]
      %v298 = vld [vmem:[%s1 + $0xf4] sm:$0xf]
      %v299 = vld [vmem:[%s1 + $0xf8] sm:$0xf]
      %v300 = vld [vmem:[%s1 + $0xfc] sm:$0xf]
      %v301 = vld [vmem:[%s1 + $0x100] sm:$0xf]
      %v302 = vld [vmem:[%s1 + $0x104] sm:$0xf]
      %v303 = vld [vmem:[%s1 + $0x108] sm:$0xf]
      %v304 = vld [vmem:[%s1 + $0x10c] sm:$0xf]
      %v305 = vld [vmem:[%s1 + $0x110] sm:$0xf]
      %v306 = vld [vmem:[%s1 + $0x114] sm:$0xf]
      %v307 = vld [vmem:[%s1 + $0x118] sm:$0xf]
      %v308 = vld [vmem:[%s1 + $0x11c] sm:$0xf]
      %v309 = vld [vmem:[%s1 + $0x120] sm:$0xf]
      %v310 = vld [vmem:[%s1 + $0x124] sm:$0xf]
      %v311 = vld [vmem:[%s1 + $0x128] sm:$0xf]
      %v312 = vld [vmem:[%s1 + $0x12c] sm:$0xf]
      %v313 = vld [vmem:[%s1 + $0x130] sm:$0xf]
      %v314 = vld [vmem:[%s1 + $0x134] sm:$0xf]
      %v315 = vld [vmem:[%s1 + $0x138] sm:$0xf]
      %v316 = vld [vmem:[%s1 + $0x13c] sm:$0xf]
      %v317 = vld [vmem:[%s1 + $0x140] sm:$0xf]
      %v318 = vld [vmem:[%s1 + $0x144] sm:$0xf]
      %v319 = vld [vmem:[%s1 + $0x148] sm:$0xf]
      %v320 = vld [vmem:[%s1 + $0x14c] sm:$0xf]
      %v321 = vld [vmem:[%s1 + $0x150] sm:$0xf]
      %v322 = vld [vmem:[%s1 + $0x154] sm:$0xf]
      %v323 = vld [vmem:[%s1 + $0x158] sm:$0xf]
      %v324 = vld [vmem:[%s1 + $0x15c] sm:$0xf]
      %v325 = vld [vmem:[%s1 + $0x160] sm:$0xf]
      %v326 = vld [vmem:[%s1 + $0x164] sm:$0xf]
      %v327 = vld [vmem:[%s1 + $0x168] sm:$0xf]
      %v328 = vld [vmem:[%s1 + $0x16c] sm:$0xf]
      %v329 = vld [vmem:[%s1 + $0x170] sm:$0xf]
      %v330 = vld [vmem:[%s1 + $0x174] sm:$0xf]
      %v331 = vld [vmem:[%s1 + $0x178] sm:$0xf]
      %v332 = vld [vmem:[%s1 + $0x17c] sm:$0xf]
      %v333 = vld [vmem:[%s1 + $0x180] sm:$0xf]
      %v334 = vld [vmem:[%s1 + $0x184] sm:$0xf]
      %v335 = vld [vmem:[%s1 + $0x188] sm:$0xf]
      %v336 = vld [vmem:[%s1 + $0x18c] sm:$0xf]
      %v337 = vld [vmem:[%s1 + $0x190] sm:$0xf]
      %v338 = vld [vmem:[%s1 + $0x194] sm:$0xf]
      %v339 = vld [vmem:[%s1 + $0x198] sm:$0xf]
      %v340 = vld [vmem:[%s1 + $0x19c] sm:$0xf]
      %v341 = vld [vmem:[%s1 + $0x1a0] sm:$0xf]
      %v342 = vld [vmem:[%s1 + $0x1a4] sm:$0xf]
      %v343 = vld [vmem:[%s1 + $0x1a8] sm:$0xf]
      %v344 = vld [vmem:[%s1 + $0x1ac] sm:$0xf]
      %v345 = vld [vmem:[%s1 + $0x1b0] sm:$0xf]
      %v346 = vld [vmem:[%s1 + $0x1b4] sm:$0xf]
      %v347 = vld [vmem:[%s1 + $0x1b8] sm:$0xf]
      %v348 = vld [vmem:[%s1 + $0x1bc] sm:$0xf]
      %v349 = vld [vmem:[%s1 + $0x1c0] sm:$0xf]
      %v350 = vld [vmem:[%s1 + $0x1c4] sm:$0xf]
      %v351 = vld [vmem:[%s1 + $0x1c8] sm:$0xf]
      %v352 = vld [vmem:[%s1 + $0x1cc] sm:$0xf]
      %v353 = vld [vmem:[%s1 + $0x1d0] sm:$0xf]
      %v354 = vld [vmem:[%s1 + $0x1d4] sm:$0xf]
      %v355 = vld [vmem:[%s1 + $0x1d8] sm:$0xf]
      %v356 = vld [vmem:[%s1 + $0x1dc] sm:$0xf]
      %v357 = vld [vmem:[%s1 + $0x1e0] sm:$0xf]
      %v358 = vld [vmem:[%s1 + $0x1e4] sm:$0xf]
      %v359 = vld [vmem:[%s1 + $0x1e8] sm:$0xf]
      %v360 = vld [vmem:[%s1 + $0x1ec] sm:$0xf]
      %v361 = vld [vmem:[%s1 + $0x1f0] sm:$0xf]
      %v362 = vld [vmem:[%s1 + $0x1f4] sm:$0xf]
      %v363 = vld [vmem:[%s1 + $0x1f8] sm:$0xf]
      %v364 = vld [vmem:[%s1 + $0x1fc] sm:$0xf]
      %v365 = vld [vmem:[%s1 + $0x200] sm:$0xf]
      %v366 = vld [vmem:[%s1 + $0x204] sm:$0xf]
      %v367 = vld [vmem:[%s1 + $0x208] sm:$0xf]
      %v368 = vld [vmem:[%s1 + $0x20c] sm:$0xf]
      %v369 = vld [vmem:[%s1 + $0x210] sm:$0xf]
      %v370 = vld [vmem:[%s1 + $0x214] sm:$0xf]
      %v371 = vld [vmem:[%s1 + $0x218] sm:$0xf]
      %v372 = vld [vmem:[%s1 + $0x21c] sm:$0xf]
      %v373 = vld [vmem:[%s1 + $0x220] sm:$0xf]
      %v374 = vld [vmem:[%s1 + $0x224] sm:$0xf]
      %v375 = vld [vmem:[%s1 + $0x228] sm:$0xf]
      %v376 = vld [vmem:[%s1 + $0x22c] sm:$0xf]
      %v377 = vld [vmem:[%s1 + $0x230] sm:$0xf]
      %v378 = vld [vmem:[%s1 + $0x234] sm:$0xf]
      %v379 = vld [vmem:[%s1 + $0x238] sm:$0xf]
      %v380 = vld [vmem:[%s1 + $0x23c] sm:$0xf]
      %v381 = vld [vmem:[%s2] sm:$0x1]
      %v383 = vlaneseq
      %v384 = vshrl.u32 %v383, 7
      %v385 = vsub.s32 0, %v384
      %v386 = vrot.slane %v381, %v385
      %v398 = vunpack.c.l.b16 %v227
      %v399 = vunpack.c.h.b16 %v227
      %v400 = vunpack.c.l.b16 %v228
      %v401 = vunpack.c.h.b16 %v228
      %v402 = vunpack.c.l.b16 %v229
      %v403 = vunpack.c.h.b16 %v229
      %v404 = vunpack.c.l.b16 %v230
      %v405 = vunpack.c.h.b16 %v230
      %v406 = vunpack.c.l.b16 %v231
      %v407 = vunpack.c.l.b16 %v232
      %v408 = vunpack.c.h.b16 %v232
      %v409 = vunpack.c.l.b16 %v233
      %v410 = vunpack.c.h.b16 %v233
      %v411 = vunpack.c.l.b16 %v234
      %v412 = vunpack.c.h.b16 %v234
      %v413 = vunpack.c.l.b16 %v235
      %v414 = vunpack.c.h.b16 %v235
      %v415 = vunpack.c.l.b16 %v236
      %v416 = vpack.c.b16 %v407, %v398
      %v417 = vpack.c.b16 %v408, %v399
      %v418 = vpack.c.b16 %v409, %v400
      %v419 = vpack.c.b16 %v410, %v401
      %v420 = vpack.c.b16 %v411, %v402
      %v421 = vpack.c.b16 %v412, %v403
      %v422 = vpack.c.b16 %v413, %v404
      %v423 = vpack.c.b16 %v414, %v405
      %v424 = vpack.c.b16 %v415, %v406
      %v578 = vunpack.c.l.b16 %v237
      %v579 = vunpack.c.l.b16 %v238
      %v580 = vunpack.c.l.b16 %v239
      %v581 = vunpack.c.l.b16 %v240
      %v582 = vunpack.c.l.b16 %v241
      %v583 = vunpack.c.l.b16 %v242
      %v584 = vunpack.c.l.b16 %v243
      %v585 = vunpack.c.l.b16 %v244
      %v586 = vunpack.c.l.b16 %v245
      %v587 = vunpack.c.l.b16 %v246
      %v588 = vunpack.c.l.b16 %v247
      %v589 = vunpack.c.l.b16 %v248
      %v590 = vunpack.c.l.b16 %v249
      %v591 = vunpack.c.l.b16 %v250
      %v592 = vunpack.c.l.b16 %v251
      %v593 = vunpack.c.l.b16 %v252
      %v594 = vunpack.c.l.b16 %v253
      %v595 = vunpack.c.l.b16 %v254
      %v596 = vunpack.c.l.b16 %v255
      %v597 = vunpack.c.l.b16 %v256
      %v598 = vunpack.c.l.b16 %v257
      %v599 = vunpack.c.l.b16 %v258
      %v600 = vunpack.c.l.b16 %v259
      %v601 = vunpack.c.l.b16 %v260
      %v602 = vunpack.c.l.b16 %v261
      %v603 = vunpack.c.l.b16 %v262
      %v604 = vunpack.c.l.b16 %v263
      %v605 = vunpack.c.l.b16 %v264
      %v606 = vunpack.c.l.b16 %v265
      %v607 = vunpack.c.l.b16 %v266
      %v608 = vunpack.c.l.b16 %v267
      %v609 = vunpack.c.l.b16 %v268
      %v610 = vunpack.c.l.b16 %v269
      %v611 = vunpack.c.l.b16 %v270
      %v612 = vunpack.c.l.b16 %v271
      %v613 = vunpack.c.l.b16 %v272
      %v614 = vunpack.c.l.b16 %v273
      %v615 = vunpack.c.l.b16 %v274
      %v616 = vunpack.c.l.b16 %v275
      %v617 = vunpack.c.l.b16 %v276
      %v618 = vunpack.c.l.b16 %v277
      %v619 = vunpack.c.l.b16 %v278
      %v620 = vunpack.c.l.b16 %v279
      %v621 = vunpack.c.l.b16 %v280
      %v622 = vunpack.c.l.b16 %v281
      %v623 = vunpack.c.l.b16 %v282
      %v624 = vunpack.c.l.b16 %v283
      %v625 = vunpack.c.l.b16 %v284
      %v626 = vunpack.c.l.b16 %v285
      %v627 = vunpack.c.l.b16 %v286
      %v628 = vunpack.c.l.b16 %v287
      %v629 = vunpack.c.l.b16 %v288
      %v630 = vunpack.c.l.b16 %v289
      %v631 = vunpack.c.l.b16 %v290
      %v632 = vunpack.c.l.b16 %v291
      %v633 = vunpack.c.l.b16 %v292
      %v634 = vunpack.c.l.b16 %v293
      %v635 = vunpack.c.l.b16 %v294
      %v636 = vunpack.c.l.b16 %v295
      %v637 = vunpack.c.l.b16 %v296
      %v638 = vunpack.c.l.b16 %v297
      %v639 = vunpack.c.l.b16 %v298
      %v640 = vunpack.c.l.b16 %v299
      %v641 = vunpack.c.l.b16 %v300
      %v642 = vunpack.c.l.b16 %v301
      %v643 = vunpack.c.l.b16 %v302
      %v644 = vunpack.c.l.b16 %v303
      %v645 = vunpack.c.l.b16 %v304
      %v646 = vunpack.c.l.b16 %v305
      %v647 = vunpack.c.l.b16 %v306
      %v648 = vunpack.c.l.b16 %v307
      %v649 = vunpack.c.l.b16 %v308
      %v650 = vunpack.c.l.b16 %v309
      %v651 = vunpack.c.l.b16 %v310
      %v652 = vunpack.c.l.b16 %v311
      %v653 = vunpack.c.l.b16 %v312
      %v654 = vunpack.c.l.b16 %v313
      %v655 = vunpack.c.l.b16 %v314
      %v656 = vunpack.c.l.b16 %v315
      %v657 = vunpack.c.l.b16 %v316
      %v658 = vunpack.c.l.b16 %v317
      %v659 = vunpack.c.l.b16 %v318
      %v660 = vunpack.c.l.b16 %v319
      %v661 = vunpack.c.l.b16 %v320
      %v662 = vunpack.c.l.b16 %v321
      %v663 = vunpack.c.l.b16 %v322
      %v664 = vunpack.c.l.b16 %v323
      %v665 = vunpack.c.l.b16 %v324
      %v666 = vunpack.c.l.b16 %v325
      %v667 = vunpack.c.l.b16 %v326
      %v668 = vunpack.c.l.b16 %v327
      %v669 = vunpack.c.l.b16 %v328
      %v670 = vunpack.c.l.b16 %v329
      %v671 = vunpack.c.l.b16 %v330
      %v672 = vunpack.c.l.b16 %v331
      %v673 = vunpack.c.l.b16 %v332
      %v674 = vunpack.c.l.b16 %v333
      %v675 = vunpack.c.l.b16 %v334
      %v676 = vunpack.c.l.b16 %v335
      %v677 = vunpack.c.l.b16 %v336
      %v678 = vunpack.c.l.b16 %v337
      %v679 = vunpack.c.l.b16 %v338
      %v680 = vunpack.c.l.b16 %v339
      %v681 = vunpack.c.l.b16 %v340
      %v682 = vunpack.c.l.b16 %v341
      %v683 = vunpack.c.l.b16 %v342
      %v684 = vunpack.c.l.b16 %v343
      %v685 = vunpack.c.l.b16 %v344
      %v686 = vunpack.c.l.b16 %v345
      %v687 = vunpack.c.l.b16 %v346
      %v688 = vunpack.c.l.b16 %v347
      %v689 = vunpack.c.l.b16 %v348
      %v690 = vunpack.c.l.b16 %v349
      %v691 = vunpack.c.l.b16 %v350
      %v692 = vunpack.c.l.b16 %v351
      %v693 = vunpack.c.l.b16 %v352
      %v694 = vunpack.c.l.b16 %v353
      %v695 = vunpack.c.l.b16 %v354
      %v696 = vunpack.c.l.b16 %v355
      %v697 = vunpack.c.l.b16 %v356
      %v698 = vunpack.c.l.b16 %v357
      %v699 = vunpack.c.l.b16 %v358
      %v700 = vunpack.c.l.b16 %v359
      %v701 = vunpack.c.l.b16 %v360
      %v702 = vunpack.c.l.b16 %v361
      %v703 = vunpack.c.l.b16 %v362
      %v704 = vunpack.c.l.b16 %v363
      %v705 = vunpack.c.l.b16 %v364
      %v706 = vunpack.c.l.b16 %v365
      %v707 = vunpack.c.l.b16 %v366
      %v708 = vunpack.c.l.b16 %v367
      %v709 = vunpack.c.l.b16 %v368
      %v710 = vunpack.c.l.b16 %v369
      %v711 = vunpack.c.l.b16 %v370
      %v712 = vunpack.c.l.b16 %v371
      %v713 = vunpack.c.l.b16 %v372
      %v714 = vunpack.c.l.b16 %v373
      %v715 = vunpack.c.l.b16 %v374
      %v716 = vunpack.c.l.b16 %v375
      %v717 = vunpack.c.l.b16 %v376
      %v718 = vunpack.c.l.b16 %v377
      %v719 = vunpack.c.l.b16 %v378
      %v720 = vunpack.c.l.b16 %v379
      %v721 = vunpack.c.l.b16 %v380
      %v722 = vpack.c.b16 %v579, %v578
      %v723 = vpack.c.b16 %v581, %v580
      %v724 = vpack.c.b16 %v583, %v582
      %v725 = vpack.c.b16 %v585, %v584
      %v726 = vpack.c.b16 %v587, %v586
      %v727 = vpack.c.b16 %v589, %v588
      %v728 = vpack.c.b16 %v591, %v590
      %v729 = vpack.c.b16 %v593, %v592
      %v730 = vpack.c.b16 %v595, %v594
      %v731 = vpack.c.b16 %v597, %v596
      %v732 = vpack.c.b16 %v599, %v598
      %v733 = vpack.c.b16 %v601, %v600
      %v734 = vpack.c.b16 %v603, %v602
      %v735 = vpack.c.b16 %v605, %v604
      %v736 = vpack.c.b16 %v607, %v606
      %v737 = vpack.c.b16 %v609, %v608
      %v738 = vpack.c.b16 %v611, %v610
      %v739 = vpack.c.b16 %v613, %v612
      %v740 = vpack.c.b16 %v615, %v614
      %v741 = vpack.c.b16 %v617, %v616
      %v742 = vpack.c.b16 %v619, %v618
      %v743 = vpack.c.b16 %v621, %v620
      %v744 = vpack.c.b16 %v623, %v622
      %v745 = vpack.c.b16 %v625, %v624
      %v746 = vpack.c.b16 %v627, %v626
      %v747 = vpack.c.b16 %v629, %v628
      %v748 = vpack.c.b16 %v631, %v630
      %v749 = vpack.c.b16 %v633, %v632
      %v750 = vpack.c.b16 %v635, %v634
      %v751 = vpack.c.b16 %v637, %v636
      %v752 = vpack.c.b16 %v639, %v638
      %v753 = vpack.c.b16 %v641, %v640
      %v754 = vpack.c.b16 %v643, %v642
      %v755 = vpack.c.b16 %v645, %v644
      %v756 = vpack.c.b16 %v647, %v646
      %v757 = vpack.c.b16 %v649, %v648
      %v758 = vpack.c.b16 %v651, %v650
      %v759 = vpack.c.b16 %v653, %v652
      %v760 = vpack.c.b16 %v655, %v654
      %v761 = vpack.c.b16 %v657, %v656
      %v762 = vpack.c.b16 %v659, %v658
      %v763 = vpack.c.b16 %v661, %v660
      %v764 = vpack.c.b16 %v663, %v662
      %v765 = vpack.c.b16 %v665, %v664
      %v766 = vpack.c.b16 %v667, %v666
      %v767 = vpack.c.b16 %v669, %v668
      %v768 = vpack.c.b16 %v671, %v670
      %v769 = vpack.c.b16 %v673, %v672
      %v770 = vpack.c.b16 %v675, %v674
      %v771 = vpack.c.b16 %v677, %v676
      %v772 = vpack.c.b16 %v679, %v678
      %v773 = vpack.c.b16 %v681, %v680
      %v774 = vpack.c.b16 %v683, %v682
      %v775 = vpack.c.b16 %v685, %v684
      %v776 = vpack.c.b16 %v687, %v686
      %v777 = vpack.c.b16 %v689, %v688
      %v778 = vpack.c.b16 %v691, %v690
      %v779 = vpack.c.b16 %v693, %v692
      %v780 = vpack.c.b16 %v695, %v694
      %v781 = vpack.c.b16 %v697, %v696
      %v782 = vpack.c.b16 %v699, %v698
      %v783 = vpack.c.b16 %v701, %v700
      %v784 = vpack.c.b16 %v703, %v702
      %v785 = vpack.c.b16 %v705, %v704
      %v786 = vpack.c.b16 %v707, %v706
      %v787 = vpack.c.b16 %v709, %v708
      %v788 = vpack.c.b16 %v711, %v710
      %v789 = vpack.c.b16 %v713, %v712
      %v790 = vpack.c.b16 %v715, %v714
      %v791 = vpack.c.b16 %v717, %v716
      %v792 = vpack.c.b16 %v719, %v718
      %v793 = vpack.c.b16 %v721, %v720
      %866 = vmatprep.subr.bf16.mxu0 0
      %867 = vmatpush1.bf16.msra.mxu0 %v722
      %868 = vmatprep.subr.bf16.mxu0 0
      %869 = vmatpush1.bf16.msra.mxu0 %v723
      %870 = vmatprep.subr.bf16.mxu0 0
      %871 = vmatpush1.bf16.msra.mxu0 %v724
      %872 = vmatprep.subr.bf16.mxu0 0
      %873 = vmatpush1.bf16.msra.mxu0 %v725
      %874 = vmatprep.subr.bf16.mxu0 0
      %875 = vmatpush1.bf16.msra.mxu0 %v726
      %876 = vmatprep.subr.bf16.mxu0 0
      %877 = vmatpush1.bf16.msra.mxu0 %v727
      %878 = vmatprep.subr.bf16.mxu0 0
      %879 = vmatpush1.bf16.msra.mxu0 %v728
      %880 = vmatprep.subr.bf16.mxu0 0
      %881 = vmatpush1.bf16.msra.mxu0 %v729
      %882 = vmatprep.subr.bf16.mxu0 0
      %883 = vmatpush1.bf16.msra.mxu0 %v730
      %884 = vmatprep.subr.bf16.mxu0 0
      %885 = vmatpush1.bf16.msra.mxu0 %v731
      %886 = vmatprep.subr.bf16.mxu0 0
      %887 = vmatpush1.bf16.msra.mxu0 %v732
      %888 = vmatprep.subr.bf16.mxu0 0
      %889 = vmatpush1.bf16.msra.mxu0 %v733
      %890 = vmatprep.subr.bf16.mxu0 0
      %891 = vmatpush1.bf16.msra.mxu0 %v734
      %892 = vmatprep.subr.bf16.mxu0 0
      %893 = vmatpush1.bf16.msra.mxu0 %v735
      %894 = vmatprep.subr.bf16.mxu0 0
      %895 = vmatpush1.bf16.msra.mxu0 %v736
      %896 = vmatprep.subr.bf16.mxu0 0
      %897 = vmatpush1.bf16.msra.mxu0 %v737
      %898 = vmatprep.mubr.bf16.mxu0 %v417
      %899 = vmatmul.mubr.bf16.gmra.mrb[0].mxu0 %v416
      %v900 = vpop.f32.mrb[0].mxu0
      %v901 = vadd.f32 %v386, %v900
      %v902 = vpop.f32.mrb[0].mxu0
      %v903 = vpop.f32.mrb[0].mxu0
      %v904 = vadd.f32 %v386, %v903
      %v905 = vpop.f32.mrb[0].mxu0
      %906 = vdwg.mxu0
      %907 = vmatprep.subr.bf16.mxu0 0
      %908 = vmatpush1.bf16.msra.mxu0 %v738
      %909 = vmatprep.subr.bf16.mxu0 0
      %910 = vmatpush1.bf16.msra.mxu0 %v739
      %911 = vmatprep.subr.bf16.mxu0 0
      %912 = vmatpush1.bf16.msra.mxu0 %v740
      %913 = vmatprep.subr.bf16.mxu0 0
      %914 = vmatpush1.bf16.msra.mxu0 %v741
      %915 = vmatprep.subr.bf16.mxu0 0
      %916 = vmatpush1.bf16.msra.mxu0 %v742
      %917 = vmatprep.subr.bf16.mxu0 0
      %918 = vmatpush1.bf16.msra.mxu0 %v743
      %919 = vmatprep.subr.bf16.mxu0 0
      %920 = vmatpush1.bf16.msra.mxu0 %v744
      %921 = vmatprep.subr.bf16.mxu0 0
      %922 = vmatpush1.bf16.msra.mxu0 %v745
      %923 = vmatprep.subr.bf16.mxu0 0
      %924 = vmatpush1.bf16.msra.mxu0 %v746
      %925 = vmatprep.subr.bf16.mxu0 0
      %926 = vmatpush1.bf16.msra.mxu0 %v747
      %927 = vmatprep.subr.bf16.mxu0 0
      %928 = vmatpush1.bf16.msra.mxu0 %v748
      %929 = vmatprep.subr.bf16.mxu0 0
      %930 = vmatpush1.bf16.msra.mxu0 %v749
      %931 = vmatprep.subr.bf16.mxu0 0
      %932 = vmatpush1.bf16.msra.mxu0 %v750
      %933 = vmatprep.subr.bf16.mxu0 0
      %934 = vmatpush1.bf16.msra.mxu0 %v751
      %935 = vmatprep.subr.bf16.mxu0 0
      %936 = vmatpush1.bf16.msra.mxu0 %v752
      %937 = vmatprep.subr.bf16.mxu0 0
      %938 = vmatpush1.bf16.msra.mxu0 %v753
      %939 = vmatprep.mubr.bf16.mxu0 %v419
      %940 = vmatmul.mubr.bf16.gmra.mrb[0].mxu0 %v418
      %v941 = vpop.f32.mrb[0].mxu0
      %v942 = vadd.f32 %v901, %v941
      %v943 = vpop.f32.mrb[0].mxu0
      %v944 = vpop.f32.mrb[0].mxu0
      %v945 = vadd.f32 %v904, %v944
      %v946 = vpop.f32.mrb[0].mxu0
      %947 = vdwg.mxu0
      %948 = vmatprep.subr.bf16.mxu0 0
      %949 = vmatpush1.bf16.msra.mxu0 %v754
      %950 = vmatprep.subr.bf16.mxu0 0
      %951 = vmatpush1.bf16.msra.mxu0 %v755
      %952 = vmatprep.subr.bf16.mxu0 0
      %953 = vmatpush1.bf16.msra.mxu0 %v756
      %954 = vmatprep.subr.bf16.mxu0 0
      %955 = vmatpush1.bf16.msra.mxu0 %v757
      %956 = vmatprep.subr.bf16.mxu0 0
      %957 = vmatpush1.bf16.msra.mxu0 %v758
      %958 = vmatprep.subr.bf16.mxu0 0
      %959 = vmatpush1.bf16.msra.mxu0 %v759
      %960 = vmatprep.subr.bf16.mxu0 0
      %961 = vmatpush1.bf16.msra.mxu0 %v760
      %962 = vmatprep.subr.bf16.mxu0 0
      %963 = vmatpush1.bf16.msra.mxu0 %v761
      %964 = vmatprep.subr.bf16.mxu0 0
      %965 = vmatpush1.bf16.msra.mxu0 %v762
      %966 = vmatprep.subr.bf16.mxu0 0
      %967 = vmatpush1.bf16.msra.mxu0 %v763
      %968 = vmatprep.subr.bf16.mxu0 0
      %969 = vmatpush1.bf16.msra.mxu0 %v764
      %970 = vmatprep.subr.bf16.mxu0 0
      %971 = vmatpush1.bf16.msra.mxu0 %v765
      %972 = vmatprep.subr.bf16.mxu0 0
      %973 = vmatpush1.bf16.msra.mxu0 %v766
      %974 = vmatprep.subr.bf16.mxu0 0
      %975 = vmatpush1.bf16.msra.mxu0 %v767
      %976 = vmatprep.subr.bf16.mxu0 0
      %977 = vmatpush1.bf16.msra.mxu0 %v768
      %978 = vmatprep.subr.bf16.mxu0 0
      %979 = vmatpush1.bf16.msra.mxu0 %v769
      %980 = vmatprep.mubr.bf16.mxu0 %v421
      %981 = vmatmul.mubr.bf16.gmra.mrb[0].mxu0 %v420
      %v982 = vpop.f32.mrb[0].mxu0
      %v983 = vadd.f32 %v942, %v982
      %v984 = vpop.f32.mrb[0].mxu0
      %v985 = vpop.f32.mrb[0].mxu0
      %v986 = vadd.f32 %v945, %v985
      %v987 = vpop.f32.mrb[0].mxu0
      %988 = vdwg.mxu0
      %989 = vmatprep.subr.bf16.mxu0 0
      %990 = vmatpush1.bf16.msra.mxu0 %v770
      %991 = vmatprep.subr.bf16.mxu0 0
      %992 = vmatpush1.bf16.msra.mxu0 %v771
      %993 = vmatprep.subr.bf16.mxu0 0
      %994 = vmatpush1.bf16.msra.mxu0 %v772
      %995 = vmatprep.subr.bf16.mxu0 0
      %996 = vmatpush1.bf16.msra.mxu0 %v773
      %997 = vmatprep.subr.bf16.mxu0 0
      %998 = vmatpush1.bf16.msra.mxu0 %v774
      %999 = vmatprep.subr.bf16.mxu0 0
      %1000 = vmatpush1.bf16.msra.mxu0 %v775
      %1001 = vmatprep.subr.bf16.mxu0 0
      %1002 = vmatpush1.bf16.msra.mxu0 %v776
      %1003 = vmatprep.subr.bf16.mxu0 0
      %1004 = vmatpush1.bf16.msra.mxu0 %v777
      %1005 = vmatprep.subr.bf16.mxu0 0
      %1006 = vmatpush1.bf16.msra.mxu0 %v778
      %1007 = vmatprep.subr.bf16.mxu0 0
      %1008 = vmatpush1.bf16.msra.mxu0 %v779
      %1009 = vmatprep.subr.bf16.mxu0 0
      %1010 = vmatpush1.bf16.msra.mxu0 %v780
      %1011 = vmatprep.subr.bf16.mxu0 0
      %1012 = vmatpush1.bf16.msra.mxu0 %v781
      %1013 = vmatprep.subr.bf16.mxu0 0
      %1014 = vmatpush1.bf16.msra.mxu0 %v782
      %1015 = vmatprep.subr.bf16.mxu0 0
      %1016 = vmatpush1.bf16.msra.mxu0 %v783
      %1017 = vmatprep.subr.bf16.mxu0 0
      %1018 = vmatpush1.bf16.msra.mxu0 %v784
      %1019 = vmatprep.subr.bf16.mxu0 0
      %1020 = vmatpush1.bf16.msra.mxu0 %v785
      %1021 = vmatprep.mubr.bf16.mxu0 %v423
      %1022 = vmatmul.mubr.bf16.gmra.mrb[0].mxu0 %v422
      %v1023 = vpop.f32.mrb[0].mxu0
      %v1024 = vadd.f32 %v983, %v1023
      %v1025 = vpop.f32.mrb[0].mxu0
      %v1026 = vpop.f32.mrb[0].mxu0
      %v1027 = vadd.f32 %v986, %v1026
      %v1028 = vpop.f32.mrb[0].mxu0
      %1029 = vdwg.mxu0
      %1030 = vmatprep.subr.bf16.mxu0 0
      %1031 = vmatpush1.bf16.msra.mxu0 %v786
      %1032 = vmatprep.subr.bf16.mxu0 0
      %1033 = vmatpush1.bf16.msra.mxu0 %v787
      %1034 = vmatprep.subr.bf16.mxu0 0
      %1035 = vmatpush1.bf16.msra.mxu0 %v788
      %1036 = vmatprep.subr.bf16.mxu0 0
      %1037 = vmatpush1.bf16.msra.mxu0 %v789
      %1038 = vmatprep.subr.bf16.mxu0 0
      %1039 = vmatpush1.bf16.msra.mxu0 %v790
      %1040 = vmatprep.subr.bf16.mxu0 0
      %1041 = vmatpush1.bf16.msra.mxu0 %v791
      %1042 = vmatprep.subr.bf16.mxu0 0
      %1043 = vmatpush1.bf16.msra.mxu0 %v792
      %1044 = vmatprep.subr.bf16.mxu0 0
      %1045 = vmatpush1.bf16.msra.mxu0 %v793
      %1046 = vmatprep.subr.bf16.mxu0 0
      %1047 = vmatpush1.bf16.msra.mxu0 0
      %1048 = vmatprep.subr.bf16.mxu0 0
      %1049 = vmatpush1.bf16.msra.mxu0 0
      %1050 = vmatprep.subr.bf16.mxu0 0
      %1051 = vmatpush1.bf16.msra.mxu0 0
      %1052 = vmatprep.subr.bf16.mxu0 0
      %1053 = vmatpush1.bf16.msra.mxu0 0
      %1054 = vmatprep.subr.bf16.mxu0 0
      %1055 = vmatpush1.bf16.msra.mxu0 0
      %1056 = vmatprep.subr.bf16.mxu0 0
      %1057 = vmatpush1.bf16.msra.mxu0 0
      %1058 = vmatprep.subr.bf16.mxu0 0
      %1059 = vmatpush1.bf16.msra.mxu0 0
      %1060 = vmatprep.subr.bf16.mxu0 0
      %1061 = vmatpush1.bf16.msra.mxu0 0
      %1062 = vmatprep.mubr.bf16.mxu0 0
      %1063 = vmatmul.mubr.bf16.gmra.mrb[0].mxu0 %v424
      %v1064 = vpop.f32.mrb[0].mxu0
      %v1065 = vadd.f32 %v1024, %v1064
      %v1066 = vpop.f32.mrb[0].mxu0
      %v1067 = vpop.f32.mrb[0].mxu0
      %v1068 = vadd.f32 %v1027, %v1067
      %v1069 = vpop.f32.mrb[0].mxu0
      %1070 = vdwg.mxu0
      %v1071 = vld [vmem:[%s218] sm:$0xf]
      %v1072 = vld [vmem:[%s218 + $0x4] sm:$0xf]
      %v1073 = vunpack.c.l.bf16 %v1071
      %v1074 = vunpack.c.l.bf16 %v1072
      %v1075 = vadd.f32 %v1065, %v1073
      %v1076 = vadd.f32 %v1068, %v1074
      %v1077 = vmax.f32 %v1075, 0.0
      %v1078 = vmax.f32 %v1076, 0.0
      %v1079 = vpack.c.bf16 %v1078, %v1077
      %v1081 = vunpack.c.l.b16 %v1079
      %v1082 = vunpack.c.h.b16 %v1079
      %v1083 = vpack.c.b16 %v1081, %v1081
      %v1084 = vpack.c.b16 %v1082, %v1082
      %1087 = vst [vmem:[%s224] sm:$0xf] %v1083
      %1088 = vst [vmem:[%s224 + $0x4] sm:$0xf] %v1084
      %s1089 = smul.u32 2, %s15
      %p1090 = scmp.lt.s32.totalorder %s1089, 3
      %s1091 = scalar_select %p1090, %s1089, 3
      %s1092 = smul.addr %s1091, 4
      %s1093 = scalar_lea.vmem %s4, %s1092
      // Predicated region
      $region37: #{_lambda_.29} parent=35 // pred_check
        %p1094 = pneg %p127
      $region38: #{_lambda_.29} parent=35 // pred_check_branch
        %1096 = sbr.rel (%p1094) target = $region40
      $region39: #{_lambda_.29} parent=35 // pred_region
        %s1097 = smul.u32 2, %s15
      $region40: #{_lambda_.29} parent=35 // pred_fallthru
        _
    $region36: #{_lambda_.29} parent=5 // pred_fallthru
      _
    %p1098 = scmp.le.s32.totalorder 2, %s10
    // Predicated region
    $region41: #{_lambda_.29} parent=5 // pred_check
      %p1099 = pneg %p1098
    $region42: #{_lambda_.29} parent=5 // pred_check_branch
      %1101 = sbr.rel (%p1099) target = $region44
    $region43: #{_lambda_.29} parent=5 // pred_region
      %s1102 = ssub.s32 %s10, 2
      // Predicated region
      $region45: #{_lambda_.29} parent=43 // pred_check
        %p1103 = pneg %p133
      $region46: #{_lambda_.29} parent=43 // pred_check_branch
        %1105 = sbr.rel (%p1103) target = $region48
      $region47: #{_lambda_.29} parent=43 // pred_region
        %s1106 = smul.u32 2, %s16
        %p1107 = scmp.lt.s32.totalorder %s1106, 3
        %s1108 = scalar_select %p1107, %s1106, 3
        %s1109 = smul.addr %s1108, 4
        %s1110 = scalar_lea.vmem %s4, %s1109
      $region48: #{_lambda_.29} parent=43 // pred_fallthru
        _
    $region44: #{_lambda_.29} parent=5 // pred_fallthru
      _
  $region6: #{_lambda_.29} parent=0 // loop_footer
    %s14 = sadd.s32 1, %s10
  $region7: #{_lambda_.29} parent=0 // loop_footer_branch
    %9 = sbr.rel target = $region3
  $region8: #{_lambda_.29} parent=0 // loop_exit
    _

// kernel: _lambda_.33
$region0: #{_lambda_.33}
  #allocation0 [shape = 'u32[]', space=smem, size = 0x4, offset = 0x4, fixed_abs, tag = 'smem constant byte address 0x4 - core index']
  #allocation1 [shape = 'u32[144,128]{1,0:T(1,128)}', space=vmem, size = 0x12000, scoped, tag = 'internal scratch']
  %s0 = inlined_call_operand.vmem [shape: bf16[8,1152], index: 0, kind: input, shape index: {}]
  %s1 = inlined_call_operand.vmem [shape: bf16[1152,128], index: 1, kind: input, shape index: {}]
  %s2 = inlined_call_operand.vmem [shape: f32[1,128], index: 2, kind: input, shape index: {}]
  %s3 = inlined_call_operand.vmem [shape: bf16[8,128], index: 3, kind: output, shape index: {}]
  %s4 = sld [smem:[#allocation0]]
  $region22: #{_lambda_.33} parent=0
    _
  %s6 = ssub.s32 1, %s4
  %s7 = scalar_select 0, %s6, %s4
  // Predicated region
  $region2: #{_lambda_.33} parent=0 // pred_check
    _
  $region3: #{_lambda_.33} parent=0 // pred_check_branch
    %9 = sbr.rel (0) target = $region5
  $region4: #{_lambda_.33} parent=0 // pred_region
    _
  $region5: #{_lambda_.33} parent=0 // pred_fallthru
    _
  // Predicated region
  $region6: #{_lambda_.33} parent=0 // pred_check
    _
  $region7: #{_lambda_.33} parent=0 // pred_check_branch
    %11 = sbr.rel (0) target = $region9
  $region8: #{_lambda_.33} parent=0 // pred_region
    _
  $region9: #{_lambda_.33} parent=0 // pred_fallthru
    _
  // Predicated region
  $region10: #{_lambda_.33} parent=0 // pred_check
    _
  $region11: #{_lambda_.33} parent=0 // pred_check_branch
    %13 = sbr.rel (0) target = $region13
  $region12: #{_lambda_.33} parent=0 // pred_region
    _
  $region13: #{_lambda_.33} parent=0 // pred_fallthru
    _
  %v15 = vld [vmem:[%s0] sm:$0xff]
  %v16 = vld [vmem:[%s0 + $0x8] sm:$0xff]
  %v17 = vld [vmem:[%s0 + $0x10] sm:$0xff]
  %v18 = vld [vmem:[%s0 + $0x18] sm:$0xff]
  %v19 = vld [vmem:[%s0 + $0x20] sm:$0xf]
  %v20 = vld [vmem:[%s1] sm:$0xf]
  %v21 = vld [vmem:[%s1 + $0x4] sm:$0xf]
  %v22 = vld [vmem:[%s1 + $0x8] sm:$0xf]
  %v23 = vld [vmem:[%s1 + $0xc] sm:$0xf]
  %v24 = vld [vmem:[%s1 + $0x10] sm:$0xf]
  %v25 = vld [vmem:[%s1 + $0x14] sm:$0xf]
  %v26 = vld [vmem:[%s1 + $0x18] sm:$0xf]
  %v27 = vld [vmem:[%s1 + $0x1c] sm:$0xf]
  %v28 = vld [vmem:[%s1 + $0x20] sm:$0xf]
  %v29 = vld [vmem:[%s1 + $0x24] sm:$0xf]
  %v30 = vld [vmem:[%s1 + $0x28] sm:$0xf]
  %v31 = vld [vmem:[%s1 + $0x2c] sm:$0xf]
  %v32 = vld [vmem:[%s1 + $0x30] sm:$0xf]
  %v33 = vld [vmem:[%s1 + $0x34] sm:$0xf]
  %v34 = vld [vmem:[%s1 + $0x38] sm:$0xf]
  %v35 = vld [vmem:[%s1 + $0x3c] sm:$0xf]
  %v36 = vld [vmem:[%s1 + $0x40] sm:$0xf]
  %v37 = vld [vmem:[%s1 + $0x44] sm:$0xf]
  %v38 = vld [vmem:[%s1 + $0x48] sm:$0xf]
  %v39 = vld [vmem:[%s1 + $0x4c] sm:$0xf]
  %v40 = vld [vmem:[%s1 + $0x50] sm:$0xf]
  %v41 = vld [vmem:[%s1 + $0x54] sm:$0xf]
  %v42 = vld [vmem:[%s1 + $0x58] sm:$0xf]
  %v43 = vld [vmem:[%s1 + $0x5c] sm:$0xf]
  %v44 = vld [vmem:[%s1 + $0x60] sm:$0xf]
  %v45 = vld [vmem:[%s1 + $0x64] sm:$0xf]
  %v46 = vld [vmem:[%s1 + $0x68] sm:$0xf]
  %v47 = vld [vmem:[%s1 + $0x6c] sm:$0xf]
  %v48 = vld [vmem:[%s1 + $0x70] sm:$0xf]
  %v49 = vld [vmem:[%s1 + $0x74] sm:$0xf]
  %v50 = vld [vmem:[%s1 + $0x78] sm:$0xf]
  %v51 = vld [vmem:[%s1 + $0x7c] sm:$0xf]
  %v52 = vld [vmem:[%s1 + $0x80] sm:$0xf]
  %v53 = vld [vmem:[%s1 + $0x84] sm:$0xf]
  %v54 = vld [vmem:[%s1 + $0x88] sm:$0xf]
  %v55 = vld [vmem:[%s1 + $0x8c] sm:$0xf]
  %v56 = vld [vmem:[%s1 + $0x90] sm:$0xf]
  %v57 = vld [vmem:[%s1 + $0x94] sm:$0xf]
  %v58 = vld [vmem:[%s1 + $0x98] sm:$0xf]
  %v59 = vld [vmem:[%s1 + $0x9c] sm:$0xf]
  %v60 = vld [vmem:[%s1 + $0xa0] sm:$0xf]
  %v61 = vld [vmem:[%s1 + $0xa4] sm:$0xf]
  %v62 = vld [vmem:[%s1 + $0xa8] sm:$0xf]
  %v63 = vld [vmem:[%s1 + $0xac] sm:$0xf]
  %v64 = vld [vmem:[%s1 + $0xb0] sm:$0xf]
  %v65 = vld [vmem:[%s1 + $0xb4] sm:$0xf]
  %v66 = vld [vmem:[%s1 + $0xb8] sm:$0xf]
  %v67 = vld [vmem:[%s1 + $0xbc] sm:$0xf]
  %v68 = vld [vmem:[%s1 + $0xc0] sm:$0xf]
  %v69 = vld [vmem:[%s1 + $0xc4] sm:$0xf]
  %v70 = vld [vmem:[%s1 + $0xc8] sm:$0xf]
  %v71 = vld [vmem:[%s1 + $0xcc] sm:$0xf]
  %v72 = vld [vmem:[%s1 + $0xd0] sm:$0xf]
  %v73 = vld [vmem:[%s1 + $0xd4] sm:$0xf]
  %v74 = vld [vmem:[%s1 + $0xd8] sm:$0xf]
  %v75 = vld [vmem:[%s1 + $0xdc] sm:$0xf]
  %v76 = vld [vmem:[%s1 + $0xe0] sm:$0xf]
  %v77 = vld [vmem:[%s1 + $0xe4] sm:$0xf]
  %v78 = vld [vmem:[%s1 + $0xe8] sm:$0xf]
  %v79 = vld [vmem:[%s1 + $0xec] sm:$0xf]
  %v80 = vld [vmem:[%s1 + $0xf0] sm:$0xf]
  %v81 = vld [vmem:[%s1 + $0xf4] sm:$0xf]
  %v82 = vld [vmem:[%s1 + $0xf8] sm:$0xf]
  %v83 = vld [vmem:[%s1 + $0xfc] sm:$0xf]
  %v84 = vld [vmem:[%s1 + $0x100] sm:$0xf]
  %v85 = vld [vmem:[%s1 + $0x104] sm:$0xf]
  %v86 = vld [vmem:[%s1 + $0x108] sm:$0xf]
  %v87 = vld [vmem:[%s1 + $0x10c] sm:$0xf]
  %v88 = vld [vmem:[%s1 + $0x110] sm:$0xf]
  %v89 = vld [vmem:[%s1 + $0x114] sm:$0xf]
  %v90 = vld [vmem:[%s1 + $0x118] sm:$0xf]
  %v91 = vld [vmem:[%s1 + $0x11c] sm:$0xf]
  %v92 = vld [vmem:[%s1 + $0x120] sm:$0xf]
  %v93 = vld [vmem:[%s1 + $0x124] sm:$0xf]
  %v94 = vld [vmem:[%s1 + $0x128] sm:$0xf]
  %v95 = vld [vmem:[%s1 + $0x12c] sm:$0xf]
  %v96 = vld [vmem:[%s1 + $0x130] sm:$0xf]
  %v97 = vld [vmem:[%s1 + $0x134] sm:$0xf]
  %v98 = vld [vmem:[%s1 + $0x138] sm:$0xf]
  %v99 = vld [vmem:[%s1 + $0x13c] sm:$0xf]
  %v100 = vld [vmem:[%s1 + $0x140] sm:$0xf]
  %v101 = vld [vmem:[%s1 + $0x144] sm:$0xf]
  %v102 = vld [vmem:[%s1 + $0x148] sm:$0xf]
  %v103 = vld [vmem:[%s1 + $0x14c] sm:$0xf]
  %v104 = vld [vmem:[%s1 + $0x150] sm:$0xf]
  %v105 = vld [vmem:[%s1 + $0x154] sm:$0xf]
  %v106 = vld [vmem:[%s1 + $0x158] sm:$0xf]
  %v107 = vld [vmem:[%s1 + $0x15c] sm:$0xf]
  %v108 = vld [vmem:[%s1 + $0x160] sm:$0xf]
  %v109 = vld [vmem:[%s1 + $0x164] sm:$0xf]
  %v110 = vld [vmem:[%s1 + $0x168] sm:$0xf]
  %v111 = vld [vmem:[%s1 + $0x16c] sm:$0xf]
  %v112 = vld [vmem:[%s1 + $0x170] sm:$0xf]
  %v113 = vld [vmem:[%s1 + $0x174] sm:$0xf]
  %v114 = vld [vmem:[%s1 + $0x178] sm:$0xf]
  %v115 = vld [vmem:[%s1 + $0x17c] sm:$0xf]
  %v116 = vld [vmem:[%s1 + $0x180] sm:$0xf]
  %v117 = vld [vmem:[%s1 + $0x184] sm:$0xf]
  %v118 = vld [vmem:[%s1 + $0x188] sm:$0xf]
  %v119 = vld [vmem:[%s1 + $0x18c] sm:$0xf]
  %v120 = vld [vmem:[%s1 + $0x190] sm:$0xf]
  %v121 = vld [vmem:[%s1 + $0x194] sm:$0xf]
  %v122 = vld [vmem:[%s1 + $0x198] sm:$0xf]
  %v123 = vld [vmem:[%s1 + $0x19c] sm:$0xf]
  %v124 = vld [vmem:[%s1 + $0x1a0] sm:$0xf]
  %v125 = vld [vmem:[%s1 + $0x1a4] sm:$0xf]
  %v126 = vld [vmem:[%s1 + $0x1a8] sm:$0xf]
  %v127 = vld [vmem:[%s1 + $0x1ac] sm:$0xf]
  %v128 = vld [vmem:[%s1 + $0x1b0] sm:$0xf]
  %v129 = vld [vmem:[%s1 + $0x1b4] sm:$0xf]
  %v130 = vld [vmem:[%s1 + $0x1b8] sm:$0xf]
  %v131 = vld [vmem:[%s1 + $0x1bc] sm:$0xf]
  %v132 = vld [vmem:[%s1 + $0x1c0] sm:$0xf]
  %v133 = vld [vmem:[%s1 + $0x1c4] sm:$0xf]
  %v134 = vld [vmem:[%s1 + $0x1c8] sm:$0xf]
  %v135 = vld [vmem:[%s1 + $0x1cc] sm:$0xf]
  %v136 = vld [vmem:[%s1 + $0x1d0] sm:$0xf]
  %v137 = vld [vmem:[%s1 + $0x1d4] sm:$0xf]
  %v138 = vld [vmem:[%s1 + $0x1d8] sm:$0xf]
  %v139 = vld [vmem:[%s1 + $0x1dc] sm:$0xf]
  %v140 = vld [vmem:[%s1 + $0x1e0] sm:$0xf]
  %v141 = vld [vmem:[%s1 + $0x1e4] sm:$0xf]
  %v142 = vld [vmem:[%s1 + $0x1e8] sm:$0xf]
  %v143 = vld [vmem:[%s1 + $0x1ec] sm:$0xf]
  %v144 = vld [vmem:[%s1 + $0x1f0] sm:$0xf]
  %v145 = vld [vmem:[%s1 + $0x1f4] sm:$0xf]
  %v146 = vld [vmem:[%s1 + $0x1f8] sm:$0xf]
  %v147 = vld [vmem:[%s1 + $0x1fc] sm:$0xf]
  %v148 = vld [vmem:[%s1 + $0x200] sm:$0xf]
  %v149 = vld [vmem:[%s1 + $0x204] sm:$0xf]
  %v150 = vld [vmem:[%s1 + $0x208] sm:$0xf]
  %v151 = vld [vmem:[%s1 + $0x20c] sm:$0xf]
  %v152 = vld [vmem:[%s1 + $0x210] sm:$0xf]
  %v153 = vld [vmem:[%s1 + $0x214] sm:$0xf]
  %v154 = vld [vmem:[%s1 + $0x218] sm:$0xf]
  %v155 = vld [vmem:[%s1 + $0x21c] sm:$0xf]
  %v156 = vld [vmem:[%s1 + $0x220] sm:$0xf]
  %v157 = vld [vmem:[%s1 + $0x224] sm:$0xf]
  %v158 = vld [vmem:[%s1 + $0x228] sm:$0xf]
  %v159 = vld [vmem:[%s1 + $0x22c] sm:$0xf]
  %v160 = vld [vmem:[%s1 + $0x230] sm:$0xf]
  %v161 = vld [vmem:[%s1 + $0x234] sm:$0xf]
  %v162 = vld [vmem:[%s1 + $0x238] sm:$0xf]
  %v163 = vld [vmem:[%s1 + $0x23c] sm:$0xf]
  %v164 = vld [vmem:[%s2] sm:$0x1]
  %v166 = vlaneseq
  %v167 = vshrl.u32 %v166, 7
  %v168 = vsub.s32 0, %v167
  %v169 = vrot.slane %v164, %v168
  %v176 = vunpack.c.l.b16 %v15
  %v177 = vunpack.c.h.b16 %v15
  %v178 = vunpack.c.l.b16 %v16
  %v179 = vunpack.c.h.b16 %v16
  %v180 = vunpack.c.l.b16 %v17
  %v181 = vunpack.c.h.b16 %v17
  %v182 = vunpack.c.l.b16 %v18
  %v183 = vunpack.c.h.b16 %v18
  %v184 = vunpack.c.l.b16 %v19
  %v185 = vpack.c.b16 %v176, %v176
  %v186 = vpack.c.b16 %v177, %v177
  %v187 = vpack.c.b16 %v178, %v178
  %v188 = vpack.c.b16 %v179, %v179
  %v189 = vpack.c.b16 %v180, %v180
  %v190 = vpack.c.b16 %v181, %v181
  %v191 = vpack.c.b16 %v182, %v182
  %v192 = vpack.c.b16 %v183, %v183
  %v193 = vpack.c.b16 %v184, %v184
  %v347 = vunpack.c.l.b16 %v20
  %v348 = vunpack.c.l.b16 %v21
  %v349 = vunpack.c.l.b16 %v22
  %v350 = vunpack.c.l.b16 %v23
  %v351 = vunpack.c.l.b16 %v24
  %v352 = vunpack.c.l.b16 %v25
  %v353 = vunpack.c.l.b16 %v26
  %v354 = vunpack.c.l.b16 %v27
  %v355 = vunpack.c.l.b16 %v28
  %v356 = vunpack.c.l.b16 %v29
  %v357 = vunpack.c.l.b16 %v30
  %v358 = vunpack.c.l.b16 %v31
  %v359 = vunpack.c.l.b16 %v32
  %v360 = vunpack.c.l.b16 %v33
  %v361 = vunpack.c.l.b16 %v34
  %v362 = vunpack.c.l.b16 %v35
  %v363 = vunpack.c.l.b16 %v36
  %v364 = vunpack.c.l.b16 %v37
  %v365 = vunpack.c.l.b16 %v38
  %v366 = vunpack.c.l.b16 %v39
  %v367 = vunpack.c.l.b16 %v40
  %v368 = vunpack.c.l.b16 %v41
  %v369 = vunpack.c.l.b16 %v42
  %v370 = vunpack.c.l.b16 %v43
  %v371 = vunpack.c.l.b16 %v44
  %v372 = vunpack.c.l.b16 %v45
  %v373 = vunpack.c.l.b16 %v46
  %v374 = vunpack.c.l.b16 %v47
  %v375 = vunpack.c.l.b16 %v48
  %v376 = vunpack.c.l.b16 %v49
  %v377 = vunpack.c.l.b16 %v50
  %v378 = vunpack.c.l.b16 %v51
  %v379 = vunpack.c.l.b16 %v52
  %v380 = vunpack.c.l.b16 %v53
  %v381 = vunpack.c.l.b16 %v54
  %v382 = vunpack.c.l.b16 %v55
  %v383 = vunpack.c.l.b16 %v56
  %v384 = vunpack.c.l.b16 %v57
  %v385 = vunpack.c.l.b16 %v58
  %v386 = vunpack.c.l.b16 %v59
  %v387 = vunpack.c.l.b16 %v60
  %v388 = vunpack.c.l.b16 %v61
  %v389 = vunpack.c.l.b16 %v62
  %v390 = vunpack.c.l.b16 %v63
  %v391 = vunpack.c.l.b16 %v64
  %v392 = vunpack.c.l.b16 %v65
  %v393 = vunpack.c.l.b16 %v66
  %v394 = vunpack.c.l.b16 %v67
  %v395 = vunpack.c.l.b16 %v68
  %v396 = vunpack.c.l.b16 %v69
  %v397 = vunpack.c.l.b16 %v70
  %v398 = vunpack.c.l.b16 %v71
  %v399 = vunpack.c.l.b16 %v72
  %v400 = vunpack.c.l.b16 %v73
  %v401 = vunpack.c.l.b16 %v74
  %v402 = vunpack.c.l.b16 %v75
  %v403 = vunpack.c.l.b16 %v76
  %v404 = vunpack.c.l.b16 %v77
  %v405 = vunpack.c.l.b16 %v78
  %v406 = vunpack.c.l.b16 %v79
  %v407 = vunpack.c.l.b16 %v80
  %v408 = vunpack.c.l.b16 %v81
  %v409 = vunpack.c.l.b16 %v82
  %v410 = vunpack.c.l.b16 %v83
  %v411 = vunpack.c.l.b16 %v84
  %v412 = vunpack.c.l.b16 %v85
  %v413 = vunpack.c.l.b16 %v86
  %v414 = vunpack.c.l.b16 %v87
  %v415 = vunpack.c.l.b16 %v88
  %v416 = vunpack.c.l.b16 %v89
  %v417 = vunpack.c.l.b16 %v90
  %v418 = vunpack.c.l.b16 %v91
  %v419 = vunpack.c.l.b16 %v92
  %v420 = vunpack.c.l.b16 %v93
  %v421 = vunpack.c.l.b16 %v94
  %v422 = vunpack.c.l.b16 %v95
  %v423 = vunpack.c.l.b16 %v96
  %v424 = vunpack.c.l.b16 %v97
  %v425 = vunpack.c.l.b16 %v98
  %v426 = vunpack.c.l.b16 %v99
  %v427 = vunpack.c.l.b16 %v100
  %v428 = vunpack.c.l.b16 %v101
  %v429 = vunpack.c.l.b16 %v102
  %v430 = vunpack.c.l.b16 %v103
  %v431 = vunpack.c.l.b16 %v104
  %v432 = vunpack.c.l.b16 %v105
  %v433 = vunpack.c.l.b16 %v106
  %v434 = vunpack.c.l.b16 %v107
  %v435 = vunpack.c.l.b16 %v108
  %v436 = vunpack.c.l.b16 %v109
  %v437 = vunpack.c.l.b16 %v110
  %v438 = vunpack.c.l.b16 %v111
  %v439 = vunpack.c.l.b16 %v112
  %v440 = vunpack.c.l.b16 %v113
  %v441 = vunpack.c.l.b16 %v114
  %v442 = vunpack.c.l.b16 %v115
  %v443 = vunpack.c.l.b16 %v116
  %v444 = vunpack.c.l.b16 %v117
  %v445 = vunpack.c.l.b16 %v118
  %v446 = vunpack.c.l.b16 %v119
  %v447 = vunpack.c.l.b16 %v120
  %v448 = vunpack.c.l.b16 %v121
  %v449 = vunpack.c.l.b16 %v122
  %v450 = vunpack.c.l.b16 %v123
  %v451 = vunpack.c.l.b16 %v124
  %v452 = vunpack.c.l.b16 %v125
  %v453 = vunpack.c.l.b16 %v126
  %v454 = vunpack.c.l.b16 %v127
  %v455 = vunpack.c.l.b16 %v128
  %v456 = vunpack.c.l.b16 %v129
  %v457 = vunpack.c.l.b16 %v130
  %v458 = vunpack.c.l.b16 %v131
  %v459 = vunpack.c.l.b16 %v132
  %v460 = vunpack.c.l.b16 %v133
  %v461 = vunpack.c.l.b16 %v134
  %v462 = vunpack.c.l.b16 %v135
  %v463 = vunpack.c.l.b16 %v136
  %v464 = vunpack.c.l.b16 %v137
  %v465 = vunpack.c.l.b16 %v138
  %v466 = vunpack.c.l.b16 %v139
  %v467 = vunpack.c.l.b16 %v140
  %v468 = vunpack.c.l.b16 %v141
  %v469 = vunpack.c.l.b16 %v142
  %v470 = vunpack.c.l.b16 %v143
  %v471 = vunpack.c.l.b16 %v144
  %v472 = vunpack.c.l.b16 %v145
  %v473 = vunpack.c.l.b16 %v146
  %v474 = vunpack.c.l.b16 %v147
  %v475 = vunpack.c.l.b16 %v148
  %v476 = vunpack.c.l.b16 %v149
  %v477 = vunpack.c.l.b16 %v150
  %v478 = vunpack.c.l.b16 %v151
  %v479 = vunpack.c.l.b16 %v152
  %v480 = vunpack.c.l.b16 %v153
  %v481 = vunpack.c.l.b16 %v154
  %v482 = vunpack.c.l.b16 %v155
  %v483 = vunpack.c.l.b16 %v156
  %v484 = vunpack.c.l.b16 %v157
  %v485 = vunpack.c.l.b16 %v158
  %v486 = vunpack.c.l.b16 %v159
  %v487 = vunpack.c.l.b16 %v160
  %v488 = vunpack.c.l.b16 %v161
  %v489 = vunpack.c.l.b16 %v162
  %v490 = vunpack.c.l.b16 %v163
  %v491 = vpack.c.b16 %v348, %v347
  %v492 = vpack.c.b16 %v350, %v349
  %v493 = vpack.c.b16 %v352, %v351
  %v494 = vpack.c.b16 %v354, %v353
  %v495 = vpack.c.b16 %v356, %v355
  %v496 = vpack.c.b16 %v358, %v357
  %v497 = vpack.c.b16 %v360, %v359
  %v498 = vpack.c.b16 %v362, %v361
  %v499 = vpack.c.b16 %v364, %v363
  %v500 = vpack.c.b16 %v366, %v365
  %v501 = vpack.c.b16 %v368, %v367
  %v502 = vpack.c.b16 %v370, %v369
  %v503 = vpack.c.b16 %v372, %v371
  %v504 = vpack.c.b16 %v374, %v373
  %v505 = vpack.c.b16 %v376, %v375
  %v506 = vpack.c.b16 %v378, %v377
  %v507 = vpack.c.b16 %v380, %v379
  %v508 = vpack.c.b16 %v382, %v381
  %v509 = vpack.c.b16 %v384, %v383
  %v510 = vpack.c.b16 %v386, %v385
  %v511 = vpack.c.b16 %v388, %v387
  %v512 = vpack.c.b16 %v390, %v389
  %v513 = vpack.c.b16 %v392, %v391
  %v514 = vpack.c.b16 %v394, %v393
  %v515 = vpack.c.b16 %v396, %v395
  %v516 = vpack.c.b16 %v398, %v397
  %v517 = vpack.c.b16 %v400, %v399
  %v518 = vpack.c.b16 %v402, %v401
  %v519 = vpack.c.b16 %v404, %v403
  %v520 = vpack.c.b16 %v406, %v405
  %v521 = vpack.c.b16 %v408, %v407
  %v522 = vpack.c.b16 %v410, %v409
  %v523 = vpack.c.b16 %v412, %v411
  %v524 = vpack.c.b16 %v414, %v413
  %v525 = vpack.c.b16 %v416, %v415
  %v526 = vpack.c.b16 %v418, %v417
  %v527 = vpack.c.b16 %v420, %v419
  %v528 = vpack.c.b16 %v422, %v421
  %v529 = vpack.c.b16 %v424, %v423
  %v530 = vpack.c.b16 %v426, %v425
  %v531 = vpack.c.b16 %v428, %v427
  %v532 = vpack.c.b16 %v430, %v429
  %v533 = vpack.c.b16 %v432, %v431
  %v534 = vpack.c.b16 %v434, %v433
  %v535 = vpack.c.b16 %v436, %v435
  %v536 = vpack.c.b16 %v438, %v437
  %v537 = vpack.c.b16 %v440, %v439
  %v538 = vpack.c.b16 %v442, %v441
  %v539 = vpack.c.b16 %v444, %v443
  %v540 = vpack.c.b16 %v446, %v445
  %v541 = vpack.c.b16 %v448, %v447
  %v542 = vpack.c.b16 %v450, %v449
  %v543 = vpack.c.b16 %v452, %v451
  %v544 = vpack.c.b16 %v454, %v453
  %v545 = vpack.c.b16 %v456, %v455
  %v546 = vpack.c.b16 %v458, %v457
  %v547 = vpack.c.b16 %v460, %v459
  %v548 = vpack.c.b16 %v462, %v461
  %v549 = vpack.c.b16 %v464, %v463
  %v550 = vpack.c.b16 %v466, %v465
  %v551 = vpack.c.b16 %v468, %v467
  %v552 = vpack.c.b16 %v470, %v469
  %v553 = vpack.c.b16 %v472, %v471
  %v554 = vpack.c.b16 %v474, %v473
  %v555 = vpack.c.b16 %v476, %v475
  %v556 = vpack.c.b16 %v478, %v477
  %v557 = vpack.c.b16 %v480, %v479
  %v558 = vpack.c.b16 %v482, %v481
  %v559 = vpack.c.b16 %v484, %v483
  %v560 = vpack.c.b16 %v486, %v485
  %v561 = vpack.c.b16 %v488, %v487
  %v562 = vpack.c.b16 %v490, %v489
  %635 = vmatprep.subr.bf16.mxu0 0
  %636 = vmatpush1.bf16.msra.mxu0 %v491
  %637 = vmatprep.subr.bf16.mxu0 0
  %638 = vmatpush1.bf16.msra.mxu0 %v492
  %639 = vmatprep.subr.bf16.mxu0 0
  %640 = vmatpush1.bf16.msra.mxu0 %v493
  %641 = vmatprep.subr.bf16.mxu0 0
  %642 = vmatpush1.bf16.msra.mxu0 %v494
  %643 = vmatprep.subr.bf16.mxu0 0
  %644 = vmatpush1.bf16.msra.mxu0 %v495
  %645 = vmatprep.subr.bf16.mxu0 0
  %646 = vmatpush1.bf16.msra.mxu0 %v496
  %647 = vmatprep.subr.bf16.mxu0 0
  %648 = vmatpush1.bf16.msra.mxu0 %v497
  %649 = vmatprep.subr.bf16.mxu0 0
  %650 = vmatpush1.bf16.msra.mxu0 %v498
  %651 = vmatprep.subr.bf16.mxu0 0
  %652 = vmatpush1.bf16.msra.mxu0 %v499
  %653 = vmatprep.subr.bf16.mxu0 0
  %654 = vmatpush1.bf16.msra.mxu0 %v500
  %655 = vmatprep.subr.bf16.mxu0 0
  %656 = vmatpush1.bf16.msra.mxu0 %v501
  %657 = vmatprep.subr.bf16.mxu0 0
  %658 = vmatpush1.bf16.msra.mxu0 %v502
  %659 = vmatprep.subr.bf16.mxu0 0
  %660 = vmatpush1.bf16.msra.mxu0 %v503
  %661 = vmatprep.subr.bf16.mxu0 0
  %662 = vmatpush1.bf16.msra.mxu0 %v504
  %663 = vmatprep.subr.bf16.mxu0 0
  %664 = vmatpush1.bf16.msra.mxu0 %v505
  %665 = vmatprep.subr.bf16.mxu0 0
  %666 = vmatpush1.bf16.msra.mxu0 %v506
  %667 = vmatprep.mubr.bf16.mxu0 %v186
  %668 = vmatmul.mubr.bf16.gmra.mrb[0].mxu0 %v185
  %v669 = vpop.f32.mrb[0].mxu0
  %v670 = vadd.f32 %v169, %v669
  %v671 = vpop.f32.mrb[0].mxu0
  %v672 = vpop.f32.mrb[0].mxu0
  %v673 = vpop.f32.mrb[0].mxu0
  %674 = vdwg.mxu0
  %675 = vmatprep.subr.bf16.mxu0 0
  %676 = vmatpush1.bf16.msra.mxu0 %v507
  %677 = vmatprep.subr.bf16.mxu0 0
  %678 = vmatpush1.bf16.msra.mxu0 %v508
  %679 = vmatprep.subr.bf16.mxu0 0
  %680 = vmatpush1.bf16.msra.mxu0 %v509
  %681 = vmatprep.subr.bf16.mxu0 0
  %682 = vmatpush1.bf16.msra.mxu0 %v510
  %683 = vmatprep.subr.bf16.mxu0 0
  %684 = vmatpush1.bf16.msra.mxu0 %v511
  %685 = vmatprep.subr.bf16.mxu0 0
  %686 = vmatpush1.bf16.msra.mxu0 %v512
  %687 = vmatprep.subr.bf16.mxu0 0
  %688 = vmatpush1.bf16.msra.mxu0 %v513
  %689 = vmatprep.subr.bf16.mxu0 0
  %690 = vmatpush1.bf16.msra.mxu0 %v514
  %691 = vmatprep.subr.bf16.mxu0 0
  %692 = vmatpush1.bf16.msra.mxu0 %v515
  %693 = vmatprep.subr.bf16.mxu0 0
  %694 = vmatpush1.bf16.msra.mxu0 %v516
  %695 = vmatprep.subr.bf16.mxu0 0
  %696 = vmatpush1.bf16.msra.mxu0 %v517
  %697 = vmatprep.subr.bf16.mxu0 0
  %698 = vmatpush1.bf16.msra.mxu0 %v518
  %699 = vmatprep.subr.bf16.mxu0 0
  %700 = vmatpush1.bf16.msra.mxu0 %v519
  %701 = vmatprep.subr.bf16.mxu0 0
  %702 = vmatpush1.bf16.msra.mxu0 %v520
  %703 = vmatprep.subr.bf16.mxu0 0
  %704 = vmatpush1.bf16.msra.mxu0 %v521
  %705 = vmatprep.subr.bf16.mxu0 0
  %706 = vmatpush1.bf16.msra.mxu0 %v522
  %707 = vmatprep.mubr.bf16.mxu0 %v188
  %708 = vmatmul.mubr.bf16.gmra.mrb[0].mxu0 %v187
  %v709 = vpop.f32.mrb[0].mxu0
  %v710 = vadd.f32 %v670, %v709
  %v711 = vpop.f32.mrb[0].mxu0
  %v712 = vpop.f32.mrb[0].mxu0
  %v713 = vpop.f32.mrb[0].mxu0
  %714 = vdwg.mxu0
  %715 = vmatprep.subr.bf16.mxu0 0
  %716 = vmatpush1.bf16.msra.mxu0 %v523
  %717 = vmatprep.subr.bf16.mxu0 0
  %718 = vmatpush1.bf16.msra.mxu0 %v524
  %719 = vmatprep.subr.bf16.mxu0 0
  %720 = vmatpush1.bf16.msra.mxu0 %v525
  %721 = vmatprep.subr.bf16.mxu0 0
  %722 = vmatpush1.bf16.msra.mxu0 %v526
  %723 = vmatprep.subr.bf16.mxu0 0
  %724 = vmatpush1.bf16.msra.mxu0 %v527
  %725 = vmatprep.subr.bf16.mxu0 0
  %726 = vmatpush1.bf16.msra.mxu0 %v528
  %727 = vmatprep.subr.bf16.mxu0 0
  %728 = vmatpush1.bf16.msra.mxu0 %v529
  %729 = vmatprep.subr.bf16.mxu0 0
  %730 = vmatpush1.bf16.msra.mxu0 %v530
  %731 = vmatprep.subr.bf16.mxu0 0
  %732 = vmatpush1.bf16.msra.mxu0 %v531
  %733 = vmatprep.subr.bf16.mxu0 0
  %734 = vmatpush1.bf16.msra.mxu0 %v532
  %735 = vmatprep.subr.bf16.mxu0 0
  %736 = vmatpush1.bf16.msra.mxu0 %v533
  %737 = vmatprep.subr.bf16.mxu0 0
  %738 = vmatpush1.bf16.msra.mxu0 %v534
  %739 = vmatprep.subr.bf16.mxu0 0
  %740 = vmatpush1.bf16.msra.mxu0 %v535
  %741 = vmatprep.subr.bf16.mxu0 0
  %742 = vmatpush1.bf16.msra.mxu0 %v536
  %743 = vmatprep.subr.bf16.mxu0 0
  %744 = vmatpush1.bf16.msra.mxu0 %v537
  %745 = vmatprep.subr.bf16.mxu0 0
  %746 = vmatpush1.bf16.msra.mxu0 %v538
  %747 = vmatprep.mubr.bf16.mxu0 %v190
  %748 = vmatmul.mubr.bf16.gmra.mrb[0].mxu0 %v189
  %v749 = vpop.f32.mrb[0].mxu0
  %v750 = vadd.f32 %v710, %v749
  %v751 = vpop.f32.mrb[0].mxu0
  %v752 = vpop.f32.mrb[0].mxu0
  %v753 = vpop.f32.mrb[0].mxu0
  %754 = vdwg.mxu0
  %755 = vmatprep.subr.bf16.mxu0 0
  %756 = vmatpush1.bf16.msra.mxu0 %v539
  %757 = vmatprep.subr.bf16.mxu0 0
  %758 = vmatpush1.bf16.msra.mxu0 %v540
  %759 = vmatprep.subr.bf16.mxu0 0
  %760 = vmatpush1.bf16.msra.mxu0 %v541
  %761 = vmatprep.subr.bf16.mxu0 0
  %762 = vmatpush1.bf16.msra.mxu0 %v542
  %763 = vmatprep.subr.bf16.mxu0 0
  %764 = vmatpush1.bf16.msra.mxu0 %v543
  %765 = vmatprep.subr.bf16.mxu0 0
  %766 = vmatpush1.bf16.msra.mxu0 %v544
  %767 = vmatprep.subr.bf16.mxu0 0
  %768 = vmatpush1.bf16.msra.mxu0 %v545
  %769 = vmatprep.subr.bf16.mxu0 0
  %770 = vmatpush1.bf16.msra.mxu0 %v546
  %771 = vmatprep.subr.bf16.mxu0 0
  %772 = vmatpush1.bf16.msra.mxu0 %v547
  %773 = vmatprep.subr.bf16.mxu0 0
  %774 = vmatpush1.bf16.msra.mxu0 %v548
  %775 = vmatprep.subr.bf16.mxu0 0
  %776 = vmatpush1.bf16.msra.mxu0 %v549
  %777 = vmatprep.subr.bf16.mxu0 0
  %778 = vmatpush1.bf16.msra.mxu0 %v550
  %779 = vmatprep.subr.bf16.mxu0 0
  %780 = vmatpush1.bf16.msra.mxu0 %v551
  %781 = vmatprep.subr.bf16.mxu0 0
  %782 = vmatpush1.bf16.msra.mxu0 %v552
  %783 = vmatprep.subr.bf16.mxu0 0
  %784 = vmatpush1.bf16.msra.mxu0 %v553
  %785 = vmatprep.subr.bf16.mxu0 0
  %786 = vmatpush1.bf16.msra.mxu0 %v554
  %787 = vmatprep.mubr.bf16.mxu0 %v192
  %788 = vmatmul.mubr.bf16.gmra.mrb[0].mxu0 %v191
  %v789 = vpop.f32.mrb[0].mxu0
  %v790 = vadd.f32 %v750, %v789
  %v791 = vpop.f32.mrb[0].mxu0
  %v792 = vpop.f32.mrb[0].mxu0
  %v793 = vpop.f32.mrb[0].mxu0
  %794 = vdwg.mxu0
  %795 = vmatprep.subr.bf16.mxu0 0
  %796 = vmatpush1.bf16.msra.mxu0 %v555
  %797 = vmatprep.subr.bf16.mxu0 0
  %798 = vmatpush1.bf16.msra.mxu0 %v556
  %799 = vmatprep.subr.bf16.mxu0 0
  %800 = vmatpush1.bf16.msra.mxu0 %v557
  %801 = vmatprep.subr.bf16.mxu0 0
  %802 = vmatpush1.bf16.msra.mxu0 %v558
  %803 = vmatprep.subr.bf16.mxu0 0
  %804 = vmatpush1.bf16.msra.mxu0 %v559
  %805 = vmatprep.subr.bf16.mxu0 0
  %806 = vmatpush1.bf16.msra.mxu0 %v560
  %807 = vmatprep.subr.bf16.mxu0 0
  %808 = vmatpush1.bf16.msra.mxu0 %v561
  %809 = vmatprep.subr.bf16.mxu0 0
  %810 = vmatpush1.bf16.msra.mxu0 %v562
  %811 = vmatprep.subr.bf16.mxu0 0
  %812 = vmatpush1.bf16.msra.mxu0 0
  %813 = vmatprep.subr.bf16.mxu0 0
  %814 = vmatpush1.bf16.msra.mxu0 0
  %815 = vmatprep.subr.bf16.mxu0 0
  %816 = vmatpush1.bf16.msra.mxu0 0
  %817 = vmatprep.subr.bf16.mxu0 0
  %818 = vmatpush1.bf16.msra.mxu0 0
  %819 = vmatprep.subr.bf16.mxu0 0
  %820 = vmatpush1.bf16.msra.mxu0 0
  %821 = vmatprep.subr.bf16.mxu0 0
  %822 = vmatpush1.bf16.msra.mxu0 0
  %823 = vmatprep.subr.bf16.mxu0 0
  %824 = vmatpush1.bf16.msra.mxu0 0
  %825 = vmatprep.subr.bf16.mxu0 0
  %826 = vmatpush1.bf16.msra.mxu0 0
  %827 = vmatprep.mubr.bf16.mxu0 0
  %828 = vmatmul.mubr.bf16.gmra.mrb[0].mxu0 %v193
  %v829 = vpop.f32.mrb[0].mxu0
  %v830 = vadd.f32 %v790, %v829
  %v831 = vpop.f32.mrb[0].mxu0
  %v832 = vpop.f32.mrb[0].mxu0
  %v833 = vpop.f32.mrb[0].mxu0
  %834 = vdwg.mxu0
  %v835 = vmax.f32 %v830, 0.0
  %v836 = vpack.c.bf16 %v835, %v835
  %837 = vst [vmem:[%s3] sm:$0xf] %v836
  // Predicated region
  $region14: #{_lambda_.33} parent=0 // pred_check
    _
  $region15: #{_lambda_.33} parent=0 // pred_check_branch
    %839 = sbr.rel (0) target = $region17
  $region16: #{_lambda_.33} parent=0 // pred_region
    _
  $region17: #{_lambda_.33} parent=0 // pred_fallthru
    _
  // Predicated region
  $region18: #{_lambda_.33} parent=0 // pred_check
    _
  $region19: #{_lambda_.33} parent=0 // pred_check_branch
    %841 = sbr.rel (0) target = $region21
  $region20: #{_lambda_.33} parent=0 // pred_region
    _
  $region21: #{_lambda_.33} parent=0 // pred_fallthru
    _

// kernel: _lambda_.32
$region0: #{_lambda_.32}
  #allocation0 [shape = 'u32[]', space=smem, size = 0x4, offset = 0x4, fixed_abs, tag = 'smem constant byte address 0x4 - core index']
  #allocation1 [shape = 'u32[144,128]{1,0:T(1,128)}', space=vmem, size = 0x12000, scoped, tag = 'internal scratch']
  %s0 = inlined_call_operand.vmem [shape: bf16[8,128], index: 0, kind: input, shape index: {}]
  %s1 = inlined_call_operand.vmem [shape: bf16[128,128], index: 1, kind: input, shape index: {}]
  %s2 = inlined_call_operand.vmem [shape: f32[1,128], index: 2, kind: input, shape index: {}]
  %s3 = inlined_call_operand.vmem [shape: bf16[8,128], index: 3, kind: output, shape index: {}]
  %s4 = sld [smem:[#allocation0]]
  $region22: #{_lambda_.32} parent=0
    _
  %s6 = ssub.s32 1, %s4
  %s7 = scalar_select 0, %s6, %s4
  // Predicated region
  $region2: #{_lambda_.32} parent=0 // pred_check
    _
  $region3: #{_lambda_.32} parent=0 // pred_check_branch
    %9 = sbr.rel (0) target = $region5
  $region4: #{_lambda_.32} parent=0 // pred_region
    _
  $region5: #{_lambda_.32} parent=0 // pred_fallthru
    _
  // Predicated region
  $region6: #{_lambda_.32} parent=0 // pred_check
    _
  $region7: #{_lambda_.32} parent=0 // pred_check_branch
    %11 = sbr.rel (0) target = $region9
  $region8: #{_lambda_.32} parent=0 // pred_region
    _
  $region9: #{_lambda_.32} parent=0 // pred_fallthru
    _
  // Predicated region
  $region10: #{_lambda_.32} parent=0 // pred_check
    _
  $region11: #{_lambda_.32} parent=0 // pred_check_branch
    %13 = sbr.rel (0) target = $region13
  $region12: #{_lambda_.32} parent=0 // pred_region
    _
  $region13: #{_lambda_.32} parent=0 // pred_fallthru
    _
  %v15 = vld [vmem:[%s0] sm:$0xf]
  %v16 = vld [vmem:[%s1] sm:$0xf]
  %v17 = vld [vmem:[%s1 + $0x4] sm:$0xf]
  %v18 = vld [vmem:[%s1 + $0x8] sm:$0xf]
  %v19 = vld [vmem:[%s1 + $0xc] sm:$0xf]
  %v20 = vld [vmem:[%s1 + $0x10] sm:$0xf]
  %v21 = vld [vmem:[%s1 + $0x14] sm:$0xf]
  %v22 = vld [vmem:[%s1 + $0x18] sm:$0xf]
  %v23 = vld [vmem:[%s1 + $0x1c] sm:$0xf]
  %v24 = vld [vmem:[%s1 + $0x20] sm:$0xf]
  %v25 = vld [vmem:[%s1 + $0x24] sm:$0xf]
  %v26 = vld [vmem:[%s1 + $0x28] sm:$0xf]
  %v27 = vld [vmem:[%s1 + $0x2c] sm:$0xf]
  %v28 = vld [vmem:[%s1 + $0x30] sm:$0xf]
  %v29 = vld [vmem:[%s1 + $0x34] sm:$0xf]
  %v30 = vld [vmem:[%s1 + $0x38] sm:$0xf]
  %v31 = vld [vmem:[%s1 + $0x3c] sm:$0xf]
  %v32 = vld [vmem:[%s2] sm:$0x1]
  %v34 = vlaneseq
  %v35 = vshrl.u32 %v34, 7
  %v36 = vsub.s32 0, %v35
  %v37 = vrot.slane %v32, %v36
  %v55 = vunpack.c.l.b16 %v16
  %v56 = vunpack.c.l.b16 %v17
  %v57 = vunpack.c.l.b16 %v18
  %v58 = vunpack.c.l.b16 %v19
  %v59 = vunpack.c.l.b16 %v20
  %v60 = vunpack.c.l.b16 %v21
  %v61 = vunpack.c.l.b16 %v22
  %v62 = vunpack.c.l.b16 %v23
  %v63 = vunpack.c.l.b16 %v24
  %v64 = vunpack.c.l.b16 %v25
  %v65 = vunpack.c.l.b16 %v26
  %v66 = vunpack.c.l.b16 %v27
  %v67 = vunpack.c.l.b16 %v28
  %v68 = vunpack.c.l.b16 %v29
  %v69 = vunpack.c.l.b16 %v30
  %v70 = vunpack.c.l.b16 %v31
  %v71 = vpack.c.b16 %v56, %v55
  %v72 = vpack.c.b16 %v58, %v57
  %v73 = vpack.c.b16 %v60, %v59
  %v74 = vpack.c.b16 %v62, %v61
  %v75 = vpack.c.b16 %v64, %v63
  %v76 = vpack.c.b16 %v66, %v65
  %v77 = vpack.c.b16 %v68, %v67
  %v78 = vpack.c.b16 %v70, %v69
  %87 = vmatprep.subr.bf16.mxu0 0
  %88 = vmatpush1.bf16.msra.mxu0 %v71
  %89 = vmatprep.subr.bf16.mxu0 0
  %90 = vmatpush1.bf16.msra.mxu0 %v72
  %91 = vmatprep.subr.bf16.mxu0 0
  %92 = vmatpush1.bf16.msra.mxu0 %v73
  %93 = vmatprep.subr.bf16.mxu0 0
  %94 = vmatpush1.bf16.msra.mxu0 %v74
  %95 = vmatprep.subr.bf16.mxu0 0
  %96 = vmatpush1.bf16.msra.mxu0 %v75
  %97 = vmatprep.subr.bf16.mxu0 0
  %98 = vmatpush1.bf16.msra.mxu0 %v76
  %99 = vmatprep.subr.bf16.mxu0 0
  %100 = vmatpush1.bf16.msra.mxu0 %v77
  %101 = vmatprep.subr.bf16.mxu0 0
  %102 = vmatpush1.bf16.msra.mxu0 %v78
  %103 = vmatprep.subr.bf16.mxu0 0
  %104 = vmatpush1.bf16.msra.mxu0 0
  %105 = vmatprep.subr.bf16.mxu0 0
  %106 = vmatpush1.bf16.msra.mxu0 0
  %107 = vmatprep.subr.bf16.mxu0 0
  %108 = vmatpush1.bf16.msra.mxu0 0
  %109 = vmatprep.subr.bf16.mxu0 0
  %110 = vmatpush1.bf16.msra.mxu0 0
  %111 = vmatprep.subr.bf16.mxu0 0
  %112 = vmatpush1.bf16.msra.mxu0 0
  %113 = vmatprep.subr.bf16.mxu0 0
  %114 = vmatpush1.bf16.msra.mxu0 0
  %115 = vmatprep.subr.bf16.mxu0 0
  %116 = vmatpush1.bf16.msra.mxu0 0
  %117 = vmatprep.subr.bf16.mxu0 0
  %118 = vmatpush1.bf16.msra.mxu0 0
  %119 = vmatprep.mubr.bf16.mxu0 0
  %120 = vmatmul.mubr.bf16.gmra.mrb[0].mxu0 %v15
  %v121 = vpop.f32.mrb[0].mxu0
  %v122 = vadd.f32 %v37, %v121
  %v123 = vpop.f32.mrb[0].mxu0
  %v124 = vpop.f32.mrb[0].mxu0
  %v125 = vpop.f32.mrb[0].mxu0
  %126 = vdwg.mxu0
  %v127 = vpack.c.bf16 %v122, %v122
  %128 = vst [vmem:[%s3] sm:$0xf] %v127
  // Predicated region
  $region14: #{_lambda_.32} parent=0 // pred_check
    _
  $region15: #{_lambda_.32} parent=0 // pred_check_branch
    %130 = sbr.rel (0) target = $region17
  $region16: #{_lambda_.32} parent=0 // pred_region
    _
  $region17: #{_lambda_.32} parent=0 // pred_fallthru
    _
  // Predicated region
  $region18: #{_lambda_.32} parent=0 // pred_check
    _
  $region19: #{_lambda_.32} parent=0 // pred_check_branch
    %132 = sbr.rel (0) target = $region21
  $region20: #{_lambda_.32} parent=0 // pred_region
    _
  $region21: #{_lambda_.32} parent=0 // pred_fallthru
    _

// kernel: _lambda_.34
$region0: #{_lambda_.34}
  #allocation0 [shape = 'u32[]', space=smem, size = 0x4, offset = 0x4, fixed_abs, tag = 'smem constant byte address 0x4 - core index']
  #allocation1 [shape = 'u32[144,128]{1,0:T(1,128)}', space=vmem, size = 0x12000, scoped, tag = 'internal scratch']
  %s0 = inlined_call_operand.vmem [shape: bf16[8,1152], index: 0, kind: input, shape index: {}]
  %s1 = inlined_call_operand.vmem [shape: bf16[1152,128], index: 1, kind: input, shape index: {}]
  %s2 = inlined_call_operand.vmem [shape: f32[1,128], index: 2, kind: input, shape index: {}]
  %s3 = inlined_call_operand.vmem [shape: bf16[8,128], index: 3, kind: input, shape index: {}]
  %s4 = inlined_call_operand.vmem [shape: bf16[8,128], index: 4, kind: output, shape index: {}]
  %s5 = sld [smem:[#allocation0]]
  $region26: #{_lambda_.34} parent=0
    _
  %s7 = ssub.s32 1, %s5
  %s8 = scalar_select 0, %s7, %s5
  // Predicated region
  $region2: #{_lambda_.34} parent=0 // pred_check
    _
  $region3: #{_lambda_.34} parent=0 // pred_check_branch
    %10 = sbr.rel (0) target = $region5
  $region4: #{_lambda_.34} parent=0 // pred_region
    _
  $region5: #{_lambda_.34} parent=0 // pred_fallthru
    _
  // Predicated region
  $region6: #{_lambda_.34} parent=0 // pred_check
    _
  $region7: #{_lambda_.34} parent=0 // pred_check_branch
    %12 = sbr.rel (0) target = $region9
  $region8: #{_lambda_.34} parent=0 // pred_region
    _
  $region9: #{_lambda_.34} parent=0 // pred_fallthru
    _
  // Predicated region
  $region10: #{_lambda_.34} parent=0 // pred_check
    _
  $region11: #{_lambda_.34} parent=0 // pred_check_branch
    %14 = sbr.rel (0) target = $region13
  $region12: #{_lambda_.34} parent=0 // pred_region
    _
  $region13: #{_lambda_.34} parent=0 // pred_fallthru
    _
  // Predicated region
  $region14: #{_lambda_.34} parent=0 // pred_check
    _
  $region15: #{_lambda_.34} parent=0 // pred_check_branch
    %16 = sbr.rel (0) target = $region17
  $region16: #{_lambda_.34} parent=0 // pred_region
    _
  $region17: #{_lambda_.34} parent=0 // pred_fallthru
    _
  %v18 = vld [vmem:[%s0] sm:$0xff]
  %v19 = vld [vmem:[%s0 + $0x8] sm:$0xff]
  %v20 = vld [vmem:[%s0 + $0x10] sm:$0xff]
  %v21 = vld [vmem:[%s0 + $0x18] sm:$0xff]
  %v22 = vld [vmem:[%s0 + $0x20] sm:$0xf]
  %v23 = vld [vmem:[%s1] sm:$0xf]
  %v24 = vld [vmem:[%s1 + $0x4] sm:$0xf]
  %v25 = vld [vmem:[%s1 + $0x8] sm:$0xf]
  %v26 = vld [vmem:[%s1 + $0xc] sm:$0xf]
  %v27 = vld [vmem:[%s1 + $0x10] sm:$0xf]
  %v28 = vld [vmem:[%s1 + $0x14] sm:$0xf]
  %v29 = vld [vmem:[%s1 + $0x18] sm:$0xf]
  %v30 = vld [vmem:[%s1 + $0x1c] sm:$0xf]
  %v31 = vld [vmem:[%s1 + $0x20] sm:$0xf]
  %v32 = vld [vmem:[%s1 + $0x24] sm:$0xf]
  %v33 = vld [vmem:[%s1 + $0x28] sm:$0xf]
  %v34 = vld [vmem:[%s1 + $0x2c] sm:$0xf]
  %v35 = vld [vmem:[%s1 + $0x30] sm:$0xf]
  %v36 = vld [vmem:[%s1 + $0x34] sm:$0xf]
  %v37 = vld [vmem:[%s1 + $0x38] sm:$0xf]
  %v38 = vld [vmem:[%s1 + $0x3c] sm:$0xf]
  %v39 = vld [vmem:[%s1 + $0x40] sm:$0xf]
  %v40 = vld [vmem:[%s1 + $0x44] sm:$0xf]
  %v41 = vld [vmem:[%s1 + $0x48] sm:$0xf]
  %v42 = vld [vmem:[%s1 + $0x4c] sm:$0xf]
  %v43 = vld [vmem:[%s1 + $0x50] sm:$0xf]
  %v44 = vld [vmem:[%s1 + $0x54] sm:$0xf]
  %v45 = vld [vmem:[%s1 + $0x58] sm:$0xf]
  %v46 = vld [vmem:[%s1 + $0x5c] sm:$0xf]
  %v47 = vld [vmem:[%s1 + $0x60] sm:$0xf]
  %v48 = vld [vmem:[%s1 + $0x64] sm:$0xf]
  %v49 = vld [vmem:[%s1 + $0x68] sm:$0xf]
  %v50 = vld [vmem:[%s1 + $0x6c] sm:$0xf]
  %v51 = vld [vmem:[%s1 + $0x70] sm:$0xf]
  %v52 = vld [vmem:[%s1 + $0x74] sm:$0xf]
  %v53 = vld [vmem:[%s1 + $0x78] sm:$0xf]
  %v54 = vld [vmem:[%s1 + $0x7c] sm:$0xf]
  %v55 = vld [vmem:[%s1 + $0x80] sm:$0xf]
  %v56 = vld [vmem:[%s1 + $0x84] sm:$0xf]
  %v57 = vld [vmem:[%s1 + $0x88] sm:$0xf]
  %v58 = vld [vmem:[%s1 + $0x8c] sm:$0xf]
  %v59 = vld [vmem:[%s1 + $0x90] sm:$0xf]
  %v60 = vld [vmem:[%s1 + $0x94] sm:$0xf]
  %v61 = vld [vmem:[%s1 + $0x98] sm:$0xf]
  %v62 = vld [vmem:[%s1 + $0x9c] sm:$0xf]
  %v63 = vld [vmem:[%s1 + $0xa0] sm:$0xf]
  %v64 = vld [vmem:[%s1 + $0xa4] sm:$0xf]
  %v65 = vld [vmem:[%s1 + $0xa8] sm:$0xf]
  %v66 = vld [vmem:[%s1 + $0xac] sm:$0xf]
  %v67 = vld [vmem:[%s1 + $0xb0] sm:$0xf]
  %v68 = vld [vmem:[%s1 + $0xb4] sm:$0xf]
  %v69 = vld [vmem:[%s1 + $0xb8] sm:$0xf]
  %v70 = vld [vmem:[%s1 + $0xbc] sm:$0xf]
  %v71 = vld [vmem:[%s1 + $0xc0] sm:$0xf]
  %v72 = vld [vmem:[%s1 + $0xc4] sm:$0xf]
  %v73 = vld [vmem:[%s1 + $0xc8] sm:$0xf]
  %v74 = vld [vmem:[%s1 + $0xcc] sm:$0xf]
  %v75 = vld [vmem:[%s1 + $0xd0] sm:$0xf]
  %v76 = vld [vmem:[%s1 + $0xd4] sm:$0xf]
  %v77 = vld [vmem:[%s1 + $0xd8] sm:$0xf]
  %v78 = vld [vmem:[%s1 + $0xdc] sm:$0xf]
  %v79 = vld [vmem:[%s1 + $0xe0] sm:$0xf]
  %v80 = vld [vmem:[%s1 + $0xe4] sm:$0xf]
  %v81 = vld [vmem:[%s1 + $0xe8] sm:$0xf]
  %v82 = vld [vmem:[%s1 + $0xec] sm:$0xf]
  %v83 = vld [vmem:[%s1 + $0xf0] sm:$0xf]
  %v84 = vld [vmem:[%s1 + $0xf4] sm:$0xf]
  %v85 = vld [vmem:[%s1 + $0xf8] sm:$0xf]
  %v86 = vld [vmem:[%s1 + $0xfc] sm:$0xf]
  %v87 = vld [vmem:[%s1 + $0x100] sm:$0xf]
  %v88 = vld [vmem:[%s1 + $0x104] sm:$0xf]
  %v89 = vld [vmem:[%s1 + $0x108] sm:$0xf]
  %v90 = vld [vmem:[%s1 + $0x10c] sm:$0xf]
  %v91 = vld [vmem:[%s1 + $0x110] sm:$0xf]
  %v92 = vld [vmem:[%s1 + $0x114] sm:$0xf]
  %v93 = vld [vmem:[%s1 + $0x118] sm:$0xf]
  %v94 = vld [vmem:[%s1 + $0x11c] sm:$0xf]
  %v95 = vld [vmem:[%s1 + $0x120] sm:$0xf]
  %v96 = vld [vmem:[%s1 + $0x124] sm:$0xf]
  %v97 = vld [vmem:[%s1 + $0x128] sm:$0xf]
  %v98 = vld [vmem:[%s1 + $0x12c] sm:$0xf]
  %v99 = vld [vmem:[%s1 + $0x130] sm:$0xf]
  %v100 = vld [vmem:[%s1 + $0x134] sm:$0xf]
  %v101 = vld [vmem:[%s1 + $0x138] sm:$0xf]
  %v102 = vld [vmem:[%s1 + $0x13c] sm:$0xf]
  %v103 = vld [vmem:[%s1 + $0x140] sm:$0xf]
  %v104 = vld [vmem:[%s1 + $0x144] sm:$0xf]
  %v105 = vld [vmem:[%s1 + $0x148] sm:$0xf]
  %v106 = vld [vmem:[%s1 + $0x14c] sm:$0xf]
  %v107 = vld [vmem:[%s1 + $0x150] sm:$0xf]
  %v108 = vld [vmem:[%s1 + $0x154] sm:$0xf]
  %v109 = vld [vmem:[%s1 + $0x158] sm:$0xf]
  %v110 = vld [vmem:[%s1 + $0x15c] sm:$0xf]
  %v111 = vld [vmem:[%s1 + $0x160] sm:$0xf]
  %v112 = vld [vmem:[%s1 + $0x164] sm:$0xf]
  %v113 = vld [vmem:[%s1 + $0x168] sm:$0xf]
  %v114 = vld [vmem:[%s1 + $0x16c] sm:$0xf]
  %v115 = vld [vmem:[%s1 + $0x170] sm:$0xf]
  %v116 = vld [vmem:[%s1 + $0x174] sm:$0xf]
  %v117 = vld [vmem:[%s1 + $0x178] sm:$0xf]
  %v118 = vld [vmem:[%s1 + $0x17c] sm:$0xf]
  %v119 = vld [vmem:[%s1 + $0x180] sm:$0xf]
  %v120 = vld [vmem:[%s1 + $0x184] sm:$0xf]
  %v121 = vld [vmem:[%s1 + $0x188] sm:$0xf]
  %v122 = vld [vmem:[%s1 + $0x18c] sm:$0xf]
  %v123 = vld [vmem:[%s1 + $0x190] sm:$0xf]
  %v124 = vld [vmem:[%s1 + $0x194] sm:$0xf]
  %v125 = vld [vmem:[%s1 + $0x198] sm:$0xf]
  %v126 = vld [vmem:[%s1 + $0x19c] sm:$0xf]
  %v127 = vld [vmem:[%s1 + $0x1a0] sm:$0xf]
  %v128 = vld [vmem:[%s1 + $0x1a4] sm:$0xf]
  %v129 = vld [vmem:[%s1 + $0x1a8] sm:$0xf]
  %v130 = vld [vmem:[%s1 + $0x1ac] sm:$0xf]
  %v131 = vld [vmem:[%s1 + $0x1b0] sm:$0xf]
  %v132 = vld [vmem:[%s1 + $0x1b4] sm:$0xf]
  %v133 = vld [vmem:[%s1 + $0x1b8] sm:$0xf]
  %v134 = vld [vmem:[%s1 + $0x1bc] sm:$0xf]
  %v135 = vld [vmem:[%s1 + $0x1c0] sm:$0xf]
  %v136 = vld [vmem:[%s1 + $0x1c4] sm:$0xf]
  %v137 = vld [vmem:[%s1 + $0x1c8] sm:$0xf]
  %v138 = vld [vmem:[%s1 + $0x1cc] sm:$0xf]
  %v139 = vld [vmem:[%s1 + $0x1d0] sm:$0xf]
  %v140 = vld [vmem:[%s1 + $0x1d4] sm:$0xf]
  %v141 = vld [vmem:[%s1 + $0x1d8] sm:$0xf]
  %v142 = vld [vmem:[%s1 + $0x1dc] sm:$0xf]
  %v143 = vld [vmem:[%s1 + $0x1e0] sm:$0xf]
  %v144 = vld [vmem:[%s1 + $0x1e4] sm:$0xf]
  %v145 = vld [vmem:[%s1 + $0x1e8] sm:$0xf]
  %v146 = vld [vmem:[%s1 + $0x1ec] sm:$0xf]
  %v147 = vld [vmem:[%s1 + $0x1f0] sm:$0xf]
  %v148 = vld [vmem:[%s1 + $0x1f4] sm:$0xf]
  %v149 = vld [vmem:[%s1 + $0x1f8] sm:$0xf]
  %v150 = vld [vmem:[%s1 + $0x1fc] sm:$0xf]
  %v151 = vld [vmem:[%s1 + $0x200] sm:$0xf]
  %v152 = vld [vmem:[%s1 + $0x204] sm:$0xf]
  %v153 = vld [vmem:[%s1 + $0x208] sm:$0xf]
  %v154 = vld [vmem:[%s1 + $0x20c] sm:$0xf]
  %v155 = vld [vmem:[%s1 + $0x210] sm:$0xf]
  %v156 = vld [vmem:[%s1 + $0x214] sm:$0xf]
  %v157 = vld [vmem:[%s1 + $0x218] sm:$0xf]
  %v158 = vld [vmem:[%s1 + $0x21c] sm:$0xf]
  %v159 = vld [vmem:[%s1 + $0x220] sm:$0xf]
  %v160 = vld [vmem:[%s1 + $0x224] sm:$0xf]
  %v161 = vld [vmem:[%s1 + $0x228] sm:$0xf]
  %v162 = vld [vmem:[%s1 + $0x22c] sm:$0xf]
  %v163 = vld [vmem:[%s1 + $0x230] sm:$0xf]
  %v164 = vld [vmem:[%s1 + $0x234] sm:$0xf]
  %v165 = vld [vmem:[%s1 + $0x238] sm:$0xf]
  %v166 = vld [vmem:[%s1 + $0x23c] sm:$0xf]
  %v167 = vld [vmem:[%s2] sm:$0x1]
  %v169 = vlaneseq
  %v170 = vshrl.u32 %v169, 7
  %v171 = vsub.s32 0, %v170
  %v172 = vrot.slane %v167, %v171
  %v179 = vunpack.c.l.b16 %v18
  %v180 = vunpack.c.h.b16 %v18
  %v181 = vunpack.c.l.b16 %v19
  %v182 = vunpack.c.h.b16 %v19
  %v183 = vunpack.c.l.b16 %v20
  %v184 = vunpack.c.h.b16 %v20
  %v185 = vunpack.c.l.b16 %v21
  %v186 = vunpack.c.h.b16 %v21
  %v187 = vunpack.c.l.b16 %v22
  %v188 = vpack.c.b16 %v179, %v179
  %v189 = vpack.c.b16 %v180, %v180
  %v190 = vpack.c.b16 %v181, %v181
  %v191 = vpack.c.b16 %v182, %v182
  %v192 = vpack.c.b16 %v183, %v183
  %v193 = vpack.c.b16 %v184, %v184
  %v194 = vpack.c.b16 %v185, %v185
  %v195 = vpack.c.b16 %v186, %v186
  %v196 = vpack.c.b16 %v187, %v187
  %v350 = vunpack.c.l.b16 %v23
  %v351 = vunpack.c.l.b16 %v24
  %v352 = vunpack.c.l.b16 %v25
  %v353 = vunpack.c.l.b16 %v26
  %v354 = vunpack.c.l.b16 %v27
  %v355 = vunpack.c.l.b16 %v28
  %v356 = vunpack.c.l.b16 %v29
  %v357 = vunpack.c.l.b16 %v30
  %v358 = vunpack.c.l.b16 %v31
  %v359 = vunpack.c.l.b16 %v32
  %v360 = vunpack.c.l.b16 %v33
  %v361 = vunpack.c.l.b16 %v34
  %v362 = vunpack.c.l.b16 %v35
  %v363 = vunpack.c.l.b16 %v36
  %v364 = vunpack.c.l.b16 %v37
  %v365 = vunpack.c.l.b16 %v38
  %v366 = vunpack.c.l.b16 %v39
  %v367 = vunpack.c.l.b16 %v40
  %v368 = vunpack.c.l.b16 %v41
  %v369 = vunpack.c.l.b16 %v42
  %v370 = vunpack.c.l.b16 %v43
  %v371 = vunpack.c.l.b16 %v44
  %v372 = vunpack.c.l.b16 %v45
  %v373 = vunpack.c.l.b16 %v46
  %v374 = vunpack.c.l.b16 %v47
  %v375 = vunpack.c.l.b16 %v48
  %v376 = vunpack.c.l.b16 %v49
  %v377 = vunpack.c.l.b16 %v50
  %v378 = vunpack.c.l.b16 %v51
  %v379 = vunpack.c.l.b16 %v52
  %v380 = vunpack.c.l.b16 %v53
  %v381 = vunpack.c.l.b16 %v54
  %v382 = vunpack.c.l.b16 %v55
  %v383 = vunpack.c.l.b16 %v56
  %v384 = vunpack.c.l.b16 %v57
  %v385 = vunpack.c.l.b16 %v58
  %v386 = vunpack.c.l.b16 %v59
  %v387 = vunpack.c.l.b16 %v60
  %v388 = vunpack.c.l.b16 %v61
  %v389 = vunpack.c.l.b16 %v62
  %v390 = vunpack.c.l.b16 %v63
  %v391 = vunpack.c.l.b16 %v64
  %v392 = vunpack.c.l.b16 %v65
  %v393 = vunpack.c.l.b16 %v66
  %v394 = vunpack.c.l.b16 %v67
  %v395 = vunpack.c.l.b16 %v68
  %v396 = vunpack.c.l.b16 %v69
  %v397 = vunpack.c.l.b16 %v70
  %v398 = vunpack.c.l.b16 %v71
  %v399 = vunpack.c.l.b16 %v72
  %v400 = vunpack.c.l.b16 %v73
  %v401 = vunpack.c.l.b16 %v74
  %v402 = vunpack.c.l.b16 %v75
  %v403 = vunpack.c.l.b16 %v76
  %v404 = vunpack.c.l.b16 %v77
  %v405 = vunpack.c.l.b16 %v78
  %v406 = vunpack.c.l.b16 %v79
  %v407 = vunpack.c.l.b16 %v80
  %v408 = vunpack.c.l.b16 %v81
  %v409 = vunpack.c.l.b16 %v82
  %v410 = vunpack.c.l.b16 %v83
  %v411 = vunpack.c.l.b16 %v84
  %v412 = vunpack.c.l.b16 %v85
  %v413 = vunpack.c.l.b16 %v86
  %v414 = vunpack.c.l.b16 %v87
  %v415 = vunpack.c.l.b16 %v88
  %v416 = vunpack.c.l.b16 %v89
  %v417 = vunpack.c.l.b16 %v90
  %v418 = vunpack.c.l.b16 %v91
  %v419 = vunpack.c.l.b16 %v92
  %v420 = vunpack.c.l.b16 %v93
  %v421 = vunpack.c.l.b16 %v94
  %v422 = vunpack.c.l.b16 %v95
  %v423 = vunpack.c.l.b16 %v96
  %v424 = vunpack.c.l.b16 %v97
  %v425 = vunpack.c.l.b16 %v98
  %v426 = vunpack.c.l.b16 %v99
  %v427 = vunpack.c.l.b16 %v100
  %v428 = vunpack.c.l.b16 %v101
  %v429 = vunpack.c.l.b16 %v102
  %v430 = vunpack.c.l.b16 %v103
  %v431 = vunpack.c.l.b16 %v104
  %v432 = vunpack.c.l.b16 %v105
  %v433 = vunpack.c.l.b16 %v106
  %v434 = vunpack.c.l.b16 %v107
  %v435 = vunpack.c.l.b16 %v108
  %v436 = vunpack.c.l.b16 %v109
  %v437 = vunpack.c.l.b16 %v110
  %v438 = vunpack.c.l.b16 %v111
  %v439 = vunpack.c.l.b16 %v112
  %v440 = vunpack.c.l.b16 %v113
  %v441 = vunpack.c.l.b16 %v114
  %v442 = vunpack.c.l.b16 %v115
  %v443 = vunpack.c.l.b16 %v116
  %v444 = vunpack.c.l.b16 %v117
  %v445 = vunpack.c.l.b16 %v118
  %v446 = vunpack.c.l.b16 %v119
  %v447 = vunpack.c.l.b16 %v120
  %v448 = vunpack.c.l.b16 %v121
  %v449 = vunpack.c.l.b16 %v122
  %v450 = vunpack.c.l.b16 %v123
  %v451 = vunpack.c.l.b16 %v124
  %v452 = vunpack.c.l.b16 %v125
  %v453 = vunpack.c.l.b16 %v126
  %v454 = vunpack.c.l.b16 %v127
  %v455 = vunpack.c.l.b16 %v128
  %v456 = vunpack.c.l.b16 %v129
  %v457 = vunpack.c.l.b16 %v130
  %v458 = vunpack.c.l.b16 %v131
  %v459 = vunpack.c.l.b16 %v132
  %v460 = vunpack.c.l.b16 %v133
  %v461 = vunpack.c.l.b16 %v134
  %v462 = vunpack.c.l.b16 %v135
  %v463 = vunpack.c.l.b16 %v136
  %v464 = vunpack.c.l.b16 %v137
  %v465 = vunpack.c.l.b16 %v138
  %v466 = vunpack.c.l.b16 %v139
  %v467 = vunpack.c.l.b16 %v140
  %v468 = vunpack.c.l.b16 %v141
  %v469 = vunpack.c.l.b16 %v142
  %v470 = vunpack.c.l.b16 %v143
  %v471 = vunpack.c.l.b16 %v144
  %v472 = vunpack.c.l.b16 %v145
  %v473 = vunpack.c.l.b16 %v146
  %v474 = vunpack.c.l.b16 %v147
  %v475 = vunpack.c.l.b16 %v148
  %v476 = vunpack.c.l.b16 %v149
  %v477 = vunpack.c.l.b16 %v150
  %v478 = vunpack.c.l.b16 %v151
  %v479 = vunpack.c.l.b16 %v152
  %v480 = vunpack.c.l.b16 %v153
  %v481 = vunpack.c.l.b16 %v154
  %v482 = vunpack.c.l.b16 %v155
  %v483 = vunpack.c.l.b16 %v156
  %v484 = vunpack.c.l.b16 %v157
  %v485 = vunpack.c.l.b16 %v158
  %v486 = vunpack.c.l.b16 %v159
  %v487 = vunpack.c.l.b16 %v160
  %v488 = vunpack.c.l.b16 %v161
  %v489 = vunpack.c.l.b16 %v162
  %v490 = vunpack.c.l.b16 %v163
  %v491 = vunpack.c.l.b16 %v164
  %v492 = vunpack.c.l.b16 %v165
  %v493 = vunpack.c.l.b16 %v166
  %v494 = vpack.c.b16 %v351, %v350
  %v495 = vpack.c.b16 %v353, %v352
  %v496 = vpack.c.b16 %v355, %v354
  %v497 = vpack.c.b16 %v357, %v356
  %v498 = vpack.c.b16 %v359, %v358
  %v499 = vpack.c.b16 %v361, %v360
  %v500 = vpack.c.b16 %v363, %v362
  %v501 = vpack.c.b16 %v365, %v364
  %v502 = vpack.c.b16 %v367, %v366
  %v503 = vpack.c.b16 %v369, %v368
  %v504 = vpack.c.b16 %v371, %v370
  %v505 = vpack.c.b16 %v373, %v372
  %v506 = vpack.c.b16 %v375, %v374
  %v507 = vpack.c.b16 %v377, %v376
  %v508 = vpack.c.b16 %v379, %v378
  %v509 = vpack.c.b16 %v381, %v380
  %v510 = vpack.c.b16 %v383, %v382
  %v511 = vpack.c.b16 %v385, %v384
  %v512 = vpack.c.b16 %v387, %v386
  %v513 = vpack.c.b16 %v389, %v388
  %v514 = vpack.c.b16 %v391, %v390
  %v515 = vpack.c.b16 %v393, %v392
  %v516 = vpack.c.b16 %v395, %v394
  %v517 = vpack.c.b16 %v397, %v396
  %v518 = vpack.c.b16 %v399, %v398
  %v519 = vpack.c.b16 %v401, %v400
  %v520 = vpack.c.b16 %v403, %v402
  %v521 = vpack.c.b16 %v405, %v404
  %v522 = vpack.c.b16 %v407, %v406
  %v523 = vpack.c.b16 %v409, %v408
  %v524 = vpack.c.b16 %v411, %v410
  %v525 = vpack.c.b16 %v413, %v412
  %v526 = vpack.c.b16 %v415, %v414
  %v527 = vpack.c.b16 %v417, %v416
  %v528 = vpack.c.b16 %v419, %v418
  %v529 = vpack.c.b16 %v421, %v420
  %v530 = vpack.c.b16 %v423, %v422
  %v531 = vpack.c.b16 %v425, %v424
  %v532 = vpack.c.b16 %v427, %v426
  %v533 = vpack.c.b16 %v429, %v428
  %v534 = vpack.c.b16 %v431, %v430
  %v535 = vpack.c.b16 %v433, %v432
  %v536 = vpack.c.b16 %v435, %v434
  %v537 = vpack.c.b16 %v437, %v436
  %v538 = vpack.c.b16 %v439, %v438
  %v539 = vpack.c.b16 %v441, %v440
  %v540 = vpack.c.b16 %v443, %v442
  %v541 = vpack.c.b16 %v445, %v444
  %v542 = vpack.c.b16 %v447, %v446
  %v543 = vpack.c.b16 %v449, %v448
  %v544 = vpack.c.b16 %v451, %v450
  %v545 = vpack.c.b16 %v453, %v452
  %v546 = vpack.c.b16 %v455, %v454
  %v547 = vpack.c.b16 %v457, %v456
  %v548 = vpack.c.b16 %v459, %v458
  %v549 = vpack.c.b16 %v461, %v460
  %v550 = vpack.c.b16 %v463, %v462
  %v551 = vpack.c.b16 %v465, %v464
  %v552 = vpack.c.b16 %v467, %v466
  %v553 = vpack.c.b16 %v469, %v468
  %v554 = vpack.c.b16 %v471, %v470
  %v555 = vpack.c.b16 %v473, %v472
  %v556 = vpack.c.b16 %v475, %v474
  %v557 = vpack.c.b16 %v477, %v476
  %v558 = vpack.c.b16 %v479, %v478
  %v559 = vpack.c.b16 %v481, %v480
  %v560 = vpack.c.b16 %v483, %v482
  %v561 = vpack.c.b16 %v485, %v484
  %v562 = vpack.c.b16 %v487, %v486
  %v563 = vpack.c.b16 %v489, %v488
  %v564 = vpack.c.b16 %v491, %v490
  %v565 = vpack.c.b16 %v493, %v492
  %638 = vmatprep.subr.bf16.mxu0 0
  %639 = vmatpush1.bf16.msra.mxu0 %v494
  %640 = vmatprep.subr.bf16.mxu0 0
  %641 = vmatpush1.bf16.msra.mxu0 %v495
  %642 = vmatprep.subr.bf16.mxu0 0
  %643 = vmatpush1.bf16.msra.mxu0 %v496
  %644 = vmatprep.subr.bf16.mxu0 0
  %645 = vmatpush1.bf16.msra.mxu0 %v497
  %646 = vmatprep.subr.bf16.mxu0 0
  %647 = vmatpush1.bf16.msra.mxu0 %v498
  %648 = vmatprep.subr.bf16.mxu0 0
  %649 = vmatpush1.bf16.msra.mxu0 %v499
  %650 = vmatprep.subr.bf16.mxu0 0
  %651 = vmatpush1.bf16.msra.mxu0 %v500
  %652 = vmatprep.subr.bf16.mxu0 0
  %653 = vmatpush1.bf16.msra.mxu0 %v501
  %654 = vmatprep.subr.bf16.mxu0 0
  %655 = vmatpush1.bf16.msra.mxu0 %v502
  %656 = vmatprep.subr.bf16.mxu0 0
  %657 = vmatpush1.bf16.msra.mxu0 %v503
  %658 = vmatprep.subr.bf16.mxu0 0
  %659 = vmatpush1.bf16.msra.mxu0 %v504
  %660 = vmatprep.subr.bf16.mxu0 0
  %661 = vmatpush1.bf16.msra.mxu0 %v505
  %662 = vmatprep.subr.bf16.mxu0 0
  %663 = vmatpush1.bf16.msra.mxu0 %v506
  %664 = vmatprep.subr.bf16.mxu0 0
  %665 = vmatpush1.bf16.msra.mxu0 %v507
  %666 = vmatprep.subr.bf16.mxu0 0
  %667 = vmatpush1.bf16.msra.mxu0 %v508
  %668 = vmatprep.subr.bf16.mxu0 0
  %669 = vmatpush1.bf16.msra.mxu0 %v509
  %670 = vmatprep.mubr.bf16.mxu0 %v189
  %671 = vmatmul.mubr.bf16.gmra.mrb[0].mxu0 %v188
  %v672 = vpop.f32.mrb[0].mxu0
  %v673 = vadd.f32 %v172, %v672
  %v674 = vpop.f32.mrb[0].mxu0
  %v675 = vpop.f32.mrb[0].mxu0
  %v676 = vpop.f32.mrb[0].mxu0
  %677 = vdwg.mxu0
  %678 = vmatprep.subr.bf16.mxu0 0
  %679 = vmatpush1.bf16.msra.mxu0 %v510
  %680 = vmatprep.subr.bf16.mxu0 0
  %681 = vmatpush1.bf16.msra.mxu0 %v511
  %682 = vmatprep.subr.bf16.mxu0 0
  %683 = vmatpush1.bf16.msra.mxu0 %v512
  %684 = vmatprep.subr.bf16.mxu0 0
  %685 = vmatpush1.bf16.msra.mxu0 %v513
  %686 = vmatprep.subr.bf16.mxu0 0
  %687 = vmatpush1.bf16.msra.mxu0 %v514
  %688 = vmatprep.subr.bf16.mxu0 0
  %689 = vmatpush1.bf16.msra.mxu0 %v515
  %690 = vmatprep.subr.bf16.mxu0 0
  %691 = vmatpush1.bf16.msra.mxu0 %v516
  %692 = vmatprep.subr.bf16.mxu0 0
  %693 = vmatpush1.bf16.msra.mxu0 %v517
  %694 = vmatprep.subr.bf16.mxu0 0
  %695 = vmatpush1.bf16.msra.mxu0 %v518
  %696 = vmatprep.subr.bf16.mxu0 0
  %697 = vmatpush1.bf16.msra.mxu0 %v519
  %698 = vmatprep.subr.bf16.mxu0 0
  %699 = vmatpush1.bf16.msra.mxu0 %v520
  %700 = vmatprep.subr.bf16.mxu0 0
  %701 = vmatpush1.bf16.msra.mxu0 %v521
  %702 = vmatprep.subr.bf16.mxu0 0
  %703 = vmatpush1.bf16.msra.mxu0 %v522
  %704 = vmatprep.subr.bf16.mxu0 0
  %705 = vmatpush1.bf16.msra.mxu0 %v523
  %706 = vmatprep.subr.bf16.mxu0 0
  %707 = vmatpush1.bf16.msra.mxu0 %v524
  %708 = vmatprep.subr.bf16.mxu0 0
  %709 = vmatpush1.bf16.msra.mxu0 %v525
  %710 = vmatprep.mubr.bf16.mxu0 %v191
  %711 = vmatmul.mubr.bf16.gmra.mrb[0].mxu0 %v190
  %v712 = vpop.f32.mrb[0].mxu0
  %v713 = vadd.f32 %v673, %v712
  %v714 = vpop.f32.mrb[0].mxu0
  %v715 = vpop.f32.mrb[0].mxu0
  %v716 = vpop.f32.mrb[0].mxu0
  %717 = vdwg.mxu0
  %718 = vmatprep.subr.bf16.mxu0 0
  %719 = vmatpush1.bf16.msra.mxu0 %v526
  %720 = vmatprep.subr.bf16.mxu0 0
  %721 = vmatpush1.bf16.msra.mxu0 %v527
  %722 = vmatprep.subr.bf16.mxu0 0
  %723 = vmatpush1.bf16.msra.mxu0 %v528
  %724 = vmatprep.subr.bf16.mxu0 0
  %725 = vmatpush1.bf16.msra.mxu0 %v529
  %726 = vmatprep.subr.bf16.mxu0 0
  %727 = vmatpush1.bf16.msra.mxu0 %v530
  %728 = vmatprep.subr.bf16.mxu0 0
  %729 = vmatpush1.bf16.msra.mxu0 %v531
  %730 = vmatprep.subr.bf16.mxu0 0
  %731 = vmatpush1.bf16.msra.mxu0 %v532
  %732 = vmatprep.subr.bf16.mxu0 0
  %733 = vmatpush1.bf16.msra.mxu0 %v533
  %734 = vmatprep.subr.bf16.mxu0 0
  %735 = vmatpush1.bf16.msra.mxu0 %v534
  %736 = vmatprep.subr.bf16.mxu0 0
  %737 = vmatpush1.bf16.msra.mxu0 %v535
  %738 = vmatprep.subr.bf16.mxu0 0
  %739 = vmatpush1.bf16.msra.mxu0 %v536
  %740 = vmatprep.subr.bf16.mxu0 0
  %741 = vmatpush1.bf16.msra.mxu0 %v537
  %742 = vmatprep.subr.bf16.mxu0 0
  %743 = vmatpush1.bf16.msra.mxu0 %v538
  %744 = vmatprep.subr.bf16.mxu0 0
  %745 = vmatpush1.bf16.msra.mxu0 %v539
  %746 = vmatprep.subr.bf16.mxu0 0
  %747 = vmatpush1.bf16.msra.mxu0 %v540
  %748 = vmatprep.subr.bf16.mxu0 0
  %749 = vmatpush1.bf16.msra.mxu0 %v541
  %750 = vmatprep.mubr.bf16.mxu0 %v193
  %751 = vmatmul.mubr.bf16.gmra.mrb[0].mxu0 %v192
  %v752 = vpop.f32.mrb[0].mxu0
  %v753 = vadd.f32 %v713, %v752
  %v754 = vpop.f32.mrb[0].mxu0
  %v755 = vpop.f32.mrb[0].mxu0
  %v756 = vpop.f32.mrb[0].mxu0
  %757 = vdwg.mxu0
  %758 = vmatprep.subr.bf16.mxu0 0
  %759 = vmatpush1.bf16.msra.mxu0 %v542
  %760 = vmatprep.subr.bf16.mxu0 0
  %761 = vmatpush1.bf16.msra.mxu0 %v543
  %762 = vmatprep.subr.bf16.mxu0 0
  %763 = vmatpush1.bf16.msra.mxu0 %v544
  %764 = vmatprep.subr.bf16.mxu0 0
  %765 = vmatpush1.bf16.msra.mxu0 %v545
  %766 = vmatprep.subr.bf16.mxu0 0
  %767 = vmatpush1.bf16.msra.mxu0 %v546
  %768 = vmatprep.subr.bf16.mxu0 0
  %769 = vmatpush1.bf16.msra.mxu0 %v547
  %770 = vmatprep.subr.bf16.mxu0 0
  %771 = vmatpush1.bf16.msra.mxu0 %v548
  %772 = vmatprep.subr.bf16.mxu0 0
  %773 = vmatpush1.bf16.msra.mxu0 %v549
  %774 = vmatprep.subr.bf16.mxu0 0
  %775 = vmatpush1.bf16.msra.mxu0 %v550
  %776 = vmatprep.subr.bf16.mxu0 0
  %777 = vmatpush1.bf16.msra.mxu0 %v551
  %778 = vmatprep.subr.bf16.mxu0 0
  %779 = vmatpush1.bf16.msra.mxu0 %v552
  %780 = vmatprep.subr.bf16.mxu0 0
  %781 = vmatpush1.bf16.msra.mxu0 %v553
  %782 = vmatprep.subr.bf16.mxu0 0
  %783 = vmatpush1.bf16.msra.mxu0 %v554
  %784 = vmatprep.subr.bf16.mxu0 0
  %785 = vmatpush1.bf16.msra.mxu0 %v555
  %786 = vmatprep.subr.bf16.mxu0 0
  %787 = vmatpush1.bf16.msra.mxu0 %v556
  %788 = vmatprep.subr.bf16.mxu0 0
  %789 = vmatpush1.bf16.msra.mxu0 %v557
  %790 = vmatprep.mubr.bf16.mxu0 %v195
  %791 = vmatmul.mubr.bf16.gmra.mrb[0].mxu0 %v194
  %v792 = vpop.f32.mrb[0].mxu0
  %v793 = vadd.f32 %v753, %v792
  %v794 = vpop.f32.mrb[0].mxu0
  %v795 = vpop.f32.mrb[0].mxu0
  %v796 = vpop.f32.mrb[0].mxu0
  %797 = vdwg.mxu0
  %798 = vmatprep.subr.bf16.mxu0 0
  %799 = vmatpush1.bf16.msra.mxu0 %v558
  %800 = vmatprep.subr.bf16.mxu0 0
  %801 = vmatpush1.bf16.msra.mxu0 %v559
  %802 = vmatprep.subr.bf16.mxu0 0
  %803 = vmatpush1.bf16.msra.mxu0 %v560
  %804 = vmatprep.subr.bf16.mxu0 0
  %805 = vmatpush1.bf16.msra.mxu0 %v561
  %806 = vmatprep.subr.bf16.mxu0 0
  %807 = vmatpush1.bf16.msra.mxu0 %v562
  %808 = vmatprep.subr.bf16.mxu0 0
  %809 = vmatpush1.bf16.msra.mxu0 %v563
  %810 = vmatprep.subr.bf16.mxu0 0
  %811 = vmatpush1.bf16.msra.mxu0 %v564
  %812 = vmatprep.subr.bf16.mxu0 0
  %813 = vmatpush1.bf16.msra.mxu0 %v565
  %814 = vmatprep.subr.bf16.mxu0 0
  %815 = vmatpush1.bf16.msra.mxu0 0
  %816 = vmatprep.subr.bf16.mxu0 0
  %817 = vmatpush1.bf16.msra.mxu0 0
  %818 = vmatprep.subr.bf16.mxu0 0
  %819 = vmatpush1.bf16.msra.mxu0 0
  %820 = vmatprep.subr.bf16.mxu0 0
  %821 = vmatpush1.bf16.msra.mxu0 0
  %822 = vmatprep.subr.bf16.mxu0 0
  %823 = vmatpush1.bf16.msra.mxu0 0
  %824 = vmatprep.subr.bf16.mxu0 0
  %825 = vmatpush1.bf16.msra.mxu0 0
  %826 = vmatprep.subr.bf16.mxu0 0
  %827 = vmatpush1.bf16.msra.mxu0 0
  %828 = vmatprep.subr.bf16.mxu0 0
  %829 = vmatpush1.bf16.msra.mxu0 0
  %830 = vmatprep.mubr.bf16.mxu0 0
  %831 = vmatmul.mubr.bf16.gmra.mrb[0].mxu0 %v196
  %v832 = vpop.f32.mrb[0].mxu0
  %v833 = vadd.f32 %v793, %v832
  %v834 = vpop.f32.mrb[0].mxu0
  %v835 = vpop.f32.mrb[0].mxu0
  %v836 = vpop.f32.mrb[0].mxu0
  %837 = vdwg.mxu0
  %v838 = vld [vmem:[%s3] sm:$0xf]
  %v839 = vunpack.c.l.bf16 %v838
  %v840 = vadd.f32 %v833, %v839
  %v841 = vmax.f32 %v840, 0.0
  %v842 = vpack.c.bf16 %v841, %v841
  %843 = vst [vmem:[%s4] sm:$0xf] %v842
  // Predicated region
  $region18: #{_lambda_.34} parent=0 // pred_check
    _
  $region19: #{_lambda_.34} parent=0 // pred_check_branch
    %845 = sbr.rel (0) target = $region21
  $region20: #{_lambda_.34} parent=0 // pred_region
    _
  $region21: #{_lambda_.34} parent=0 // pred_fallthru
    _
  // Predicated region
  $region22: #{_lambda_.34} parent=0 // pred_check
    _
  $region23: #{_lambda_.34} parent=0 // pred_check_branch
    %847 = sbr.rel (0) target = $region25
  $region24: #{_lambda_.34} parent=0 // pred_region
    _
  $region25: #{_lambda_.34} parent=0 // pred_fallthru
    _

</llo_original>
